<compile_context>
chip_gen: v6e
topology: v6e:2x2x1
jax: 0.10.0
libtpu: 0.0.40
codegen_flags: <defaults>
</compile_context>

<pallas_src>
import jax
import jax.numpy as jnp
from jax.experimental import pallas as pl
from jax.experimental.pallas import tpu as pltpu

LATENT_DIM = 8
IN_DIM = 784
HID = 400
HID_PAD = 512            # 400 -> 512: lane-dense hidden activations
LANE = 128               # latent padded to one full 128-lane block
HEAD_PAD = 2 * LANE      # fused mu|logvar head, split at the 128-lane boundary
RECON_PAD = 896          # 7 * 128 -> lane-dense recon store
DEFAULT_TB = 512         # max batch rows per grid step


def _vae_kernel(
    x_ref, eps_ref,
    w1_ref, b1_ref, w2_ref, b2_ref, w3_ref, b3_ref,
    wh_ref, bh_ref,                       # fused mu|logvar head (f32)
    wd1_ref, bd1_ref, wd2_ref, bd2_ref, wd3_ref, bd3_ref,
    recon_ref, head_ref,
):
    relu = lambda v: jnp.maximum(v, 0.0)

    def dense_bf16(a_f32, w_ref, b_ref):
        # bf16 MXU operands, f32 accumulation, f32 epilogue.
        y = jnp.dot(a_f32.astype(jnp.bfloat16), w_ref[...],
                    preferred_element_type=jnp.float32)
        return y + b_ref[...]

    # ---- encoder MLP (x arrives already bf16; lane-dense 512-wide hidden)
    x = x_ref[...]                                        # (TB, 784) bf16
    h = relu(jnp.dot(x, w1_ref[...],
                     preferred_element_type=jnp.float32) + b1_ref[...])
    h = relu(dense_bf16(h, w2_ref, b2_ref))
    h = relu(dense_bf16(h, w3_ref, b3_ref))

    # ---- fused latent heads: one (512, 256) f32 matmul, lane-aligned split.
    #      Kept in f32 so logvar isn't bf16-quantized before exp().
    head = jnp.dot(h, wh_ref[...],
                   preferred_element_type=jnp.float32) + bh_ref[...]
    head_ref[...] = head                                  # (TB, 256) f32

    mu = head[:, :LANE]                                   # lanes 0..127
    logvar = head[:, LANE:]                               # lanes 128..255

    # ---- reparameterize (f32); padded lanes: mu=0, logvar=0, eps=0 -> z=0
    z = mu + eps_ref[...] * jnp.exp(0.5 * logvar)         # (TB, 128) f32

    # ---- decoder MLP (last layer zero-padded to 896 output lanes)
    d = relu(dense_bf16(z, wd1_ref, bd1_ref))
    d = relu(dense_bf16(d, wd2_ref, bd2_ref))
    logits = dense_bf16(d, wd3_ref, bd3_ref)              # (TB, 896) f32

    # sigmoid(x) == 0.5 * tanh(0.5 * x) + 0.5  -> single EUP push per vreg
    recon = 0.5 * jnp.tanh(0.5 * logits) + 0.5
    recon_ref[...] = recon.astype(recon_ref.dtype)        # bf16 store


def init_vae_params(key, latent_dim=LATENT_DIM):
    """Deterministic synthetic parameters. Weights stored as (in, out)."""
    shapes = [
        ("w1", (IN_DIM, HID)), ("b1", (1, HID)),
        ("w2", (HID, HID)), ("b2", (1, HID)),
        ("w3", (HID, HID)), ("b3", (1, HID)),
        ("w21", (HID, latent_dim)), ("b21", (1, latent_dim)),
        ("w22", (HID, latent_dim)), ("b22", (1, latent_dim)),
        ("wd1", (latent_dim, HID)), ("bd1", (1, HID)),
        ("wd2", (HID, HID)), ("bd2", (1, HID)),
        ("wd3", (HID, IN_DIM)), ("bd3", (1, IN_DIM)),
    ]
    keys = jax.random.split(key, len(shapes))
    params = {}
    for (name, shp), k in zip(shapes, keys):
        params[name] = jax.random.normal(k, shp, dtype=jnp.float32) * 0.05
    return params


def _resident_spec(arr):
    """Full-array block, constant index_map, single-buffered (index never
    changes, so double-buffering the weights would only burn VMEM)."""
    ndim = arr.ndim
    return pl.BlockSpec(arr.shape, lambda i, _n=ndim: (0,) * _n,
                        pipeline_mode=pl.Buffered(1))


def _pad2(a, rows, cols, dtype):
    r, c = a.shape
    return jnp.pad(a, ((0, rows - r), (0, cols - c))).astype(dtype)


def _choose_tiling(B, block_batch):
    """Tile count >= 2 and even (megacore balance on v7x), tile size a
    multiple of 8 and <= block_batch, with minimal batch padding."""
    n_tiles = max(2, pl.cdiv(B, block_batch))
    if n_tiles % 2:
        n_tiles += 1
    tb = -(-B // n_tiles)          # ceil(B / n_tiles)
    tb = max(8, -(-tb // 8) * 8)   # round up to multiple of 8
    return tb, n_tiles, n_tiles * tb


def vae_forward(x_nchw, eps, params, *, block_batch=DEFAULT_TB):
    """x_nchw: (B, 1, 28, 28) f32; eps: (B, latent_dim) f32.
    Returns (recon (B,784), mu (B,L), logvar (B,L))."""
    B = x_nchw.shape[0]
    L = eps.shape[1]

    tb, n_tiles, B_pad = _choose_tiling(B, block_batch)

    f32, bf16 = jnp.float32, jnp.bfloat16

    # ---- inputs: bf16 x stream (halves the dominant input DMA), lane-padded eps
    x = x_nchw.reshape(B, IN_DIM)                          # torch: x.view(-1, 784)
    x = jnp.pad(x, ((0, B_pad - B), (0, 0))).astype(bf16)
    eps_p = jnp.zeros((B_pad, LANE), f32).at[:B, :L].set(eps.astype(f32))

    # ---- weights: zero-pad the 400-sized dims to 512, bf16 except the tiny head
    w1 = _pad2(params["w1"], IN_DIM, HID_PAD, bf16)
    b1 = _pad2(params["b1"], 1, HID_PAD, f32)
    w2 = _pad2(params["w2"], HID_PAD, HID_PAD, bf16)
    b2 = _pad2(params["b2"], 1, HID_PAD, f32)
    w3 = _pad2(params["w3"], HID_PAD, HID_PAD, bf16)
    b3 = _pad2(params["b3"], 1, HID_PAD, f32)

    # fused head: mu in lanes [0, L), logvar in lanes [128, 128+L); f32
    wh = jnp.zeros((HID_PAD, HEAD_PAD), f32)
    wh = wh.at[:HID, :L].set(params["w21"])
    wh = wh.at[:HID, LANE:LANE + L].set(params["w22"])
    bh = jnp.zeros((1, HEAD_PAD), f32)
    bh = bh.at[:, :L].set(params["b21"])
    bh = bh.at[:, LANE:LANE + L].set(params["b22"])

    wd1 = _pad2(params["wd1"], LANE, HID_PAD, bf16)        # (128, 512)
    bd1 = _pad2(params["bd1"], 1, HID_PAD, f32)
    wd2 = _pad2(params["wd2"], HID_PAD, HID_PAD, bf16)
    bd2 = _pad2(params["bd2"], 1, HID_PAD, f32)
    wd3 = _pad2(params["wd3"], HID_PAD, RECON_PAD, bf16)   # (512, 896)
    bd3 = _pad2(params["bd3"], 1, RECON_PAD, f32)

    weights = [w1, b1, w2, b2, w3, b3, wh, bh,
               wd1, bd1, wd2, bd2, wd3, bd3]
    args = [x, eps_p] + weights

    in_specs = (
        [pl.BlockSpec((tb, IN_DIM), lambda i: (i, 0)),     # x: batch-tiled bf16
         pl.BlockSpec((tb, LANE), lambda i: (i, 0))]       # eps: batch-tiled
        + [_resident_spec(w) for w in weights]             # weights: resident
    )
    out_specs = (
        pl.BlockSpec((tb, RECON_PAD), lambda i: (i, 0)),   # recon, lane-dense bf16
        pl.BlockSpec((tb, HEAD_PAD), lambda i: (i, 0)),    # mu|logvar, lane-dense
    )
    out_shape = (
        jax.ShapeDtypeStruct((B_pad, RECON_PAD), bf16),
        jax.ShapeDtypeStruct((B_pad, HEAD_PAD), f32),
    )

    # Advisory cost estimate so XLA can schedule neighbouring ops around us.
    flops = 2 * B_pad * (
        IN_DIM * HID_PAD + 2 * HID_PAD * HID_PAD           # encoder
        + HID_PAD * HEAD_PAD                               # fused heads
        + LANE * HID_PAD + HID_PAD * HID_PAD               # decoder hidden
        + HID_PAD * RECON_PAD                              # decoder out
    )
    transcendentals = B_pad * (RECON_PAD + LANE)           # tanh + exp
    bytes_accessed = (
        x.size * 2 + eps_p.size * 4
        + sum(int(w.size) * w.dtype.itemsize for w in weights)
        + B_pad * RECON_PAD * 2 + B_pad * HEAD_PAD * 4
    )

    recon_pad, head = pl.pallas_call(
        _vae_kernel,
        out_shape=out_shape,
        grid=(n_tiles,),
        in_specs=in_specs,
        out_specs=out_specs,
        compiler_params=pltpu.CompilerParams(
            dimension_semantics=("parallel",),             # megacore-shard batch
            vmem_limit_bytes=32 << 20,                     # ~14 MiB needed; v7x-safe
        ),
        cost_estimate=pl.CostEstimate(
            flops=int(flops),
            transcendentals=int(transcendentals),
            bytes_accessed=int(bytes_accessed),
        ),
    )(*args)

    recon = recon_pad[:B, :IN_DIM].astype(f32)
    mu = head[:B, :L]
    logvar = head[:B, LANE:LANE + L]
    return recon, mu, logvar


def vae_forward_ref(x_nchw, eps, params):
    """Pure-JAX f32 reference for validation."""
    x = x_nchw.reshape(-1, IN_DIM)
    relu = lambda v: jnp.maximum(v, 0.0)
    h = relu(x @ params["w1"] + params["b1"])
    h = relu(h @ params["w2"] + params["b2"])
    h = relu(h @ params["w3"] + params["b3"])
    mu = h @ params["w21"] + params["b21"]
    logvar = h @ params["w22"] + params["b22"]
    z = mu + eps * jnp.exp(0.5 * logvar)
    d = relu(z @ params["wd1"] + params["bd1"])
    d = relu(d @ params["wd2"] + params["bd2"])
    recon = jax.nn.sigmoid(d @ params["wd3"] + params["bd3"])
    return recon, mu, logvar


if __name__ == "__main__":
    key = jax.random.PRNGKey(0)
    k_params, k_x, k_eps = jax.random.split(key, 3)

    B = 2
    params = init_vae_params(k_params, LATENT_DIM)
    x = jax.random.uniform(k_x, (B, 1, 28, 28), dtype=jnp.float32)      # MNIST-like NCHW
    eps = jax.random.normal(k_eps, (B, LATENT_DIM), dtype=jnp.float32)  # torch.randn_like

    recon, mu, logvar = vae_forward(x, eps, params)
    jax.block_until_ready((recon, mu, logvar))

    recon_r, mu_r, logvar_r = vae_forward_ref(x, eps, params)
    assert recon.shape == (B, IN_DIM)
    assert mu.shape == (B, LATENT_DIM) and logvar.shape == (B, LATENT_DIM)
    # bf16 MXU operands / bf16 recon store vs f32 reference -> loosened tolerances.
    assert jnp.allclose(recon, recon_r, atol=2e-2, rtol=2e-2)
    assert jnp.allclose(mu, mu_r, atol=2e-2, rtol=2e-2)
    assert jnp.allclose(logvar, logvar_r, atol=2e-2, rtol=2e-2)

    print("KERNEL_OK")
</pallas_src>

<mosaic_0001>
module attributes {stable_mosaic.version = 11 : i64} {
  func.func @_vae_kernel(%arg0: i32, %arg1: memref<8x784xbf16, #tpu.memory_space<vmem>>, %arg2: memref<8x128xf32, #tpu.memory_space<vmem>>, %arg3: memref<784x512xbf16, #tpu.memory_space<vmem>>, %arg4: memref<1x512xf32, #tpu.memory_space<vmem>>, %arg5: memref<512x512xbf16, #tpu.memory_space<vmem>>, %arg6: memref<1x512xf32, #tpu.memory_space<vmem>>, %arg7: memref<512x512xbf16, #tpu.memory_space<vmem>>, %arg8: memref<1x512xf32, #tpu.memory_space<vmem>>, %arg9: memref<512x256xf32, #tpu.memory_space<vmem>>, %arg10: memref<1x256xf32, #tpu.memory_space<vmem>>, %arg11: memref<128x512xbf16, #tpu.memory_space<vmem>>, %arg12: memref<1x512xf32, #tpu.memory_space<vmem>>, %arg13: memref<512x512xbf16, #tpu.memory_space<vmem>>, %arg14: memref<1x512xf32, #tpu.memory_space<vmem>>, %arg15: memref<512x896xbf16, #tpu.memory_space<vmem>>, %arg16: memref<1x896xf32, #tpu.memory_space<vmem>>, %arg17: memref<8x896xbf16, #tpu.memory_space<vmem>>, %arg18: memref<8x256xf32, #tpu.memory_space<vmem>>) attributes {dimension_semantics = [#tpu.dimension_semantics<parallel>], iteration_bounds = array<i64: 2>, scalar_prefetch = 0 : i64, scratch_operands = 0 : i64, tpu.core_type = #tpu.core_type<tc>, window_params = [{transform_indices = @transform_0, window_bounds = array<i64: 8, 784>}, {transform_indices = @transform_1, window_bounds = array<i64: 8, 128>}, {pipeline_mode = #tpu.pipeline_mode<synchronous>, transform_indices = @transform_2, window_bounds = array<i64: 784, 512>}, {pipeline_mode = #tpu.pipeline_mode<synchronous>, transform_indices = @transform_3, window_bounds = array<i64: 1, 512>}, {pipeline_mode = #tpu.pipeline_mode<synchronous>, transform_indices = @transform_4, window_bounds = array<i64: 512, 512>}, {pipeline_mode = #tpu.pipeline_mode<synchronous>, transform_indices = @transform_5, window_bounds = array<i64: 1, 512>}, {pipeline_mode = #tpu.pipeline_mode<synchronous>, transform_indices = @transform_6, window_bounds = array<i64: 512, 512>}, {pipeline_mode = #tpu.pipeline_mode<synchronous>, transform_indices = @transform_7, window_bounds = array<i64: 1, 512>}, {pipeline_mode = #tpu.pipeline_mode<synchronous>, transform_indices = @transform_8, window_bounds = array<i64: 512, 256>}, {pipeline_mode = #tpu.pipeline_mode<synchronous>, transform_indices = @transform_9, window_bounds = array<i64: 1, 256>}, {pipeline_mode = #tpu.pipeline_mode<synchronous>, transform_indices = @transform_10, window_bounds = array<i64: 128, 512>}, {pipeline_mode = #tpu.pipeline_mode<synchronous>, transform_indices = @transform_11, window_bounds = array<i64: 1, 512>}, {pipeline_mode = #tpu.pipeline_mode<synchronous>, transform_indices = @transform_12, window_bounds = array<i64: 512, 512>}, {pipeline_mode = #tpu.pipeline_mode<synchronous>, transform_indices = @transform_13, window_bounds = array<i64: 1, 512>}, {pipeline_mode = #tpu.pipeline_mode<synchronous>, transform_indices = @transform_14, window_bounds = array<i64: 512, 896>}, {pipeline_mode = #tpu.pipeline_mode<synchronous>, transform_indices = @transform_15, window_bounds = array<i64: 1, 896>}, {transform_indices = @transform_16, window_bounds = array<i64: 8, 896>}, {transform_indices = @transform_17, window_bounds = array<i64: 8, 256>}]} {
    %c0 = arith.constant 0 : index
    %c0_0 = arith.constant 0 : index
    %0 = vector.load %arg1[%c0, %c0_0] : memref<8x784xbf16, #tpu.memory_space<vmem>>, vector<8x784xbf16>
    %c0_1 = arith.constant 0 : index
    %c0_2 = arith.constant 0 : index
    %1 = vector.load %arg3[%c0_1, %c0_2] : memref<784x512xbf16, #tpu.memory_space<vmem>>, vector<784x512xbf16>
    %cst = arith.constant dense<0.000000e+00> : vector<8x512xf32>
    %2 = tpu.matmul %0, %1, %cst {dimension_numbers = #tpu.dot_dimension_numbers<[1], [0], [0], [1], [0, 0, 1, 1], [], []>} : vector<8x784xbf16>, vector<784x512xbf16>, vector<8x512xf32> -> vector<8x512xf32>
    %c0_3 = arith.constant 0 : index
    %c0_4 = arith.constant 0 : index
    %3 = vector.load %arg4[%c0_3, %c0_4] : memref<1x512xf32, #tpu.memory_space<vmem>>, vector<1x512xf32>
    %4 = vector.broadcast %3 : vector<1x512xf32> to vector<8x512xf32>
    %5 = arith.addf %2, %4 : vector<8x512xf32>
    %cst_5 = arith.constant 0.000000e+00 : f32
    %6 = vector.broadcast %cst_5 : f32 to vector<8x512xf32>
    %7 = arith.maximumf %5, %6 : vector<8x512xf32>
    %8 = arith.truncf %7 : vector<8x512xf32> to vector<8x512xbf16>
    %c0_6 = arith.constant 0 : index
    %c0_7 = arith.constant 0 : index
    %9 = vector.load %arg5[%c0_6, %c0_7] : memref<512x512xbf16, #tpu.memory_space<vmem>>, vector<512x512xbf16>
    %cst_8 = arith.constant dense<0.000000e+00> : vector<8x512xf32>
    %10 = tpu.matmul %8, %9, %cst_8 {dimension_numbers = #tpu.dot_dimension_numbers<[1], [0], [0], [1], [0, 0, 1, 1], [], []>} : vector<8x512xbf16>, vector<512x512xbf16>, vector<8x512xf32> -> vector<8x512xf32>
    %c0_9 = arith.constant 0 : index
    %c0_10 = arith.constant 0 : index
    %11 = vector.load %arg6[%c0_9, %c0_10] : memref<1x512xf32, #tpu.memory_space<vmem>>, vector<1x512xf32>
    %12 = vector.broadcast %11 : vector<1x512xf32> to vector<8x512xf32>
    %13 = arith.addf %10, %12 : vector<8x512xf32>
    %cst_11 = arith.constant 0.000000e+00 : f32
    %14 = vector.broadcast %cst_11 : f32 to vector<8x512xf32>
    %15 = arith.maximumf %13, %14 : vector<8x512xf32>
    %16 = arith.truncf %15 : vector<8x512xf32> to vector<8x512xbf16>
    %c0_12 = arith.constant 0 : index
    %c0_13 = arith.constant 0 : index
    %17 = vector.load %arg7[%c0_12, %c0_13] : memref<512x512xbf16, #tpu.memory_space<vmem>>, vector<512x512xbf16>
    %cst_14 = arith.constant dense<0.000000e+00> : vector<8x512xf32>
    %18 = tpu.matmul %16, %17, %cst_14 {dimension_numbers = #tpu.dot_dimension_numbers<[1], [0], [0], [1], [0, 0, 1, 1], [], []>} : vector<8x512xbf16>, vector<512x512xbf16>, vector<8x512xf32> -> vector<8x512xf32>
    %c0_15 = arith.constant 0 : index
    %c0_16 = arith.constant 0 : index
    %19 = vector.load %arg8[%c0_15, %c0_16] : memref<1x512xf32, #tpu.memory_space<vmem>>, vector<1x512xf32>
    %20 = vector.broadcast %19 : vector<1x512xf32> to vector<8x512xf32>
    %21 = arith.addf %18, %20 : vector<8x512xf32>
    %cst_17 = arith.constant 0.000000e+00 : f32
    %22 = vector.broadcast %cst_17 : f32 to vector<8x512xf32>
    %23 = arith.maximumf %21, %22 : vector<8x512xf32>
    %c0_18 = arith.constant 0 : index
    %c0_19 = arith.constant 0 : index
    %24 = vector.load %arg9[%c0_18, %c0_19] : memref<512x256xf32, #tpu.memory_space<vmem>>, vector<512x256xf32>
    %cst_20 = arith.constant dense<0.000000e+00> : vector<8x256xf32>
    %25 = tpu.matmul %23, %24, %cst_20 {dimension_numbers = #tpu.dot_dimension_numbers<[1], [0], [0], [1], [0, 0, 1, 1], [], []>} : vector<8x512xf32>, vector<512x256xf32>, vector<8x256xf32> -> vector<8x256xf32>
    %c0_21 = arith.constant 0 : index
    %c0_22 = arith.constant 0 : index
    %26 = vector.load %arg10[%c0_21, %c0_22] : memref<1x256xf32, #tpu.memory_space<vmem>>, vector<1x256xf32>
    %27 = vector.broadcast %26 : vector<1x256xf32> to vector<8x256xf32>
    %28 = arith.addf %25, %27 : vector<8x256xf32>
    %c0_23 = arith.constant 0 : index
    %c0_24 = arith.constant 0 : index
    %29 = vector.load %arg18[%c0_23, %c0_24] : memref<8x256xf32, #tpu.memory_space<vmem>>, vector<8x256xf32>
    tpu.vector_store %arg18[%c0_23, %c0_24], %28 {strides = array<i32>} : memref<8x256xf32, #tpu.memory_space<vmem>>, vector<8x256xf32>,
    %30 = vector.extract_strided_slice %28 {offsets = [0, 0], sizes = [8, 128], strides = [1, 1]} : vector<8x256xf32> to vector<8x128xf32>
    %31 = vector.extract_strided_slice %28 {offsets = [0, 128], sizes = [8, 128], strides = [1, 1]} : vector<8x256xf32> to vector<8x128xf32>
    %c0_25 = arith.constant 0 : index
    %c0_26 = arith.constant 0 : index
    %32 = vector.load %arg2[%c0_25, %c0_26] : memref<8x128xf32, #tpu.memory_space<vmem>>, vector<8x128xf32>
    %cst_27 = arith.constant 5.000000e-01 : f32
    %33 = vector.broadcast %cst_27 : f32 to vector<8x128xf32>
    %34 = arith.mulf %33, %31 : vector<8x128xf32>
    %35 = math.exp %34 : vector<8x128xf32>
    %36 = arith.mulf %32, %35 : vector<8x128xf32>
    %37 = arith.addf %30, %36 : vector<8x128xf32>
    %38 = arith.truncf %37 : vector<8x128xf32> to vector<8x128xbf16>
    %c0_28 = arith.constant 0 : index
    %c0_29 = arith.constant 0 : index
    %39 = vector.load %arg11[%c0_28, %c0_29] : memref<128x512xbf16, #tpu.memory_space<vmem>>, vector<128x512xbf16>
    %cst_30 = arith.constant dense<0.000000e+00> : vector<8x512xf32>
    %40 = tpu.matmul %38, %39, %cst_30 {dimension_numbers = #tpu.dot_dimension_numbers<[1], [0], [0], [1], [0, 0, 1, 1], [], []>} : vector<8x128xbf16>, vector<128x512xbf16>, vector<8x512xf32> -> vector<8x512xf32>
    %c0_31 = arith.constant 0 : index
    %c0_32 = arith.constant 0 : index
    %41 = vector.load %arg12[%c0_31, %c0_32] : memref<1x512xf32, #tpu.memory_space<vmem>>, vector<1x512xf32>
    %42 = vector.broadcast %41 : vector<1x512xf32> to vector<8x512xf32>
    %43 = arith.addf %40, %42 : vector<8x512xf32>
    %cst_33 = arith.constant 0.000000e+00 : f32
    %44 = vector.broadcast %cst_33 : f32 to vector<8x512xf32>
    %45 = arith.maximumf %43, %44 : vector<8x512xf32>
    %46 = arith.truncf %45 : vector<8x512xf32> to vector<8x512xbf16>
    %c0_34 = arith.constant 0 : index
    %c0_35 = arith.constant 0 : index
    %47 = vector.load %arg13[%c0_34, %c0_35] : memref<512x512xbf16, #tpu.memory_space<vmem>>, vector<512x512xbf16>
    %cst_36 = arith.constant dense<0.000000e+00> : vector<8x512xf32>
    %48 = tpu.matmul %46, %47, %cst_36 {dimension_numbers = #tpu.dot_dimension_numbers<[1], [0], [0], [1], [0, 0, 1, 1], [], []>} : vector<8x512xbf16>, vector<512x512xbf16>, vector<8x512xf32> -> vector<8x512xf32>
    %c0_37 = arith.constant 0 : index
    %c0_38 = arith.constant 0 : index
    %49 = vector.load %arg14[%c0_37, %c0_38] : memref<1x512xf32, #tpu.memory_space<vmem>>, vector<1x512xf32>
    %50 = vector.broadcast %49 : vector<1x512xf32> to vector<8x512xf32>
    %51 = arith.addf %48, %50 : vector<8x512xf32>
    %cst_39 = arith.constant 0.000000e+00 : f32
    %52 = vector.broadcast %cst_39 : f32 to vector<8x512xf32>
    %53 = arith.maximumf %51, %52 : vector<8x512xf32>
    %54 = arith.truncf %53 : vector<8x512xf32> to vector<8x512xbf16>
    %c0_40 = arith.constant 0 : index
    %c0_41 = arith.constant 0 : index
    %55 = vector.load %arg15[%c0_40, %c0_41] : memref<512x896xbf16, #tpu.memory_space<vmem>>, vector<512x896xbf16>
    %cst_42 = arith.constant dense<0.000000e+00> : vector<8x896xf32>
    %56 = tpu.matmul %54, %55, %cst_42 {dimension_numbers = #tpu.dot_dimension_numbers<[1], [0], [0], [1], [0, 0, 1, 1], [], []>} : vector<8x512xbf16>, vector<512x896xbf16>, vector<8x896xf32> -> vector<8x896xf32>
    %c0_43 = arith.constant 0 : index
    %c0_44 = arith.constant 0 : index
    %57 = vector.load %arg16[%c0_43, %c0_44] : memref<1x896xf32, #tpu.memory_space<vmem>>, vector<1x896xf32>
    %58 = vector.broadcast %57 : vector<1x896xf32> to vector<8x896xf32>
    %59 = arith.addf %56, %58 : vector<8x896xf32>
    %cst_45 = arith.constant 5.000000e-01 : f32
    %60 = vector.broadcast %cst_45 : f32 to vector<8x896xf32>
    %61 = arith.mulf %60, %59 : vector<8x896xf32>
    %62 = math.tanh %61 : vector<8x896xf32>
    %cst_46 = arith.constant 5.000000e-01 : f32
    %63 = vector.broadcast %cst_46 : f32 to vector<8x896xf32>
    %64 = arith.mulf %63, %62 : vector<8x896xf32>
    %cst_47 = arith.constant 5.000000e-01 : f32
    %65 = vector.broadcast %cst_47 : f32 to vector<8x896xf32>
    %66 = arith.addf %64, %65 : vector<8x896xf32>
    %67 = arith.truncf %66 : vector<8x896xf32> to vector<8x896xbf16>
    %c0_48 = arith.constant 0 : index
    %c0_49 = arith.constant 0 : index
    %68 = vector.load %arg17[%c0_48, %c0_49] : memref<8x896xbf16, #tpu.memory_space<vmem>>, vector<8x896xbf16>
    tpu.vector_store %arg17[%c0_48, %c0_49], %67 {strides = array<i32>} : memref<8x896xbf16, #tpu.memory_space<vmem>>, vector<8x896xbf16>,
    return
  }
  func.func @transform_0(%arg0: i32) -> (i32, i32) {
    %c0_i32 = arith.constant 0 : i32
    %c0_i32_0 = arith.constant 0 : i32
    return %arg0, %c0_i32 : i32, i32
  }
  func.func @transform_1(%arg0: i32) -> (i32, i32) {
    %c0_i32 = arith.constant 0 : i32
    %c0_i32_0 = arith.constant 0 : i32
    return %arg0, %c0_i32 : i32, i32
  }
  func.func @transform_2(%arg0: i32) -> (i32, i32) {
    %c0_i32 = arith.constant 0 : i32
    %c0_i32_0 = arith.constant 0 : i32
    %c0_i32_1 = arith.constant 0 : i32
    return %c0_i32, %c0_i32_0 : i32, i32
  }
  func.func @transform_3(%arg0: i32) -> (i32, i32) {
    %c0_i32 = arith.constant 0 : i32
    %c0_i32_0 = arith.constant 0 : i32
    %c0_i32_1 = arith.constant 0 : i32
    return %c0_i32, %c0_i32_0 : i32, i32
  }
  func.func @transform_4(%arg0: i32) -> (i32, i32) {
    %c0_i32 = arith.constant 0 : i32
    %c0_i32_0 = arith.constant 0 : i32
    %c0_i32_1 = arith.constant 0 : i32
    return %c0_i32, %c0_i32_0 : i32, i32
  }
  func.func @transform_5(%arg0: i32) -> (i32, i32) {
    %c0_i32 = arith.constant 0 : i32
    %c0_i32_0 = arith.constant 0 : i32
    %c0_i32_1 = arith.constant 0 : i32
    return %c0_i32, %c0_i32_0 : i32, i32
  }
  func.func @transform_6(%arg0: i32) -> (i32, i32) {
    %c0_i32 = arith.constant 0 : i32
    %c0_i32_0 = arith.constant 0 : i32
    %c0_i32_1 = arith.constant 0 : i32
    return %c0_i32, %c0_i32_0 : i32, i32
  }
  func.func @transform_7(%arg0: i32) -> (i32, i32) {
    %c0_i32 = arith.constant 0 : i32
    %c0_i32_0 = arith.constant 0 : i32
    %c0_i32_1 = arith.constant 0 : i32
    return %c0_i32, %c0_i32_0 : i32, i32
  }
  func.func @transform_8(%arg0: i32) -> (i32, i32) {
    %c0_i32 = arith.constant 0 : i32
    %c0_i32_0 = arith.constant 0 : i32
    %c0_i32_1 = arith.constant 0 : i32
    return %c0_i32, %c0_i32_0 : i32, i32
  }
  func.func @transform_9(%arg0: i32) -> (i32, i32) {
    %c0_i32 = arith.constant 0 : i32
    %c0_i32_0 = arith.constant 0 : i32
    %c0_i32_1 = arith.constant 0 : i32
    return %c0_i32, %c0_i32_0 : i32, i32
  }
  func.func @transform_10(%arg0: i32) -> (i32, i32) {
    %c0_i32 = arith.constant 0 : i32
    %c0_i32_0 = arith.constant 0 : i32
    %c0_i32_1 = arith.constant 0 : i32
    return %c0_i32, %c0_i32_0 : i32, i32
  }
  func.func @transform_11(%arg0: i32) -> (i32, i32) {
    %c0_i32 = arith.constant 0 : i32
    %c0_i32_0 = arith.constant 0 : i32
    %c0_i32_1 = arith.constant 0 : i32
    return %c0_i32, %c0_i32_0 : i32, i32
  }
  func.func @transform_12(%arg0: i32) -> (i32, i32) {
    %c0_i32 = arith.constant 0 : i32
    %c0_i32_0 = arith.constant 0 : i32
    %c0_i32_1 = arith.constant 0 : i32
    return %c0_i32, %c0_i32_0 : i32, i32
  }
  func.func @transform_13(%arg0: i32) -> (i32, i32) {
    %c0_i32 = arith.constant 0 : i32
    %c0_i32_0 = arith.constant 0 : i32
    %c0_i32_1 = arith.constant 0 : i32
    return %c0_i32, %c0_i32_0 : i32, i32
  }
  func.func @transform_14(%arg0: i32) -> (i32, i32) {
    %c0_i32 = arith.constant 0 : i32
    %c0_i32_0 = arith.constant 0 : i32
    %c0_i32_1 = arith.constant 0 : i32
    return %c0_i32, %c0_i32_0 : i32, i32
  }
  func.func @transform_15(%arg0: i32) -> (i32, i32) {
    %c0_i32 = arith.constant 0 : i32
    %c0_i32_0 = arith.constant 0 : i32
    %c0_i32_1 = arith.constant 0 : i32
    return %c0_i32, %c0_i32_0 : i32, i32
  }
  func.func @transform_16(%arg0: i32) -> (i32, i32) {
    %c0_i32 = arith.constant 0 : i32
    %c0_i32_0 = arith.constant 0 : i32
    return %arg0, %c0_i32 : i32, i32
  }
  func.func @transform_17(%arg0: i32) -> (i32, i32) {
    %c0_i32 = arith.constant 0 : i32
    %c0_i32_0 = arith.constant 0 : i32
    return %arg0, %c0_i32 : i32, i32
  }
}

</mosaic_0001>

<llo_original>
// kernel: tpu_custom_call.1
$region0: #{tpu_custom_call.1}
  #allocation0 [shape = 'u32[]', space=smem, size = 0x4, offset = 0x4, fixed_abs, tag = 'smem constant byte address 0x4 - core index']
  #allocation1 [shape = 'u32[144,128]{1,0:T(1,128)}', space=vmem, size = 0x12000, scoped, tag = 'internal scratch']
  %s0 = inlined_call_operand.hbm [shape: bf16[16,784], index: 0, kind: input, shape index: {}]
  %s1 = inlined_call_operand.hbm [shape: f32[16,128], index: 1, kind: input, shape index: {}]
  %s2 = inlined_call_operand.hbm [shape: bf16[784,512], index: 2, kind: input, shape index: {}]
  %s3 = inlined_call_operand.vmem [shape: f32[1,512], index: 3, kind: input, shape index: {}]
  %s4 = inlined_call_operand.hbm [shape: bf16[512,512], index: 4, kind: input, shape index: {}]
  %s5 = inlined_call_operand.hbm [shape: f32[1,512], index: 5, kind: input, shape index: {}]
  %s6 = inlined_call_operand.hbm [shape: bf16[512,512], index: 6, kind: input, shape index: {}]
  %s7 = inlined_call_operand.hbm [shape: f32[1,512], index: 7, kind: input, shape index: {}]
  %s8 = inlined_call_operand.hbm [shape: f32[512,256], index: 8, kind: input, shape index: {}]
  %s9 = inlined_call_operand.hbm [shape: f32[1,256], index: 9, kind: input, shape index: {}]
  %s10 = inlined_call_operand.hbm [shape: bf16[128,512], index: 10, kind: input, shape index: {}]
  %s11 = inlined_call_operand.vmem [shape: f32[1,512], index: 11, kind: input, shape index: {}]
  %s12 = inlined_call_operand.hbm [shape: bf16[512,512], index: 12, kind: input, shape index: {}]
  %s13 = inlined_call_operand.vmem [shape: f32[1,512], index: 13, kind: input, shape index: {}]
  %s14 = inlined_call_operand.hbm [shape: bf16[512,896], index: 14, kind: input, shape index: {}]
  %s15 = inlined_call_operand.vmem [shape: f32[1,896], index: 15, kind: input, shape index: {}]
  %s16 = inlined_call_operand.hbm [shape: bf16[16,896], index: 16, kind: output, shape index: {0}]
  %s17 = inlined_call_operand.hbm [shape: f32[16,256], index: 17, kind: output, shape index: {1}]
  %18 = xla_tuple %s16, %s17
  %s19 = sld [smem:[#allocation0]]
  $region153: #{tpu_custom_call.1} parent=0
    _
  %s21 = ssub.s32 1, %s19
  %s22 = scalar_select 0, %s21, %s19
  $region1: #{tpu_custom_call.1} parent=0
    #allocation2 [shape = 'u8[28672]{0}', space=vmem, size = 0x7000, scoped, tag = 'input window, operand 0']
    #allocation3 [shape = 's32[2]{0}', space=sflag, size = 0x8, scoped, tag = 'scoped memory for tpu_custom_call.1']
    #allocation4 [shape = 's32[2]{0}', space=sflag, size = 0x8, scoped, tag = 'scoped memory for tpu_custom_call.1']
    #allocation5 [shape = 'u8[8192]{0}', space=vmem, size = 0x2000, scoped, tag = 'input window, operand 1']
    #allocation6 [shape = 's32[2]{0}', space=sflag, size = 0x8, scoped, tag = 'scoped memory for tpu_custom_call.1']
    #allocation7 [shape = 'u8[802816]{0}', space=vmem, size = 0xc4000, scoped, tag = 'input window, operand 2, single buffered']
    #allocation8 [shape = 'u8[524288]{0}', space=vmem, size = 0x80000, scoped, tag = 'input window, operand 4, single buffered']
    #allocation9 [shape = 's32[1]{0}', space=sflag, size = 0x4, scoped, tag = 'scoped memory for tpu_custom_call.1']
    #allocation10 [shape = 'u8[2048]{0}', space=vmem, size = 0x800, scoped, tag = 'input window, operand 5, single buffered']
    #allocation11 [shape = 'u8[524288]{0}', space=vmem, size = 0x80000, scoped, tag = 'input window, operand 6, single buffered']
    #allocation12 [shape = 's32[1]{0}', space=sflag, size = 0x4, scoped, tag = 'scoped memory for tpu_custom_call.1']
    #allocation13 [shape = 'u8[2048]{0}', space=vmem, size = 0x800, scoped, tag = 'input window, operand 7, single buffered']
    #allocation14 [shape = 'u8[524288]{0}', space=vmem, size = 0x80000, scoped, tag = 'input window, operand 8, single buffered']
    #allocation15 [shape = 's32[1]{0}', space=sflag, size = 0x4, scoped, tag = 'scoped memory for tpu_custom_call.1']
    #allocation16 [shape = 'u8[1024]{0}', space=vmem, size = 0x400, scoped, tag = 'input window, operand 9, single buffered']
    #allocation17 [shape = 'u8[131072]{0}', space=vmem, size = 0x20000, scoped, tag = 'input window, operand 10, single buffered']
    #allocation18 [shape = 's32[1]{0}', space=sflag, size = 0x4, scoped, tag = 'scoped memory for tpu_custom_call.1']
    #allocation19 [shape = 'u8[524288]{0}', space=vmem, size = 0x80000, scoped, tag = 'input window, operand 12, single buffered']
    #allocation20 [shape = 'u8[917504]{0}', space=vmem, size = 0xe0000, scoped, tag = 'input window, operand 14, single buffered']
    #allocation21 [shape = 's32[1]{0}', space=sflag, size = 0x4, scoped, tag = 'scoped memory for tpu_custom_call.1']
    #allocation22 [shape = 'u8[28672]{0}', space=vmem, size = 0x7000, scoped, tag = 'output window, operand 0']
    #allocation23 [shape = 'u8[16384]{0}', space=vmem, size = 0x4000, scoped, tag = 'output window, operand 1']
    #allocation24 [shape = 's32[2]{0}', space=sflag, size = 0x8, scoped, tag = 'scoped memory for tpu_custom_call.1']
    %23 = vsyncpa [#allocation3], 0
    %s24 = scalar_lea.sflag [#allocation3], 1
    %25 = vsyncpa %s24, 0
    %26 = vsyncpa [#allocation6], 0
    %s27 = scalar_lea.sflag [#allocation6], 1
    %28 = vsyncpa %s27, 0
    %29 = vsyncpa [#allocation9], 0
    %30 = vsyncpa [#allocation12], 0
    %31 = vsyncpa [#allocation15], 0
    %32 = vsyncpa [#allocation18], 0
    %33 = vsyncpa [#allocation21], 0
    %34 = vsyncpa [#allocation4], 0
    %s35 = scalar_lea.sflag [#allocation4], 1
    %36 = vsyncpa %s35, 0
    %37 = vsyncpa [#allocation24], 0
    %s38 = scalar_lea.sflag [#allocation24], 1
    %39 = vsyncpa %s38, 0
    loop: start=0, step=1, limit=4
    $region2: #{tpu_custom_call.1} parent=1 // loop_pre_header
      _
    $region3: #{tpu_custom_call.1} parent=1 // loop_header
      %s41 = sphi 0, %s45
      %p42 = scmp.ge.s32.totalorder %s41, 4
      %s51 = sphi 0, %s53
      %s54 = sphi 0, %s51
      %s55 = sphi 0, %s54
      %s71 = sphi 0, %s55
      %s77 = sphi 0, %s79
      %s80 = sphi 0, %s77
      %s81 = sphi 0, %s80
      %s97 = sphi 0, %s81
      %s101 = sphi 0, %s101
      %s103 = sphi 0, %s101
      %s104 = sphi 0, %s103
      %s118 = sphi 0, %s104
      %s122 = sphi 0, %s122
      %s124 = sphi 0, %s122
      %s125 = sphi 0, %s124
      %s139 = sphi 0, %s125
      %s143 = sphi 0, %s143
      %s145 = sphi 0, %s143
      %s146 = sphi 0, %s145
      %s160 = sphi 0, %s146
      %s164 = sphi 0, %s164
      %s166 = sphi 0, %s164
      %s167 = sphi 0, %s166
      %s181 = sphi 0, %s167
      %s185 = sphi 0, %s185
      %s187 = sphi 0, %s185
      %s188 = sphi 0, %s187
      %s202 = sphi 0, %s188
      %s206 = sphi 0, %s206
      %s208 = sphi 0, %s206
      %s209 = sphi 0, %s208
      %s223 = sphi 0, %s209
      %s227 = sphi 0, %s227
      %s229 = sphi 0, %s227
      %s230 = sphi 0, %s229
      %s244 = sphi 0, %s230
      %s248 = sphi 0, %s248
      %s250 = sphi 0, %s248
      %s251 = sphi 0, %s250
      %s265 = sphi 0, %s251
      %s269 = sphi 0, %s269
      %s271 = sphi 0, %s269
      %s272 = sphi 0, %s271
      %s286 = sphi 0, %s272
      %s290 = sphi 0, %s290
      %s292 = sphi 0, %s290
      %s293 = sphi 0, %s292
      %s307 = sphi 0, %s293
      %s311 = sphi 0, %s311
      %s313 = sphi 0, %s311
      %s314 = sphi 0, %s313
      %s328 = sphi 0, %s314
      %s332 = sphi 0, %s332
      %s334 = sphi 0, %s332
      %s335 = sphi 0, %s334
      %s349 = sphi 0, %s335
      %s353 = sphi 0, %s353
      %s355 = sphi 0, %s353
      %s356 = sphi 0, %s355
      %s370 = sphi 0, %s356
      %s374 = sphi 0, %s374
      %s376 = sphi 0, %s374
      %s377 = sphi 0, %s376
      %s391 = sphi 0, %s377
      %s397 = sphi 0, %s399
      %s400 = sphi 0, %s397
      %s401 = sphi 0, %s400
      %s417 = sphi 0, %s401
      %s423 = sphi 0, %s425
      %s426 = sphi 0, %s423
      %s427 = sphi 0, %s426
      %s443 = sphi 0, %s427
    $region4: #{tpu_custom_call.1} parent=1 // loop_header_branch
      %44 = sbr.rel (%p42) target = $region8
    $region5: #{tpu_custom_call.1} parent=1 // loop_body
      %s46 = ssub.s32 %s41, 1
      %s47 = ssub.s32 %s41, 2
      %s48 = sadd.s32 %s41, 1
      %s49 = ssub.s32 %s41, %s48
      %p50 = scmp.eq.s32.totalorder %s49, 0
      %s52 = sadd.s32 %s51, 1
      %s53 = scalar_select %p50, %s51, %s52
      %p56 = pneg %p50
      %p57 = scmp.eq.s32.totalorder %s41, 1
      %p58 = por %p56, %p57
      %p59 = scmp.ne.s32.totalorder %s51, %s54
      %p60 = scmp.eq.s32.totalorder %s41, 0
      %p61 = por %p59, %p60
      %p62 = scmp.ne.s32.totalorder %s51, %s54
      %p63 = scmp.eq.s32.totalorder %s46, 1
      %p64 = por %p62, %p63
      %p65 = scmp.ne.s32.totalorder %s54, %s55
      %p66 = scmp.eq.s32.totalorder %s46, 0
      %p67 = por %p65, %p66
      %p68 = scmp.ne.s32.totalorder %s54, %s55
      %p69 = scmp.eq.s32.totalorder %s47, 1
      %p70 = por %p68, %p69
      %p72 = scmp.ne.s32.totalorder %s55, %s71
      %p73 = scmp.eq.s32.totalorder %s47, 0
      %p74 = por %p72, %p73
      %s75 = ssub.s32 %s41, %s48
      %p76 = scmp.eq.s32.totalorder %s75, 0
      %s78 = sadd.s32 %s77, 1
      %s79 = scalar_select %p76, %s77, %s78
      %p82 = pneg %p76
      %p83 = scmp.eq.s32.totalorder %s41, 1
      %p84 = por %p82, %p83
      %p85 = scmp.ne.s32.totalorder %s77, %s80
      %p86 = scmp.eq.s32.totalorder %s41, 0
      %p87 = por %p85, %p86
      %p88 = scmp.ne.s32.totalorder %s77, %s80
      %p89 = scmp.eq.s32.totalorder %s46, 1
      %p90 = por %p88, %p89
      %p91 = scmp.ne.s32.totalorder %s80, %s81
      %p92 = scmp.eq.s32.totalorder %s46, 0
      %p93 = por %p91, %p92
      %p94 = scmp.ne.s32.totalorder %s80, %s81
      %p95 = scmp.eq.s32.totalorder %s47, 1
      %p96 = por %p94, %p95
      %p98 = scmp.ne.s32.totalorder %s81, %s97
      %p99 = scmp.eq.s32.totalorder %s47, 0
      %p100 = por %p98, %p99
      %s102 = sadd.s32 %s101, 1
      %p105 = scmp.eq.s32.totalorder %s41, 1
      %p106 = scmp.ne.s32.totalorder %s101, %s103
      %p107 = scmp.eq.s32.totalorder %s41, 0
      %p108 = por %p106, %p107
      %p109 = scmp.ne.s32.totalorder %s101, %s103
      %p110 = scmp.eq.s32.totalorder %s46, 1
      %p111 = por %p109, %p110
      %p112 = scmp.ne.s32.totalorder %s103, %s104
      %p113 = scmp.eq.s32.totalorder %s46, 0
      %p114 = por %p112, %p113
      %p115 = scmp.ne.s32.totalorder %s103, %s104
      %p116 = scmp.eq.s32.totalorder %s47, 1
      %p117 = por %p115, %p116
      %p119 = scmp.ne.s32.totalorder %s104, %s118
      %p120 = scmp.eq.s32.totalorder %s47, 0
      %p121 = por %p119, %p120
      %s123 = sadd.s32 %s122, 1
      %p126 = scmp.eq.s32.totalorder %s41, 1
      %p127 = scmp.ne.s32.totalorder %s122, %s124
      %p128 = scmp.eq.s32.totalorder %s41, 0
      %p129 = por %p127, %p128
      %p130 = scmp.ne.s32.totalorder %s122, %s124
      %p131 = scmp.eq.s32.totalorder %s46, 1
      %p132 = por %p130, %p131
      %p133 = scmp.ne.s32.totalorder %s124, %s125
      %p134 = scmp.eq.s32.totalorder %s46, 0
      %p135 = por %p133, %p134
      %p136 = scmp.ne.s32.totalorder %s124, %s125
      %p137 = scmp.eq.s32.totalorder %s47, 1
      %p138 = por %p136, %p137
      %p140 = scmp.ne.s32.totalorder %s125, %s139
      %p141 = scmp.eq.s32.totalorder %s47, 0
      %p142 = por %p140, %p141
      %s144 = sadd.s32 %s143, 1
      %p147 = scmp.eq.s32.totalorder %s41, 1
      %p148 = scmp.ne.s32.totalorder %s143, %s145
      %p149 = scmp.eq.s32.totalorder %s41, 0
      %p150 = por %p148, %p149
      %p151 = scmp.ne.s32.totalorder %s143, %s145
      %p152 = scmp.eq.s32.totalorder %s46, 1
      %p153 = por %p151, %p152
      %p154 = scmp.ne.s32.totalorder %s145, %s146
      %p155 = scmp.eq.s32.totalorder %s46, 0
      %p156 = por %p154, %p155
      %p157 = scmp.ne.s32.totalorder %s145, %s146
      %p158 = scmp.eq.s32.totalorder %s47, 1
      %p159 = por %p157, %p158
      %p161 = scmp.ne.s32.totalorder %s146, %s160
      %p162 = scmp.eq.s32.totalorder %s47, 0
      %p163 = por %p161, %p162
      %s165 = sadd.s32 %s164, 1
      %p168 = scmp.eq.s32.totalorder %s41, 1
      %p169 = scmp.ne.s32.totalorder %s164, %s166
      %p170 = scmp.eq.s32.totalorder %s41, 0
      %p171 = por %p169, %p170
      %p172 = scmp.ne.s32.totalorder %s164, %s166
      %p173 = scmp.eq.s32.totalorder %s46, 1
      %p174 = por %p172, %p173
      %p175 = scmp.ne.s32.totalorder %s166, %s167
      %p176 = scmp.eq.s32.totalorder %s46, 0
      %p177 = por %p175, %p176
      %p178 = scmp.ne.s32.totalorder %s166, %s167
      %p179 = scmp.eq.s32.totalorder %s47, 1
      %p180 = por %p178, %p179
      %p182 = scmp.ne.s32.totalorder %s167, %s181
      %p183 = scmp.eq.s32.totalorder %s47, 0
      %p184 = por %p182, %p183
      %s186 = sadd.s32 %s185, 1
      %p189 = scmp.eq.s32.totalorder %s41, 1
      %p190 = scmp.ne.s32.totalorder %s185, %s187
      %p191 = scmp.eq.s32.totalorder %s41, 0
      %p192 = por %p190, %p191
      %p193 = scmp.ne.s32.totalorder %s185, %s187
      %p194 = scmp.eq.s32.totalorder %s46, 1
      %p195 = por %p193, %p194
      %p196 = scmp.ne.s32.totalorder %s187, %s188
      %p197 = scmp.eq.s32.totalorder %s46, 0
      %p198 = por %p196, %p197
      %p199 = scmp.ne.s32.totalorder %s187, %s188
      %p200 = scmp.eq.s32.totalorder %s47, 1
      %p201 = por %p199, %p200
      %p203 = scmp.ne.s32.totalorder %s188, %s202
      %p204 = scmp.eq.s32.totalorder %s47, 0
      %p205 = por %p203, %p204
      %s207 = sadd.s32 %s206, 1
      %p210 = scmp.eq.s32.totalorder %s41, 1
      %p211 = scmp.ne.s32.totalorder %s206, %s208
      %p212 = scmp.eq.s32.totalorder %s41, 0
      %p213 = por %p211, %p212
      %p214 = scmp.ne.s32.totalorder %s206, %s208
      %p215 = scmp.eq.s32.totalorder %s46, 1
      %p216 = por %p214, %p215
      %p217 = scmp.ne.s32.totalorder %s208, %s209
      %p218 = scmp.eq.s32.totalorder %s46, 0
      %p219 = por %p217, %p218
      %p220 = scmp.ne.s32.totalorder %s208, %s209
      %p221 = scmp.eq.s32.totalorder %s47, 1
      %p222 = por %p220, %p221
      %p224 = scmp.ne.s32.totalorder %s209, %s223
      %p225 = scmp.eq.s32.totalorder %s47, 0
      %p226 = por %p224, %p225
      %s228 = sadd.s32 %s227, 1
      %p231 = scmp.eq.s32.totalorder %s41, 1
      %p232 = scmp.ne.s32.totalorder %s227, %s229
      %p233 = scmp.eq.s32.totalorder %s41, 0
      %p234 = por %p232, %p233
      %p235 = scmp.ne.s32.totalorder %s227, %s229
      %p236 = scmp.eq.s32.totalorder %s46, 1
      %p237 = por %p235, %p236
      %p238 = scmp.ne.s32.totalorder %s229, %s230
      %p239 = scmp.eq.s32.totalorder %s46, 0
      %p240 = por %p238, %p239
      %p241 = scmp.ne.s32.totalorder %s229, %s230
      %p242 = scmp.eq.s32.totalorder %s47, 1
      %p243 = por %p241, %p242
      %p245 = scmp.ne.s32.totalorder %s230, %s244
      %p246 = scmp.eq.s32.totalorder %s47, 0
      %p247 = por %p245, %p246
      %s249 = sadd.s32 %s248, 1
      %p252 = scmp.eq.s32.totalorder %s41, 1
      %p253 = scmp.ne.s32.totalorder %s248, %s250
      %p254 = scmp.eq.s32.totalorder %s41, 0
      %p255 = por %p253, %p254
      %p256 = scmp.ne.s32.totalorder %s248, %s250
      %p257 = scmp.eq.s32.totalorder %s46, 1
      %p258 = por %p256, %p257
      %p259 = scmp.ne.s32.totalorder %s250, %s251
      %p260 = scmp.eq.s32.totalorder %s46, 0
      %p261 = por %p259, %p260
      %p262 = scmp.ne.s32.totalorder %s250, %s251
      %p263 = scmp.eq.s32.totalorder %s47, 1
      %p264 = por %p262, %p263
      %p266 = scmp.ne.s32.totalorder %s251, %s265
      %p267 = scmp.eq.s32.totalorder %s47, 0
      %p268 = por %p266, %p267
      %s270 = sadd.s32 %s269, 1
      %p273 = scmp.eq.s32.totalorder %s41, 1
      %p274 = scmp.ne.s32.totalorder %s269, %s271
      %p275 = scmp.eq.s32.totalorder %s41, 0
      %p276 = por %p274, %p275
      %p277 = scmp.ne.s32.totalorder %s269, %s271
      %p278 = scmp.eq.s32.totalorder %s46, 1
      %p279 = por %p277, %p278
      %p280 = scmp.ne.s32.totalorder %s271, %s272
      %p281 = scmp.eq.s32.totalorder %s46, 0
      %p282 = por %p280, %p281
      %p283 = scmp.ne.s32.totalorder %s271, %s272
      %p284 = scmp.eq.s32.totalorder %s47, 1
      %p285 = por %p283, %p284
      %p287 = scmp.ne.s32.totalorder %s272, %s286
      %p288 = scmp.eq.s32.totalorder %s47, 0
      %p289 = por %p287, %p288
      %s291 = sadd.s32 %s290, 1
      %p294 = scmp.eq.s32.totalorder %s41, 1
      %p295 = scmp.ne.s32.totalorder %s290, %s292
      %p296 = scmp.eq.s32.totalorder %s41, 0
      %p297 = por %p295, %p296
      %p298 = scmp.ne.s32.totalorder %s290, %s292
      %p299 = scmp.eq.s32.totalorder %s46, 1
      %p300 = por %p298, %p299
      %p301 = scmp.ne.s32.totalorder %s292, %s293
      %p302 = scmp.eq.s32.totalorder %s46, 0
      %p303 = por %p301, %p302
      %p304 = scmp.ne.s32.totalorder %s292, %s293
      %p305 = scmp.eq.s32.totalorder %s47, 1
      %p306 = por %p304, %p305
      %p308 = scmp.ne.s32.totalorder %s293, %s307
      %p309 = scmp.eq.s32.totalorder %s47, 0
      %p310 = por %p308, %p309
      %s312 = sadd.s32 %s311, 1
      %p315 = scmp.eq.s32.totalorder %s41, 1
      %p316 = scmp.ne.s32.totalorder %s311, %s313
      %p317 = scmp.eq.s32.totalorder %s41, 0
      %p318 = por %p316, %p317
      %p319 = scmp.ne.s32.totalorder %s311, %s313
      %p320 = scmp.eq.s32.totalorder %s46, 1
      %p321 = por %p319, %p320
      %p322 = scmp.ne.s32.totalorder %s313, %s314
      %p323 = scmp.eq.s32.totalorder %s46, 0
      %p324 = por %p322, %p323
      %p325 = scmp.ne.s32.totalorder %s313, %s314
      %p326 = scmp.eq.s32.totalorder %s47, 1
      %p327 = por %p325, %p326
      %p329 = scmp.ne.s32.totalorder %s314, %s328
      %p330 = scmp.eq.s32.totalorder %s47, 0
      %p331 = por %p329, %p330
      %s333 = sadd.s32 %s332, 1
      %p336 = scmp.eq.s32.totalorder %s41, 1
      %p337 = scmp.ne.s32.totalorder %s332, %s334
      %p338 = scmp.eq.s32.totalorder %s41, 0
      %p339 = por %p337, %p338
      %p340 = scmp.ne.s32.totalorder %s332, %s334
      %p341 = scmp.eq.s32.totalorder %s46, 1
      %p342 = por %p340, %p341
      %p343 = scmp.ne.s32.totalorder %s334, %s335
      %p344 = scmp.eq.s32.totalorder %s46, 0
      %p345 = por %p343, %p344
      %p346 = scmp.ne.s32.totalorder %s334, %s335
      %p347 = scmp.eq.s32.totalorder %s47, 1
      %p348 = por %p346, %p347
      %p350 = scmp.ne.s32.totalorder %s335, %s349
      %p351 = scmp.eq.s32.totalorder %s47, 0
      %p352 = por %p350, %p351
      %s354 = sadd.s32 %s353, 1
      %p357 = scmp.eq.s32.totalorder %s41, 1
      %p358 = scmp.ne.s32.totalorder %s353, %s355
      %p359 = scmp.eq.s32.totalorder %s41, 0
      %p360 = por %p358, %p359
      %p361 = scmp.ne.s32.totalorder %s353, %s355
      %p362 = scmp.eq.s32.totalorder %s46, 1
      %p363 = por %p361, %p362
      %p364 = scmp.ne.s32.totalorder %s355, %s356
      %p365 = scmp.eq.s32.totalorder %s46, 0
      %p366 = por %p364, %p365
      %p367 = scmp.ne.s32.totalorder %s355, %s356
      %p368 = scmp.eq.s32.totalorder %s47, 1
      %p369 = por %p367, %p368
      %p371 = scmp.ne.s32.totalorder %s356, %s370
      %p372 = scmp.eq.s32.totalorder %s47, 0
      %p373 = por %p371, %p372
      %s375 = sadd.s32 %s374, 1
      %p378 = scmp.eq.s32.totalorder %s41, 1
      %p379 = scmp.ne.s32.totalorder %s374, %s376
      %p380 = scmp.eq.s32.totalorder %s41, 0
      %p381 = por %p379, %p380
      %p382 = scmp.ne.s32.totalorder %s374, %s376
      %p383 = scmp.eq.s32.totalorder %s46, 1
      %p384 = por %p382, %p383
      %p385 = scmp.ne.s32.totalorder %s376, %s377
      %p386 = scmp.eq.s32.totalorder %s46, 0
      %p387 = por %p385, %p386
      %p388 = scmp.ne.s32.totalorder %s376, %s377
      %p389 = scmp.eq.s32.totalorder %s47, 1
      %p390 = por %p388, %p389
      %p392 = scmp.ne.s32.totalorder %s377, %s391
      %p393 = scmp.eq.s32.totalorder %s47, 0
      %p394 = por %p392, %p393
      %s395 = ssub.s32 %s41, %s48
      %p396 = scmp.eq.s32.totalorder %s395, 0
      %s398 = sadd.s32 %s397, 1
      %s399 = scalar_select %p396, %s397, %s398
      %p402 = pneg %p396
      %p403 = scmp.eq.s32.totalorder %s41, 1
      %p404 = por %p402, %p403
      %p405 = scmp.ne.s32.totalorder %s397, %s400
      %p406 = scmp.eq.s32.totalorder %s41, 0
      %p407 = por %p405, %p406
      %p408 = scmp.ne.s32.totalorder %s397, %s400
      %p409 = scmp.eq.s32.totalorder %s46, 1
      %p410 = por %p408, %p409
      %p411 = scmp.ne.s32.totalorder %s400, %s401
      %p412 = scmp.eq.s32.totalorder %s46, 0
      %p413 = por %p411, %p412
      %p414 = scmp.ne.s32.totalorder %s400, %s401
      %p415 = scmp.eq.s32.totalorder %s47, 1
      %p416 = por %p414, %p415
      %p418 = scmp.ne.s32.totalorder %s401, %s417
      %p419 = scmp.eq.s32.totalorder %s47, 0
      %p420 = por %p418, %p419
      %s421 = ssub.s32 %s41, %s48
      %p422 = scmp.eq.s32.totalorder %s421, 0
      %s424 = sadd.s32 %s423, 1
      %s425 = scalar_select %p422, %s423, %s424
      %p428 = pneg %p422
      %p429 = scmp.eq.s32.totalorder %s41, 1
      %p430 = por %p428, %p429
      %p431 = scmp.ne.s32.totalorder %s423, %s426
      %p432 = scmp.eq.s32.totalorder %s41, 0
      %p433 = por %p431, %p432
      %p434 = scmp.ne.s32.totalorder %s423, %s426
      %p435 = scmp.eq.s32.totalorder %s46, 1
      %p436 = por %p434, %p435
      %p437 = scmp.ne.s32.totalorder %s426, %s427
      %p438 = scmp.eq.s32.totalorder %s46, 0
      %p439 = por %p437, %p438
      %p440 = scmp.ne.s32.totalorder %s426, %s427
      %p441 = scmp.eq.s32.totalorder %s47, 1
      %p442 = por %p440, %p441
      %p444 = scmp.ne.s32.totalorder %s427, %s443
      %p445 = scmp.eq.s32.totalorder %s47, 0
      %p446 = por %p444, %p445
      %p447 = scmp.le.s32.totalorder 1, %s41
      %p448 = scmp.lt.s32.totalorder %s41, 3
      %p449 = pnand %p447, %p448
      %p450 = pneg %p449
      // Predicated region
      $region9: #{tpu_custom_call.1} parent=5 // pred_check
        _
      $region10: #{tpu_custom_call.1} parent=5 // pred_check_branch
        %452 = sbr.rel (%p449) target = $region12
      $region11: #{tpu_custom_call.1} parent=5 // pred_region
        %s453 = ssub.s32 %s41, 1
        // Predicated region
        $region13: #{tpu_custom_call.1} parent=11 // pred_check
          %p454 = pneg %p114
        $region14: #{tpu_custom_call.1} parent=11 // pred_check_branch
          %456 = sbr.rel (%p454) target = $region16
        $region15: #{tpu_custom_call.1} parent=11 // pred_region
          %s458 = ssub.s32 25088, 25088
          %459 = vsyncadd [#allocation6], %s458
          %s460 = sshll.u32 [#allocation7], 4
          %s461 = int_to_ptr.vmem [resolvable:$true] %s460
          %466 = dma.hbm_to_vmem [thread:$0]  %s2, 25088, %s461, [#allocation6], 256, 256, 16
        $region16: #{tpu_custom_call.1} parent=11 // pred_fallthru
          _
        // Predicated region
        $region17: #{tpu_custom_call.1} parent=11 // pred_check
          %p467 = pneg %p135
        $region18: #{tpu_custom_call.1} parent=11 // pred_check_branch
          %469 = sbr.rel (%p467) target = $region20
        $region19: #{tpu_custom_call.1} parent=11 // pred_region
          _
        $region20: #{tpu_custom_call.1} parent=11 // pred_fallthru
          _
        // Predicated region
        $region21: #{tpu_custom_call.1} parent=11 // pred_check
          %p470 = pneg %p156
        $region22: #{tpu_custom_call.1} parent=11 // pred_check_branch
          %472 = sbr.rel (%p470) target = $region24
        $region23: #{tpu_custom_call.1} parent=11 // pred_region
          %s474 = ssub.s32 16384, 16384
          %475 = vsyncadd [#allocation9], %s474
          %s476 = sshll.u32 [#allocation8], 4
          %s477 = int_to_ptr.vmem [resolvable:$true] %s476
          %482 = dma.hbm_to_vmem [thread:$0]  %s4, 16384, %s477, [#allocation9], 256, 256, 16
        $region24: #{tpu_custom_call.1} parent=11 // pred_fallthru
          _
        // Predicated region
        $region25: #{tpu_custom_call.1} parent=11 // pred_check
          %p483 = pneg %p177
        $region26: #{tpu_custom_call.1} parent=11 // pred_check_branch
          %485 = sbr.rel (%p483) target = $region28
        $region27: #{tpu_custom_call.1} parent=11 // pred_region
          %s487 = ssub.s32 64, 64
          %488 = vsyncadd [#allocation9], %s487
          %s490 = sshll.u32 [#allocation10], 4
          %s491 = int_to_ptr.vmem [resolvable:$true] %s490
          %493 = dma.hbm_to_vmem [thread:$0]  %s5, 64, %s491, [#allocation9]
        $region28: #{tpu_custom_call.1} parent=11 // pred_fallthru
          _
        // Predicated region
        $region29: #{tpu_custom_call.1} parent=11 // pred_check
          %p494 = pneg %p198
        $region30: #{tpu_custom_call.1} parent=11 // pred_check_branch
          %496 = sbr.rel (%p494) target = $region32
        $region31: #{tpu_custom_call.1} parent=11 // pred_region
          %s498 = ssub.s32 16384, 16384
          %499 = vsyncadd [#allocation12], %s498
          %s500 = sshll.u32 [#allocation11], 4
          %s501 = int_to_ptr.vmem [resolvable:$true] %s500
          %506 = dma.hbm_to_vmem [thread:$0]  %s6, 16384, %s501, [#allocation12], 256, 256, 16
        $region32: #{tpu_custom_call.1} parent=11 // pred_fallthru
          _
        // Predicated region
        $region33: #{tpu_custom_call.1} parent=11 // pred_check
          %p507 = pneg %p219
        $region34: #{tpu_custom_call.1} parent=11 // pred_check_branch
          %509 = sbr.rel (%p507) target = $region36
        $region35: #{tpu_custom_call.1} parent=11 // pred_region
          %s511 = ssub.s32 64, 64
          %512 = vsyncadd [#allocation12], %s511
          %s514 = sshll.u32 [#allocation13], 4
          %s515 = int_to_ptr.vmem [resolvable:$true] %s514
          %517 = dma.hbm_to_vmem [thread:$0]  %s7, 64, %s515, [#allocation12]
        $region36: #{tpu_custom_call.1} parent=11 // pred_fallthru
          _
        // Predicated region
        $region37: #{tpu_custom_call.1} parent=11 // pred_check
          %p518 = pneg %p240
        $region38: #{tpu_custom_call.1} parent=11 // pred_check_branch
          %520 = sbr.rel (%p518) target = $region40
        $region39: #{tpu_custom_call.1} parent=11 // pred_region
          %s522 = ssub.s32 16384, 16384
          %523 = vsyncadd [#allocation15], %s522
          %s524 = sshll.u32 [#allocation14], 4
          %s525 = int_to_ptr.vmem [resolvable:$true] %s524
          %530 = dma.hbm_to_vmem [thread:$0]  %s8, 16384, %s525, [#allocation15], 256, 256, 16
        $region40: #{tpu_custom_call.1} parent=11 // pred_fallthru
          _
        // Predicated region
        $region41: #{tpu_custom_call.1} parent=11 // pred_check
          %p531 = pneg %p261
        $region42: #{tpu_custom_call.1} parent=11 // pred_check_branch
          %533 = sbr.rel (%p531) target = $region44
        $region43: #{tpu_custom_call.1} parent=11 // pred_region
          %s535 = ssub.s32 32, 32
          %536 = vsyncadd [#allocation15], %s535
          %s538 = sshll.u32 [#allocation16], 4
          %s539 = int_to_ptr.vmem [resolvable:$true] %s538
          %541 = dma.hbm_to_vmem [thread:$0]  %s9, 32, %s539, [#allocation15]
        $region44: #{tpu_custom_call.1} parent=11 // pred_fallthru
          _
        // Predicated region
        $region45: #{tpu_custom_call.1} parent=11 // pred_check
          %p542 = pneg %p282
        $region46: #{tpu_custom_call.1} parent=11 // pred_check_branch
          %544 = sbr.rel (%p542) target = $region48
        $region47: #{tpu_custom_call.1} parent=11 // pred_region
          %s546 = ssub.s32 4096, 4096
          %547 = vsyncadd [#allocation18], %s546
          %s548 = sshll.u32 [#allocation17], 4
          %s549 = int_to_ptr.vmem [resolvable:$true] %s548
          %554 = dma.hbm_to_vmem [thread:$0]  %s10, 4096, %s549, [#allocation18], 256, 256, 16
        $region48: #{tpu_custom_call.1} parent=11 // pred_fallthru
          _
        // Predicated region
        $region49: #{tpu_custom_call.1} parent=11 // pred_check
          %p555 = pneg %p303
        $region50: #{tpu_custom_call.1} parent=11 // pred_check_branch
          %557 = sbr.rel (%p555) target = $region52
        $region51: #{tpu_custom_call.1} parent=11 // pred_region
          _
        $region52: #{tpu_custom_call.1} parent=11 // pred_fallthru
          _
        // Predicated region
        $region53: #{tpu_custom_call.1} parent=11 // pred_check
          %p558 = pneg %p324
        $region54: #{tpu_custom_call.1} parent=11 // pred_check_branch
          %560 = sbr.rel (%p558) target = $region56
        $region55: #{tpu_custom_call.1} parent=11 // pred_region
          %s562 = ssub.s32 16384, 16384
          %563 = vsyncadd [#allocation18], %s562
          %s564 = sshll.u32 [#allocation19], 4
          %s565 = int_to_ptr.vmem [resolvable:$true] %s564
          %570 = dma.hbm_to_vmem [thread:$0]  %s12, 16384, %s565, [#allocation18], 256, 256, 16
        $region56: #{tpu_custom_call.1} parent=11 // pred_fallthru
          _
        // Predicated region
        $region57: #{tpu_custom_call.1} parent=11 // pred_check
          %p571 = pneg %p345
        $region58: #{tpu_custom_call.1} parent=11 // pred_check_branch
          %573 = sbr.rel (%p571) target = $region60
        $region59: #{tpu_custom_call.1} parent=11 // pred_region
          _
        $region60: #{tpu_custom_call.1} parent=11 // pred_fallthru
          _
        // Predicated region
        $region61: #{tpu_custom_call.1} parent=11 // pred_check
          %p574 = pneg %p366
        $region62: #{tpu_custom_call.1} parent=11 // pred_check_branch
          %576 = sbr.rel (%p574) target = $region64
        $region63: #{tpu_custom_call.1} parent=11 // pred_region
          %s578 = ssub.s32 28672, 28672
          %579 = vsyncadd [#allocation21], %s578
          %s580 = sshll.u32 [#allocation20], 4
          %s581 = int_to_ptr.vmem [resolvable:$true] %s580
          %586 = dma.hbm_to_vmem [thread:$0]  %s14, 28672, %s581, [#allocation21], 448, 448, 28
        $region64: #{tpu_custom_call.1} parent=11 // pred_fallthru
          _
        // Predicated region
        $region65: #{tpu_custom_call.1} parent=11 // pred_check
          %p587 = pneg %p387
        $region66: #{tpu_custom_call.1} parent=11 // pred_check_branch
          %589 = sbr.rel (%p587) target = $region68
        $region67: #{tpu_custom_call.1} parent=11 // pred_region
          _
        $region68: #{tpu_custom_call.1} parent=11 // pred_fallthru
          _
      $region12: #{tpu_custom_call.1} parent=5 // pred_fallthru
        _
      %p590 = scmp.lt.s32.totalorder %s41, 2
      // Predicated region
      $region69: #{tpu_custom_call.1} parent=5 // pred_check
        %p591 = pneg %p590
      $region70: #{tpu_custom_call.1} parent=5 // pred_check_branch
        %593 = sbr.rel (%p591) target = $region72
      $region71: #{tpu_custom_call.1} parent=5 // pred_region
        // Predicated region
        $region73: #{tpu_custom_call.1} parent=71 // pred_check
          %p594 = pneg %p61
        $region74: #{tpu_custom_call.1} parent=71 // pred_check_branch
          %596 = sbr.rel (%p594) target = $region76
        $region75: #{tpu_custom_call.1} parent=71 // pred_region
          %s597 = sand.u32 %s51, 1
          %s598 = scalar_lea.sflag [#allocation3], %s597
          %s599 = sand.u32 %s51, 1
          %s600 = smul.addr %s599, 28
          %s601 = scalar_lea.vmem [#allocation2], %s600
          %s603 = ssub.s32 448, 448
          %604 = vsyncadd %s598, %s603
          %s605 = smul.addr %s41, 7
          %s606 = smul.addr %s605, 64
          %s607 = scalar_lea.hbm %s0, %s606
          %s609 = sshll.u32 %s601, 4
          %s610 = int_to_ptr.vmem [resolvable:$true] %s609
          %612 = dma.hbm_to_vmem [thread:$0]  %s607, 448, %s610, %s598
        $region76: #{tpu_custom_call.1} parent=71 // pred_fallthru
          _
        // Predicated region
        $region77: #{tpu_custom_call.1} parent=71 // pred_check
          %p613 = pneg %p87
        $region78: #{tpu_custom_call.1} parent=71 // pred_check_branch
          %615 = sbr.rel (%p613) target = $region80
        $region79: #{tpu_custom_call.1} parent=71 // pred_region
          %s616 = sand.u32 %s41, 1
          %s617 = scalar_lea.sflag [#allocation6], %s616
          %s618 = sand.u32 %s77, 1
          %s619 = smul.addr %s618, 8
          %s620 = scalar_lea.vmem [#allocation5], %s619
          %s622 = ssub.s32 128, 128
          %623 = vsyncadd %s617, %s622
          %s624 = smul.addr %s41, 128
          %s625 = scalar_lea.hbm %s1, %s624
          %s627 = sshll.u32 %s620, 4
          %s628 = int_to_ptr.vmem [resolvable:$true] %s627
          %630 = dma.hbm_to_vmem [thread:$0]  %s625, 128, %s628, %s617
        $region80: #{tpu_custom_call.1} parent=71 // pred_fallthru
          _
      $region72: #{tpu_custom_call.1} parent=5 // pred_fallthru
        _
      %p631 = scmp.le.s32.totalorder 1, %s41
      %p632 = scmp.lt.s32.totalorder %s41, 3
      %p633 = pnand %p631, %p632
      %p634 = pneg %p633
      // Predicated region
      $region81: #{tpu_custom_call.1} parent=5 // pred_check
        _
      $region82: #{tpu_custom_call.1} parent=5 // pred_check_branch
        %636 = sbr.rel (%p633) target = $region84
      $region83: #{tpu_custom_call.1} parent=5 // pred_region
        %s637 = ssub.s32 %s41, 1
        %s638 = sand.u32 %s54, 1
        %s639 = scalar_lea.sflag [#allocation3], %s638
        %s640 = sand.u32 %s54, 1
        %s641 = smul.addr %s640, 28
        %s642 = scalar_lea.vmem [#allocation2], %s641
        // Predicated region
        $region85: #{tpu_custom_call.1} parent=83 // pred_check
          %p643 = pneg %p67
        $region86: #{tpu_custom_call.1} parent=83 // pred_check_branch
          %645 = sbr.rel (%p643) target = $region88
        $region87: #{tpu_custom_call.1} parent=83 // pred_region
          %646 = dma.done %s639, 448
        $region88: #{tpu_custom_call.1} parent=83 // pred_fallthru
          _
        %s647 = sand.u32 %s46, 1
        %s648 = scalar_lea.sflag [#allocation6], %s647
        %s649 = sand.u32 %s80, 1
        %s650 = smul.addr %s649, 8
        %s651 = scalar_lea.vmem [#allocation5], %s650
        // Predicated region
        $region89: #{tpu_custom_call.1} parent=83 // pred_check
          %p652 = pneg %p93
        $region90: #{tpu_custom_call.1} parent=83 // pred_check_branch
          %654 = sbr.rel (%p652) target = $region92
        $region91: #{tpu_custom_call.1} parent=83 // pred_region
          %655 = dma.done %s648, 128
        $region92: #{tpu_custom_call.1} parent=83 // pred_fallthru
          _
        // Predicated region
        $region93: #{tpu_custom_call.1} parent=83 // pred_check
          %p656 = pneg %p114
        $region94: #{tpu_custom_call.1} parent=83 // pred_check_branch
          %658 = sbr.rel (%p656) target = $region96
        $region95: #{tpu_custom_call.1} parent=83 // pred_region
          %659 = dma.done [#allocation6], 25088
        $region96: #{tpu_custom_call.1} parent=83 // pred_fallthru
          _
        // Predicated region
        $region97: #{tpu_custom_call.1} parent=83 // pred_check
          %p660 = pneg %p156
        $region98: #{tpu_custom_call.1} parent=83 // pred_check_branch
          %662 = sbr.rel (%p660) target = $region100
        $region99: #{tpu_custom_call.1} parent=83 // pred_region
          %663 = dma.done [#allocation9], 16384
        $region100: #{tpu_custom_call.1} parent=83 // pred_fallthru
          _
        // Predicated region
        $region101: #{tpu_custom_call.1} parent=83 // pred_check
          %p664 = pneg %p177
        $region102: #{tpu_custom_call.1} parent=83 // pred_check_branch
          %666 = sbr.rel (%p664) target = $region104
        $region103: #{tpu_custom_call.1} parent=83 // pred_region
          %667 = dma.done [#allocation9], 64
        $region104: #{tpu_custom_call.1} parent=83 // pred_fallthru
          _
        // Predicated region
        $region105: #{tpu_custom_call.1} parent=83 // pred_check
          %p668 = pneg %p198
        $region106: #{tpu_custom_call.1} parent=83 // pred_check_branch
          %670 = sbr.rel (%p668) target = $region108
        $region107: #{tpu_custom_call.1} parent=83 // pred_region
          %671 = dma.done [#allocation12], 16384
        $region108: #{tpu_custom_call.1} parent=83 // pred_fallthru
          _
        // Predicated region
        $region109: #{tpu_custom_call.1} parent=83 // pred_check
          %p672 = pneg %p219
        $region110: #{tpu_custom_call.1} parent=83 // pred_check_branch
          %674 = sbr.rel (%p672) target = $region112
        $region111: #{tpu_custom_call.1} parent=83 // pred_region
          %675 = dma.done [#allocation12], 64
        $region112: #{tpu_custom_call.1} parent=83 // pred_fallthru
          _
        // Predicated region
        $region113: #{tpu_custom_call.1} parent=83 // pred_check
          %p676 = pneg %p240
        $region114: #{tpu_custom_call.1} parent=83 // pred_check_branch
          %678 = sbr.rel (%p676) target = $region116
        $region115: #{tpu_custom_call.1} parent=83 // pred_region
          %679 = dma.done [#allocation15], 16384
        $region116: #{tpu_custom_call.1} parent=83 // pred_fallthru
          _
        // Predicated region
        $region117: #{tpu_custom_call.1} parent=83 // pred_check
          %p680 = pneg %p261
        $region118: #{tpu_custom_call.1} parent=83 // pred_check_branch
          %682 = sbr.rel (%p680) target = $region120
        $region119: #{tpu_custom_call.1} parent=83 // pred_region
          %683 = dma.done [#allocation15], 32
        $region120: #{tpu_custom_call.1} parent=83 // pred_fallthru
          _
        // Predicated region
        $region121: #{tpu_custom_call.1} parent=83 // pred_check
          %p684 = pneg %p282
        $region122: #{tpu_custom_call.1} parent=83 // pred_check_branch
          %686 = sbr.rel (%p684) target = $region124
        $region123: #{tpu_custom_call.1} parent=83 // pred_region
          %687 = dma.done [#allocation18], 4096
        $region124: #{tpu_custom_call.1} parent=83 // pred_fallthru
          _
        // Predicated region
        $region125: #{tpu_custom_call.1} parent=83 // pred_check
          %p688 = pneg %p324
        $region126: #{tpu_custom_call.1} parent=83 // pred_check_branch
          %690 = sbr.rel (%p688) target = $region128
        $region127: #{tpu_custom_call.1} parent=83 // pred_region
          %691 = dma.done [#allocation18], 16384
        $region128: #{tpu_custom_call.1} parent=83 // pred_fallthru
          _
        // Predicated region
        $region129: #{tpu_custom_call.1} parent=83 // pred_check
          %p692 = pneg %p366
        $region130: #{tpu_custom_call.1} parent=83 // pred_check_branch
          %694 = sbr.rel (%p692) target = $region132
        $region131: #{tpu_custom_call.1} parent=83 // pred_region
          %695 = dma.done [#allocation21], 28672
        $region132: #{tpu_custom_call.1} parent=83 // pred_fallthru
          _
        %s696 = sand.u32 %s54, 1
        %s697 = scalar_lea.sflag [#allocation3], %s696
        %s698 = sand.u32 %s54, 1
        %s699 = smul.addr %s698, 28
        %s700 = scalar_lea.vmem [#allocation2], %s699
        %p701 = pneg %p67
        %p702 = pneg %p64
        %s703 = sand.u32 %s46, 1
        %s704 = scalar_lea.sflag [#allocation6], %s703
        %s705 = sand.u32 %s80, 1
        %s706 = smul.addr %s705, 8
        %s707 = scalar_lea.vmem [#allocation5], %s706
        %p708 = pneg %p93
        %p709 = pneg %p90
        %p710 = pneg %p114
        %p711 = pneg %p111
        %p712 = pneg %p135
        %p713 = pneg %p132
        %p714 = pneg %p156
        %p715 = pneg %p153
        %p716 = pneg %p177
        %p717 = pneg %p174
        %p718 = pneg %p198
        %p719 = pneg %p195
        %p720 = pneg %p219
        %p721 = pneg %p216
        %p722 = pneg %p240
        %p723 = pneg %p237
        %p724 = pneg %p261
        %p725 = pneg %p258
        %p726 = pneg %p282
        %p727 = pneg %p279
        %p728 = pneg %p303
        %p729 = pneg %p300
        %p730 = pneg %p324
        %p731 = pneg %p321
        %p732 = pneg %p345
        %p733 = pneg %p342
        %p734 = pneg %p366
        %p735 = pneg %p363
        %p736 = pneg %p387
        %p737 = pneg %p384
        %p738 = pneg %p413
        %p739 = pneg %p410
        %s740 = sand.u32 %s400, 1
        %s741 = scalar_lea.sflag [#allocation4], %s740
        %s742 = sand.u32 %s400, 1
        %s743 = smul.addr %s742, 28
        %s744 = scalar_lea.vmem [#allocation22], %s743
        %p745 = pneg %p439
        %p746 = pneg %p436
        %s747 = sand.u32 %s426, 1
        %s748 = scalar_lea.sflag [#allocation24], %s747
        %s749 = sand.u32 %s426, 1
        %s750 = smul.addr %s749, 16
        %s751 = scalar_lea.vmem [#allocation23], %s750
        %v753 = vld [vmem:[%s642] sm:$0xff]
        %v754 = vld [vmem:[%s642 + $0x8] sm:$0xff]
        %v755 = vld [vmem:[%s642 + $0x10] sm:$0xff]
        %v756 = vld [vmem:[%s642 + $0x18] sm:$0xf]
        %v757 = vld [vmem:[#allocation7] sm:$0xff]
        %v758 = vld [vmem:[#allocation7 + $0x8] sm:$0xff]
        %v759 = vld [vmem:[#allocation7 + $0x10] sm:$0xff]
        %v760 = vld [vmem:[#allocation7 + $0x18] sm:$0xff]
        %v761 = vld [vmem:[#allocation7 + $0x20] sm:$0xff]
        %v762 = vld [vmem:[#allocation7 + $0x28] sm:$0xff]
        %v763 = vld [vmem:[#allocation7 + $0x30] sm:$0xff]
        %v764 = vld [vmem:[#allocation7 + $0x38] sm:$0xff]
        %v765 = vld [vmem:[#allocation7 + $0x40] sm:$0xff]
        %v766 = vld [vmem:[#allocation7 + $0x48] sm:$0xff]
        %v767 = vld [vmem:[#allocation7 + $0x50] sm:$0xff]
        %v768 = vld [vmem:[#allocation7 + $0x58] sm:$0xff]
        %v769 = vld [vmem:[#allocation7 + $0x60] sm:$0xff]
        %v770 = vld [vmem:[#allocation7 + $0x68] sm:$0xff]
        %v771 = vld [vmem:[#allocation7 + $0x70] sm:$0xff]
        %v772 = vld [vmem:[#allocation7 + $0x78] sm:$0xff]
        %v773 = vld [vmem:[#allocation7 + $0x80] sm:$0xff]
        %v774 = vld [vmem:[#allocation7 + $0x88] sm:$0xff]
        %v775 = vld [vmem:[#allocation7 + $0x90] sm:$0xff]
        %v776 = vld [vmem:[#allocation7 + $0x98] sm:$0xff]
        %v777 = vld [vmem:[#allocation7 + $0xa0] sm:$0xff]
        %v778 = vld [vmem:[#allocation7 + $0xa8] sm:$0xff]
        %v779 = vld [vmem:[#allocation7 + $0xb0] sm:$0xff]
        %v780 = vld [vmem:[#allocation7 + $0xb8] sm:$0xff]
        %v781 = vld [vmem:[#allocation7 + $0xc0] sm:$0xff]
        %v782 = vld [vmem:[#allocation7 + $0xc8] sm:$0xff]
        %v783 = vld [vmem:[#allocation7 + $0xd0] sm:$0xff]
        %v784 = vld [vmem:[#allocation7 + $0xd8] sm:$0xff]
        %v785 = vld [vmem:[#allocation7 + $0xe0] sm:$0xff]
        %v786 = vld [vmem:[#allocation7 + $0xe8] sm:$0xff]
        %v787 = vld [vmem:[#allocation7 + $0xf0] sm:$0xff]
        %v788 = vld [vmem:[#allocation7 + $0xf8] sm:$0xff]
        %v789 = vld [vmem:[#allocation7 + $0x100] sm:$0xff]
        %v790 = vld [vmem:[#allocation7 + $0x108] sm:$0xff]
        %v791 = vld [vmem:[#allocation7 + $0x110] sm:$0xff]
        %v792 = vld [vmem:[#allocation7 + $0x118] sm:$0xff]
        %v793 = vld [vmem:[#allocation7 + $0x120] sm:$0xff]
        %v794 = vld [vmem:[#allocation7 + $0x128] sm:$0xff]
        %v795 = vld [vmem:[#allocation7 + $0x130] sm:$0xff]
        %v796 = vld [vmem:[#allocation7 + $0x138] sm:$0xff]
        %v797 = vld [vmem:[#allocation7 + $0x140] sm:$0xff]
        %v798 = vld [vmem:[#allocation7 + $0x148] sm:$0xff]
        %v799 = vld [vmem:[#allocation7 + $0x150] sm:$0xff]
        %v800 = vld [vmem:[#allocation7 + $0x158] sm:$0xff]
        %v801 = vld [vmem:[#allocation7 + $0x160] sm:$0xff]
        %v802 = vld [vmem:[#allocation7 + $0x168] sm:$0xff]
        %v803 = vld [vmem:[#allocation7 + $0x170] sm:$0xff]
        %v804 = vld [vmem:[#allocation7 + $0x178] sm:$0xff]
        %v805 = vld [vmem:[#allocation7 + $0x180] sm:$0xff]
        %v806 = vld [vmem:[#allocation7 + $0x188] sm:$0xff]
        %v807 = vld [vmem:[#allocation7 + $0x190] sm:$0xff]
        %v808 = vld [vmem:[#allocation7 + $0x198] sm:$0xff]
        %v809 = vld [vmem:[#allocation7 + $0x1a0] sm:$0xff]
        %v810 = vld [vmem:[#allocation7 + $0x1a8] sm:$0xff]
        %v811 = vld [vmem:[#allocation7 + $0x1b0] sm:$0xff]
        %v812 = vld [vmem:[#allocation7 + $0x1b8] sm:$0xff]
        %v813 = vld [vmem:[#allocation7 + $0x1c0] sm:$0xff]
        %v814 = vld [vmem:[#allocation7 + $0x1c8] sm:$0xff]
        %v815 = vld [vmem:[#allocation7 + $0x1d0] sm:$0xff]
        %v816 = vld [vmem:[#allocation7 + $0x1d8] sm:$0xff]
        %v817 = vld [vmem:[#allocation7 + $0x1e0] sm:$0xff]
        %v818 = vld [vmem:[#allocation7 + $0x1e8] sm:$0xff]
        %v819 = vld [vmem:[#allocation7 + $0x1f0] sm:$0xff]
        %v820 = vld [vmem:[#allocation7 + $0x1f8] sm:$0xff]
        %v821 = vld [vmem:[#allocation7 + $0x200] sm:$0xff]
        %v822 = vld [vmem:[#allocation7 + $0x208] sm:$0xff]
        %v823 = vld [vmem:[#allocation7 + $0x210] sm:$0xff]
        %v824 = vld [vmem:[#allocation7 + $0x218] sm:$0xff]
        %v825 = vld [vmem:[#allocation7 + $0x220] sm:$0xff]
        %v826 = vld [vmem:[#allocation7 + $0x228] sm:$0xff]
        %v827 = vld [vmem:[#allocation7 + $0x230] sm:$0xff]
        %v828 = vld [vmem:[#allocation7 + $0x238] sm:$0xff]
        %v829 = vld [vmem:[#allocation7 + $0x240] sm:$0xff]
        %v830 = vld [vmem:[#allocation7 + $0x248] sm:$0xff]
        %v831 = vld [vmem:[#allocation7 + $0x250] sm:$0xff]
        %v832 = vld [vmem:[#allocation7 + $0x258] sm:$0xff]
        %v833 = vld [vmem:[#allocation7 + $0x260] sm:$0xff]
        %v834 = vld [vmem:[#allocation7 + $0x268] sm:$0xff]
        %v835 = vld [vmem:[#allocation7 + $0x270] sm:$0xff]
        %v836 = vld [vmem:[#allocation7 + $0x278] sm:$0xff]
        %v837 = vld [vmem:[#allocation7 + $0x280] sm:$0xff]
        %v838 = vld [vmem:[#allocation7 + $0x288] sm:$0xff]
        %v839 = vld [vmem:[#allocation7 + $0x290] sm:$0xff]
        %v840 = vld [vmem:[#allocation7 + $0x298] sm:$0xff]
        %v841 = vld [vmem:[#allocation7 + $0x2a0] sm:$0xff]
        %v842 = vld [vmem:[#allocation7 + $0x2a8] sm:$0xff]
        %v843 = vld [vmem:[#allocation7 + $0x2b0] sm:$0xff]
        %v844 = vld [vmem:[#allocation7 + $0x2b8] sm:$0xff]
        %v845 = vld [vmem:[#allocation7 + $0x2c0] sm:$0xff]
        %v846 = vld [vmem:[#allocation7 + $0x2c8] sm:$0xff]
        %v847 = vld [vmem:[#allocation7 + $0x2d0] sm:$0xff]
        %v848 = vld [vmem:[#allocation7 + $0x2d8] sm:$0xff]
        %v849 = vld [vmem:[#allocation7 + $0x2e0] sm:$0xff]
        %v850 = vld [vmem:[#allocation7 + $0x2e8] sm:$0xff]
        %v851 = vld [vmem:[#allocation7 + $0x2f0] sm:$0xff]
        %v852 = vld [vmem:[#allocation7 + $0x2f8] sm:$0xff]
        %v853 = vld [vmem:[#allocation7 + $0x300] sm:$0xff]
        %v854 = vld [vmem:[#allocation7 + $0x308] sm:$0xff]
        %v855 = vld [vmem:[#allocation7 + $0x310] sm:$0xff]
        %v856 = vld [vmem:[#allocation7 + $0x318] sm:$0xff]
        %v857 = vld [vmem:[#allocation7 + $0x320] sm:$0xff]
        %v858 = vld [vmem:[#allocation7 + $0x328] sm:$0xff]
        %v859 = vld [vmem:[#allocation7 + $0x330] sm:$0xff]
        %v860 = vld [vmem:[#allocation7 + $0x338] sm:$0xff]
        %v861 = vld [vmem:[#allocation7 + $0x340] sm:$0xff]
        %v862 = vld [vmem:[#allocation7 + $0x348] sm:$0xff]
        %v863 = vld [vmem:[#allocation7 + $0x350] sm:$0xff]
        %v864 = vld [vmem:[#allocation7 + $0x358] sm:$0xff]
        %v865 = vld [vmem:[#allocation7 + $0x360] sm:$0xff]
        %v866 = vld [vmem:[#allocation7 + $0x368] sm:$0xff]
        %v867 = vld [vmem:[#allocation7 + $0x370] sm:$0xff]
        %v868 = vld [vmem:[#allocation7 + $0x378] sm:$0xff]
        %v869 = vld [vmem:[#allocation7 + $0x380] sm:$0xff]
        %v870 = vld [vmem:[#allocation7 + $0x388] sm:$0xff]
        %v871 = vld [vmem:[#allocation7 + $0x390] sm:$0xff]
        %v872 = vld [vmem:[#allocation7 + $0x398] sm:$0xff]
        %v873 = vld [vmem:[#allocation7 + $0x3a0] sm:$0xff]
        %v874 = vld [vmem:[#allocation7 + $0x3a8] sm:$0xff]
        %v875 = vld [vmem:[#allocation7 + $0x3b0] sm:$0xff]
        %v876 = vld [vmem:[#allocation7 + $0x3b8] sm:$0xff]
        %v877 = vld [vmem:[#allocation7 + $0x3c0] sm:$0xff]
        %v878 = vld [vmem:[#allocation7 + $0x3c8] sm:$0xff]
        %v879 = vld [vmem:[#allocation7 + $0x3d0] sm:$0xff]
        %v880 = vld [vmem:[#allocation7 + $0x3d8] sm:$0xff]
        %v881 = vld [vmem:[#allocation7 + $0x3e0] sm:$0xff]
        %v882 = vld [vmem:[#allocation7 + $0x3e8] sm:$0xff]
        %v883 = vld [vmem:[#allocation7 + $0x3f0] sm:$0xff]
        %v884 = vld [vmem:[#allocation7 + $0x3f8] sm:$0xff]
        %v885 = vld [vmem:[#allocation7 + $0x400] sm:$0xff]
        %v886 = vld [vmem:[#allocation7 + $0x408] sm:$0xff]
        %v887 = vld [vmem:[#allocation7 + $0x410] sm:$0xff]
        %v888 = vld [vmem:[#allocation7 + $0x418] sm:$0xff]
        %v889 = vld [vmem:[#allocation7 + $0x420] sm:$0xff]
        %v890 = vld [vmem:[#allocation7 + $0x428] sm:$0xff]
        %v891 = vld [vmem:[#allocation7 + $0x430] sm:$0xff]
        %v892 = vld [vmem:[#allocation7 + $0x438] sm:$0xff]
        %v893 = vld [vmem:[#allocation7 + $0x440] sm:$0xff]
        %v894 = vld [vmem:[#allocation7 + $0x448] sm:$0xff]
        %v895 = vld [vmem:[#allocation7 + $0x450] sm:$0xff]
        %v896 = vld [vmem:[#allocation7 + $0x458] sm:$0xff]
        %v897 = vld [vmem:[#allocation7 + $0x460] sm:$0xff]
        %v898 = vld [vmem:[#allocation7 + $0x468] sm:$0xff]
        %v899 = vld [vmem:[#allocation7 + $0x470] sm:$0xff]
        %v900 = vld [vmem:[#allocation7 + $0x478] sm:$0xff]
        %v901 = vld [vmem:[#allocation7 + $0x480] sm:$0xff]
        %v902 = vld [vmem:[#allocation7 + $0x488] sm:$0xff]
        %v903 = vld [vmem:[#allocation7 + $0x490] sm:$0xff]
        %v904 = vld [vmem:[#allocation7 + $0x498] sm:$0xff]
        %v905 = vld [vmem:[#allocation7 + $0x4a0] sm:$0xff]
        %v906 = vld [vmem:[#allocation7 + $0x4a8] sm:$0xff]
        %v907 = vld [vmem:[#allocation7 + $0x4b0] sm:$0xff]
        %v908 = vld [vmem:[#allocation7 + $0x4b8] sm:$0xff]
        %v909 = vld [vmem:[#allocation7 + $0x4c0] sm:$0xff]
        %v910 = vld [vmem:[#allocation7 + $0x4c8] sm:$0xff]
        %v911 = vld [vmem:[#allocation7 + $0x4d0] sm:$0xff]
        %v912 = vld [vmem:[#allocation7 + $0x4d8] sm:$0xff]
        %v913 = vld [vmem:[#allocation7 + $0x4e0] sm:$0xff]
        %v914 = vld [vmem:[#allocation7 + $0x4e8] sm:$0xff]
        %v915 = vld [vmem:[#allocation7 + $0x4f0] sm:$0xff]
        %v916 = vld [vmem:[#allocation7 + $0x4f8] sm:$0xff]
        %v917 = vld [vmem:[#allocation7 + $0x500] sm:$0xff]
        %v918 = vld [vmem:[#allocation7 + $0x508] sm:$0xff]
        %v919 = vld [vmem:[#allocation7 + $0x510] sm:$0xff]
        %v920 = vld [vmem:[#allocation7 + $0x518] sm:$0xff]
        %v921 = vld [vmem:[#allocation7 + $0x520] sm:$0xff]
        %v922 = vld [vmem:[#allocation7 + $0x528] sm:$0xff]
        %v923 = vld [vmem:[#allocation7 + $0x530] sm:$0xff]
        %v924 = vld [vmem:[#allocation7 + $0x538] sm:$0xff]
        %v925 = vld [vmem:[#allocation7 + $0x540] sm:$0xff]
        %v926 = vld [vmem:[#allocation7 + $0x548] sm:$0xff]
        %v927 = vld [vmem:[#allocation7 + $0x550] sm:$0xff]
        %v928 = vld [vmem:[#allocation7 + $0x558] sm:$0xff]
        %v929 = vld [vmem:[#allocation7 + $0x560] sm:$0xff]
        %v930 = vld [vmem:[#allocation7 + $0x568] sm:$0xff]
        %v931 = vld [vmem:[#allocation7 + $0x570] sm:$0xff]
        %v932 = vld [vmem:[#allocation7 + $0x578] sm:$0xff]
        %v933 = vld [vmem:[#allocation7 + $0x580] sm:$0xff]
        %v934 = vld [vmem:[#allocation7 + $0x588] sm:$0xff]
        %v935 = vld [vmem:[#allocation7 + $0x590] sm:$0xff]
        %v936 = vld [vmem:[#allocation7 + $0x598] sm:$0xff]
        %v937 = vld [vmem:[#allocation7 + $0x5a0] sm:$0xff]
        %v938 = vld [vmem:[#allocation7 + $0x5a8] sm:$0xff]
        %v939 = vld [vmem:[#allocation7 + $0x5b0] sm:$0xff]
        %v940 = vld [vmem:[#allocation7 + $0x5b8] sm:$0xff]
        %v941 = vld [vmem:[#allocation7 + $0x5c0] sm:$0xff]
        %v942 = vld [vmem:[#allocation7 + $0x5c8] sm:$0xff]
        %v943 = vld [vmem:[#allocation7 + $0x5d0] sm:$0xff]
        %v944 = vld [vmem:[#allocation7 + $0x5d8] sm:$0xff]
        %v945 = vld [vmem:[#allocation7 + $0x5e0] sm:$0xff]
        %v946 = vld [vmem:[#allocation7 + $0x5e8] sm:$0xff]
        %v947 = vld [vmem:[#allocation7 + $0x5f0] sm:$0xff]
        %v948 = vld [vmem:[#allocation7 + $0x5f8] sm:$0xff]
        %v949 = vld [vmem:[#allocation7 + $0x600] sm:$0xff]
        %v950 = vld [vmem:[#allocation7 + $0x608] sm:$0xff]
        %v951 = vld [vmem:[#allocation7 + $0x610] sm:$0xff]
        %v952 = vld [vmem:[#allocation7 + $0x618] sm:$0xff]
        %v953 = vld [vmem:[%s3] sm:$0xf]
        %v955 = vlaneseq
        %v956 = vshrl.u32 %v955, 7
        %v957 = vsub.s32 0, %v956
        %v958 = vrot.slane %v953, %v957
        %v959 = vlaneseq
        %v960 = vshrl.u32 %v959, 7
        %v961 = vsub.s32 1, %v960
        %v962 = vrot.slane %v953, %v961
        %v963 = vlaneseq
        %v964 = vshrl.u32 %v963, 7
        %v965 = vsub.s32 2, %v964
        %v966 = vrot.slane %v953, %v965
        %v967 = vlaneseq
        %v968 = vshrl.u32 %v967, 7
        %v969 = vsub.s32 3, %v968
        %v970 = vrot.slane %v953, %v969
        %v979 = vunpack.c.l.b16 %v753
        %v980 = vunpack.c.h.b16 %v753
        %v981 = vunpack.c.l.b16 %v754
        %v982 = vunpack.c.h.b16 %v754
        %v983 = vunpack.c.l.b16 %v755
        %v984 = vunpack.c.h.b16 %v755
        %v985 = vunpack.c.l.b16 %v756
        %v986 = vpack.c.b16 %v979, %v979
        %v987 = vpack.c.b16 %v980, %v980
        %v988 = vpack.c.b16 %v981, %v981
        %v989 = vpack.c.b16 %v982, %v982
        %v990 = vpack.c.b16 %v983, %v983
        %v991 = vpack.c.b16 %v984, %v984
        %v992 = vpack.c.b16 %v985, %v985
        %v1195 = vunpack.c.l.b16 %v757
        %v1196 = vunpack.c.h.b16 %v757
        %v1197 = vunpack.c.l.b16 %v758
        %v1198 = vunpack.c.h.b16 %v758
        %v1199 = vunpack.c.l.b16 %v759
        %v1200 = vunpack.c.h.b16 %v759
        %v1201 = vunpack.c.l.b16 %v760
        %v1202 = vunpack.c.h.b16 %v760
        %v1203 = vunpack.c.l.b16 %v761
        %v1204 = vunpack.c.h.b16 %v761
        %v1205 = vunpack.c.l.b16 %v762
        %v1206 = vunpack.c.h.b16 %v762
        %v1207 = vunpack.c.l.b16 %v763
        %v1208 = vunpack.c.h.b16 %v763
        %v1209 = vunpack.c.l.b16 %v764
        %v1210 = vunpack.c.h.b16 %v764
        %v1211 = vunpack.c.l.b16 %v765
        %v1212 = vunpack.c.h.b16 %v765
        %v1213 = vunpack.c.l.b16 %v766
        %v1214 = vunpack.c.h.b16 %v766
        %v1215 = vunpack.c.l.b16 %v767
        %v1216 = vunpack.c.h.b16 %v767
        %v1217 = vunpack.c.l.b16 %v768
        %v1218 = vunpack.c.h.b16 %v768
        %v1219 = vunpack.c.l.b16 %v769
        %v1220 = vunpack.c.h.b16 %v769
        %v1221 = vunpack.c.l.b16 %v770
        %v1222 = vunpack.c.h.b16 %v770
        %v1223 = vunpack.c.l.b16 %v771
        %v1224 = vunpack.c.h.b16 %v771
        %v1225 = vunpack.c.l.b16 %v772
        %v1226 = vunpack.c.h.b16 %v772
        %v1227 = vunpack.c.l.b16 %v773
        %v1228 = vunpack.c.h.b16 %v773
        %v1229 = vunpack.c.l.b16 %v774
        %v1230 = vunpack.c.h.b16 %v774
        %v1231 = vunpack.c.l.b16 %v775
        %v1232 = vunpack.c.h.b16 %v775
        %v1233 = vunpack.c.l.b16 %v776
        %v1234 = vunpack.c.h.b16 %v776
        %v1235 = vunpack.c.l.b16 %v777
        %v1236 = vunpack.c.h.b16 %v777
        %v1237 = vunpack.c.l.b16 %v778
        %v1238 = vunpack.c.h.b16 %v778
        %v1239 = vunpack.c.l.b16 %v779
        %v1240 = vunpack.c.h.b16 %v779
        %v1241 = vunpack.c.l.b16 %v780
        %v1242 = vunpack.c.h.b16 %v780
        %v1243 = vunpack.c.l.b16 %v781
        %v1244 = vunpack.c.h.b16 %v781
        %v1245 = vunpack.c.l.b16 %v782
        %v1246 = vunpack.c.h.b16 %v782
        %v1247 = vunpack.c.l.b16 %v783
        %v1248 = vunpack.c.h.b16 %v783
        %v1249 = vunpack.c.l.b16 %v784
        %v1250 = vunpack.c.h.b16 %v784
        %v1251 = vunpack.c.l.b16 %v785
        %v1252 = vunpack.c.h.b16 %v785
        %v1253 = vunpack.c.l.b16 %v786
        %v1254 = vunpack.c.h.b16 %v786
        %v1255 = vunpack.c.l.b16 %v787
        %v1256 = vunpack.c.h.b16 %v787
        %v1257 = vunpack.c.l.b16 %v788
        %v1258 = vunpack.c.h.b16 %v788
        %v1259 = vunpack.c.l.b16 %v789
        %v1260 = vunpack.c.h.b16 %v789
        %v1261 = vunpack.c.l.b16 %v790
        %v1262 = vunpack.c.h.b16 %v790
        %v1263 = vunpack.c.l.b16 %v791
        %v1264 = vunpack.c.h.b16 %v791
        %v1265 = vunpack.c.l.b16 %v792
        %v1266 = vunpack.c.h.b16 %v792
        %v1267 = vunpack.c.l.b16 %v793
        %v1268 = vunpack.c.h.b16 %v793
        %v1269 = vunpack.c.l.b16 %v794
        %v1270 = vunpack.c.h.b16 %v794
        %v1271 = vunpack.c.l.b16 %v795
        %v1272 = vunpack.c.h.b16 %v795
        %v1273 = vunpack.c.l.b16 %v796
        %v1274 = vunpack.c.h.b16 %v796
        %v1275 = vunpack.c.l.b16 %v797
        %v1276 = vunpack.c.h.b16 %v797
        %v1277 = vunpack.c.l.b16 %v798
        %v1278 = vunpack.c.h.b16 %v798
        %v1279 = vunpack.c.l.b16 %v799
        %v1280 = vunpack.c.h.b16 %v799
        %v1281 = vunpack.c.l.b16 %v800
        %v1282 = vunpack.c.h.b16 %v800
        %v1283 = vunpack.c.l.b16 %v801
        %v1284 = vunpack.c.h.b16 %v801
        %v1285 = vunpack.c.l.b16 %v802
        %v1286 = vunpack.c.h.b16 %v802
        %v1287 = vunpack.c.l.b16 %v803
        %v1288 = vunpack.c.h.b16 %v803
        %v1289 = vunpack.c.l.b16 %v804
        %v1290 = vunpack.c.h.b16 %v804
        %v1291 = vunpack.c.l.b16 %v805
        %v1292 = vunpack.c.h.b16 %v805
        %v1293 = vunpack.c.l.b16 %v806
        %v1294 = vunpack.c.h.b16 %v806
        %v1295 = vunpack.c.l.b16 %v807
        %v1296 = vunpack.c.h.b16 %v807
        %v1297 = vunpack.c.l.b16 %v808
        %v1298 = vunpack.c.h.b16 %v808
        %v1299 = vunpack.c.l.b16 %v809
        %v1300 = vunpack.c.h.b16 %v809
        %v1301 = vunpack.c.l.b16 %v810
        %v1302 = vunpack.c.h.b16 %v810
        %v1303 = vunpack.c.l.b16 %v811
        %v1304 = vunpack.c.h.b16 %v811
        %v1305 = vunpack.c.l.b16 %v812
        %v1306 = vunpack.c.h.b16 %v812
        %v1307 = vunpack.c.l.b16 %v813
        %v1308 = vunpack.c.h.b16 %v813
        %v1309 = vunpack.c.l.b16 %v814
        %v1310 = vunpack.c.h.b16 %v814
        %v1311 = vunpack.c.l.b16 %v815
        %v1312 = vunpack.c.h.b16 %v815
        %v1313 = vunpack.c.l.b16 %v816
        %v1314 = vunpack.c.h.b16 %v816
        %v1315 = vunpack.c.l.b16 %v817
        %v1316 = vunpack.c.h.b16 %v817
        %v1317 = vunpack.c.l.b16 %v818
        %v1318 = vunpack.c.h.b16 %v818
        %v1319 = vunpack.c.l.b16 %v819
        %v1320 = vunpack.c.h.b16 %v819
        %v1321 = vunpack.c.l.b16 %v820
        %v1322 = vunpack.c.h.b16 %v820
        %v1323 = vunpack.c.l.b16 %v821
        %v1324 = vunpack.c.h.b16 %v821
        %v1325 = vunpack.c.l.b16 %v822
        %v1326 = vunpack.c.h.b16 %v822
        %v1327 = vunpack.c.l.b16 %v823
        %v1328 = vunpack.c.h.b16 %v823
        %v1329 = vunpack.c.l.b16 %v824
        %v1330 = vunpack.c.h.b16 %v824
        %v1331 = vunpack.c.l.b16 %v825
        %v1332 = vunpack.c.h.b16 %v825
        %v1333 = vunpack.c.l.b16 %v826
        %v1334 = vunpack.c.h.b16 %v826
        %v1335 = vunpack.c.l.b16 %v827
        %v1336 = vunpack.c.h.b16 %v827
        %v1337 = vunpack.c.l.b16 %v828
        %v1338 = vunpack.c.h.b16 %v828
        %v1339 = vunpack.c.l.b16 %v829
        %v1340 = vunpack.c.h.b16 %v829
        %v1341 = vunpack.c.l.b16 %v830
        %v1342 = vunpack.c.h.b16 %v830
        %v1343 = vunpack.c.l.b16 %v831
        %v1344 = vunpack.c.h.b16 %v831
        %v1345 = vunpack.c.l.b16 %v832
        %v1346 = vunpack.c.h.b16 %v832
        %v1347 = vunpack.c.l.b16 %v833
        %v1348 = vunpack.c.h.b16 %v833
        %v1349 = vunpack.c.l.b16 %v834
        %v1350 = vunpack.c.h.b16 %v834
        %v1351 = vunpack.c.l.b16 %v835
        %v1352 = vunpack.c.h.b16 %v835
        %v1353 = vunpack.c.l.b16 %v836
        %v1354 = vunpack.c.h.b16 %v836
        %v1355 = vunpack.c.l.b16 %v837
        %v1356 = vunpack.c.h.b16 %v837
        %v1357 = vunpack.c.l.b16 %v838
        %v1358 = vunpack.c.h.b16 %v838
        %v1359 = vunpack.c.l.b16 %v839
        %v1360 = vunpack.c.h.b16 %v839
        %v1361 = vunpack.c.l.b16 %v840
        %v1362 = vunpack.c.h.b16 %v840
        %v1363 = vunpack.c.l.b16 %v841
        %v1364 = vunpack.c.h.b16 %v841
        %v1365 = vunpack.c.l.b16 %v842
        %v1366 = vunpack.c.h.b16 %v842
        %v1367 = vunpack.c.l.b16 %v843
        %v1368 = vunpack.c.h.b16 %v843
        %v1369 = vunpack.c.l.b16 %v844
        %v1370 = vunpack.c.h.b16 %v844
        %v1371 = vunpack.c.l.b16 %v845
        %v1372 = vunpack.c.h.b16 %v845
        %v1373 = vunpack.c.l.b16 %v846
        %v1374 = vunpack.c.h.b16 %v846
        %v1375 = vunpack.c.l.b16 %v847
        %v1376 = vunpack.c.h.b16 %v847
        %v1377 = vunpack.c.l.b16 %v848
        %v1378 = vunpack.c.h.b16 %v848
        %v1379 = vunpack.c.l.b16 %v849
        %v1380 = vunpack.c.h.b16 %v849
        %v1381 = vunpack.c.l.b16 %v850
        %v1382 = vunpack.c.h.b16 %v850
        %v1383 = vunpack.c.l.b16 %v851
        %v1384 = vunpack.c.h.b16 %v851
        %v1385 = vunpack.c.l.b16 %v852
        %v1386 = vunpack.c.h.b16 %v852
        %v1387 = vunpack.c.l.b16 %v853
        %v1388 = vunpack.c.h.b16 %v853
        %v1389 = vunpack.c.l.b16 %v854
        %v1390 = vunpack.c.h.b16 %v854
        %v1391 = vunpack.c.l.b16 %v855
        %v1392 = vunpack.c.h.b16 %v855
        %v1393 = vunpack.c.l.b16 %v856
        %v1394 = vunpack.c.h.b16 %v856
        %v1395 = vunpack.c.l.b16 %v857
        %v1396 = vunpack.c.h.b16 %v857
        %v1397 = vunpack.c.l.b16 %v858
        %v1398 = vunpack.c.h.b16 %v858
        %v1399 = vunpack.c.l.b16 %v859
        %v1400 = vunpack.c.h.b16 %v859
        %v1401 = vunpack.c.l.b16 %v860
        %v1402 = vunpack.c.h.b16 %v860
        %v1403 = vunpack.c.l.b16 %v861
        %v1404 = vunpack.c.h.b16 %v861
        %v1405 = vunpack.c.l.b16 %v862
        %v1406 = vunpack.c.h.b16 %v862
        %v1407 = vunpack.c.l.b16 %v863
        %v1408 = vunpack.c.h.b16 %v863
        %v1409 = vunpack.c.l.b16 %v864
        %v1410 = vunpack.c.h.b16 %v864
        %v1411 = vunpack.c.l.b16 %v865
        %v1412 = vunpack.c.h.b16 %v865
        %v1413 = vunpack.c.l.b16 %v866
        %v1414 = vunpack.c.h.b16 %v866
        %v1415 = vunpack.c.l.b16 %v867
        %v1416 = vunpack.c.h.b16 %v867
        %v1417 = vunpack.c.l.b16 %v868
        %v1418 = vunpack.c.h.b16 %v868
        %v1419 = vunpack.c.l.b16 %v869
        %v1420 = vunpack.c.h.b16 %v869
        %v1421 = vunpack.c.l.b16 %v870
        %v1422 = vunpack.c.h.b16 %v870
        %v1423 = vunpack.c.l.b16 %v871
        %v1424 = vunpack.c.h.b16 %v871
        %v1425 = vunpack.c.l.b16 %v872
        %v1426 = vunpack.c.h.b16 %v872
        %v1427 = vunpack.c.l.b16 %v873
        %v1428 = vunpack.c.h.b16 %v873
        %v1429 = vunpack.c.l.b16 %v874
        %v1430 = vunpack.c.h.b16 %v874
        %v1431 = vunpack.c.l.b16 %v875
        %v1432 = vunpack.c.h.b16 %v875
        %v1433 = vunpack.c.l.b16 %v876
        %v1434 = vunpack.c.h.b16 %v876
        %v1435 = vunpack.c.l.b16 %v877
        %v1436 = vunpack.c.h.b16 %v877
        %v1437 = vunpack.c.l.b16 %v878
        %v1438 = vunpack.c.h.b16 %v878
        %v1439 = vunpack.c.l.b16 %v879
        %v1440 = vunpack.c.h.b16 %v879
        %v1441 = vunpack.c.l.b16 %v880
        %v1442 = vunpack.c.h.b16 %v880
        %v1443 = vunpack.c.l.b16 %v881
        %v1444 = vunpack.c.h.b16 %v881
        %v1445 = vunpack.c.l.b16 %v882
        %v1446 = vunpack.c.h.b16 %v882
        %v1447 = vunpack.c.l.b16 %v883
        %v1448 = vunpack.c.h.b16 %v883
        %v1449 = vunpack.c.l.b16 %v884
        %v1450 = vunpack.c.h.b16 %v884
        %v1451 = vunpack.c.l.b16 %v885
        %v1452 = vunpack.c.h.b16 %v885
        %v1453 = vunpack.c.l.b16 %v886
        %v1454 = vunpack.c.h.b16 %v886
        %v1455 = vunpack.c.l.b16 %v887
        %v1456 = vunpack.c.h.b16 %v887
        %v1457 = vunpack.c.l.b16 %v888
        %v1458 = vunpack.c.h.b16 %v888
        %v1459 = vunpack.c.l.b16 %v889
        %v1460 = vunpack.c.h.b16 %v889
        %v1461 = vunpack.c.l.b16 %v890
        %v1462 = vunpack.c.h.b16 %v890
        %v1463 = vunpack.c.l.b16 %v891
        %v1464 = vunpack.c.h.b16 %v891
        %v1465 = vunpack.c.l.b16 %v892
        %v1466 = vunpack.c.h.b16 %v892
        %v1467 = vunpack.c.l.b16 %v893
        %v1468 = vunpack.c.h.b16 %v893
        %v1469 = vunpack.c.l.b16 %v894
        %v1470 = vunpack.c.h.b16 %v894
        %v1471 = vunpack.c.l.b16 %v895
        %v1472 = vunpack.c.h.b16 %v895
        %v1473 = vunpack.c.l.b16 %v896
        %v1474 = vunpack.c.h.b16 %v896
        %v1475 = vunpack.c.l.b16 %v897
        %v1476 = vunpack.c.h.b16 %v897
        %v1477 = vunpack.c.l.b16 %v898
        %v1478 = vunpack.c.h.b16 %v898
        %v1479 = vunpack.c.l.b16 %v899
        %v1480 = vunpack.c.h.b16 %v899
        %v1481 = vunpack.c.l.b16 %v900
        %v1482 = vunpack.c.h.b16 %v900
        %v1483 = vunpack.c.l.b16 %v901
        %v1484 = vunpack.c.h.b16 %v901
        %v1485 = vunpack.c.l.b16 %v902
        %v1486 = vunpack.c.h.b16 %v902
        %v1487 = vunpack.c.l.b16 %v903
        %v1488 = vunpack.c.h.b16 %v903
        %v1489 = vunpack.c.l.b16 %v904
        %v1490 = vunpack.c.h.b16 %v904
        %v1491 = vunpack.c.l.b16 %v905
        %v1492 = vunpack.c.h.b16 %v905
        %v1493 = vunpack.c.l.b16 %v906
        %v1494 = vunpack.c.h.b16 %v906
        %v1495 = vunpack.c.l.b16 %v907
        %v1496 = vunpack.c.h.b16 %v907
        %v1497 = vunpack.c.l.b16 %v908
        %v1498 = vunpack.c.h.b16 %v908
        %v1499 = vunpack.c.l.b16 %v909
        %v1500 = vunpack.c.h.b16 %v909
        %v1501 = vunpack.c.l.b16 %v910
        %v1502 = vunpack.c.h.b16 %v910
        %v1503 = vunpack.c.l.b16 %v911
        %v1504 = vunpack.c.h.b16 %v911
        %v1505 = vunpack.c.l.b16 %v912
        %v1506 = vunpack.c.h.b16 %v912
        %v1507 = vunpack.c.l.b16 %v913
        %v1508 = vunpack.c.h.b16 %v913
        %v1509 = vunpack.c.l.b16 %v914
        %v1510 = vunpack.c.h.b16 %v914
        %v1511 = vunpack.c.l.b16 %v915
        %v1512 = vunpack.c.h.b16 %v915
        %v1513 = vunpack.c.l.b16 %v916
        %v1514 = vunpack.c.h.b16 %v916
        %v1515 = vunpack.c.l.b16 %v917
        %v1516 = vunpack.c.h.b16 %v917
        %v1517 = vunpack.c.l.b16 %v918
        %v1518 = vunpack.c.h.b16 %v918
        %v1519 = vunpack.c.l.b16 %v919
        %v1520 = vunpack.c.h.b16 %v919
        %v1521 = vunpack.c.l.b16 %v920
        %v1522 = vunpack.c.h.b16 %v920
        %v1523 = vunpack.c.l.b16 %v921
        %v1524 = vunpack.c.h.b16 %v921
        %v1525 = vunpack.c.l.b16 %v922
        %v1526 = vunpack.c.h.b16 %v922
        %v1527 = vunpack.c.l.b16 %v923
        %v1528 = vunpack.c.h.b16 %v923
        %v1529 = vunpack.c.l.b16 %v924
        %v1530 = vunpack.c.h.b16 %v924
        %v1531 = vunpack.c.l.b16 %v925
        %v1532 = vunpack.c.h.b16 %v925
        %v1533 = vunpack.c.l.b16 %v926
        %v1534 = vunpack.c.h.b16 %v926
        %v1535 = vunpack.c.l.b16 %v927
        %v1536 = vunpack.c.h.b16 %v927
        %v1537 = vunpack.c.l.b16 %v928
        %v1538 = vunpack.c.h.b16 %v928
        %v1539 = vunpack.c.l.b16 %v929
        %v1540 = vunpack.c.h.b16 %v929
        %v1541 = vunpack.c.l.b16 %v930
        %v1542 = vunpack.c.h.b16 %v930
        %v1543 = vunpack.c.l.b16 %v931
        %v1544 = vunpack.c.h.b16 %v931
        %v1545 = vunpack.c.l.b16 %v932
        %v1546 = vunpack.c.h.b16 %v932
        %v1547 = vunpack.c.l.b16 %v933
        %v1548 = vunpack.c.h.b16 %v933
        %v1549 = vunpack.c.l.b16 %v934
        %v1550 = vunpack.c.h.b16 %v934
        %v1551 = vunpack.c.l.b16 %v935
        %v1552 = vunpack.c.h.b16 %v935
        %v1553 = vunpack.c.l.b16 %v936
        %v1554 = vunpack.c.h.b16 %v936
        %v1555 = vunpack.c.l.b16 %v937
        %v1556 = vunpack.c.h.b16 %v937
        %v1557 = vunpack.c.l.b16 %v938
        %v1558 = vunpack.c.h.b16 %v938
        %v1559 = vunpack.c.l.b16 %v939
        %v1560 = vunpack.c.h.b16 %v939
        %v1561 = vunpack.c.l.b16 %v940
        %v1562 = vunpack.c.h.b16 %v940
        %v1563 = vunpack.c.l.b16 %v941
        %v1564 = vunpack.c.h.b16 %v941
        %v1565 = vunpack.c.l.b16 %v942
        %v1566 = vunpack.c.h.b16 %v942
        %v1567 = vunpack.c.l.b16 %v943
        %v1568 = vunpack.c.h.b16 %v943
        %v1569 = vunpack.c.l.b16 %v944
        %v1570 = vunpack.c.h.b16 %v944
        %v1571 = vunpack.c.l.b16 %v945
        %v1572 = vunpack.c.h.b16 %v945
        %v1573 = vunpack.c.l.b16 %v946
        %v1574 = vunpack.c.h.b16 %v946
        %v1575 = vunpack.c.l.b16 %v947
        %v1576 = vunpack.c.h.b16 %v947
        %v1577 = vunpack.c.l.b16 %v948
        %v1578 = vunpack.c.h.b16 %v948
        %v1579 = vunpack.c.l.b16 %v949
        %v1580 = vunpack.c.h.b16 %v949
        %v1581 = vunpack.c.l.b16 %v950
        %v1582 = vunpack.c.h.b16 %v950
        %v1583 = vunpack.c.l.b16 %v951
        %v1584 = vunpack.c.h.b16 %v951
        %v1585 = vunpack.c.l.b16 %v952
        %v1586 = vunpack.c.h.b16 %v952
        %v1587 = vpack.c.b16 %v1199, %v1195
        %v1588 = vpack.c.b16 %v1200, %v1196
        %v1589 = vpack.c.b16 %v1201, %v1197
        %v1590 = vpack.c.b16 %v1202, %v1198
        %v1591 = vpack.c.b16 %v1207, %v1203
        %v1592 = vpack.c.b16 %v1208, %v1204
        %v1593 = vpack.c.b16 %v1209, %v1205
        %v1594 = vpack.c.b16 %v1210, %v1206
        %v1595 = vpack.c.b16 %v1215, %v1211
        %v1596 = vpack.c.b16 %v1216, %v1212
        %v1597 = vpack.c.b16 %v1217, %v1213
        %v1598 = vpack.c.b16 %v1218, %v1214
        %v1599 = vpack.c.b16 %v1223, %v1219
        %v1600 = vpack.c.b16 %v1224, %v1220
        %v1601 = vpack.c.b16 %v1225, %v1221
        %v1602 = vpack.c.b16 %v1226, %v1222
        %v1603 = vpack.c.b16 %v1231, %v1227
        %v1604 = vpack.c.b16 %v1232, %v1228
        %v1605 = vpack.c.b16 %v1233, %v1229
        %v1606 = vpack.c.b16 %v1234, %v1230
        %v1607 = vpack.c.b16 %v1239, %v1235
        %v1608 = vpack.c.b16 %v1240, %v1236
        %v1609 = vpack.c.b16 %v1241, %v1237
        %v1610 = vpack.c.b16 %v1242, %v1238
        %v1611 = vpack.c.b16 %v1247, %v1243
        %v1612 = vpack.c.b16 %v1248, %v1244
        %v1613 = vpack.c.b16 %v1249, %v1245
        %v1614 = vpack.c.b16 %v1250, %v1246
        %v1615 = vpack.c.b16 %v1255, %v1251
        %v1616 = vpack.c.b16 %v1256, %v1252
        %v1617 = vpack.c.b16 %v1257, %v1253
        %v1618 = vpack.c.b16 %v1258, %v1254
        %v1619 = vpack.c.b16 %v1263, %v1259
        %v1620 = vpack.c.b16 %v1264, %v1260
        %v1621 = vpack.c.b16 %v1265, %v1261
        %v1622 = vpack.c.b16 %v1266, %v1262
        %v1623 = vpack.c.b16 %v1271, %v1267
        %v1624 = vpack.c.b16 %v1272, %v1268
        %v1625 = vpack.c.b16 %v1273, %v1269
        %v1626 = vpack.c.b16 %v1274, %v1270
        %v1627 = vpack.c.b16 %v1279, %v1275
        %v1628 = vpack.c.b16 %v1280, %v1276
        %v1629 = vpack.c.b16 %v1281, %v1277
        %v1630 = vpack.c.b16 %v1282, %v1278
        %v1631 = vpack.c.b16 %v1287, %v1283
        %v1632 = vpack.c.b16 %v1288, %v1284
        %v1633 = vpack.c.b16 %v1289, %v1285
        %v1634 = vpack.c.b16 %v1290, %v1286
        %v1635 = vpack.c.b16 %v1295, %v1291
        %v1636 = vpack.c.b16 %v1296, %v1292
        %v1637 = vpack.c.b16 %v1297, %v1293
        %v1638 = vpack.c.b16 %v1298, %v1294
        %v1639 = vpack.c.b16 %v1303, %v1299
        %v1640 = vpack.c.b16 %v1304, %v1300
        %v1641 = vpack.c.b16 %v1305, %v1301
        %v1642 = vpack.c.b16 %v1306, %v1302
        %v1643 = vpack.c.b16 %v1311, %v1307
        %v1644 = vpack.c.b16 %v1312, %v1308
        %v1645 = vpack.c.b16 %v1313, %v1309
        %v1646 = vpack.c.b16 %v1314, %v1310
        %v1647 = vpack.c.b16 %v1319, %v1315
        %v1648 = vpack.c.b16 %v1320, %v1316
        %v1649 = vpack.c.b16 %v1321, %v1317
        %v1650 = vpack.c.b16 %v1322, %v1318
        %v1651 = vpack.c.b16 %v1327, %v1323
        %v1652 = vpack.c.b16 %v1328, %v1324
        %v1653 = vpack.c.b16 %v1329, %v1325
        %v1654 = vpack.c.b16 %v1330, %v1326
        %v1655 = vpack.c.b16 %v1335, %v1331
        %v1656 = vpack.c.b16 %v1336, %v1332
        %v1657 = vpack.c.b16 %v1337, %v1333
        %v1658 = vpack.c.b16 %v1338, %v1334
        %v1659 = vpack.c.b16 %v1343, %v1339
        %v1660 = vpack.c.b16 %v1344, %v1340
        %v1661 = vpack.c.b16 %v1345, %v1341
        %v1662 = vpack.c.b16 %v1346, %v1342
        %v1663 = vpack.c.b16 %v1351, %v1347
        %v1664 = vpack.c.b16 %v1352, %v1348
        %v1665 = vpack.c.b16 %v1353, %v1349
        %v1666 = vpack.c.b16 %v1354, %v1350
        %v1667 = vpack.c.b16 %v1359, %v1355
        %v1668 = vpack.c.b16 %v1360, %v1356
        %v1669 = vpack.c.b16 %v1361, %v1357
        %v1670 = vpack.c.b16 %v1362, %v1358
        %v1671 = vpack.c.b16 %v1367, %v1363
        %v1672 = vpack.c.b16 %v1368, %v1364
        %v1673 = vpack.c.b16 %v1369, %v1365
        %v1674 = vpack.c.b16 %v1370, %v1366
        %v1675 = vpack.c.b16 %v1375, %v1371
        %v1676 = vpack.c.b16 %v1376, %v1372
        %v1677 = vpack.c.b16 %v1377, %v1373
        %v1678 = vpack.c.b16 %v1378, %v1374
        %v1679 = vpack.c.b16 %v1383, %v1379
        %v1680 = vpack.c.b16 %v1384, %v1380
        %v1681 = vpack.c.b16 %v1385, %v1381
        %v1682 = vpack.c.b16 %v1386, %v1382
        %v1683 = vpack.c.b16 %v1391, %v1387
        %v1684 = vpack.c.b16 %v1392, %v1388
        %v1685 = vpack.c.b16 %v1393, %v1389
        %v1686 = vpack.c.b16 %v1394, %v1390
        %v1687 = vpack.c.b16 %v1399, %v1395
        %v1688 = vpack.c.b16 %v1400, %v1396
        %v1689 = vpack.c.b16 %v1401, %v1397
        %v1690 = vpack.c.b16 %v1402, %v1398
        %v1691 = vpack.c.b16 %v1407, %v1403
        %v1692 = vpack.c.b16 %v1408, %v1404
        %v1693 = vpack.c.b16 %v1409, %v1405
        %v1694 = vpack.c.b16 %v1410, %v1406
        %v1695 = vpack.c.b16 %v1415, %v1411
        %v1696 = vpack.c.b16 %v1416, %v1412
        %v1697 = vpack.c.b16 %v1417, %v1413
        %v1698 = vpack.c.b16 %v1418, %v1414
        %v1699 = vpack.c.b16 %v1423, %v1419
        %v1700 = vpack.c.b16 %v1424, %v1420
        %v1701 = vpack.c.b16 %v1425, %v1421
        %v1702 = vpack.c.b16 %v1426, %v1422
        %v1703 = vpack.c.b16 %v1431, %v1427
        %v1704 = vpack.c.b16 %v1432, %v1428
        %v1705 = vpack.c.b16 %v1433, %v1429
        %v1706 = vpack.c.b16 %v1434, %v1430
        %v1707 = vpack.c.b16 %v1439, %v1435
        %v1708 = vpack.c.b16 %v1440, %v1436
        %v1709 = vpack.c.b16 %v1441, %v1437
        %v1710 = vpack.c.b16 %v1442, %v1438
        %v1711 = vpack.c.b16 %v1447, %v1443
        %v1712 = vpack.c.b16 %v1448, %v1444
        %v1713 = vpack.c.b16 %v1449, %v1445
        %v1714 = vpack.c.b16 %v1450, %v1446
        %v1715 = vpack.c.b16 %v1455, %v1451
        %v1716 = vpack.c.b16 %v1456, %v1452
        %v1717 = vpack.c.b16 %v1457, %v1453
        %v1718 = vpack.c.b16 %v1458, %v1454
        %v1719 = vpack.c.b16 %v1463, %v1459
        %v1720 = vpack.c.b16 %v1464, %v1460
        %v1721 = vpack.c.b16 %v1465, %v1461
        %v1722 = vpack.c.b16 %v1466, %v1462
        %v1723 = vpack.c.b16 %v1471, %v1467
        %v1724 = vpack.c.b16 %v1472, %v1468
        %v1725 = vpack.c.b16 %v1473, %v1469
        %v1726 = vpack.c.b16 %v1474, %v1470
        %v1727 = vpack.c.b16 %v1479, %v1475
        %v1728 = vpack.c.b16 %v1480, %v1476
        %v1729 = vpack.c.b16 %v1481, %v1477
        %v1730 = vpack.c.b16 %v1482, %v1478
        %v1731 = vpack.c.b16 %v1487, %v1483
        %v1732 = vpack.c.b16 %v1488, %v1484
        %v1733 = vpack.c.b16 %v1489, %v1485
        %v1734 = vpack.c.b16 %v1490, %v1486
        %v1735 = vpack.c.b16 %v1495, %v1491
        %v1736 = vpack.c.b16 %v1496, %v1492
        %v1737 = vpack.c.b16 %v1497, %v1493
        %v1738 = vpack.c.b16 %v1498, %v1494
        %v1739 = vpack.c.b16 %v1503, %v1499
        %v1740 = vpack.c.b16 %v1504, %v1500
        %v1741 = vpack.c.b16 %v1505, %v1501
        %v1742 = vpack.c.b16 %v1506, %v1502
        %v1743 = vpack.c.b16 %v1511, %v1507
        %v1744 = vpack.c.b16 %v1512, %v1508
        %v1745 = vpack.c.b16 %v1513, %v1509
        %v1746 = vpack.c.b16 %v1514, %v1510
        %v1747 = vpack.c.b16 %v1519, %v1515
        %v1748 = vpack.c.b16 %v1520, %v1516
        %v1749 = vpack.c.b16 %v1521, %v1517
        %v1750 = vpack.c.b16 %v1522, %v1518
        %v1751 = vpack.c.b16 %v1527, %v1523
        %v1752 = vpack.c.b16 %v1528, %v1524
        %v1753 = vpack.c.b16 %v1529, %v1525
        %v1754 = vpack.c.b16 %v1530, %v1526
        %v1755 = vpack.c.b16 %v1535, %v1531
        %v1756 = vpack.c.b16 %v1536, %v1532
        %v1757 = vpack.c.b16 %v1537, %v1533
        %v1758 = vpack.c.b16 %v1538, %v1534
        %v1759 = vpack.c.b16 %v1543, %v1539
        %v1760 = vpack.c.b16 %v1544, %v1540
        %v1761 = vpack.c.b16 %v1545, %v1541
        %v1762 = vpack.c.b16 %v1546, %v1542
        %v1763 = vpack.c.b16 %v1551, %v1547
        %v1764 = vpack.c.b16 %v1552, %v1548
        %v1765 = vpack.c.b16 %v1553, %v1549
        %v1766 = vpack.c.b16 %v1554, %v1550
        %v1767 = vpack.c.b16 %v1559, %v1555
        %v1768 = vpack.c.b16 %v1560, %v1556
        %v1769 = vpack.c.b16 %v1561, %v1557
        %v1770 = vpack.c.b16 %v1562, %v1558
        %v1771 = vpack.c.b16 %v1567, %v1563
        %v1772 = vpack.c.b16 %v1568, %v1564
        %v1773 = vpack.c.b16 %v1569, %v1565
        %v1774 = vpack.c.b16 %v1570, %v1566
        %v1775 = vpack.c.b16 %v1575, %v1571
        %v1776 = vpack.c.b16 %v1576, %v1572
        %v1777 = vpack.c.b16 %v1577, %v1573
        %v1778 = vpack.c.b16 %v1578, %v1574
        %v1779 = vpack.c.b16 %v1583, %v1579
        %v1780 = vpack.c.b16 %v1584, %v1580
        %v1781 = vpack.c.b16 %v1585, %v1581
        %v1782 = vpack.c.b16 %v1586, %v1582
        %vm1979 = vcmask 130048
        %v1981 = vsel %vm1979, %v992, 0
        %1983 = vmatprep.subr.bf16.mxu0 %v1616
        %1984 = vmatpush1.bf16.msra.mxu0 %v1615
        %1985 = vmatprep.subr.bf16.mxu0 %v1612
        %1986 = vmatpush1.bf16.msra.mxu0 %v1611
        %1987 = vmatprep.subr.bf16.mxu0 %v1608
        %1988 = vmatpush1.bf16.msra.mxu0 %v1607
        %1989 = vmatprep.subr.bf16.mxu0 %v1604
        %1990 = vmatpush1.bf16.msra.mxu0 %v1603
        %1991 = vmatprep.subr.bf16.mxu0 %v1600
        %1992 = vmatpush1.bf16.msra.mxu0 %v1599
        %1993 = vmatprep.subr.bf16.mxu0 %v1596
        %1994 = vmatpush1.bf16.msra.mxu0 %v1595
        %1995 = vmatprep.subr.bf16.mxu0 %v1592
        %1996 = vmatpush1.bf16.msra.mxu0 %v1591
        %1997 = vmatprep.subr.bf16.mxu0 %v1588
        %1998 = vmatpush1.bf16.msra.mxu0 %v1587
        %1999 = vmatprep.subr.bf16.mxu0 %v1648
        %2000 = vmatpush2.bf16.msra.mxu0 %v1647
        %2001 = vmatprep.subr.bf16.mxu0 %v1644
        %2002 = vmatpush2.bf16.msra.mxu0 %v1643
        %2003 = vmatprep.subr.bf16.mxu0 %v1640
        %2004 = vmatpush2.bf16.msra.mxu0 %v1639
        %2005 = vmatprep.subr.bf16.mxu0 %v1636
        %2006 = vmatpush2.bf16.msra.mxu0 %v1635
        %2007 = vmatprep.subr.bf16.mxu0 %v1632
        %2008 = vmatpush2.bf16.msra.mxu0 %v1631
        %2009 = vmatprep.subr.bf16.mxu0 %v1628
        %2010 = vmatpush2.bf16.msra.mxu0 %v1627
        %2011 = vmatprep.subr.bf16.mxu0 %v1624
        %2012 = vmatpush2.bf16.msra.mxu0 %v1623
        %2013 = vmatprep.subr.bf16.mxu0 %v1620
        %2014 = vmatpush2.bf16.msra.mxu0 %v1619
        %2015 = vmatprep.mubr.bf16.mxu0 %v987
        %2016 = vmatmul.mubr.bf16.gmra.mxu0 %v986
        %v2017 = vpop.f32.mrf.mxu0
        %v2018 = vadd.f32 %v958, %v2017
        %v2019 = vpop.f32.mrf.mxu0
        %v2020 = vadd.f32 %v962, %v2019
        %v2021 = vpop.f32.mrf.mxu0
        %v2022 = vpop.f32.mrf.mxu0
        %2023 = vdwg.mxu0
        %2024 = vmatprep.subr.bf16.mxu0 %v1680
        %2025 = vmatpush1.bf16.msra.mxu0 %v1679
        %2026 = vmatprep.subr.bf16.mxu0 %v1676
        %2027 = vmatpush1.bf16.msra.mxu0 %v1675
        %2028 = vmatprep.subr.bf16.mxu0 %v1672
        %2029 = vmatpush1.bf16.msra.mxu0 %v1671
        %2030 = vmatprep.subr.bf16.mxu0 %v1668
        %2031 = vmatpush1.bf16.msra.mxu0 %v1667
        %2032 = vmatprep.subr.bf16.mxu0 %v1664
        %2033 = vmatpush1.bf16.msra.mxu0 %v1663
        %2034 = vmatprep.subr.bf16.mxu0 %v1660
        %2035 = vmatpush1.bf16.msra.mxu0 %v1659
        %2036 = vmatprep.subr.bf16.mxu0 %v1656
        %2037 = vmatpush1.bf16.msra.mxu0 %v1655
        %2038 = vmatprep.subr.bf16.mxu0 %v1652
        %2039 = vmatpush1.bf16.msra.mxu0 %v1651
        %2040 = vmatprep.subr.bf16.mxu0 %v1712
        %2041 = vmatpush2.bf16.msra.mxu0 %v1711
        %2042 = vmatprep.subr.bf16.mxu0 %v1708
        %2043 = vmatpush2.bf16.msra.mxu0 %v1707
        %2044 = vmatprep.subr.bf16.mxu0 %v1704
        %2045 = vmatpush2.bf16.msra.mxu0 %v1703
        %2046 = vmatprep.subr.bf16.mxu0 %v1700
        %2047 = vmatpush2.bf16.msra.mxu0 %v1699
        %2048 = vmatprep.subr.bf16.mxu0 %v1696
        %2049 = vmatpush2.bf16.msra.mxu0 %v1695
        %2050 = vmatprep.subr.bf16.mxu0 %v1692
        %2051 = vmatpush2.bf16.msra.mxu0 %v1691
        %2052 = vmatprep.subr.bf16.mxu0 %v1688
        %2053 = vmatpush2.bf16.msra.mxu0 %v1687
        %2054 = vmatprep.subr.bf16.mxu0 %v1684
        %2055 = vmatpush2.bf16.msra.mxu0 %v1683
        %2056 = vmatprep.mubr.bf16.mxu0 %v989
        %2057 = vmatmul.mubr.bf16.gmra.mxu0 %v988
        %v2058 = vpop.f32.mrf.mxu0
        %v2059 = vadd.f32 %v2018, %v2058
        %v2060 = vpop.f32.mrf.mxu0
        %v2061 = vadd.f32 %v2020, %v2060
        %v2062 = vpop.f32.mrf.mxu0
        %v2063 = vpop.f32.mrf.mxu0
        %2064 = vdwg.mxu0
        %2065 = vmatprep.subr.bf16.mxu0 %v1744
        %2066 = vmatpush1.bf16.msra.mxu0 %v1743
        %2067 = vmatprep.subr.bf16.mxu0 %v1740
        %2068 = vmatpush1.bf16.msra.mxu0 %v1739
        %2069 = vmatprep.subr.bf16.mxu0 %v1736
        %2070 = vmatpush1.bf16.msra.mxu0 %v1735
        %2071 = vmatprep.subr.bf16.mxu0 %v1732
        %2072 = vmatpush1.bf16.msra.mxu0 %v1731
        %2073 = vmatprep.subr.bf16.mxu0 %v1728
        %2074 = vmatpush1.bf16.msra.mxu0 %v1727
        %2075 = vmatprep.subr.bf16.mxu0 %v1724
        %2076 = vmatpush1.bf16.msra.mxu0 %v1723
        %2077 = vmatprep.subr.bf16.mxu0 %v1720
        %2078 = vmatpush1.bf16.msra.mxu0 %v1719
        %2079 = vmatprep.subr.bf16.mxu0 %v1716
        %2080 = vmatpush1.bf16.msra.mxu0 %v1715
        %2081 = vmatprep.subr.bf16.mxu0 %v1776
        %2082 = vmatpush2.bf16.msra.mxu0 %v1775
        %2083 = vmatprep.subr.bf16.mxu0 %v1772
        %2084 = vmatpush2.bf16.msra.mxu0 %v1771
        %2085 = vmatprep.subr.bf16.mxu0 %v1768
        %2086 = vmatpush2.bf16.msra.mxu0 %v1767
        %2087 = vmatprep.subr.bf16.mxu0 %v1764
        %2088 = vmatpush2.bf16.msra.mxu0 %v1763
        %2089 = vmatprep.subr.bf16.mxu0 %v1760
        %2090 = vmatpush2.bf16.msra.mxu0 %v1759
        %2091 = vmatprep.subr.bf16.mxu0 %v1756
        %2092 = vmatpush2.bf16.msra.mxu0 %v1755
        %2093 = vmatprep.subr.bf16.mxu0 %v1752
        %2094 = vmatpush2.bf16.msra.mxu0 %v1751
        %2095 = vmatprep.subr.bf16.mxu0 %v1748
        %2096 = vmatpush2.bf16.msra.mxu0 %v1747
        %2097 = vmatprep.mubr.bf16.mxu0 %v991
        %2098 = vmatmul.mubr.bf16.gmra.mxu0 %v990
        %v2099 = vpop.f32.mrf.mxu0
        %v2100 = vadd.f32 %v2059, %v2099
        %v2101 = vpop.f32.mrf.mxu0
        %v2102 = vadd.f32 %v2061, %v2101
        %v2103 = vpop.f32.mrf.mxu0
        %v2104 = vpop.f32.mrf.mxu0
        %2105 = vdwg.mxu0
        %2106 = vmatprep.subr.bf16.mxu0 0
        %2107 = vmatpush1.bf16.msra.mxu0 0
        %2108 = vmatprep.subr.bf16.mxu0 0
        %2109 = vmatpush1.bf16.msra.mxu0 0
        %2110 = vmatprep.subr.bf16.mxu0 0
        %2111 = vmatpush1.bf16.msra.mxu0 0
        %2112 = vmatprep.subr.bf16.mxu0 0
        %2113 = vmatpush1.bf16.msra.mxu0 0
        %2114 = vmatprep.subr.bf16.mxu0 0
        %2115 = vmatpush1.bf16.msra.mxu0 0
        %2116 = vmatprep.subr.bf16.mxu0 0
        %2117 = vmatpush1.bf16.msra.mxu0 0
        %2118 = vmatprep.subr.bf16.mxu0 0
        %2119 = vmatpush1.bf16.msra.mxu0 0
        %2120 = vmatprep.subr.bf16.mxu0 %v1780
        %2121 = vmatpush1.bf16.msra.mxu0 %v1779
        %2122 = vmatprep.subr.bf16.mxu0 0
        %2123 = vmatpush2.bf16.msra.mxu0 0
        %2124 = vmatprep.subr.bf16.mxu0 0
        %2125 = vmatpush2.bf16.msra.mxu0 0
        %2126 = vmatprep.subr.bf16.mxu0 0
        %2127 = vmatpush2.bf16.msra.mxu0 0
        %2128 = vmatprep.subr.bf16.mxu0 0
        %2129 = vmatpush2.bf16.msra.mxu0 0
        %2130 = vmatprep.subr.bf16.mxu0 0
        %2131 = vmatpush2.bf16.msra.mxu0 0
        %2132 = vmatprep.subr.bf16.mxu0 0
        %2133 = vmatpush2.bf16.msra.mxu0 0
        %2134 = vmatprep.subr.bf16.mxu0 0
        %2135 = vmatpush2.bf16.msra.mxu0 0
        %2136 = vmatprep.subr.bf16.mxu0 0
        %2137 = vmatpush2.bf16.msra.mxu0 0
        %2138 = vmatprep.mubr.bf16.mxu0 0
        %2139 = vmatmul.mubr.bf16.gmra.mxu0 %v1981
        %v2140 = vpop.f32.mrf.mxu0
        %v2141 = vadd.f32 %v2100, %v2140
        %v2142 = vpop.f32.mrf.mxu0
        %v2143 = vadd.f32 %v2102, %v2142
        %v2144 = vpop.f32.mrf.mxu0
        %v2145 = vpop.f32.mrf.mxu0
        %2146 = vdwg.mxu0
        %2147 = vmatprep.subr.bf16.mxu0 %v1618
        %2148 = vmatpush1.bf16.msra.mxu0 %v1617
        %2149 = vmatprep.subr.bf16.mxu0 %v1614
        %2150 = vmatpush1.bf16.msra.mxu0 %v1613
        %2151 = vmatprep.subr.bf16.mxu0 %v1610
        %2152 = vmatpush1.bf16.msra.mxu0 %v1609
        %2153 = vmatprep.subr.bf16.mxu0 %v1606
        %2154 = vmatpush1.bf16.msra.mxu0 %v1605
        %2155 = vmatprep.subr.bf16.mxu0 %v1602
        %2156 = vmatpush1.bf16.msra.mxu0 %v1601
        %2157 = vmatprep.subr.bf16.mxu0 %v1598
        %2158 = vmatpush1.bf16.msra.mxu0 %v1597
        %2159 = vmatprep.subr.bf16.mxu0 %v1594
        %2160 = vmatpush1.bf16.msra.mxu0 %v1593
        %2161 = vmatprep.subr.bf16.mxu0 %v1590
        %2162 = vmatpush1.bf16.msra.mxu0 %v1589
        %2163 = vmatprep.subr.bf16.mxu0 %v1650
        %2164 = vmatpush2.bf16.msra.mxu0 %v1649
        %2165 = vmatprep.subr.bf16.mxu0 %v1646
        %2166 = vmatpush2.bf16.msra.mxu0 %v1645
        %2167 = vmatprep.subr.bf16.mxu0 %v1642
        %2168 = vmatpush2.bf16.msra.mxu0 %v1641
        %2169 = vmatprep.subr.bf16.mxu0 %v1638
        %2170 = vmatpush2.bf16.msra.mxu0 %v1637
        %2171 = vmatprep.subr.bf16.mxu0 %v1634
        %2172 = vmatpush2.bf16.msra.mxu0 %v1633
        %2173 = vmatprep.subr.bf16.mxu0 %v1630
        %2174 = vmatpush2.bf16.msra.mxu0 %v1629
        %2175 = vmatprep.subr.bf16.mxu0 %v1626
        %2176 = vmatpush2.bf16.msra.mxu0 %v1625
        %2177 = vmatprep.subr.bf16.mxu0 %v1622
        %2178 = vmatpush2.bf16.msra.mxu0 %v1621
        %2179 = vmatprep.mubr.bf16.mxu0 %v987
        %2180 = vmatmul.mubr.bf16.gmra.mxu0 %v986
        %v2181 = vpop.f32.mrf.mxu0
        %v2182 = vadd.f32 %v966, %v2181
        %v2183 = vpop.f32.mrf.mxu0
        %v2184 = vadd.f32 %v970, %v2183
        %v2185 = vpop.f32.mrf.mxu0
        %v2186 = vpop.f32.mrf.mxu0
        %2187 = vdwg.mxu0
        %2188 = vmatprep.subr.bf16.mxu0 %v1682
        %2189 = vmatpush1.bf16.msra.mxu0 %v1681
        %2190 = vmatprep.subr.bf16.mxu0 %v1678
        %2191 = vmatpush1.bf16.msra.mxu0 %v1677
        %2192 = vmatprep.subr.bf16.mxu0 %v1674
        %2193 = vmatpush1.bf16.msra.mxu0 %v1673
        %2194 = vmatprep.subr.bf16.mxu0 %v1670
        %2195 = vmatpush1.bf16.msra.mxu0 %v1669
        %2196 = vmatprep.subr.bf16.mxu0 %v1666
        %2197 = vmatpush1.bf16.msra.mxu0 %v1665
        %2198 = vmatprep.subr.bf16.mxu0 %v1662
        %2199 = vmatpush1.bf16.msra.mxu0 %v1661
        %2200 = vmatprep.subr.bf16.mxu0 %v1658
        %2201 = vmatpush1.bf16.msra.mxu0 %v1657
        %2202 = vmatprep.subr.bf16.mxu0 %v1654
        %2203 = vmatpush1.bf16.msra.mxu0 %v1653
        %2204 = vmatprep.subr.bf16.mxu0 %v1714
        %2205 = vmatpush2.bf16.msra.mxu0 %v1713
        %2206 = vmatprep.subr.bf16.mxu0 %v1710
        %2207 = vmatpush2.bf16.msra.mxu0 %v1709
        %2208 = vmatprep.subr.bf16.mxu0 %v1706
        %2209 = vmatpush2.bf16.msra.mxu0 %v1705
        %2210 = vmatprep.subr.bf16.mxu0 %v1702
        %2211 = vmatpush2.bf16.msra.mxu0 %v1701
        %2212 = vmatprep.subr.bf16.mxu0 %v1698
        %2213 = vmatpush2.bf16.msra.mxu0 %v1697
        %2214 = vmatprep.subr.bf16.mxu0 %v1694
        %2215 = vmatpush2.bf16.msra.mxu0 %v1693
        %2216 = vmatprep.subr.bf16.mxu0 %v1690
        %2217 = vmatpush2.bf16.msra.mxu0 %v1689
        %2218 = vmatprep.subr.bf16.mxu0 %v1686
        %2219 = vmatpush2.bf16.msra.mxu0 %v1685
        %2220 = vmatprep.mubr.bf16.mxu0 %v989
        %2221 = vmatmul.mubr.bf16.gmra.mxu0 %v988
        %v2222 = vpop.f32.mrf.mxu0
        %v2223 = vadd.f32 %v2182, %v2222
        %v2224 = vpop.f32.mrf.mxu0
        %v2225 = vadd.f32 %v2184, %v2224
        %v2226 = vpop.f32.mrf.mxu0
        %v2227 = vpop.f32.mrf.mxu0
        %2228 = vdwg.mxu0
        %2229 = vmatprep.subr.bf16.mxu0 %v1746
        %2230 = vmatpush1.bf16.msra.mxu0 %v1745
        %2231 = vmatprep.subr.bf16.mxu0 %v1742
        %2232 = vmatpush1.bf16.msra.mxu0 %v1741
        %2233 = vmatprep.subr.bf16.mxu0 %v1738
        %2234 = vmatpush1.bf16.msra.mxu0 %v1737
        %2235 = vmatprep.subr.bf16.mxu0 %v1734
        %2236 = vmatpush1.bf16.msra.mxu0 %v1733
        %2237 = vmatprep.subr.bf16.mxu0 %v1730
        %2238 = vmatpush1.bf16.msra.mxu0 %v1729
        %2239 = vmatprep.subr.bf16.mxu0 %v1726
        %2240 = vmatpush1.bf16.msra.mxu0 %v1725
        %2241 = vmatprep.subr.bf16.mxu0 %v1722
        %2242 = vmatpush1.bf16.msra.mxu0 %v1721
        %2243 = vmatprep.subr.bf16.mxu0 %v1718
        %2244 = vmatpush1.bf16.msra.mxu0 %v1717
        %2245 = vmatprep.subr.bf16.mxu0 %v1778
        %2246 = vmatpush2.bf16.msra.mxu0 %v1777
        %2247 = vmatprep.subr.bf16.mxu0 %v1774
        %2248 = vmatpush2.bf16.msra.mxu0 %v1773
        %2249 = vmatprep.subr.bf16.mxu0 %v1770
        %2250 = vmatpush2.bf16.msra.mxu0 %v1769
        %2251 = vmatprep.subr.bf16.mxu0 %v1766
        %2252 = vmatpush2.bf16.msra.mxu0 %v1765
        %2253 = vmatprep.subr.bf16.mxu0 %v1762
        %2254 = vmatpush2.bf16.msra.mxu0 %v1761
        %2255 = vmatprep.subr.bf16.mxu0 %v1758
        %2256 = vmatpush2.bf16.msra.mxu0 %v1757
        %2257 = vmatprep.subr.bf16.mxu0 %v1754
        %2258 = vmatpush2.bf16.msra.mxu0 %v1753
        %2259 = vmatprep.subr.bf16.mxu0 %v1750
        %2260 = vmatpush2.bf16.msra.mxu0 %v1749
        %2261 = vmatprep.mubr.bf16.mxu0 %v991
        %2262 = vmatmul.mubr.bf16.gmra.mxu0 %v990
        %v2263 = vpop.f32.mrf.mxu0
        %v2264 = vadd.f32 %v2223, %v2263
        %v2265 = vpop.f32.mrf.mxu0
        %v2266 = vadd.f32 %v2225, %v2265
        %v2267 = vpop.f32.mrf.mxu0
        %v2268 = vpop.f32.mrf.mxu0
        %2269 = vdwg.mxu0
        %2270 = vmatprep.subr.bf16.mxu0 0
        %2271 = vmatpush1.bf16.msra.mxu0 0
        %2272 = vmatprep.subr.bf16.mxu0 0
        %2273 = vmatpush1.bf16.msra.mxu0 0
        %2274 = vmatprep.subr.bf16.mxu0 0
        %2275 = vmatpush1.bf16.msra.mxu0 0
        %2276 = vmatprep.subr.bf16.mxu0 0
        %2277 = vmatpush1.bf16.msra.mxu0 0
        %2278 = vmatprep.subr.bf16.mxu0 0
        %2279 = vmatpush1.bf16.msra.mxu0 0
        %2280 = vmatprep.subr.bf16.mxu0 0
        %2281 = vmatpush1.bf16.msra.mxu0 0
        %2282 = vmatprep.subr.bf16.mxu0 0
        %2283 = vmatpush1.bf16.msra.mxu0 0
        %2284 = vmatprep.subr.bf16.mxu0 %v1782
        %2285 = vmatpush1.bf16.msra.mxu0 %v1781
        %2286 = vmatprep.subr.bf16.mxu0 0
        %2287 = vmatpush2.bf16.msra.mxu0 0
        %2288 = vmatprep.subr.bf16.mxu0 0
        %2289 = vmatpush2.bf16.msra.mxu0 0
        %2290 = vmatprep.subr.bf16.mxu0 0
        %2291 = vmatpush2.bf16.msra.mxu0 0
        %2292 = vmatprep.subr.bf16.mxu0 0
        %2293 = vmatpush2.bf16.msra.mxu0 0
        %2294 = vmatprep.subr.bf16.mxu0 0
        %2295 = vmatpush2.bf16.msra.mxu0 0
        %2296 = vmatprep.subr.bf16.mxu0 0
        %2297 = vmatpush2.bf16.msra.mxu0 0
        %2298 = vmatprep.subr.bf16.mxu0 0
        %2299 = vmatpush2.bf16.msra.mxu0 0
        %2300 = vmatprep.subr.bf16.mxu0 0
        %2301 = vmatpush2.bf16.msra.mxu0 0
        %2302 = vmatprep.mubr.bf16.mxu0 0
        %2303 = vmatmul.mubr.bf16.gmra.mxu0 %v1981
        %v2304 = vpop.f32.mrf.mxu0
        %v2305 = vadd.f32 %v2264, %v2304
        %v2306 = vpop.f32.mrf.mxu0
        %v2307 = vadd.f32 %v2266, %v2306
        %v2308 = vpop.f32.mrf.mxu0
        %v2309 = vpop.f32.mrf.mxu0
        %2310 = vdwg.mxu0
        %v2311 = vmax.f32 %v2141, 0.0
        %v2312 = vmax.f32 %v2143, 0.0
        %v2313 = vmax.f32 %v2305, 0.0
        %v2314 = vmax.f32 %v2307, 0.0
        %v2315 = vpack.c.bf16 %v2311, %v2311
        %v2316 = vpack.c.bf16 %v2312, %v2312
        %v2317 = vpack.c.bf16 %v2313, %v2313
        %v2318 = vpack.c.bf16 %v2314, %v2314
        %v2319 = vld [vmem:[#allocation8] sm:$0xff]
        %v2320 = vld [vmem:[#allocation8 + $0x8] sm:$0xff]
        %v2321 = vld [vmem:[#allocation8 + $0x10] sm:$0xff]
        %v2322 = vld [vmem:[#allocation8 + $0x18] sm:$0xff]
        %v2323 = vld [vmem:[#allocation8 + $0x20] sm:$0xff]
        %v2324 = vld [vmem:[#allocation8 + $0x28] sm:$0xff]
        %v2325 = vld [vmem:[#allocation8 + $0x30] sm:$0xff]
        %v2326 = vld [vmem:[#allocation8 + $0x38] sm:$0xff]
        %v2327 = vld [vmem:[#allocation8 + $0x40] sm:$0xff]
        %v2328 = vld [vmem:[#allocation8 + $0x48] sm:$0xff]
        %v2329 = vld [vmem:[#allocation8 + $0x50] sm:$0xff]
        %v2330 = vld [vmem:[#allocation8 + $0x58] sm:$0xff]
        %v2331 = vld [vmem:[#allocation8 + $0x60] sm:$0xff]
        %v2332 = vld [vmem:[#allocation8 + $0x68] sm:$0xff]
        %v2333 = vld [vmem:[#allocation8 + $0x70] sm:$0xff]
        %v2334 = vld [vmem:[#allocation8 + $0x78] sm:$0xff]
        %v2335 = vld [vmem:[#allocation8 + $0x80] sm:$0xff]
        %v2336 = vld [vmem:[#allocation8 + $0x88] sm:$0xff]
        %v2337 = vld [vmem:[#allocation8 + $0x90] sm:$0xff]
        %v2338 = vld [vmem:[#allocation8 + $0x98] sm:$0xff]
        %v2339 = vld [vmem:[#allocation8 + $0xa0] sm:$0xff]
        %v2340 = vld [vmem:[#allocation8 + $0xa8] sm:$0xff]
        %v2341 = vld [vmem:[#allocation8 + $0xb0] sm:$0xff]
        %v2342 = vld [vmem:[#allocation8 + $0xb8] sm:$0xff]
        %v2343 = vld [vmem:[#allocation8 + $0xc0] sm:$0xff]
        %v2344 = vld [vmem:[#allocation8 + $0xc8] sm:$0xff]
        %v2345 = vld [vmem:[#allocation8 + $0xd0] sm:$0xff]
        %v2346 = vld [vmem:[#allocation8 + $0xd8] sm:$0xff]
        %v2347 = vld [vmem:[#allocation8 + $0xe0] sm:$0xff]
        %v2348 = vld [vmem:[#allocation8 + $0xe8] sm:$0xff]
        %v2349 = vld [vmem:[#allocation8 + $0xf0] sm:$0xff]
        %v2350 = vld [vmem:[#allocation8 + $0xf8] sm:$0xff]
        %v2351 = vld [vmem:[#allocation8 + $0x100] sm:$0xff]
        %v2352 = vld [vmem:[#allocation8 + $0x108] sm:$0xff]
        %v2353 = vld [vmem:[#allocation8 + $0x110] sm:$0xff]
        %v2354 = vld [vmem:[#allocation8 + $0x118] sm:$0xff]
        %v2355 = vld [vmem:[#allocation8 + $0x120] sm:$0xff]
        %v2356 = vld [vmem:[#allocation8 + $0x128] sm:$0xff]
        %v2357 = vld [vmem:[#allocation8 + $0x130] sm:$0xff]
        %v2358 = vld [vmem:[#allocation8 + $0x138] sm:$0xff]
        %v2359 = vld [vmem:[#allocation8 + $0x140] sm:$0xff]
        %v2360 = vld [vmem:[#allocation8 + $0x148] sm:$0xff]
        %v2361 = vld [vmem:[#allocation8 + $0x150] sm:$0xff]
        %v2362 = vld [vmem:[#allocation8 + $0x158] sm:$0xff]
        %v2363 = vld [vmem:[#allocation8 + $0x160] sm:$0xff]
        %v2364 = vld [vmem:[#allocation8 + $0x168] sm:$0xff]
        %v2365 = vld [vmem:[#allocation8 + $0x170] sm:$0xff]
        %v2366 = vld [vmem:[#allocation8 + $0x178] sm:$0xff]
        %v2367 = vld [vmem:[#allocation8 + $0x180] sm:$0xff]
        %v2368 = vld [vmem:[#allocation8 + $0x188] sm:$0xff]
        %v2369 = vld [vmem:[#allocation8 + $0x190] sm:$0xff]
        %v2370 = vld [vmem:[#allocation8 + $0x198] sm:$0xff]
        %v2371 = vld [vmem:[#allocation8 + $0x1a0] sm:$0xff]
        %v2372 = vld [vmem:[#allocation8 + $0x1a8] sm:$0xff]
        %v2373 = vld [vmem:[#allocation8 + $0x1b0] sm:$0xff]
        %v2374 = vld [vmem:[#allocation8 + $0x1b8] sm:$0xff]
        %v2375 = vld [vmem:[#allocation8 + $0x1c0] sm:$0xff]
        %v2376 = vld [vmem:[#allocation8 + $0x1c8] sm:$0xff]
        %v2377 = vld [vmem:[#allocation8 + $0x1d0] sm:$0xff]
        %v2378 = vld [vmem:[#allocation8 + $0x1d8] sm:$0xff]
        %v2379 = vld [vmem:[#allocation8 + $0x1e0] sm:$0xff]
        %v2380 = vld [vmem:[#allocation8 + $0x1e8] sm:$0xff]
        %v2381 = vld [vmem:[#allocation8 + $0x1f0] sm:$0xff]
        %v2382 = vld [vmem:[#allocation8 + $0x1f8] sm:$0xff]
        %v2383 = vld [vmem:[#allocation8 + $0x200] sm:$0xff]
        %v2384 = vld [vmem:[#allocation8 + $0x208] sm:$0xff]
        %v2385 = vld [vmem:[#allocation8 + $0x210] sm:$0xff]
        %v2386 = vld [vmem:[#allocation8 + $0x218] sm:$0xff]
        %v2387 = vld [vmem:[#allocation8 + $0x220] sm:$0xff]
        %v2388 = vld [vmem:[#allocation8 + $0x228] sm:$0xff]
        %v2389 = vld [vmem:[#allocation8 + $0x230] sm:$0xff]
        %v2390 = vld [vmem:[#allocation8 + $0x238] sm:$0xff]
        %v2391 = vld [vmem:[#allocation8 + $0x240] sm:$0xff]
        %v2392 = vld [vmem:[#allocation8 + $0x248] sm:$0xff]
        %v2393 = vld [vmem:[#allocation8 + $0x250] sm:$0xff]
        %v2394 = vld [vmem:[#allocation8 + $0x258] sm:$0xff]
        %v2395 = vld [vmem:[#allocation8 + $0x260] sm:$0xff]
        %v2396 = vld [vmem:[#allocation8 + $0x268] sm:$0xff]
        %v2397 = vld [vmem:[#allocation8 + $0x270] sm:$0xff]
        %v2398 = vld [vmem:[#allocation8 + $0x278] sm:$0xff]
        %v2399 = vld [vmem:[#allocation8 + $0x280] sm:$0xff]
        %v2400 = vld [vmem:[#allocation8 + $0x288] sm:$0xff]
        %v2401 = vld [vmem:[#allocation8 + $0x290] sm:$0xff]
        %v2402 = vld [vmem:[#allocation8 + $0x298] sm:$0xff]
        %v2403 = vld [vmem:[#allocation8 + $0x2a0] sm:$0xff]
        %v2404 = vld [vmem:[#allocation8 + $0x2a8] sm:$0xff]
        %v2405 = vld [vmem:[#allocation8 + $0x2b0] sm:$0xff]
        %v2406 = vld [vmem:[#allocation8 + $0x2b8] sm:$0xff]
        %v2407 = vld [vmem:[#allocation8 + $0x2c0] sm:$0xff]
        %v2408 = vld [vmem:[#allocation8 + $0x2c8] sm:$0xff]
        %v2409 = vld [vmem:[#allocation8 + $0x2d0] sm:$0xff]
        %v2410 = vld [vmem:[#allocation8 + $0x2d8] sm:$0xff]
        %v2411 = vld [vmem:[#allocation8 + $0x2e0] sm:$0xff]
        %v2412 = vld [vmem:[#allocation8 + $0x2e8] sm:$0xff]
        %v2413 = vld [vmem:[#allocation8 + $0x2f0] sm:$0xff]
        %v2414 = vld [vmem:[#allocation8 + $0x2f8] sm:$0xff]
        %v2415 = vld [vmem:[#allocation8 + $0x300] sm:$0xff]
        %v2416 = vld [vmem:[#allocation8 + $0x308] sm:$0xff]
        %v2417 = vld [vmem:[#allocation8 + $0x310] sm:$0xff]
        %v2418 = vld [vmem:[#allocation8 + $0x318] sm:$0xff]
        %v2419 = vld [vmem:[#allocation8 + $0x320] sm:$0xff]
        %v2420 = vld [vmem:[#allocation8 + $0x328] sm:$0xff]
        %v2421 = vld [vmem:[#allocation8 + $0x330] sm:$0xff]
        %v2422 = vld [vmem:[#allocation8 + $0x338] sm:$0xff]
        %v2423 = vld [vmem:[#allocation8 + $0x340] sm:$0xff]
        %v2424 = vld [vmem:[#allocation8 + $0x348] sm:$0xff]
        %v2425 = vld [vmem:[#allocation8 + $0x350] sm:$0xff]
        %v2426 = vld [vmem:[#allocation8 + $0x358] sm:$0xff]
        %v2427 = vld [vmem:[#allocation8 + $0x360] sm:$0xff]
        %v2428 = vld [vmem:[#allocation8 + $0x368] sm:$0xff]
        %v2429 = vld [vmem:[#allocation8 + $0x370] sm:$0xff]
        %v2430 = vld [vmem:[#allocation8 + $0x378] sm:$0xff]
        %v2431 = vld [vmem:[#allocation8 + $0x380] sm:$0xff]
        %v2432 = vld [vmem:[#allocation8 + $0x388] sm:$0xff]
        %v2433 = vld [vmem:[#allocation8 + $0x390] sm:$0xff]
        %v2434 = vld [vmem:[#allocation8 + $0x398] sm:$0xff]
        %v2435 = vld [vmem:[#allocation8 + $0x3a0] sm:$0xff]
        %v2436 = vld [vmem:[#allocation8 + $0x3a8] sm:$0xff]
        %v2437 = vld [vmem:[#allocation8 + $0x3b0] sm:$0xff]
        %v2438 = vld [vmem:[#allocation8 + $0x3b8] sm:$0xff]
        %v2439 = vld [vmem:[#allocation8 + $0x3c0] sm:$0xff]
        %v2440 = vld [vmem:[#allocation8 + $0x3c8] sm:$0xff]
        %v2441 = vld [vmem:[#allocation8 + $0x3d0] sm:$0xff]
        %v2442 = vld [vmem:[#allocation8 + $0x3d8] sm:$0xff]
        %v2443 = vld [vmem:[#allocation8 + $0x3e0] sm:$0xff]
        %v2444 = vld [vmem:[#allocation8 + $0x3e8] sm:$0xff]
        %v2445 = vld [vmem:[#allocation8 + $0x3f0] sm:$0xff]
        %v2446 = vld [vmem:[#allocation8 + $0x3f8] sm:$0xff]
        %v2447 = vld [vmem:[#allocation10] sm:$0xf]
        %v2449 = vlaneseq
        %v2450 = vshrl.u32 %v2449, 7
        %v2451 = vsub.s32 0, %v2450
        %v2452 = vrot.slane %v2447, %v2451
        %v2453 = vlaneseq
        %v2454 = vshrl.u32 %v2453, 7
        %v2455 = vsub.s32 1, %v2454
        %v2456 = vrot.slane %v2447, %v2455
        %v2457 = vlaneseq
        %v2458 = vshrl.u32 %v2457, 7
        %v2459 = vsub.s32 2, %v2458
        %v2460 = vrot.slane %v2447, %v2459
        %v2461 = vlaneseq
        %v2462 = vshrl.u32 %v2461, 7
        %v2463 = vsub.s32 3, %v2462
        %v2464 = vrot.slane %v2447, %v2463
        %v2597 = vunpack.c.l.b16 %v2319
        %v2598 = vunpack.c.h.b16 %v2319
        %v2599 = vunpack.c.l.b16 %v2320
        %v2600 = vunpack.c.h.b16 %v2320
        %v2601 = vunpack.c.l.b16 %v2321
        %v2602 = vunpack.c.h.b16 %v2321
        %v2603 = vunpack.c.l.b16 %v2322
        %v2604 = vunpack.c.h.b16 %v2322
        %v2605 = vunpack.c.l.b16 %v2323
        %v2606 = vunpack.c.h.b16 %v2323
        %v2607 = vunpack.c.l.b16 %v2324
        %v2608 = vunpack.c.h.b16 %v2324
        %v2609 = vunpack.c.l.b16 %v2325
        %v2610 = vunpack.c.h.b16 %v2325
        %v2611 = vunpack.c.l.b16 %v2326
        %v2612 = vunpack.c.h.b16 %v2326
        %v2613 = vunpack.c.l.b16 %v2327
        %v2614 = vunpack.c.h.b16 %v2327
        %v2615 = vunpack.c.l.b16 %v2328
        %v2616 = vunpack.c.h.b16 %v2328
        %v2617 = vunpack.c.l.b16 %v2329
        %v2618 = vunpack.c.h.b16 %v2329
        %v2619 = vunpack.c.l.b16 %v2330
        %v2620 = vunpack.c.h.b16 %v2330
        %v2621 = vunpack.c.l.b16 %v2331
        %v2622 = vunpack.c.h.b16 %v2331
        %v2623 = vunpack.c.l.b16 %v2332
        %v2624 = vunpack.c.h.b16 %v2332
        %v2625 = vunpack.c.l.b16 %v2333
        %v2626 = vunpack.c.h.b16 %v2333
        %v2627 = vunpack.c.l.b16 %v2334
        %v2628 = vunpack.c.h.b16 %v2334
        %v2629 = vunpack.c.l.b16 %v2335
        %v2630 = vunpack.c.h.b16 %v2335
        %v2631 = vunpack.c.l.b16 %v2336
        %v2632 = vunpack.c.h.b16 %v2336
        %v2633 = vunpack.c.l.b16 %v2337
        %v2634 = vunpack.c.h.b16 %v2337
        %v2635 = vunpack.c.l.b16 %v2338
        %v2636 = vunpack.c.h.b16 %v2338
        %v2637 = vunpack.c.l.b16 %v2339
        %v2638 = vunpack.c.h.b16 %v2339
        %v2639 = vunpack.c.l.b16 %v2340
        %v2640 = vunpack.c.h.b16 %v2340
        %v2641 = vunpack.c.l.b16 %v2341
        %v2642 = vunpack.c.h.b16 %v2341
        %v2643 = vunpack.c.l.b16 %v2342
        %v2644 = vunpack.c.h.b16 %v2342
        %v2645 = vunpack.c.l.b16 %v2343
        %v2646 = vunpack.c.h.b16 %v2343
        %v2647 = vunpack.c.l.b16 %v2344
        %v2648 = vunpack.c.h.b16 %v2344
        %v2649 = vunpack.c.l.b16 %v2345
        %v2650 = vunpack.c.h.b16 %v2345
        %v2651 = vunpack.c.l.b16 %v2346
        %v2652 = vunpack.c.h.b16 %v2346
        %v2653 = vunpack.c.l.b16 %v2347
        %v2654 = vunpack.c.h.b16 %v2347
        %v2655 = vunpack.c.l.b16 %v2348
        %v2656 = vunpack.c.h.b16 %v2348
        %v2657 = vunpack.c.l.b16 %v2349
        %v2658 = vunpack.c.h.b16 %v2349
        %v2659 = vunpack.c.l.b16 %v2350
        %v2660 = vunpack.c.h.b16 %v2350
        %v2661 = vunpack.c.l.b16 %v2351
        %v2662 = vunpack.c.h.b16 %v2351
        %v2663 = vunpack.c.l.b16 %v2352
        %v2664 = vunpack.c.h.b16 %v2352
        %v2665 = vunpack.c.l.b16 %v2353
        %v2666 = vunpack.c.h.b16 %v2353
        %v2667 = vunpack.c.l.b16 %v2354
        %v2668 = vunpack.c.h.b16 %v2354
        %v2669 = vunpack.c.l.b16 %v2355
        %v2670 = vunpack.c.h.b16 %v2355
        %v2671 = vunpack.c.l.b16 %v2356
        %v2672 = vunpack.c.h.b16 %v2356
        %v2673 = vunpack.c.l.b16 %v2357
        %v2674 = vunpack.c.h.b16 %v2357
        %v2675 = vunpack.c.l.b16 %v2358
        %v2676 = vunpack.c.h.b16 %v2358
        %v2677 = vunpack.c.l.b16 %v2359
        %v2678 = vunpack.c.h.b16 %v2359
        %v2679 = vunpack.c.l.b16 %v2360
        %v2680 = vunpack.c.h.b16 %v2360
        %v2681 = vunpack.c.l.b16 %v2361
        %v2682 = vunpack.c.h.b16 %v2361
        %v2683 = vunpack.c.l.b16 %v2362
        %v2684 = vunpack.c.h.b16 %v2362
        %v2685 = vunpack.c.l.b16 %v2363
        %v2686 = vunpack.c.h.b16 %v2363
        %v2687 = vunpack.c.l.b16 %v2364
        %v2688 = vunpack.c.h.b16 %v2364
        %v2689 = vunpack.c.l.b16 %v2365
        %v2690 = vunpack.c.h.b16 %v2365
        %v2691 = vunpack.c.l.b16 %v2366
        %v2692 = vunpack.c.h.b16 %v2366
        %v2693 = vunpack.c.l.b16 %v2367
        %v2694 = vunpack.c.h.b16 %v2367
        %v2695 = vunpack.c.l.b16 %v2368
        %v2696 = vunpack.c.h.b16 %v2368
        %v2697 = vunpack.c.l.b16 %v2369
        %v2698 = vunpack.c.h.b16 %v2369
        %v2699 = vunpack.c.l.b16 %v2370
        %v2700 = vunpack.c.h.b16 %v2370
        %v2701 = vunpack.c.l.b16 %v2371
        %v2702 = vunpack.c.h.b16 %v2371
        %v2703 = vunpack.c.l.b16 %v2372
        %v2704 = vunpack.c.h.b16 %v2372
        %v2705 = vunpack.c.l.b16 %v2373
        %v2706 = vunpack.c.h.b16 %v2373
        %v2707 = vunpack.c.l.b16 %v2374
        %v2708 = vunpack.c.h.b16 %v2374
        %v2709 = vunpack.c.l.b16 %v2375
        %v2710 = vunpack.c.h.b16 %v2375
        %v2711 = vunpack.c.l.b16 %v2376
        %v2712 = vunpack.c.h.b16 %v2376
        %v2713 = vunpack.c.l.b16 %v2377
        %v2714 = vunpack.c.h.b16 %v2377
        %v2715 = vunpack.c.l.b16 %v2378
        %v2716 = vunpack.c.h.b16 %v2378
        %v2717 = vunpack.c.l.b16 %v2379
        %v2718 = vunpack.c.h.b16 %v2379
        %v2719 = vunpack.c.l.b16 %v2380
        %v2720 = vunpack.c.h.b16 %v2380
        %v2721 = vunpack.c.l.b16 %v2381
        %v2722 = vunpack.c.h.b16 %v2381
        %v2723 = vunpack.c.l.b16 %v2382
        %v2724 = vunpack.c.h.b16 %v2382
        %v2725 = vunpack.c.l.b16 %v2383
        %v2726 = vunpack.c.h.b16 %v2383
        %v2727 = vunpack.c.l.b16 %v2384
        %v2728 = vunpack.c.h.b16 %v2384
        %v2729 = vunpack.c.l.b16 %v2385
        %v2730 = vunpack.c.h.b16 %v2385
        %v2731 = vunpack.c.l.b16 %v2386
        %v2732 = vunpack.c.h.b16 %v2386
        %v2733 = vunpack.c.l.b16 %v2387
        %v2734 = vunpack.c.h.b16 %v2387
        %v2735 = vunpack.c.l.b16 %v2388
        %v2736 = vunpack.c.h.b16 %v2388
        %v2737 = vunpack.c.l.b16 %v2389
        %v2738 = vunpack.c.h.b16 %v2389
        %v2739 = vunpack.c.l.b16 %v2390
        %v2740 = vunpack.c.h.b16 %v2390
        %v2741 = vunpack.c.l.b16 %v2391
        %v2742 = vunpack.c.h.b16 %v2391
        %v2743 = vunpack.c.l.b16 %v2392
        %v2744 = vunpack.c.h.b16 %v2392
        %v2745 = vunpack.c.l.b16 %v2393
        %v2746 = vunpack.c.h.b16 %v2393
        %v2747 = vunpack.c.l.b16 %v2394
        %v2748 = vunpack.c.h.b16 %v2394
        %v2749 = vunpack.c.l.b16 %v2395
        %v2750 = vunpack.c.h.b16 %v2395
        %v2751 = vunpack.c.l.b16 %v2396
        %v2752 = vunpack.c.h.b16 %v2396
        %v2753 = vunpack.c.l.b16 %v2397
        %v2754 = vunpack.c.h.b16 %v2397
        %v2755 = vunpack.c.l.b16 %v2398
        %v2756 = vunpack.c.h.b16 %v2398
        %v2757 = vunpack.c.l.b16 %v2399
        %v2758 = vunpack.c.h.b16 %v2399
        %v2759 = vunpack.c.l.b16 %v2400
        %v2760 = vunpack.c.h.b16 %v2400
        %v2761 = vunpack.c.l.b16 %v2401
        %v2762 = vunpack.c.h.b16 %v2401
        %v2763 = vunpack.c.l.b16 %v2402
        %v2764 = vunpack.c.h.b16 %v2402
        %v2765 = vunpack.c.l.b16 %v2403
        %v2766 = vunpack.c.h.b16 %v2403
        %v2767 = vunpack.c.l.b16 %v2404
        %v2768 = vunpack.c.h.b16 %v2404
        %v2769 = vunpack.c.l.b16 %v2405
        %v2770 = vunpack.c.h.b16 %v2405
        %v2771 = vunpack.c.l.b16 %v2406
        %v2772 = vunpack.c.h.b16 %v2406
        %v2773 = vunpack.c.l.b16 %v2407
        %v2774 = vunpack.c.h.b16 %v2407
        %v2775 = vunpack.c.l.b16 %v2408
        %v2776 = vunpack.c.h.b16 %v2408
        %v2777 = vunpack.c.l.b16 %v2409
        %v2778 = vunpack.c.h.b16 %v2409
        %v2779 = vunpack.c.l.b16 %v2410
        %v2780 = vunpack.c.h.b16 %v2410
        %v2781 = vunpack.c.l.b16 %v2411
        %v2782 = vunpack.c.h.b16 %v2411
        %v2783 = vunpack.c.l.b16 %v2412
        %v2784 = vunpack.c.h.b16 %v2412
        %v2785 = vunpack.c.l.b16 %v2413
        %v2786 = vunpack.c.h.b16 %v2413
        %v2787 = vunpack.c.l.b16 %v2414
        %v2788 = vunpack.c.h.b16 %v2414
        %v2789 = vunpack.c.l.b16 %v2415
        %v2790 = vunpack.c.h.b16 %v2415
        %v2791 = vunpack.c.l.b16 %v2416
        %v2792 = vunpack.c.h.b16 %v2416
        %v2793 = vunpack.c.l.b16 %v2417
        %v2794 = vunpack.c.h.b16 %v2417
        %v2795 = vunpack.c.l.b16 %v2418
        %v2796 = vunpack.c.h.b16 %v2418
        %v2797 = vunpack.c.l.b16 %v2419
        %v2798 = vunpack.c.h.b16 %v2419
        %v2799 = vunpack.c.l.b16 %v2420
        %v2800 = vunpack.c.h.b16 %v2420
        %v2801 = vunpack.c.l.b16 %v2421
        %v2802 = vunpack.c.h.b16 %v2421
        %v2803 = vunpack.c.l.b16 %v2422
        %v2804 = vunpack.c.h.b16 %v2422
        %v2805 = vunpack.c.l.b16 %v2423
        %v2806 = vunpack.c.h.b16 %v2423
        %v2807 = vunpack.c.l.b16 %v2424
        %v2808 = vunpack.c.h.b16 %v2424
        %v2809 = vunpack.c.l.b16 %v2425
        %v2810 = vunpack.c.h.b16 %v2425
        %v2811 = vunpack.c.l.b16 %v2426
        %v2812 = vunpack.c.h.b16 %v2426
        %v2813 = vunpack.c.l.b16 %v2427
        %v2814 = vunpack.c.h.b16 %v2427
        %v2815 = vunpack.c.l.b16 %v2428
        %v2816 = vunpack.c.h.b16 %v2428
        %v2817 = vunpack.c.l.b16 %v2429
        %v2818 = vunpack.c.h.b16 %v2429
        %v2819 = vunpack.c.l.b16 %v2430
        %v2820 = vunpack.c.h.b16 %v2430
        %v2821 = vunpack.c.l.b16 %v2431
        %v2822 = vunpack.c.h.b16 %v2431
        %v2823 = vunpack.c.l.b16 %v2432
        %v2824 = vunpack.c.h.b16 %v2432
        %v2825 = vunpack.c.l.b16 %v2433
        %v2826 = vunpack.c.h.b16 %v2433
        %v2827 = vunpack.c.l.b16 %v2434
        %v2828 = vunpack.c.h.b16 %v2434
        %v2829 = vunpack.c.l.b16 %v2435
        %v2830 = vunpack.c.h.b16 %v2435
        %v2831 = vunpack.c.l.b16 %v2436
        %v2832 = vunpack.c.h.b16 %v2436
        %v2833 = vunpack.c.l.b16 %v2437
        %v2834 = vunpack.c.h.b16 %v2437
        %v2835 = vunpack.c.l.b16 %v2438
        %v2836 = vunpack.c.h.b16 %v2438
        %v2837 = vunpack.c.l.b16 %v2439
        %v2838 = vunpack.c.h.b16 %v2439
        %v2839 = vunpack.c.l.b16 %v2440
        %v2840 = vunpack.c.h.b16 %v2440
        %v2841 = vunpack.c.l.b16 %v2441
        %v2842 = vunpack.c.h.b16 %v2441
        %v2843 = vunpack.c.l.b16 %v2442
        %v2844 = vunpack.c.h.b16 %v2442
        %v2845 = vunpack.c.l.b16 %v2443
        %v2846 = vunpack.c.h.b16 %v2443
        %v2847 = vunpack.c.l.b16 %v2444
        %v2848 = vunpack.c.h.b16 %v2444
        %v2849 = vunpack.c.l.b16 %v2445
        %v2850 = vunpack.c.h.b16 %v2445
        %v2851 = vunpack.c.l.b16 %v2446
        %v2852 = vunpack.c.h.b16 %v2446
        %v2853 = vpack.c.b16 %v2601, %v2597
        %v2854 = vpack.c.b16 %v2602, %v2598
        %v2855 = vpack.c.b16 %v2603, %v2599
        %v2856 = vpack.c.b16 %v2604, %v2600
        %v2857 = vpack.c.b16 %v2609, %v2605
        %v2858 = vpack.c.b16 %v2610, %v2606
        %v2859 = vpack.c.b16 %v2611, %v2607
        %v2860 = vpack.c.b16 %v2612, %v2608
        %v2861 = vpack.c.b16 %v2617, %v2613
        %v2862 = vpack.c.b16 %v2618, %v2614
        %v2863 = vpack.c.b16 %v2619, %v2615
        %v2864 = vpack.c.b16 %v2620, %v2616
        %v2865 = vpack.c.b16 %v2625, %v2621
        %v2866 = vpack.c.b16 %v2626, %v2622
        %v2867 = vpack.c.b16 %v2627, %v2623
        %v2868 = vpack.c.b16 %v2628, %v2624
        %v2869 = vpack.c.b16 %v2633, %v2629
        %v2870 = vpack.c.b16 %v2634, %v2630
        %v2871 = vpack.c.b16 %v2635, %v2631
        %v2872 = vpack.c.b16 %v2636, %v2632
        %v2873 = vpack.c.b16 %v2641, %v2637
        %v2874 = vpack.c.b16 %v2642, %v2638
        %v2875 = vpack.c.b16 %v2643, %v2639
        %v2876 = vpack.c.b16 %v2644, %v2640
        %v2877 = vpack.c.b16 %v2649, %v2645
        %v2878 = vpack.c.b16 %v2650, %v2646
        %v2879 = vpack.c.b16 %v2651, %v2647
        %v2880 = vpack.c.b16 %v2652, %v2648
        %v2881 = vpack.c.b16 %v2657, %v2653
        %v2882 = vpack.c.b16 %v2658, %v2654
        %v2883 = vpack.c.b16 %v2659, %v2655
        %v2884 = vpack.c.b16 %v2660, %v2656
        %v2885 = vpack.c.b16 %v2665, %v2661
        %v2886 = vpack.c.b16 %v2666, %v2662
        %v2887 = vpack.c.b16 %v2667, %v2663
        %v2888 = vpack.c.b16 %v2668, %v2664
        %v2889 = vpack.c.b16 %v2673, %v2669
        %v2890 = vpack.c.b16 %v2674, %v2670
        %v2891 = vpack.c.b16 %v2675, %v2671
        %v2892 = vpack.c.b16 %v2676, %v2672
        %v2893 = vpack.c.b16 %v2681, %v2677
        %v2894 = vpack.c.b16 %v2682, %v2678
        %v2895 = vpack.c.b16 %v2683, %v2679
        %v2896 = vpack.c.b16 %v2684, %v2680
        %v2897 = vpack.c.b16 %v2689, %v2685
        %v2898 = vpack.c.b16 %v2690, %v2686
        %v2899 = vpack.c.b16 %v2691, %v2687
        %v2900 = vpack.c.b16 %v2692, %v2688
        %v2901 = vpack.c.b16 %v2697, %v2693
        %v2902 = vpack.c.b16 %v2698, %v2694
        %v2903 = vpack.c.b16 %v2699, %v2695
        %v2904 = vpack.c.b16 %v2700, %v2696
        %v2905 = vpack.c.b16 %v2705, %v2701
        %v2906 = vpack.c.b16 %v2706, %v2702
        %v2907 = vpack.c.b16 %v2707, %v2703
        %v2908 = vpack.c.b16 %v2708, %v2704
        %v2909 = vpack.c.b16 %v2713, %v2709
        %v2910 = vpack.c.b16 %v2714, %v2710
        %v2911 = vpack.c.b16 %v2715, %v2711
        %v2912 = vpack.c.b16 %v2716, %v2712
        %v2913 = vpack.c.b16 %v2721, %v2717
        %v2914 = vpack.c.b16 %v2722, %v2718
        %v2915 = vpack.c.b16 %v2723, %v2719
        %v2916 = vpack.c.b16 %v2724, %v2720
        %v2917 = vpack.c.b16 %v2729, %v2725
        %v2918 = vpack.c.b16 %v2730, %v2726
        %v2919 = vpack.c.b16 %v2731, %v2727
        %v2920 = vpack.c.b16 %v2732, %v2728
        %v2921 = vpack.c.b16 %v2737, %v2733
        %v2922 = vpack.c.b16 %v2738, %v2734
        %v2923 = vpack.c.b16 %v2739, %v2735
        %v2924 = vpack.c.b16 %v2740, %v2736
        %v2925 = vpack.c.b16 %v2745, %v2741
        %v2926 = vpack.c.b16 %v2746, %v2742
        %v2927 = vpack.c.b16 %v2747, %v2743
        %v2928 = vpack.c.b16 %v2748, %v2744
        %v2929 = vpack.c.b16 %v2753, %v2749
        %v2930 = vpack.c.b16 %v2754, %v2750
        %v2931 = vpack.c.b16 %v2755, %v2751
        %v2932 = vpack.c.b16 %v2756, %v2752
        %v2933 = vpack.c.b16 %v2761, %v2757
        %v2934 = vpack.c.b16 %v2762, %v2758
        %v2935 = vpack.c.b16 %v2763, %v2759
        %v2936 = vpack.c.b16 %v2764, %v2760
        %v2937 = vpack.c.b16 %v2769, %v2765
        %v2938 = vpack.c.b16 %v2770, %v2766
        %v2939 = vpack.c.b16 %v2771, %v2767
        %v2940 = vpack.c.b16 %v2772, %v2768
        %v2941 = vpack.c.b16 %v2777, %v2773
        %v2942 = vpack.c.b16 %v2778, %v2774
        %v2943 = vpack.c.b16 %v2779, %v2775
        %v2944 = vpack.c.b16 %v2780, %v2776
        %v2945 = vpack.c.b16 %v2785, %v2781
        %v2946 = vpack.c.b16 %v2786, %v2782
        %v2947 = vpack.c.b16 %v2787, %v2783
        %v2948 = vpack.c.b16 %v2788, %v2784
        %v2949 = vpack.c.b16 %v2793, %v2789
        %v2950 = vpack.c.b16 %v2794, %v2790
        %v2951 = vpack.c.b16 %v2795, %v2791
        %v2952 = vpack.c.b16 %v2796, %v2792
        %v2953 = vpack.c.b16 %v2801, %v2797
        %v2954 = vpack.c.b16 %v2802, %v2798
        %v2955 = vpack.c.b16 %v2803, %v2799
        %v2956 = vpack.c.b16 %v2804, %v2800
        %v2957 = vpack.c.b16 %v2809, %v2805
        %v2958 = vpack.c.b16 %v2810, %v2806
        %v2959 = vpack.c.b16 %v2811, %v2807
        %v2960 = vpack.c.b16 %v2812, %v2808
        %v2961 = vpack.c.b16 %v2817, %v2813
        %v2962 = vpack.c.b16 %v2818, %v2814
        %v2963 = vpack.c.b16 %v2819, %v2815
        %v2964 = vpack.c.b16 %v2820, %v2816
        %v2965 = vpack.c.b16 %v2825, %v2821
        %v2966 = vpack.c.b16 %v2826, %v2822
        %v2967 = vpack.c.b16 %v2827, %v2823
        %v2968 = vpack.c.b16 %v2828, %v2824
        %v2969 = vpack.c.b16 %v2833, %v2829
        %v2970 = vpack.c.b16 %v2834, %v2830
        %v2971 = vpack.c.b16 %v2835, %v2831
        %v2972 = vpack.c.b16 %v2836, %v2832
        %v2973 = vpack.c.b16 %v2841, %v2837
        %v2974 = vpack.c.b16 %v2842, %v2838
        %v2975 = vpack.c.b16 %v2843, %v2839
        %v2976 = vpack.c.b16 %v2844, %v2840
        %v2977 = vpack.c.b16 %v2849, %v2845
        %v2978 = vpack.c.b16 %v2850, %v2846
        %v2979 = vpack.c.b16 %v2851, %v2847
        %v2980 = vpack.c.b16 %v2852, %v2848
        %3109 = vmatprep.subr.bf16.mxu0 %v2882
        %3110 = vmatpush1.bf16.msra.mxu0 %v2881
        %3111 = vmatprep.subr.bf16.mxu0 %v2878
        %3112 = vmatpush1.bf16.msra.mxu0 %v2877
        %3113 = vmatprep.subr.bf16.mxu0 %v2874
        %3114 = vmatpush1.bf16.msra.mxu0 %v2873
        %3115 = vmatprep.subr.bf16.mxu0 %v2870
        %3116 = vmatpush1.bf16.msra.mxu0 %v2869
        %3117 = vmatprep.subr.bf16.mxu0 %v2866
        %3118 = vmatpush1.bf16.msra.mxu0 %v2865
        %3119 = vmatprep.subr.bf16.mxu0 %v2862
        %3120 = vmatpush1.bf16.msra.mxu0 %v2861
        %3121 = vmatprep.subr.bf16.mxu0 %v2858
        %3122 = vmatpush1.bf16.msra.mxu0 %v2857
        %3123 = vmatprep.subr.bf16.mxu0 %v2854
        %3124 = vmatpush1.bf16.msra.mxu0 %v2853
        %3125 = vmatprep.subr.bf16.mxu0 %v2914
        %3126 = vmatpush2.bf16.msra.mxu0 %v2913
        %3127 = vmatprep.subr.bf16.mxu0 %v2910
        %3128 = vmatpush2.bf16.msra.mxu0 %v2909
        %3129 = vmatprep.subr.bf16.mxu0 %v2906
        %3130 = vmatpush2.bf16.msra.mxu0 %v2905
        %3131 = vmatprep.subr.bf16.mxu0 %v2902
        %3132 = vmatpush2.bf16.msra.mxu0 %v2901
        %3133 = vmatprep.subr.bf16.mxu0 %v2898
        %3134 = vmatpush2.bf16.msra.mxu0 %v2897
        %3135 = vmatprep.subr.bf16.mxu0 %v2894
        %3136 = vmatpush2.bf16.msra.mxu0 %v2893
        %3137 = vmatprep.subr.bf16.mxu0 %v2890
        %3138 = vmatpush2.bf16.msra.mxu0 %v2889
        %3139 = vmatprep.subr.bf16.mxu0 %v2886
        %3140 = vmatpush2.bf16.msra.mxu0 %v2885
        %3141 = vmatprep.mubr.bf16.mxu0 %v2316
        %3142 = vmatmul.mubr.bf16.gmra.mxu0 %v2315
        %v3143 = vpop.f32.mrf.mxu0
        %v3144 = vadd.f32 %v2452, %v3143
        %v3145 = vpop.f32.mrf.mxu0
        %v3146 = vadd.f32 %v2456, %v3145
        %v3147 = vpop.f32.mrf.mxu0
        %v3148 = vpop.f32.mrf.mxu0
        %3149 = vdwg.mxu0
        %3150 = vmatprep.subr.bf16.mxu0 %v2946
        %3151 = vmatpush1.bf16.msra.mxu0 %v2945
        %3152 = vmatprep.subr.bf16.mxu0 %v2942
        %3153 = vmatpush1.bf16.msra.mxu0 %v2941
        %3154 = vmatprep.subr.bf16.mxu0 %v2938
        %3155 = vmatpush1.bf16.msra.mxu0 %v2937
        %3156 = vmatprep.subr.bf16.mxu0 %v2934
        %3157 = vmatpush1.bf16.msra.mxu0 %v2933
        %3158 = vmatprep.subr.bf16.mxu0 %v2930
        %3159 = vmatpush1.bf16.msra.mxu0 %v2929
        %3160 = vmatprep.subr.bf16.mxu0 %v2926
        %3161 = vmatpush1.bf16.msra.mxu0 %v2925
        %3162 = vmatprep.subr.bf16.mxu0 %v2922
        %3163 = vmatpush1.bf16.msra.mxu0 %v2921
        %3164 = vmatprep.subr.bf16.mxu0 %v2918
        %3165 = vmatpush1.bf16.msra.mxu0 %v2917
        %3166 = vmatprep.subr.bf16.mxu0 %v2978
        %3167 = vmatpush2.bf16.msra.mxu0 %v2977
        %3168 = vmatprep.subr.bf16.mxu0 %v2974
        %3169 = vmatpush2.bf16.msra.mxu0 %v2973
        %3170 = vmatprep.subr.bf16.mxu0 %v2970
        %3171 = vmatpush2.bf16.msra.mxu0 %v2969
        %3172 = vmatprep.subr.bf16.mxu0 %v2966
        %3173 = vmatpush2.bf16.msra.mxu0 %v2965
        %3174 = vmatprep.subr.bf16.mxu0 %v2962
        %3175 = vmatpush2.bf16.msra.mxu0 %v2961
        %3176 = vmatprep.subr.bf16.mxu0 %v2958
        %3177 = vmatpush2.bf16.msra.mxu0 %v2957
        %3178 = vmatprep.subr.bf16.mxu0 %v2954
        %3179 = vmatpush2.bf16.msra.mxu0 %v2953
        %3180 = vmatprep.subr.bf16.mxu0 %v2950
        %3181 = vmatpush2.bf16.msra.mxu0 %v2949
        %3182 = vmatprep.mubr.bf16.mxu0 %v2318
        %3183 = vmatmul.mubr.bf16.gmra.mxu0 %v2317
        %v3184 = vpop.f32.mrf.mxu0
        %v3185 = vadd.f32 %v3144, %v3184
        %v3186 = vpop.f32.mrf.mxu0
        %v3187 = vadd.f32 %v3146, %v3186
        %v3188 = vpop.f32.mrf.mxu0
        %v3189 = vpop.f32.mrf.mxu0
        %3190 = vdwg.mxu0
        %3191 = vmatprep.subr.bf16.mxu0 %v2884
        %3192 = vmatpush1.bf16.msra.mxu0 %v2883
        %3193 = vmatprep.subr.bf16.mxu0 %v2880
        %3194 = vmatpush1.bf16.msra.mxu0 %v2879
        %3195 = vmatprep.subr.bf16.mxu0 %v2876
        %3196 = vmatpush1.bf16.msra.mxu0 %v2875
        %3197 = vmatprep.subr.bf16.mxu0 %v2872
        %3198 = vmatpush1.bf16.msra.mxu0 %v2871
        %3199 = vmatprep.subr.bf16.mxu0 %v2868
        %3200 = vmatpush1.bf16.msra.mxu0 %v2867
        %3201 = vmatprep.subr.bf16.mxu0 %v2864
        %3202 = vmatpush1.bf16.msra.mxu0 %v2863
        %3203 = vmatprep.subr.bf16.mxu0 %v2860
        %3204 = vmatpush1.bf16.msra.mxu0 %v2859
        %3205 = vmatprep.subr.bf16.mxu0 %v2856
        %3206 = vmatpush1.bf16.msra.mxu0 %v2855
        %3207 = vmatprep.subr.bf16.mxu0 %v2916
        %3208 = vmatpush2.bf16.msra.mxu0 %v2915
        %3209 = vmatprep.subr.bf16.mxu0 %v2912
        %3210 = vmatpush2.bf16.msra.mxu0 %v2911
        %3211 = vmatprep.subr.bf16.mxu0 %v2908
        %3212 = vmatpush2.bf16.msra.mxu0 %v2907
        %3213 = vmatprep.subr.bf16.mxu0 %v2904
        %3214 = vmatpush2.bf16.msra.mxu0 %v2903
        %3215 = vmatprep.subr.bf16.mxu0 %v2900
        %3216 = vmatpush2.bf16.msra.mxu0 %v2899
        %3217 = vmatprep.subr.bf16.mxu0 %v2896
        %3218 = vmatpush2.bf16.msra.mxu0 %v2895
        %3219 = vmatprep.subr.bf16.mxu0 %v2892
        %3220 = vmatpush2.bf16.msra.mxu0 %v2891
        %3221 = vmatprep.subr.bf16.mxu0 %v2888
        %3222 = vmatpush2.bf16.msra.mxu0 %v2887
        %3223 = vmatprep.mubr.bf16.mxu0 %v2316
        %3224 = vmatmul.mubr.bf16.gmra.mxu0 %v2315
        %v3225 = vpop.f32.mrf.mxu0
        %v3226 = vadd.f32 %v2460, %v3225
        %v3227 = vpop.f32.mrf.mxu0
        %v3228 = vadd.f32 %v2464, %v3227
        %v3229 = vpop.f32.mrf.mxu0
        %v3230 = vpop.f32.mrf.mxu0
        %3231 = vdwg.mxu0
        %3232 = vmatprep.subr.bf16.mxu0 %v2948
        %3233 = vmatpush1.bf16.msra.mxu0 %v2947
        %3234 = vmatprep.subr.bf16.mxu0 %v2944
        %3235 = vmatpush1.bf16.msra.mxu0 %v2943
        %3236 = vmatprep.subr.bf16.mxu0 %v2940
        %3237 = vmatpush1.bf16.msra.mxu0 %v2939
        %3238 = vmatprep.subr.bf16.mxu0 %v2936
        %3239 = vmatpush1.bf16.msra.mxu0 %v2935
        %3240 = vmatprep.subr.bf16.mxu0 %v2932
        %3241 = vmatpush1.bf16.msra.mxu0 %v2931
        %3242 = vmatprep.subr.bf16.mxu0 %v2928
        %3243 = vmatpush1.bf16.msra.mxu0 %v2927
        %3244 = vmatprep.subr.bf16.mxu0 %v2924
        %3245 = vmatpush1.bf16.msra.mxu0 %v2923
        %3246 = vmatprep.subr.bf16.mxu0 %v2920
        %3247 = vmatpush1.bf16.msra.mxu0 %v2919
        %3248 = vmatprep.subr.bf16.mxu0 %v2980
        %3249 = vmatpush2.bf16.msra.mxu0 %v2979
        %3250 = vmatprep.subr.bf16.mxu0 %v2976
        %3251 = vmatpush2.bf16.msra.mxu0 %v2975
        %3252 = vmatprep.subr.bf16.mxu0 %v2972
        %3253 = vmatpush2.bf16.msra.mxu0 %v2971
        %3254 = vmatprep.subr.bf16.mxu0 %v2968
        %3255 = vmatpush2.bf16.msra.mxu0 %v2967
        %3256 = vmatprep.subr.bf16.mxu0 %v2964
        %3257 = vmatpush2.bf16.msra.mxu0 %v2963
        %3258 = vmatprep.subr.bf16.mxu0 %v2960
        %3259 = vmatpush2.bf16.msra.mxu0 %v2959
        %3260 = vmatprep.subr.bf16.mxu0 %v2956
        %3261 = vmatpush2.bf16.msra.mxu0 %v2955
        %3262 = vmatprep.subr.bf16.mxu0 %v2952
        %3263 = vmatpush2.bf16.msra.mxu0 %v2951
        %3264 = vmatprep.mubr.bf16.mxu0 %v2318
        %3265 = vmatmul.mubr.bf16.gmra.mxu0 %v2317
        %v3266 = vpop.f32.mrf.mxu0
        %v3267 = vadd.f32 %v3226, %v3266
        %v3268 = vpop.f32.mrf.mxu0
        %v3269 = vadd.f32 %v3228, %v3268
        %v3270 = vpop.f32.mrf.mxu0
        %v3271 = vpop.f32.mrf.mxu0
        %3272 = vdwg.mxu0
        %v3273 = vmax.f32 %v3185, 0.0
        %v3274 = vmax.f32 %v3187, 0.0
        %v3275 = vmax.f32 %v3267, 0.0
        %v3276 = vmax.f32 %v3269, 0.0
        %v3277 = vpack.c.bf16 %v3273, %v3273
        %v3278 = vpack.c.bf16 %v3274, %v3274
        %v3279 = vpack.c.bf16 %v3275, %v3275
        %v3280 = vpack.c.bf16 %v3276, %v3276
        %v3281 = vld [vmem:[#allocation11] sm:$0xff]
        %v3282 = vld [vmem:[#allocation11 + $0x8] sm:$0xff]
        %v3283 = vld [vmem:[#allocation11 + $0x10] sm:$0xff]
        %v3284 = vld [vmem:[#allocation11 + $0x18] sm:$0xff]
        %v3285 = vld [vmem:[#allocation11 + $0x20] sm:$0xff]
        %v3286 = vld [vmem:[#allocation11 + $0x28] sm:$0xff]
        %v3287 = vld [vmem:[#allocation11 + $0x30] sm:$0xff]
        %v3288 = vld [vmem:[#allocation11 + $0x38] sm:$0xff]
        %v3289 = vld [vmem:[#allocation11 + $0x40] sm:$0xff]
        %v3290 = vld [vmem:[#allocation11 + $0x48] sm:$0xff]
        %v3291 = vld [vmem:[#allocation11 + $0x50] sm:$0xff]
        %v3292 = vld [vmem:[#allocation11 + $0x58] sm:$0xff]
        %v3293 = vld [vmem:[#allocation11 + $0x60] sm:$0xff]
        %v3294 = vld [vmem:[#allocation11 + $0x68] sm:$0xff]
        %v3295 = vld [vmem:[#allocation11 + $0x70] sm:$0xff]
        %v3296 = vld [vmem:[#allocation11 + $0x78] sm:$0xff]
        %v3297 = vld [vmem:[#allocation11 + $0x80] sm:$0xff]
        %v3298 = vld [vmem:[#allocation11 + $0x88] sm:$0xff]
        %v3299 = vld [vmem:[#allocation11 + $0x90] sm:$0xff]
        %v3300 = vld [vmem:[#allocation11 + $0x98] sm:$0xff]
        %v3301 = vld [vmem:[#allocation11 + $0xa0] sm:$0xff]
        %v3302 = vld [vmem:[#allocation11 + $0xa8] sm:$0xff]
        %v3303 = vld [vmem:[#allocation11 + $0xb0] sm:$0xff]
        %v3304 = vld [vmem:[#allocation11 + $0xb8] sm:$0xff]
        %v3305 = vld [vmem:[#allocation11 + $0xc0] sm:$0xff]
        %v3306 = vld [vmem:[#allocation11 + $0xc8] sm:$0xff]
        %v3307 = vld [vmem:[#allocation11 + $0xd0] sm:$0xff]
        %v3308 = vld [vmem:[#allocation11 + $0xd8] sm:$0xff]
        %v3309 = vld [vmem:[#allocation11 + $0xe0] sm:$0xff]
        %v3310 = vld [vmem:[#allocation11 + $0xe8] sm:$0xff]
        %v3311 = vld [vmem:[#allocation11 + $0xf0] sm:$0xff]
        %v3312 = vld [vmem:[#allocation11 + $0xf8] sm:$0xff]
        %v3313 = vld [vmem:[#allocation11 + $0x100] sm:$0xff]
        %v3314 = vld [vmem:[#allocation11 + $0x108] sm:$0xff]
        %v3315 = vld [vmem:[#allocation11 + $0x110] sm:$0xff]
        %v3316 = vld [vmem:[#allocation11 + $0x118] sm:$0xff]
        %v3317 = vld [vmem:[#allocation11 + $0x120] sm:$0xff]
        %v3318 = vld [vmem:[#allocation11 + $0x128] sm:$0xff]
        %v3319 = vld [vmem:[#allocation11 + $0x130] sm:$0xff]
        %v3320 = vld [vmem:[#allocation11 + $0x138] sm:$0xff]
        %v3321 = vld [vmem:[#allocation11 + $0x140] sm:$0xff]
        %v3322 = vld [vmem:[#allocation11 + $0x148] sm:$0xff]
        %v3323 = vld [vmem:[#allocation11 + $0x150] sm:$0xff]
        %v3324 = vld [vmem:[#allocation11 + $0x158] sm:$0xff]
        %v3325 = vld [vmem:[#allocation11 + $0x160] sm:$0xff]
        %v3326 = vld [vmem:[#allocation11 + $0x168] sm:$0xff]
        %v3327 = vld [vmem:[#allocation11 + $0x170] sm:$0xff]
        %v3328 = vld [vmem:[#allocation11 + $0x178] sm:$0xff]
        %v3329 = vld [vmem:[#allocation11 + $0x180] sm:$0xff]
        %v3330 = vld [vmem:[#allocation11 + $0x188] sm:$0xff]
        %v3331 = vld [vmem:[#allocation11 + $0x190] sm:$0xff]
        %v3332 = vld [vmem:[#allocation11 + $0x198] sm:$0xff]
        %v3333 = vld [vmem:[#allocation11 + $0x1a0] sm:$0xff]
        %v3334 = vld [vmem:[#allocation11 + $0x1a8] sm:$0xff]
        %v3335 = vld [vmem:[#allocation11 + $0x1b0] sm:$0xff]
        %v3336 = vld [vmem:[#allocation11 + $0x1b8] sm:$0xff]
        %v3337 = vld [vmem:[#allocation11 + $0x1c0] sm:$0xff]
        %v3338 = vld [vmem:[#allocation11 + $0x1c8] sm:$0xff]
        %v3339 = vld [vmem:[#allocation11 + $0x1d0] sm:$0xff]
        %v3340 = vld [vmem:[#allocation11 + $0x1d8] sm:$0xff]
        %v3341 = vld [vmem:[#allocation11 + $0x1e0] sm:$0xff]
        %v3342 = vld [vmem:[#allocation11 + $0x1e8] sm:$0xff]
        %v3343 = vld [vmem:[#allocation11 + $0x1f0] sm:$0xff]
        %v3344 = vld [vmem:[#allocation11 + $0x1f8] sm:$0xff]
        %v3345 = vld [vmem:[#allocation11 + $0x200] sm:$0xff]
        %v3346 = vld [vmem:[#allocation11 + $0x208] sm:$0xff]
        %v3347 = vld [vmem:[#allocation11 + $0x210] sm:$0xff]
        %v3348 = vld [vmem:[#allocation11 + $0x218] sm:$0xff]
        %v3349 = vld [vmem:[#allocation11 + $0x220] sm:$0xff]
        %v3350 = vld [vmem:[#allocation11 + $0x228] sm:$0xff]
        %v3351 = vld [vmem:[#allocation11 + $0x230] sm:$0xff]
        %v3352 = vld [vmem:[#allocation11 + $0x238] sm:$0xff]
        %v3353 = vld [vmem:[#allocation11 + $0x240] sm:$0xff]
        %v3354 = vld [vmem:[#allocation11 + $0x248] sm:$0xff]
        %v3355 = vld [vmem:[#allocation11 + $0x250] sm:$0xff]
        %v3356 = vld [vmem:[#allocation11 + $0x258] sm:$0xff]
        %v3357 = vld [vmem:[#allocation11 + $0x260] sm:$0xff]
        %v3358 = vld [vmem:[#allocation11 + $0x268] sm:$0xff]
        %v3359 = vld [vmem:[#allocation11 + $0x270] sm:$0xff]
        %v3360 = vld [vmem:[#allocation11 + $0x278] sm:$0xff]
        %v3361 = vld [vmem:[#allocation11 + $0x280] sm:$0xff]
        %v3362 = vld [vmem:[#allocation11 + $0x288] sm:$0xff]
        %v3363 = vld [vmem:[#allocation11 + $0x290] sm:$0xff]
        %v3364 = vld [vmem:[#allocation11 + $0x298] sm:$0xff]
        %v3365 = vld [vmem:[#allocation11 + $0x2a0] sm:$0xff]
        %v3366 = vld [vmem:[#allocation11 + $0x2a8] sm:$0xff]
        %v3367 = vld [vmem:[#allocation11 + $0x2b0] sm:$0xff]
        %v3368 = vld [vmem:[#allocation11 + $0x2b8] sm:$0xff]
        %v3369 = vld [vmem:[#allocation11 + $0x2c0] sm:$0xff]
        %v3370 = vld [vmem:[#allocation11 + $0x2c8] sm:$0xff]
        %v3371 = vld [vmem:[#allocation11 + $0x2d0] sm:$0xff]
        %v3372 = vld [vmem:[#allocation11 + $0x2d8] sm:$0xff]
        %v3373 = vld [vmem:[#allocation11 + $0x2e0] sm:$0xff]
        %v3374 = vld [vmem:[#allocation11 + $0x2e8] sm:$0xff]
        %v3375 = vld [vmem:[#allocation11 + $0x2f0] sm:$0xff]
        %v3376 = vld [vmem:[#allocation11 + $0x2f8] sm:$0xff]
        %v3377 = vld [vmem:[#allocation11 + $0x300] sm:$0xff]
        %v3378 = vld [vmem:[#allocation11 + $0x308] sm:$0xff]
        %v3379 = vld [vmem:[#allocation11 + $0x310] sm:$0xff]
        %v3380 = vld [vmem:[#allocation11 + $0x318] sm:$0xff]
        %v3381 = vld [vmem:[#allocation11 + $0x320] sm:$0xff]
        %v3382 = vld [vmem:[#allocation11 + $0x328] sm:$0xff]
        %v3383 = vld [vmem:[#allocation11 + $0x330] sm:$0xff]
        %v3384 = vld [vmem:[#allocation11 + $0x338] sm:$0xff]
        %v3385 = vld [vmem:[#allocation11 + $0x340] sm:$0xff]
        %v3386 = vld [vmem:[#allocation11 + $0x348] sm:$0xff]
        %v3387 = vld [vmem:[#allocation11 + $0x350] sm:$0xff]
        %v3388 = vld [vmem:[#allocation11 + $0x358] sm:$0xff]
        %v3389 = vld [vmem:[#allocation11 + $0x360] sm:$0xff]
        %v3390 = vld [vmem:[#allocation11 + $0x368] sm:$0xff]
        %v3391 = vld [vmem:[#allocation11 + $0x370] sm:$0xff]
        %v3392 = vld [vmem:[#allocation11 + $0x378] sm:$0xff]
        %v3393 = vld [vmem:[#allocation11 + $0x380] sm:$0xff]
        %v3394 = vld [vmem:[#allocation11 + $0x388] sm:$0xff]
        %v3395 = vld [vmem:[#allocation11 + $0x390] sm:$0xff]
        %v3396 = vld [vmem:[#allocation11 + $0x398] sm:$0xff]
        %v3397 = vld [vmem:[#allocation11 + $0x3a0] sm:$0xff]
        %v3398 = vld [vmem:[#allocation11 + $0x3a8] sm:$0xff]
        %v3399 = vld [vmem:[#allocation11 + $0x3b0] sm:$0xff]
        %v3400 = vld [vmem:[#allocation11 + $0x3b8] sm:$0xff]
        %v3401 = vld [vmem:[#allocation11 + $0x3c0] sm:$0xff]
        %v3402 = vld [vmem:[#allocation11 + $0x3c8] sm:$0xff]
        %v3403 = vld [vmem:[#allocation11 + $0x3d0] sm:$0xff]
        %v3404 = vld [vmem:[#allocation11 + $0x3d8] sm:$0xff]
        %v3405 = vld [vmem:[#allocation11 + $0x3e0] sm:$0xff]
        %v3406 = vld [vmem:[#allocation11 + $0x3e8] sm:$0xff]
        %v3407 = vld [vmem:[#allocation11 + $0x3f0] sm:$0xff]
        %v3408 = vld [vmem:[#allocation11 + $0x3f8] sm:$0xff]
        %v3409 = vld [vmem:[#allocation13] sm:$0xf]
        %v3411 = vlaneseq
        %v3412 = vshrl.u32 %v3411, 7
        %v3413 = vsub.s32 0, %v3412
        %v3414 = vrot.slane %v3409, %v3413
        %v3415 = vlaneseq
        %v3416 = vshrl.u32 %v3415, 7
        %v3417 = vsub.s32 1, %v3416
        %v3418 = vrot.slane %v3409, %v3417
        %v3419 = vlaneseq
        %v3420 = vshrl.u32 %v3419, 7
        %v3421 = vsub.s32 2, %v3420
        %v3422 = vrot.slane %v3409, %v3421
        %v3423 = vlaneseq
        %v3424 = vshrl.u32 %v3423, 7
        %v3425 = vsub.s32 3, %v3424
        %v3426 = vrot.slane %v3409, %v3425
        %v3559 = vunpack.c.l.b16 %v3281
        %v3560 = vunpack.c.h.b16 %v3281
        %v3561 = vunpack.c.l.b16 %v3282
        %v3562 = vunpack.c.h.b16 %v3282
        %v3563 = vunpack.c.l.b16 %v3283
        %v3564 = vunpack.c.h.b16 %v3283
        %v3565 = vunpack.c.l.b16 %v3284
        %v3566 = vunpack.c.h.b16 %v3284
        %v3567 = vunpack.c.l.b16 %v3285
        %v3568 = vunpack.c.h.b16 %v3285
        %v3569 = vunpack.c.l.b16 %v3286
        %v3570 = vunpack.c.h.b16 %v3286
        %v3571 = vunpack.c.l.b16 %v3287
        %v3572 = vunpack.c.h.b16 %v3287
        %v3573 = vunpack.c.l.b16 %v3288
        %v3574 = vunpack.c.h.b16 %v3288
        %v3575 = vunpack.c.l.b16 %v3289
        %v3576 = vunpack.c.h.b16 %v3289
        %v3577 = vunpack.c.l.b16 %v3290
        %v3578 = vunpack.c.h.b16 %v3290
        %v3579 = vunpack.c.l.b16 %v3291
        %v3580 = vunpack.c.h.b16 %v3291
        %v3581 = vunpack.c.l.b16 %v3292
        %v3582 = vunpack.c.h.b16 %v3292
        %v3583 = vunpack.c.l.b16 %v3293
        %v3584 = vunpack.c.h.b16 %v3293
        %v3585 = vunpack.c.l.b16 %v3294
        %v3586 = vunpack.c.h.b16 %v3294
        %v3587 = vunpack.c.l.b16 %v3295
        %v3588 = vunpack.c.h.b16 %v3295
        %v3589 = vunpack.c.l.b16 %v3296
        %v3590 = vunpack.c.h.b16 %v3296
        %v3591 = vunpack.c.l.b16 %v3297
        %v3592 = vunpack.c.h.b16 %v3297
        %v3593 = vunpack.c.l.b16 %v3298
        %v3594 = vunpack.c.h.b16 %v3298
        %v3595 = vunpack.c.l.b16 %v3299
        %v3596 = vunpack.c.h.b16 %v3299
        %v3597 = vunpack.c.l.b16 %v3300
        %v3598 = vunpack.c.h.b16 %v3300
        %v3599 = vunpack.c.l.b16 %v3301
        %v3600 = vunpack.c.h.b16 %v3301
        %v3601 = vunpack.c.l.b16 %v3302
        %v3602 = vunpack.c.h.b16 %v3302
        %v3603 = vunpack.c.l.b16 %v3303
        %v3604 = vunpack.c.h.b16 %v3303
        %v3605 = vunpack.c.l.b16 %v3304
        %v3606 = vunpack.c.h.b16 %v3304
        %v3607 = vunpack.c.l.b16 %v3305
        %v3608 = vunpack.c.h.b16 %v3305
        %v3609 = vunpack.c.l.b16 %v3306
        %v3610 = vunpack.c.h.b16 %v3306
        %v3611 = vunpack.c.l.b16 %v3307
        %v3612 = vunpack.c.h.b16 %v3307
        %v3613 = vunpack.c.l.b16 %v3308
        %v3614 = vunpack.c.h.b16 %v3308
        %v3615 = vunpack.c.l.b16 %v3309
        %v3616 = vunpack.c.h.b16 %v3309
        %v3617 = vunpack.c.l.b16 %v3310
        %v3618 = vunpack.c.h.b16 %v3310
        %v3619 = vunpack.c.l.b16 %v3311
        %v3620 = vunpack.c.h.b16 %v3311
        %v3621 = vunpack.c.l.b16 %v3312
        %v3622 = vunpack.c.h.b16 %v3312
        %v3623 = vunpack.c.l.b16 %v3313
        %v3624 = vunpack.c.h.b16 %v3313
        %v3625 = vunpack.c.l.b16 %v3314
        %v3626 = vunpack.c.h.b16 %v3314
        %v3627 = vunpack.c.l.b16 %v3315
        %v3628 = vunpack.c.h.b16 %v3315
        %v3629 = vunpack.c.l.b16 %v3316
        %v3630 = vunpack.c.h.b16 %v3316
        %v3631 = vunpack.c.l.b16 %v3317
        %v3632 = vunpack.c.h.b16 %v3317
        %v3633 = vunpack.c.l.b16 %v3318
        %v3634 = vunpack.c.h.b16 %v3318
        %v3635 = vunpack.c.l.b16 %v3319
        %v3636 = vunpack.c.h.b16 %v3319
        %v3637 = vunpack.c.l.b16 %v3320
        %v3638 = vunpack.c.h.b16 %v3320
        %v3639 = vunpack.c.l.b16 %v3321
        %v3640 = vunpack.c.h.b16 %v3321
        %v3641 = vunpack.c.l.b16 %v3322
        %v3642 = vunpack.c.h.b16 %v3322
        %v3643 = vunpack.c.l.b16 %v3323
        %v3644 = vunpack.c.h.b16 %v3323
        %v3645 = vunpack.c.l.b16 %v3324
        %v3646 = vunpack.c.h.b16 %v3324
        %v3647 = vunpack.c.l.b16 %v3325
        %v3648 = vunpack.c.h.b16 %v3325
        %v3649 = vunpack.c.l.b16 %v3326
        %v3650 = vunpack.c.h.b16 %v3326
        %v3651 = vunpack.c.l.b16 %v3327
        %v3652 = vunpack.c.h.b16 %v3327
        %v3653 = vunpack.c.l.b16 %v3328
        %v3654 = vunpack.c.h.b16 %v3328
        %v3655 = vunpack.c.l.b16 %v3329
        %v3656 = vunpack.c.h.b16 %v3329
        %v3657 = vunpack.c.l.b16 %v3330
        %v3658 = vunpack.c.h.b16 %v3330
        %v3659 = vunpack.c.l.b16 %v3331
        %v3660 = vunpack.c.h.b16 %v3331
        %v3661 = vunpack.c.l.b16 %v3332
        %v3662 = vunpack.c.h.b16 %v3332
        %v3663 = vunpack.c.l.b16 %v3333
        %v3664 = vunpack.c.h.b16 %v3333
        %v3665 = vunpack.c.l.b16 %v3334
        %v3666 = vunpack.c.h.b16 %v3334
        %v3667 = vunpack.c.l.b16 %v3335
        %v3668 = vunpack.c.h.b16 %v3335
        %v3669 = vunpack.c.l.b16 %v3336
        %v3670 = vunpack.c.h.b16 %v3336
        %v3671 = vunpack.c.l.b16 %v3337
        %v3672 = vunpack.c.h.b16 %v3337
        %v3673 = vunpack.c.l.b16 %v3338
        %v3674 = vunpack.c.h.b16 %v3338
        %v3675 = vunpack.c.l.b16 %v3339
        %v3676 = vunpack.c.h.b16 %v3339
        %v3677 = vunpack.c.l.b16 %v3340
        %v3678 = vunpack.c.h.b16 %v3340
        %v3679 = vunpack.c.l.b16 %v3341
        %v3680 = vunpack.c.h.b16 %v3341
        %v3681 = vunpack.c.l.b16 %v3342
        %v3682 = vunpack.c.h.b16 %v3342
        %v3683 = vunpack.c.l.b16 %v3343
        %v3684 = vunpack.c.h.b16 %v3343
        %v3685 = vunpack.c.l.b16 %v3344
        %v3686 = vunpack.c.h.b16 %v3344
        %v3687 = vunpack.c.l.b16 %v3345
        %v3688 = vunpack.c.h.b16 %v3345
        %v3689 = vunpack.c.l.b16 %v3346
        %v3690 = vunpack.c.h.b16 %v3346
        %v3691 = vunpack.c.l.b16 %v3347
        %v3692 = vunpack.c.h.b16 %v3347
        %v3693 = vunpack.c.l.b16 %v3348
        %v3694 = vunpack.c.h.b16 %v3348
        %v3695 = vunpack.c.l.b16 %v3349
        %v3696 = vunpack.c.h.b16 %v3349
        %v3697 = vunpack.c.l.b16 %v3350
        %v3698 = vunpack.c.h.b16 %v3350
        %v3699 = vunpack.c.l.b16 %v3351
        %v3700 = vunpack.c.h.b16 %v3351
        %v3701 = vunpack.c.l.b16 %v3352
        %v3702 = vunpack.c.h.b16 %v3352
        %v3703 = vunpack.c.l.b16 %v3353
        %v3704 = vunpack.c.h.b16 %v3353
        %v3705 = vunpack.c.l.b16 %v3354
        %v3706 = vunpack.c.h.b16 %v3354
        %v3707 = vunpack.c.l.b16 %v3355
        %v3708 = vunpack.c.h.b16 %v3355
        %v3709 = vunpack.c.l.b16 %v3356
        %v3710 = vunpack.c.h.b16 %v3356
        %v3711 = vunpack.c.l.b16 %v3357
        %v3712 = vunpack.c.h.b16 %v3357
        %v3713 = vunpack.c.l.b16 %v3358
        %v3714 = vunpack.c.h.b16 %v3358
        %v3715 = vunpack.c.l.b16 %v3359
        %v3716 = vunpack.c.h.b16 %v3359
        %v3717 = vunpack.c.l.b16 %v3360
        %v3718 = vunpack.c.h.b16 %v3360
        %v3719 = vunpack.c.l.b16 %v3361
        %v3720 = vunpack.c.h.b16 %v3361
        %v3721 = vunpack.c.l.b16 %v3362
        %v3722 = vunpack.c.h.b16 %v3362
        %v3723 = vunpack.c.l.b16 %v3363
        %v3724 = vunpack.c.h.b16 %v3363
        %v3725 = vunpack.c.l.b16 %v3364
        %v3726 = vunpack.c.h.b16 %v3364
        %v3727 = vunpack.c.l.b16 %v3365
        %v3728 = vunpack.c.h.b16 %v3365
        %v3729 = vunpack.c.l.b16 %v3366
        %v3730 = vunpack.c.h.b16 %v3366
        %v3731 = vunpack.c.l.b16 %v3367
        %v3732 = vunpack.c.h.b16 %v3367
        %v3733 = vunpack.c.l.b16 %v3368
        %v3734 = vunpack.c.h.b16 %v3368
        %v3735 = vunpack.c.l.b16 %v3369
        %v3736 = vunpack.c.h.b16 %v3369
        %v3737 = vunpack.c.l.b16 %v3370
        %v3738 = vunpack.c.h.b16 %v3370
        %v3739 = vunpack.c.l.b16 %v3371
        %v3740 = vunpack.c.h.b16 %v3371
        %v3741 = vunpack.c.l.b16 %v3372
        %v3742 = vunpack.c.h.b16 %v3372
        %v3743 = vunpack.c.l.b16 %v3373
        %v3744 = vunpack.c.h.b16 %v3373
        %v3745 = vunpack.c.l.b16 %v3374
        %v3746 = vunpack.c.h.b16 %v3374
        %v3747 = vunpack.c.l.b16 %v3375
        %v3748 = vunpack.c.h.b16 %v3375
        %v3749 = vunpack.c.l.b16 %v3376
        %v3750 = vunpack.c.h.b16 %v3376
        %v3751 = vunpack.c.l.b16 %v3377
        %v3752 = vunpack.c.h.b16 %v3377
        %v3753 = vunpack.c.l.b16 %v3378
        %v3754 = vunpack.c.h.b16 %v3378
        %v3755 = vunpack.c.l.b16 %v3379
        %v3756 = vunpack.c.h.b16 %v3379
        %v3757 = vunpack.c.l.b16 %v3380
        %v3758 = vunpack.c.h.b16 %v3380
        %v3759 = vunpack.c.l.b16 %v3381
        %v3760 = vunpack.c.h.b16 %v3381
        %v3761 = vunpack.c.l.b16 %v3382
        %v3762 = vunpack.c.h.b16 %v3382
        %v3763 = vunpack.c.l.b16 %v3383
        %v3764 = vunpack.c.h.b16 %v3383
        %v3765 = vunpack.c.l.b16 %v3384
        %v3766 = vunpack.c.h.b16 %v3384
        %v3767 = vunpack.c.l.b16 %v3385
        %v3768 = vunpack.c.h.b16 %v3385
        %v3769 = vunpack.c.l.b16 %v3386
        %v3770 = vunpack.c.h.b16 %v3386
        %v3771 = vunpack.c.l.b16 %v3387
        %v3772 = vunpack.c.h.b16 %v3387
        %v3773 = vunpack.c.l.b16 %v3388
        %v3774 = vunpack.c.h.b16 %v3388
        %v3775 = vunpack.c.l.b16 %v3389
        %v3776 = vunpack.c.h.b16 %v3389
        %v3777 = vunpack.c.l.b16 %v3390
        %v3778 = vunpack.c.h.b16 %v3390
        %v3779 = vunpack.c.l.b16 %v3391
        %v3780 = vunpack.c.h.b16 %v3391
        %v3781 = vunpack.c.l.b16 %v3392
        %v3782 = vunpack.c.h.b16 %v3392
        %v3783 = vunpack.c.l.b16 %v3393
        %v3784 = vunpack.c.h.b16 %v3393
        %v3785 = vunpack.c.l.b16 %v3394
        %v3786 = vunpack.c.h.b16 %v3394
        %v3787 = vunpack.c.l.b16 %v3395
        %v3788 = vunpack.c.h.b16 %v3395
        %v3789 = vunpack.c.l.b16 %v3396
        %v3790 = vunpack.c.h.b16 %v3396
        %v3791 = vunpack.c.l.b16 %v3397
        %v3792 = vunpack.c.h.b16 %v3397
        %v3793 = vunpack.c.l.b16 %v3398
        %v3794 = vunpack.c.h.b16 %v3398
        %v3795 = vunpack.c.l.b16 %v3399
        %v3796 = vunpack.c.h.b16 %v3399
        %v3797 = vunpack.c.l.b16 %v3400
        %v3798 = vunpack.c.h.b16 %v3400
        %v3799 = vunpack.c.l.b16 %v3401
        %v3800 = vunpack.c.h.b16 %v3401
        %v3801 = vunpack.c.l.b16 %v3402
        %v3802 = vunpack.c.h.b16 %v3402
        %v3803 = vunpack.c.l.b16 %v3403
        %v3804 = vunpack.c.h.b16 %v3403
        %v3805 = vunpack.c.l.b16 %v3404
        %v3806 = vunpack.c.h.b16 %v3404
        %v3807 = vunpack.c.l.b16 %v3405
        %v3808 = vunpack.c.h.b16 %v3405
        %v3809 = vunpack.c.l.b16 %v3406
        %v3810 = vunpack.c.h.b16 %v3406
        %v3811 = vunpack.c.l.b16 %v3407
        %v3812 = vunpack.c.h.b16 %v3407
        %v3813 = vunpack.c.l.b16 %v3408
        %v3814 = vunpack.c.h.b16 %v3408
        %v3815 = vpack.c.b16 %v3563, %v3559
        %v3816 = vpack.c.b16 %v3564, %v3560
        %v3817 = vpack.c.b16 %v3565, %v3561
        %v3818 = vpack.c.b16 %v3566, %v3562
        %v3819 = vpack.c.b16 %v3571, %v3567
        %v3820 = vpack.c.b16 %v3572, %v3568
        %v3821 = vpack.c.b16 %v3573, %v3569
        %v3822 = vpack.c.b16 %v3574, %v3570
        %v3823 = vpack.c.b16 %v3579, %v3575
        %v3824 = vpack.c.b16 %v3580, %v3576
        %v3825 = vpack.c.b16 %v3581, %v3577
        %v3826 = vpack.c.b16 %v3582, %v3578
        %v3827 = vpack.c.b16 %v3587, %v3583
        %v3828 = vpack.c.b16 %v3588, %v3584
        %v3829 = vpack.c.b16 %v3589, %v3585
        %v3830 = vpack.c.b16 %v3590, %v3586
        %v3831 = vpack.c.b16 %v3595, %v3591
        %v3832 = vpack.c.b16 %v3596, %v3592
        %v3833 = vpack.c.b16 %v3597, %v3593
        %v3834 = vpack.c.b16 %v3598, %v3594
        %v3835 = vpack.c.b16 %v3603, %v3599
        %v3836 = vpack.c.b16 %v3604, %v3600
        %v3837 = vpack.c.b16 %v3605, %v3601
        %v3838 = vpack.c.b16 %v3606, %v3602
        %v3839 = vpack.c.b16 %v3611, %v3607
        %v3840 = vpack.c.b16 %v3612, %v3608
        %v3841 = vpack.c.b16 %v3613, %v3609
        %v3842 = vpack.c.b16 %v3614, %v3610
        %v3843 = vpack.c.b16 %v3619, %v3615
        %v3844 = vpack.c.b16 %v3620, %v3616
        %v3845 = vpack.c.b16 %v3621, %v3617
        %v3846 = vpack.c.b16 %v3622, %v3618
        %v3847 = vpack.c.b16 %v3627, %v3623
        %v3848 = vpack.c.b16 %v3628, %v3624
        %v3849 = vpack.c.b16 %v3629, %v3625
        %v3850 = vpack.c.b16 %v3630, %v3626
        %v3851 = vpack.c.b16 %v3635, %v3631
        %v3852 = vpack.c.b16 %v3636, %v3632
        %v3853 = vpack.c.b16 %v3637, %v3633
        %v3854 = vpack.c.b16 %v3638, %v3634
        %v3855 = vpack.c.b16 %v3643, %v3639
        %v3856 = vpack.c.b16 %v3644, %v3640
        %v3857 = vpack.c.b16 %v3645, %v3641
        %v3858 = vpack.c.b16 %v3646, %v3642
        %v3859 = vpack.c.b16 %v3651, %v3647
        %v3860 = vpack.c.b16 %v3652, %v3648
        %v3861 = vpack.c.b16 %v3653, %v3649
        %v3862 = vpack.c.b16 %v3654, %v3650
        %v3863 = vpack.c.b16 %v3659, %v3655
        %v3864 = vpack.c.b16 %v3660, %v3656
        %v3865 = vpack.c.b16 %v3661, %v3657
        %v3866 = vpack.c.b16 %v3662, %v3658
        %v3867 = vpack.c.b16 %v3667, %v3663
        %v3868 = vpack.c.b16 %v3668, %v3664
        %v3869 = vpack.c.b16 %v3669, %v3665
        %v3870 = vpack.c.b16 %v3670, %v3666
        %v3871 = vpack.c.b16 %v3675, %v3671
        %v3872 = vpack.c.b16 %v3676, %v3672
        %v3873 = vpack.c.b16 %v3677, %v3673
        %v3874 = vpack.c.b16 %v3678, %v3674
        %v3875 = vpack.c.b16 %v3683, %v3679
        %v3876 = vpack.c.b16 %v3684, %v3680
        %v3877 = vpack.c.b16 %v3685, %v3681
        %v3878 = vpack.c.b16 %v3686, %v3682
        %v3879 = vpack.c.b16 %v3691, %v3687
        %v3880 = vpack.c.b16 %v3692, %v3688
        %v3881 = vpack.c.b16 %v3693, %v3689
        %v3882 = vpack.c.b16 %v3694, %v3690
        %v3883 = vpack.c.b16 %v3699, %v3695
        %v3884 = vpack.c.b16 %v3700, %v3696
        %v3885 = vpack.c.b16 %v3701, %v3697
        %v3886 = vpack.c.b16 %v3702, %v3698
        %v3887 = vpack.c.b16 %v3707, %v3703
        %v3888 = vpack.c.b16 %v3708, %v3704
        %v3889 = vpack.c.b16 %v3709, %v3705
        %v3890 = vpack.c.b16 %v3710, %v3706
        %v3891 = vpack.c.b16 %v3715, %v3711
        %v3892 = vpack.c.b16 %v3716, %v3712
        %v3893 = vpack.c.b16 %v3717, %v3713
        %v3894 = vpack.c.b16 %v3718, %v3714
        %v3895 = vpack.c.b16 %v3723, %v3719
        %v3896 = vpack.c.b16 %v3724, %v3720
        %v3897 = vpack.c.b16 %v3725, %v3721
        %v3898 = vpack.c.b16 %v3726, %v3722
        %v3899 = vpack.c.b16 %v3731, %v3727
        %v3900 = vpack.c.b16 %v3732, %v3728
        %v3901 = vpack.c.b16 %v3733, %v3729
        %v3902 = vpack.c.b16 %v3734, %v3730
        %v3903 = vpack.c.b16 %v3739, %v3735
        %v3904 = vpack.c.b16 %v3740, %v3736
        %v3905 = vpack.c.b16 %v3741, %v3737
        %v3906 = vpack.c.b16 %v3742, %v3738
        %v3907 = vpack.c.b16 %v3747, %v3743
        %v3908 = vpack.c.b16 %v3748, %v3744
        %v3909 = vpack.c.b16 %v3749, %v3745
        %v3910 = vpack.c.b16 %v3750, %v3746
        %v3911 = vpack.c.b16 %v3755, %v3751
        %v3912 = vpack.c.b16 %v3756, %v3752
        %v3913 = vpack.c.b16 %v3757, %v3753
        %v3914 = vpack.c.b16 %v3758, %v3754
        %v3915 = vpack.c.b16 %v3763, %v3759
        %v3916 = vpack.c.b16 %v3764, %v3760
        %v3917 = vpack.c.b16 %v3765, %v3761
        %v3918 = vpack.c.b16 %v3766, %v3762
        %v3919 = vpack.c.b16 %v3771, %v3767
        %v3920 = vpack.c.b16 %v3772, %v3768
        %v3921 = vpack.c.b16 %v3773, %v3769
        %v3922 = vpack.c.b16 %v3774, %v3770
        %v3923 = vpack.c.b16 %v3779, %v3775
        %v3924 = vpack.c.b16 %v3780, %v3776
        %v3925 = vpack.c.b16 %v3781, %v3777
        %v3926 = vpack.c.b16 %v3782, %v3778
        %v3927 = vpack.c.b16 %v3787, %v3783
        %v3928 = vpack.c.b16 %v3788, %v3784
        %v3929 = vpack.c.b16 %v3789, %v3785
        %v3930 = vpack.c.b16 %v3790, %v3786
        %v3931 = vpack.c.b16 %v3795, %v3791
        %v3932 = vpack.c.b16 %v3796, %v3792
        %v3933 = vpack.c.b16 %v3797, %v3793
        %v3934 = vpack.c.b16 %v3798, %v3794
        %v3935 = vpack.c.b16 %v3803, %v3799
        %v3936 = vpack.c.b16 %v3804, %v3800
        %v3937 = vpack.c.b16 %v3805, %v3801
        %v3938 = vpack.c.b16 %v3806, %v3802
        %v3939 = vpack.c.b16 %v3811, %v3807
        %v3940 = vpack.c.b16 %v3812, %v3808
        %v3941 = vpack.c.b16 %v3813, %v3809
        %v3942 = vpack.c.b16 %v3814, %v3810
        %4071 = vmatprep.subr.bf16.mxu0 %v3844
        %4072 = vmatpush1.bf16.msra.mxu0 %v3843
        %4073 = vmatprep.subr.bf16.mxu0 %v3840
        %4074 = vmatpush1.bf16.msra.mxu0 %v3839
        %4075 = vmatprep.subr.bf16.mxu0 %v3836
        %4076 = vmatpush1.bf16.msra.mxu0 %v3835
        %4077 = vmatprep.subr.bf16.mxu0 %v3832
        %4078 = vmatpush1.bf16.msra.mxu0 %v3831
        %4079 = vmatprep.subr.bf16.mxu0 %v3828
        %4080 = vmatpush1.bf16.msra.mxu0 %v3827
        %4081 = vmatprep.subr.bf16.mxu0 %v3824
        %4082 = vmatpush1.bf16.msra.mxu0 %v3823
        %4083 = vmatprep.subr.bf16.mxu0 %v3820
        %4084 = vmatpush1.bf16.msra.mxu0 %v3819
        %4085 = vmatprep.subr.bf16.mxu0 %v3816
        %4086 = vmatpush1.bf16.msra.mxu0 %v3815
        %4087 = vmatprep.subr.bf16.mxu0 %v3876
        %4088 = vmatpush2.bf16.msra.mxu0 %v3875
        %4089 = vmatprep.subr.bf16.mxu0 %v3872
        %4090 = vmatpush2.bf16.msra.mxu0 %v3871
        %4091 = vmatprep.subr.bf16.mxu0 %v3868
        %4092 = vmatpush2.bf16.msra.mxu0 %v3867
        %4093 = vmatprep.subr.bf16.mxu0 %v3864
        %4094 = vmatpush2.bf16.msra.mxu0 %v3863
        %4095 = vmatprep.subr.bf16.mxu0 %v3860
        %4096 = vmatpush2.bf16.msra.mxu0 %v3859
        %4097 = vmatprep.subr.bf16.mxu0 %v3856
        %4098 = vmatpush2.bf16.msra.mxu0 %v3855
        %4099 = vmatprep.subr.bf16.mxu0 %v3852
        %4100 = vmatpush2.bf16.msra.mxu0 %v3851
        %4101 = vmatprep.subr.bf16.mxu0 %v3848
        %4102 = vmatpush2.bf16.msra.mxu0 %v3847
        %4103 = vmatprep.mubr.bf16.mxu0 %v3278
        %4104 = vmatmul.mubr.bf16.gmra.mxu0 %v3277
        %v4105 = vpop.f32.mrf.mxu0
        %v4106 = vadd.f32 %v3414, %v4105
        %v4107 = vpop.f32.mrf.mxu0
        %v4108 = vadd.f32 %v3418, %v4107
        %v4109 = vpop.f32.mrf.mxu0
        %v4110 = vpop.f32.mrf.mxu0
        %4111 = vdwg.mxu0
        %4112 = vmatprep.subr.bf16.mxu0 %v3908
        %4113 = vmatpush1.bf16.msra.mxu0 %v3907
        %4114 = vmatprep.subr.bf16.mxu0 %v3904
        %4115 = vmatpush1.bf16.msra.mxu0 %v3903
        %4116 = vmatprep.subr.bf16.mxu0 %v3900
        %4117 = vmatpush1.bf16.msra.mxu0 %v3899
        %4118 = vmatprep.subr.bf16.mxu0 %v3896
        %4119 = vmatpush1.bf16.msra.mxu0 %v3895
        %4120 = vmatprep.subr.bf16.mxu0 %v3892
        %4121 = vmatpush1.bf16.msra.mxu0 %v3891
        %4122 = vmatprep.subr.bf16.mxu0 %v3888
        %4123 = vmatpush1.bf16.msra.mxu0 %v3887
        %4124 = vmatprep.subr.bf16.mxu0 %v3884
        %4125 = vmatpush1.bf16.msra.mxu0 %v3883
        %4126 = vmatprep.subr.bf16.mxu0 %v3880
        %4127 = vmatpush1.bf16.msra.mxu0 %v3879
        %4128 = vmatprep.subr.bf16.mxu0 %v3940
        %4129 = vmatpush2.bf16.msra.mxu0 %v3939
        %4130 = vmatprep.subr.bf16.mxu0 %v3936
        %4131 = vmatpush2.bf16.msra.mxu0 %v3935
        %4132 = vmatprep.subr.bf16.mxu0 %v3932
        %4133 = vmatpush2.bf16.msra.mxu0 %v3931
        %4134 = vmatprep.subr.bf16.mxu0 %v3928
        %4135 = vmatpush2.bf16.msra.mxu0 %v3927
        %4136 = vmatprep.subr.bf16.mxu0 %v3924
        %4137 = vmatpush2.bf16.msra.mxu0 %v3923
        %4138 = vmatprep.subr.bf16.mxu0 %v3920
        %4139 = vmatpush2.bf16.msra.mxu0 %v3919
        %4140 = vmatprep.subr.bf16.mxu0 %v3916
        %4141 = vmatpush2.bf16.msra.mxu0 %v3915
        %4142 = vmatprep.subr.bf16.mxu0 %v3912
        %4143 = vmatpush2.bf16.msra.mxu0 %v3911
        %4144 = vmatprep.mubr.bf16.mxu0 %v3280
        %4145 = vmatmul.mubr.bf16.gmra.mxu0 %v3279
        %v4146 = vpop.f32.mrf.mxu0
        %v4147 = vadd.f32 %v4106, %v4146
        %v4148 = vpop.f32.mrf.mxu0
        %v4149 = vadd.f32 %v4108, %v4148
        %v4150 = vpop.f32.mrf.mxu0
        %v4151 = vpop.f32.mrf.mxu0
        %4152 = vdwg.mxu0
        %4153 = vmatprep.subr.bf16.mxu0 %v3846
        %4154 = vmatpush1.bf16.msra.mxu0 %v3845
        %4155 = vmatprep.subr.bf16.mxu0 %v3842
        %4156 = vmatpush1.bf16.msra.mxu0 %v3841
        %4157 = vmatprep.subr.bf16.mxu0 %v3838
        %4158 = vmatpush1.bf16.msra.mxu0 %v3837
        %4159 = vmatprep.subr.bf16.mxu0 %v3834
        %4160 = vmatpush1.bf16.msra.mxu0 %v3833
        %4161 = vmatprep.subr.bf16.mxu0 %v3830
        %4162 = vmatpush1.bf16.msra.mxu0 %v3829
        %4163 = vmatprep.subr.bf16.mxu0 %v3826
        %4164 = vmatpush1.bf16.msra.mxu0 %v3825
        %4165 = vmatprep.subr.bf16.mxu0 %v3822
        %4166 = vmatpush1.bf16.msra.mxu0 %v3821
        %4167 = vmatprep.subr.bf16.mxu0 %v3818
        %4168 = vmatpush1.bf16.msra.mxu0 %v3817
        %4169 = vmatprep.subr.bf16.mxu0 %v3878
        %4170 = vmatpush2.bf16.msra.mxu0 %v3877
        %4171 = vmatprep.subr.bf16.mxu0 %v3874
        %4172 = vmatpush2.bf16.msra.mxu0 %v3873
        %4173 = vmatprep.subr.bf16.mxu0 %v3870
        %4174 = vmatpush2.bf16.msra.mxu0 %v3869
        %4175 = vmatprep.subr.bf16.mxu0 %v3866
        %4176 = vmatpush2.bf16.msra.mxu0 %v3865
        %4177 = vmatprep.subr.bf16.mxu0 %v3862
        %4178 = vmatpush2.bf16.msra.mxu0 %v3861
        %4179 = vmatprep.subr.bf16.mxu0 %v3858
        %4180 = vmatpush2.bf16.msra.mxu0 %v3857
        %4181 = vmatprep.subr.bf16.mxu0 %v3854
        %4182 = vmatpush2.bf16.msra.mxu0 %v3853
        %4183 = vmatprep.subr.bf16.mxu0 %v3850
        %4184 = vmatpush2.bf16.msra.mxu0 %v3849
        %4185 = vmatprep.mubr.bf16.mxu0 %v3278
        %4186 = vmatmul.mubr.bf16.gmra.mxu0 %v3277
        %v4187 = vpop.f32.mrf.mxu0
        %v4188 = vadd.f32 %v3422, %v4187
        %v4189 = vpop.f32.mrf.mxu0
        %v4190 = vadd.f32 %v3426, %v4189
        %v4191 = vpop.f32.mrf.mxu0
        %v4192 = vpop.f32.mrf.mxu0
        %4193 = vdwg.mxu0
        %4194 = vmatprep.subr.bf16.mxu0 %v3910
        %4195 = vmatpush1.bf16.msra.mxu0 %v3909
        %4196 = vmatprep.subr.bf16.mxu0 %v3906
        %4197 = vmatpush1.bf16.msra.mxu0 %v3905
        %4198 = vmatprep.subr.bf16.mxu0 %v3902
        %4199 = vmatpush1.bf16.msra.mxu0 %v3901
        %4200 = vmatprep.subr.bf16.mxu0 %v3898
        %4201 = vmatpush1.bf16.msra.mxu0 %v3897
        %4202 = vmatprep.subr.bf16.mxu0 %v3894
        %4203 = vmatpush1.bf16.msra.mxu0 %v3893
        %4204 = vmatprep.subr.bf16.mxu0 %v3890
        %4205 = vmatpush1.bf16.msra.mxu0 %v3889
        %4206 = vmatprep.subr.bf16.mxu0 %v3886
        %4207 = vmatpush1.bf16.msra.mxu0 %v3885
        %4208 = vmatprep.subr.bf16.mxu0 %v3882
        %4209 = vmatpush1.bf16.msra.mxu0 %v3881
        %4210 = vmatprep.subr.bf16.mxu0 %v3942
        %4211 = vmatpush2.bf16.msra.mxu0 %v3941
        %4212 = vmatprep.subr.bf16.mxu0 %v3938
        %4213 = vmatpush2.bf16.msra.mxu0 %v3937
        %4214 = vmatprep.subr.bf16.mxu0 %v3934
        %4215 = vmatpush2.bf16.msra.mxu0 %v3933
        %4216 = vmatprep.subr.bf16.mxu0 %v3930
        %4217 = vmatpush2.bf16.msra.mxu0 %v3929
        %4218 = vmatprep.subr.bf16.mxu0 %v3926
        %4219 = vmatpush2.bf16.msra.mxu0 %v3925
        %4220 = vmatprep.subr.bf16.mxu0 %v3922
        %4221 = vmatpush2.bf16.msra.mxu0 %v3921
        %4222 = vmatprep.subr.bf16.mxu0 %v3918
        %4223 = vmatpush2.bf16.msra.mxu0 %v3917
        %4224 = vmatprep.subr.bf16.mxu0 %v3914
        %4225 = vmatpush2.bf16.msra.mxu0 %v3913
        %4226 = vmatprep.mubr.bf16.mxu0 %v3280
        %4227 = vmatmul.mubr.bf16.gmra.mxu0 %v3279
        %v4228 = vpop.f32.mrf.mxu0
        %v4229 = vadd.f32 %v4188, %v4228
        %v4230 = vpop.f32.mrf.mxu0
        %v4231 = vadd.f32 %v4190, %v4230
        %v4232 = vpop.f32.mrf.mxu0
        %v4233 = vpop.f32.mrf.mxu0
        %4234 = vdwg.mxu0
        %v4235 = vmax.f32 %v4147, 0.0
        %v4236 = vmax.f32 %v4149, 0.0
        %v4237 = vmax.f32 %v4229, 0.0
        %v4238 = vmax.f32 %v4231, 0.0
        %v4239 = vld [vmem:[#allocation14] sm:$0xff]
        %v4240 = vld [vmem:[#allocation14 + $0x8] sm:$0xff]
        %v4241 = vld [vmem:[#allocation14 + $0x10] sm:$0xff]
        %v4242 = vld [vmem:[#allocation14 + $0x18] sm:$0xff]
        %v4243 = vld [vmem:[#allocation14 + $0x20] sm:$0xff]
        %v4244 = vld [vmem:[#allocation14 + $0x28] sm:$0xff]
        %v4245 = vld [vmem:[#allocation14 + $0x30] sm:$0xff]
        %v4246 = vld [vmem:[#allocation14 + $0x38] sm:$0xff]
        %v4247 = vld [vmem:[#allocation14 + $0x40] sm:$0xff]
        %v4248 = vld [vmem:[#allocation14 + $0x48] sm:$0xff]
        %v4249 = vld [vmem:[#allocation14 + $0x50] sm:$0xff]
        %v4250 = vld [vmem:[#allocation14 + $0x58] sm:$0xff]
        %v4251 = vld [vmem:[#allocation14 + $0x60] sm:$0xff]
        %v4252 = vld [vmem:[#allocation14 + $0x68] sm:$0xff]
        %v4253 = vld [vmem:[#allocation14 + $0x70] sm:$0xff]
        %v4254 = vld [vmem:[#allocation14 + $0x78] sm:$0xff]
        %v4255 = vld [vmem:[#allocation14 + $0x80] sm:$0xff]
        %v4256 = vld [vmem:[#allocation14 + $0x88] sm:$0xff]
        %v4257 = vld [vmem:[#allocation14 + $0x90] sm:$0xff]
        %v4258 = vld [vmem:[#allocation14 + $0x98] sm:$0xff]
        %v4259 = vld [vmem:[#allocation14 + $0xa0] sm:$0xff]
        %v4260 = vld [vmem:[#allocation14 + $0xa8] sm:$0xff]
        %v4261 = vld [vmem:[#allocation14 + $0xb0] sm:$0xff]
        %v4262 = vld [vmem:[#allocation14 + $0xb8] sm:$0xff]
        %v4263 = vld [vmem:[#allocation14 + $0xc0] sm:$0xff]
        %v4264 = vld [vmem:[#allocation14 + $0xc8] sm:$0xff]
        %v4265 = vld [vmem:[#allocation14 + $0xd0] sm:$0xff]
        %v4266 = vld [vmem:[#allocation14 + $0xd8] sm:$0xff]
        %v4267 = vld [vmem:[#allocation14 + $0xe0] sm:$0xff]
        %v4268 = vld [vmem:[#allocation14 + $0xe8] sm:$0xff]
        %v4269 = vld [vmem:[#allocation14 + $0xf0] sm:$0xff]
        %v4270 = vld [vmem:[#allocation14 + $0xf8] sm:$0xff]
        %v4271 = vld [vmem:[#allocation14 + $0x100] sm:$0xff]
        %v4272 = vld [vmem:[#allocation14 + $0x108] sm:$0xff]
        %v4273 = vld [vmem:[#allocation14 + $0x110] sm:$0xff]
        %v4274 = vld [vmem:[#allocation14 + $0x118] sm:$0xff]
        %v4275 = vld [vmem:[#allocation14 + $0x120] sm:$0xff]
        %v4276 = vld [vmem:[#allocation14 + $0x128] sm:$0xff]
        %v4277 = vld [vmem:[#allocation14 + $0x130] sm:$0xff]
        %v4278 = vld [vmem:[#allocation14 + $0x138] sm:$0xff]
        %v4279 = vld [vmem:[#allocation14 + $0x140] sm:$0xff]
        %v4280 = vld [vmem:[#allocation14 + $0x148] sm:$0xff]
        %v4281 = vld [vmem:[#allocation14 + $0x150] sm:$0xff]
        %v4282 = vld [vmem:[#allocation14 + $0x158] sm:$0xff]
        %v4283 = vld [vmem:[#allocation14 + $0x160] sm:$0xff]
        %v4284 = vld [vmem:[#allocation14 + $0x168] sm:$0xff]
        %v4285 = vld [vmem:[#allocation14 + $0x170] sm:$0xff]
        %v4286 = vld [vmem:[#allocation14 + $0x178] sm:$0xff]
        %v4287 = vld [vmem:[#allocation14 + $0x180] sm:$0xff]
        %v4288 = vld [vmem:[#allocation14 + $0x188] sm:$0xff]
        %v4289 = vld [vmem:[#allocation14 + $0x190] sm:$0xff]
        %v4290 = vld [vmem:[#allocation14 + $0x198] sm:$0xff]
        %v4291 = vld [vmem:[#allocation14 + $0x1a0] sm:$0xff]
        %v4292 = vld [vmem:[#allocation14 + $0x1a8] sm:$0xff]
        %v4293 = vld [vmem:[#allocation14 + $0x1b0] sm:$0xff]
        %v4294 = vld [vmem:[#allocation14 + $0x1b8] sm:$0xff]
        %v4295 = vld [vmem:[#allocation14 + $0x1c0] sm:$0xff]
        %v4296 = vld [vmem:[#allocation14 + $0x1c8] sm:$0xff]
        %v4297 = vld [vmem:[#allocation14 + $0x1d0] sm:$0xff]
        %v4298 = vld [vmem:[#allocation14 + $0x1d8] sm:$0xff]
        %v4299 = vld [vmem:[#allocation14 + $0x1e0] sm:$0xff]
        %v4300 = vld [vmem:[#allocation14 + $0x1e8] sm:$0xff]
        %v4301 = vld [vmem:[#allocation14 + $0x1f0] sm:$0xff]
        %v4302 = vld [vmem:[#allocation14 + $0x1f8] sm:$0xff]
        %v4303 = vld [vmem:[#allocation14 + $0x200] sm:$0xff]
        %v4304 = vld [vmem:[#allocation14 + $0x208] sm:$0xff]
        %v4305 = vld [vmem:[#allocation14 + $0x210] sm:$0xff]
        %v4306 = vld [vmem:[#allocation14 + $0x218] sm:$0xff]
        %v4307 = vld [vmem:[#allocation14 + $0x220] sm:$0xff]
        %v4308 = vld [vmem:[#allocation14 + $0x228] sm:$0xff]
        %v4309 = vld [vmem:[#allocation14 + $0x230] sm:$0xff]
        %v4310 = vld [vmem:[#allocation14 + $0x238] sm:$0xff]
        %v4311 = vld [vmem:[#allocation14 + $0x240] sm:$0xff]
        %v4312 = vld [vmem:[#allocation14 + $0x248] sm:$0xff]
        %v4313 = vld [vmem:[#allocation14 + $0x250] sm:$0xff]
        %v4314 = vld [vmem:[#allocation14 + $0x258] sm:$0xff]
        %v4315 = vld [vmem:[#allocation14 + $0x260] sm:$0xff]
        %v4316 = vld [vmem:[#allocation14 + $0x268] sm:$0xff]
        %v4317 = vld [vmem:[#allocation14 + $0x270] sm:$0xff]
        %v4318 = vld [vmem:[#allocation14 + $0x278] sm:$0xff]
        %v4319 = vld [vmem:[#allocation14 + $0x280] sm:$0xff]
        %v4320 = vld [vmem:[#allocation14 + $0x288] sm:$0xff]
        %v4321 = vld [vmem:[#allocation14 + $0x290] sm:$0xff]
        %v4322 = vld [vmem:[#allocation14 + $0x298] sm:$0xff]
        %v4323 = vld [vmem:[#allocation14 + $0x2a0] sm:$0xff]
        %v4324 = vld [vmem:[#allocation14 + $0x2a8] sm:$0xff]
        %v4325 = vld [vmem:[#allocation14 + $0x2b0] sm:$0xff]
        %v4326 = vld [vmem:[#allocation14 + $0x2b8] sm:$0xff]
        %v4327 = vld [vmem:[#allocation14 + $0x2c0] sm:$0xff]
        %v4328 = vld [vmem:[#allocation14 + $0x2c8] sm:$0xff]
        %v4329 = vld [vmem:[#allocation14 + $0x2d0] sm:$0xff]
        %v4330 = vld [vmem:[#allocation14 + $0x2d8] sm:$0xff]
        %v4331 = vld [vmem:[#allocation14 + $0x2e0] sm:$0xff]
        %v4332 = vld [vmem:[#allocation14 + $0x2e8] sm:$0xff]
        %v4333 = vld [vmem:[#allocation14 + $0x2f0] sm:$0xff]
        %v4334 = vld [vmem:[#allocation14 + $0x2f8] sm:$0xff]
        %v4335 = vld [vmem:[#allocation14 + $0x300] sm:$0xff]
        %v4336 = vld [vmem:[#allocation14 + $0x308] sm:$0xff]
        %v4337 = vld [vmem:[#allocation14 + $0x310] sm:$0xff]
        %v4338 = vld [vmem:[#allocation14 + $0x318] sm:$0xff]
        %v4339 = vld [vmem:[#allocation14 + $0x320] sm:$0xff]
        %v4340 = vld [vmem:[#allocation14 + $0x328] sm:$0xff]
        %v4341 = vld [vmem:[#allocation14 + $0x330] sm:$0xff]
        %v4342 = vld [vmem:[#allocation14 + $0x338] sm:$0xff]
        %v4343 = vld [vmem:[#allocation14 + $0x340] sm:$0xff]
        %v4344 = vld [vmem:[#allocation14 + $0x348] sm:$0xff]
        %v4345 = vld [vmem:[#allocation14 + $0x350] sm:$0xff]
        %v4346 = vld [vmem:[#allocation14 + $0x358] sm:$0xff]
        %v4347 = vld [vmem:[#allocation14 + $0x360] sm:$0xff]
        %v4348 = vld [vmem:[#allocation14 + $0x368] sm:$0xff]
        %v4349 = vld [vmem:[#allocation14 + $0x370] sm:$0xff]
        %v4350 = vld [vmem:[#allocation14 + $0x378] sm:$0xff]
        %v4351 = vld [vmem:[#allocation14 + $0x380] sm:$0xff]
        %v4352 = vld [vmem:[#allocation14 + $0x388] sm:$0xff]
        %v4353 = vld [vmem:[#allocation14 + $0x390] sm:$0xff]
        %v4354 = vld [vmem:[#allocation14 + $0x398] sm:$0xff]
        %v4355 = vld [vmem:[#allocation14 + $0x3a0] sm:$0xff]
        %v4356 = vld [vmem:[#allocation14 + $0x3a8] sm:$0xff]
        %v4357 = vld [vmem:[#allocation14 + $0x3b0] sm:$0xff]
        %v4358 = vld [vmem:[#allocation14 + $0x3b8] sm:$0xff]
        %v4359 = vld [vmem:[#allocation14 + $0x3c0] sm:$0xff]
        %v4360 = vld [vmem:[#allocation14 + $0x3c8] sm:$0xff]
        %v4361 = vld [vmem:[#allocation14 + $0x3d0] sm:$0xff]
        %v4362 = vld [vmem:[#allocation14 + $0x3d8] sm:$0xff]
        %v4363 = vld [vmem:[#allocation14 + $0x3e0] sm:$0xff]
        %v4364 = vld [vmem:[#allocation14 + $0x3e8] sm:$0xff]
        %v4365 = vld [vmem:[#allocation14 + $0x3f0] sm:$0xff]
        %v4366 = vld [vmem:[#allocation14 + $0x3f8] sm:$0xff]
        %v4367 = vld [vmem:[#allocation16] sm:$0x3]
        %v4369 = vlaneseq
        %v4370 = vshrl.u32 %v4369, 7
        %v4371 = vsub.s32 0, %v4370
        %v4372 = vrot.slane %v4367, %v4371
        %v4373 = vlaneseq
        %v4374 = vshrl.u32 %v4373, 7
        %v4375 = vsub.s32 1, %v4374
        %v4376 = vrot.slane %v4367, %v4375
        %4379 = vmatprep.subr.mxu0 %v4270
        %4380 = vmatpush1.msra.mxu0 %v4269
        %4381 = vmatprep.subr.mxu0 %v4268
        %4382 = vmatpush1.msra.mxu0 %v4267
        %4383 = vmatprep.subr.mxu0 %v4266
        %4384 = vmatpush1.msra.mxu0 %v4265
        %4385 = vmatprep.subr.mxu0 %v4264
        %4386 = vmatpush1.msra.mxu0 %v4263
        %4387 = vmatprep.subr.mxu0 %v4262
        %4388 = vmatpush1.msra.mxu0 %v4261
        %4389 = vmatprep.subr.mxu0 %v4260
        %4390 = vmatpush1.msra.mxu0 %v4259
        %4391 = vmatprep.subr.mxu0 %v4258
        %4392 = vmatpush1.msra.mxu0 %v4257
        %4393 = vmatprep.subr.mxu0 %v4256
        %4394 = vmatpush1.msra.mxu0 %v4255
        %4395 = vmatprep.subr.mxu0 %v4254
        %4396 = vmatpush1.msra.mxu0 %v4253
        %4397 = vmatprep.subr.mxu0 %v4252
        %4398 = vmatpush1.msra.mxu0 %v4251
        %4399 = vmatprep.subr.mxu0 %v4250
        %4400 = vmatpush1.msra.mxu0 %v4249
        %4401 = vmatprep.subr.mxu0 %v4248
        %4402 = vmatpush1.msra.mxu0 %v4247
        %4403 = vmatprep.subr.mxu0 %v4246
        %4404 = vmatpush1.msra.mxu0 %v4245
        %4405 = vmatprep.subr.mxu0 %v4244
        %4406 = vmatpush1.msra.mxu0 %v4243
        %4407 = vmatprep.subr.mxu0 %v4242
        %4408 = vmatpush1.msra.mxu0 %v4241
        %4409 = vmatprep.subr.mxu0 %v4240
        %4410 = vmatpush1.msra.mxu0 %v4239
        %4411 = vmatprep.subr.mxu0 %v4302
        %4412 = vmatpush2.msra.mxu0 %v4301
        %4413 = vmatprep.subr.mxu0 %v4300
        %4414 = vmatpush2.msra.mxu0 %v4299
        %4415 = vmatprep.subr.mxu0 %v4298
        %4416 = vmatpush2.msra.mxu0 %v4297
        %4417 = vmatprep.subr.mxu0 %v4296
        %4418 = vmatpush2.msra.mxu0 %v4295
        %4419 = vmatprep.subr.mxu0 %v4294
        %4420 = vmatpush2.msra.mxu0 %v4293
        %4421 = vmatprep.subr.mxu0 %v4292
        %4422 = vmatpush2.msra.mxu0 %v4291
        %4423 = vmatprep.subr.mxu0 %v4290
        %4424 = vmatpush2.msra.mxu0 %v4289
        %4425 = vmatprep.subr.mxu0 %v4288
        %4426 = vmatpush2.msra.mxu0 %v4287
        %4427 = vmatprep.subr.mxu0 %v4286
        %4428 = vmatpush2.msra.mxu0 %v4285
        %4429 = vmatprep.subr.mxu0 %v4284
        %4430 = vmatpush2.msra.mxu0 %v4283
        %4431 = vmatprep.subr.mxu0 %v4282
        %4432 = vmatpush2.msra.mxu0 %v4281
        %4433 = vmatprep.subr.mxu0 %v4280
        %4434 = vmatpush2.msra.mxu0 %v4279
        %4435 = vmatprep.subr.mxu0 %v4278
        %4436 = vmatpush2.msra.mxu0 %v4277
        %4437 = vmatprep.subr.mxu0 %v4276
        %4438 = vmatpush2.msra.mxu0 %v4275
        %4439 = vmatprep.subr.mxu0 %v4274
        %4440 = vmatpush2.msra.mxu0 %v4273
        %4441 = vmatprep.subr.mxu0 %v4272
        %4442 = vmatpush2.msra.mxu0 %v4271
        %4443 = vmatprep.mubr.f32.mxu0 %v4236
        %4444 = vmatmul.mubr.f32.gmra.mxu0 %v4235
        %v4445 = vpop.f32.mrf.mxu0
        %v4446 = vadd.f32 %v4372, %v4445
        %v4447 = vpop.f32.mrf.mxu0
        %v4448 = vadd.f32 %v4376, %v4447
        %4449 = vdwg.mxu0
        %4450 = vmatprep.subr.mxu0 %v4334
        %4451 = vmatpush1.msra.mxu0 %v4333
        %4452 = vmatprep.subr.mxu0 %v4332
        %4453 = vmatpush1.msra.mxu0 %v4331
        %4454 = vmatprep.subr.mxu0 %v4330
        %4455 = vmatpush1.msra.mxu0 %v4329
        %4456 = vmatprep.subr.mxu0 %v4328
        %4457 = vmatpush1.msra.mxu0 %v4327
        %4458 = vmatprep.subr.mxu0 %v4326
        %4459 = vmatpush1.msra.mxu0 %v4325
        %4460 = vmatprep.subr.mxu0 %v4324
        %4461 = vmatpush1.msra.mxu0 %v4323
        %4462 = vmatprep.subr.mxu0 %v4322
        %4463 = vmatpush1.msra.mxu0 %v4321
        %4464 = vmatprep.subr.mxu0 %v4320
        %4465 = vmatpush1.msra.mxu0 %v4319
        %4466 = vmatprep.subr.mxu0 %v4318
        %4467 = vmatpush1.msra.mxu0 %v4317
        %4468 = vmatprep.subr.mxu0 %v4316
        %4469 = vmatpush1.msra.mxu0 %v4315
        %4470 = vmatprep.subr.mxu0 %v4314
        %4471 = vmatpush1.msra.mxu0 %v4313
        %4472 = vmatprep.subr.mxu0 %v4312
        %4473 = vmatpush1.msra.mxu0 %v4311
        %4474 = vmatprep.subr.mxu0 %v4310
        %4475 = vmatpush1.msra.mxu0 %v4309
        %4476 = vmatprep.subr.mxu0 %v4308
        %4477 = vmatpush1.msra.mxu0 %v4307
        %4478 = vmatprep.subr.mxu0 %v4306
        %4479 = vmatpush1.msra.mxu0 %v4305
        %4480 = vmatprep.subr.mxu0 %v4304
        %4481 = vmatpush1.msra.mxu0 %v4303
        %4482 = vmatprep.subr.mxu0 %v4366
        %4483 = vmatpush2.msra.mxu0 %v4365
        %4484 = vmatprep.subr.mxu0 %v4364
        %4485 = vmatpush2.msra.mxu0 %v4363
        %4486 = vmatprep.subr.mxu0 %v4362
        %4487 = vmatpush2.msra.mxu0 %v4361
        %4488 = vmatprep.subr.mxu0 %v4360
        %4489 = vmatpush2.msra.mxu0 %v4359
        %4490 = vmatprep.subr.mxu0 %v4358
        %4491 = vmatpush2.msra.mxu0 %v4357
        %4492 = vmatprep.subr.mxu0 %v4356
        %4493 = vmatpush2.msra.mxu0 %v4355
        %4494 = vmatprep.subr.mxu0 %v4354
        %4495 = vmatpush2.msra.mxu0 %v4353
        %4496 = vmatprep.subr.mxu0 %v4352
        %4497 = vmatpush2.msra.mxu0 %v4351
        %4498 = vmatprep.subr.mxu0 %v4350
        %4499 = vmatpush2.msra.mxu0 %v4349
        %4500 = vmatprep.subr.mxu0 %v4348
        %4501 = vmatpush2.msra.mxu0 %v4347
        %4502 = vmatprep.subr.mxu0 %v4346
        %4503 = vmatpush2.msra.mxu0 %v4345
        %4504 = vmatprep.subr.mxu0 %v4344
        %4505 = vmatpush2.msra.mxu0 %v4343
        %4506 = vmatprep.subr.mxu0 %v4342
        %4507 = vmatpush2.msra.mxu0 %v4341
        %4508 = vmatprep.subr.mxu0 %v4340
        %4509 = vmatpush2.msra.mxu0 %v4339
        %4510 = vmatprep.subr.mxu0 %v4338
        %4511 = vmatpush2.msra.mxu0 %v4337
        %4512 = vmatprep.subr.mxu0 %v4336
        %4513 = vmatpush2.msra.mxu0 %v4335
        %4514 = vmatprep.mubr.f32.mxu0 %v4238
        %4515 = vmatmul.mubr.f32.gmra.mxu0 %v4237
        %v4516 = vpop.f32.mrf.mxu0
        %v4517 = vadd.f32 %v4446, %v4516
        %v4518 = vpop.f32.mrf.mxu0
        %v4519 = vadd.f32 %v4448, %v4518
        %4520 = vdwg.mxu0
        %4521 = vst [vmem:[%s751] sm:$0xff] %v4517
        %4522 = vst [vmem:[%s751 + $0x8] sm:$0xff] %v4519
        %v4523 = vld [vmem:[%s651] sm:$0xff]
        %v4524 = vmul.f32 %v4519, 0.5
        %v4525 = vmul.f32 %v4524, 1.442695
        %v4526 = vpow.pop %v4525
        %v4527 = vmul.f32 %v4523, %v4526
        %v4528 = vadd.f32 %v4517, %v4527
        %v4529 = vpack.c.bf16 %v4528, %v4528
        %v4530 = vld [vmem:[#allocation17] sm:$0xff]
        %v4531 = vld [vmem:[#allocation17 + $0x8] sm:$0xff]
        %v4532 = vld [vmem:[#allocation17 + $0x10] sm:$0xff]
        %v4533 = vld [vmem:[#allocation17 + $0x18] sm:$0xff]
        %v4534 = vld [vmem:[#allocation17 + $0x20] sm:$0xff]
        %v4535 = vld [vmem:[#allocation17 + $0x28] sm:$0xff]
        %v4536 = vld [vmem:[#allocation17 + $0x30] sm:$0xff]
        %v4537 = vld [vmem:[#allocation17 + $0x38] sm:$0xff]
        %v4538 = vld [vmem:[#allocation17 + $0x40] sm:$0xff]
        %v4539 = vld [vmem:[#allocation17 + $0x48] sm:$0xff]
        %v4540 = vld [vmem:[#allocation17 + $0x50] sm:$0xff]
        %v4541 = vld [vmem:[#allocation17 + $0x58] sm:$0xff]
        %v4542 = vld [vmem:[#allocation17 + $0x60] sm:$0xff]
        %v4543 = vld [vmem:[#allocation17 + $0x68] sm:$0xff]
        %v4544 = vld [vmem:[#allocation17 + $0x70] sm:$0xff]
        %v4545 = vld [vmem:[#allocation17 + $0x78] sm:$0xff]
        %v4546 = vld [vmem:[#allocation17 + $0x80] sm:$0xff]
        %v4547 = vld [vmem:[#allocation17 + $0x88] sm:$0xff]
        %v4548 = vld [vmem:[#allocation17 + $0x90] sm:$0xff]
        %v4549 = vld [vmem:[#allocation17 + $0x98] sm:$0xff]
        %v4550 = vld [vmem:[#allocation17 + $0xa0] sm:$0xff]
        %v4551 = vld [vmem:[#allocation17 + $0xa8] sm:$0xff]
        %v4552 = vld [vmem:[#allocation17 + $0xb0] sm:$0xff]
        %v4553 = vld [vmem:[#allocation17 + $0xb8] sm:$0xff]
        %v4554 = vld [vmem:[#allocation17 + $0xc0] sm:$0xff]
        %v4555 = vld [vmem:[#allocation17 + $0xc8] sm:$0xff]
        %v4556 = vld [vmem:[#allocation17 + $0xd0] sm:$0xff]
        %v4557 = vld [vmem:[#allocation17 + $0xd8] sm:$0xff]
        %v4558 = vld [vmem:[#allocation17 + $0xe0] sm:$0xff]
        %v4559 = vld [vmem:[#allocation17 + $0xe8] sm:$0xff]
        %v4560 = vld [vmem:[#allocation17 + $0xf0] sm:$0xff]
        %v4561 = vld [vmem:[#allocation17 + $0xf8] sm:$0xff]
        %v4562 = vld [vmem:[%s11] sm:$0xf]
        %v4564 = vlaneseq
        %v4565 = vshrl.u32 %v4564, 7
        %v4566 = vsub.s32 0, %v4565
        %v4567 = vrot.slane %v4562, %v4566
        %v4568 = vlaneseq
        %v4569 = vshrl.u32 %v4568, 7
        %v4570 = vsub.s32 1, %v4569
        %v4571 = vrot.slane %v4562, %v4570
        %v4572 = vlaneseq
        %v4573 = vshrl.u32 %v4572, 7
        %v4574 = vsub.s32 2, %v4573
        %v4575 = vrot.slane %v4562, %v4574
        %v4576 = vlaneseq
        %v4577 = vshrl.u32 %v4576, 7
        %v4578 = vsub.s32 3, %v4577
        %v4579 = vrot.slane %v4562, %v4578
        %v4616 = vunpack.c.l.b16 %v4530
        %v4617 = vunpack.c.h.b16 %v4530
        %v4618 = vunpack.c.l.b16 %v4531
        %v4619 = vunpack.c.h.b16 %v4531
        %v4620 = vunpack.c.l.b16 %v4532
        %v4621 = vunpack.c.h.b16 %v4532
        %v4622 = vunpack.c.l.b16 %v4533
        %v4623 = vunpack.c.h.b16 %v4533
        %v4624 = vunpack.c.l.b16 %v4534
        %v4625 = vunpack.c.h.b16 %v4534
        %v4626 = vunpack.c.l.b16 %v4535
        %v4627 = vunpack.c.h.b16 %v4535
        %v4628 = vunpack.c.l.b16 %v4536
        %v4629 = vunpack.c.h.b16 %v4536
        %v4630 = vunpack.c.l.b16 %v4537
        %v4631 = vunpack.c.h.b16 %v4537
        %v4632 = vunpack.c.l.b16 %v4538
        %v4633 = vunpack.c.h.b16 %v4538
        %v4634 = vunpack.c.l.b16 %v4539
        %v4635 = vunpack.c.h.b16 %v4539
        %v4636 = vunpack.c.l.b16 %v4540
        %v4637 = vunpack.c.h.b16 %v4540
        %v4638 = vunpack.c.l.b16 %v4541
        %v4639 = vunpack.c.h.b16 %v4541
        %v4640 = vunpack.c.l.b16 %v4542
        %v4641 = vunpack.c.h.b16 %v4542
        %v4642 = vunpack.c.l.b16 %v4543
        %v4643 = vunpack.c.h.b16 %v4543
        %v4644 = vunpack.c.l.b16 %v4544
        %v4645 = vunpack.c.h.b16 %v4544
        %v4646 = vunpack.c.l.b16 %v4545
        %v4647 = vunpack.c.h.b16 %v4545
        %v4648 = vunpack.c.l.b16 %v4546
        %v4649 = vunpack.c.h.b16 %v4546
        %v4650 = vunpack.c.l.b16 %v4547
        %v4651 = vunpack.c.h.b16 %v4547
        %v4652 = vunpack.c.l.b16 %v4548
        %v4653 = vunpack.c.h.b16 %v4548
        %v4654 = vunpack.c.l.b16 %v4549
        %v4655 = vunpack.c.h.b16 %v4549
        %v4656 = vunpack.c.l.b16 %v4550
        %v4657 = vunpack.c.h.b16 %v4550
        %v4658 = vunpack.c.l.b16 %v4551
        %v4659 = vunpack.c.h.b16 %v4551
        %v4660 = vunpack.c.l.b16 %v4552
        %v4661 = vunpack.c.h.b16 %v4552
        %v4662 = vunpack.c.l.b16 %v4553
        %v4663 = vunpack.c.h.b16 %v4553
        %v4664 = vunpack.c.l.b16 %v4554
        %v4665 = vunpack.c.h.b16 %v4554
        %v4666 = vunpack.c.l.b16 %v4555
        %v4667 = vunpack.c.h.b16 %v4555
        %v4668 = vunpack.c.l.b16 %v4556
        %v4669 = vunpack.c.h.b16 %v4556
        %v4670 = vunpack.c.l.b16 %v4557
        %v4671 = vunpack.c.h.b16 %v4557
        %v4672 = vunpack.c.l.b16 %v4558
        %v4673 = vunpack.c.h.b16 %v4558
        %v4674 = vunpack.c.l.b16 %v4559
        %v4675 = vunpack.c.h.b16 %v4559
        %v4676 = vunpack.c.l.b16 %v4560
        %v4677 = vunpack.c.h.b16 %v4560
        %v4678 = vunpack.c.l.b16 %v4561
        %v4679 = vunpack.c.h.b16 %v4561
        %v4680 = vpack.c.b16 %v4620, %v4616
        %v4681 = vpack.c.b16 %v4621, %v4617
        %v4682 = vpack.c.b16 %v4622, %v4618
        %v4683 = vpack.c.b16 %v4623, %v4619
        %v4684 = vpack.c.b16 %v4628, %v4624
        %v4685 = vpack.c.b16 %v4629, %v4625
        %v4686 = vpack.c.b16 %v4630, %v4626
        %v4687 = vpack.c.b16 %v4631, %v4627
        %v4688 = vpack.c.b16 %v4636, %v4632
        %v4689 = vpack.c.b16 %v4637, %v4633
        %v4690 = vpack.c.b16 %v4638, %v4634
        %v4691 = vpack.c.b16 %v4639, %v4635
        %v4692 = vpack.c.b16 %v4644, %v4640
        %v4693 = vpack.c.b16 %v4645, %v4641
        %v4694 = vpack.c.b16 %v4646, %v4642
        %v4695 = vpack.c.b16 %v4647, %v4643
        %v4696 = vpack.c.b16 %v4652, %v4648
        %v4697 = vpack.c.b16 %v4653, %v4649
        %v4698 = vpack.c.b16 %v4654, %v4650
        %v4699 = vpack.c.b16 %v4655, %v4651
        %v4700 = vpack.c.b16 %v4660, %v4656
        %v4701 = vpack.c.b16 %v4661, %v4657
        %v4702 = vpack.c.b16 %v4662, %v4658
        %v4703 = vpack.c.b16 %v4663, %v4659
        %v4704 = vpack.c.b16 %v4668, %v4664
        %v4705 = vpack.c.b16 %v4669, %v4665
        %v4706 = vpack.c.b16 %v4670, %v4666
        %v4707 = vpack.c.b16 %v4671, %v4667
        %v4708 = vpack.c.b16 %v4676, %v4672
        %v4709 = vpack.c.b16 %v4677, %v4673
        %v4710 = vpack.c.b16 %v4678, %v4674
        %v4711 = vpack.c.b16 %v4679, %v4675
        %4744 = vmatprep.subr.bf16.mxu0 %v4709
        %4745 = vmatpush1.bf16.msra.mxu0 %v4708
        %4746 = vmatprep.subr.bf16.mxu0 %v4705
        %4747 = vmatpush1.bf16.msra.mxu0 %v4704
        %4748 = vmatprep.subr.bf16.mxu0 %v4701
        %4749 = vmatpush1.bf16.msra.mxu0 %v4700
        %4750 = vmatprep.subr.bf16.mxu0 %v4697
        %4751 = vmatpush1.bf16.msra.mxu0 %v4696
        %4752 = vmatprep.subr.bf16.mxu0 %v4693
        %4753 = vmatpush1.bf16.msra.mxu0 %v4692
        %4754 = vmatprep.subr.bf16.mxu0 %v4689
        %4755 = vmatpush1.bf16.msra.mxu0 %v4688
        %4756 = vmatprep.subr.bf16.mxu0 %v4685
        %4757 = vmatpush1.bf16.msra.mxu0 %v4684
        %4758 = vmatprep.subr.bf16.mxu0 %v4681
        %4759 = vmatpush1.bf16.msra.mxu0 %v4680
        %4760 = vmatprep.subr.bf16.mxu0 0
        %4761 = vmatpush2.bf16.msra.mxu0 0
        %4762 = vmatprep.subr.bf16.mxu0 0
        %4763 = vmatpush2.bf16.msra.mxu0 0
        %4764 = vmatprep.subr.bf16.mxu0 0
        %4765 = vmatpush2.bf16.msra.mxu0 0
        %4766 = vmatprep.subr.bf16.mxu0 0
        %4767 = vmatpush2.bf16.msra.mxu0 0
        %4768 = vmatprep.subr.bf16.mxu0 0
        %4769 = vmatpush2.bf16.msra.mxu0 0
        %4770 = vmatprep.subr.bf16.mxu0 0
        %4771 = vmatpush2.bf16.msra.mxu0 0
        %4772 = vmatprep.subr.bf16.mxu0 0
        %4773 = vmatpush2.bf16.msra.mxu0 0
        %4774 = vmatprep.subr.bf16.mxu0 0
        %4775 = vmatpush2.bf16.msra.mxu0 0
        %4776 = vmatprep.mubr.bf16.mxu0 0
        %4777 = vmatmul.mubr.bf16.gmra.mxu0 %v4529
        %v4778 = vpop.f32.mrf.mxu0
        %v4779 = vadd.f32 %v4567, %v4778
        %v4780 = vpop.f32.mrf.mxu0
        %v4781 = vadd.f32 %v4571, %v4780
        %v4782 = vpop.f32.mrf.mxu0
        %v4783 = vpop.f32.mrf.mxu0
        %4784 = vdwg.mxu0
        %4785 = vmatprep.subr.bf16.mxu0 %v4711
        %4786 = vmatpush1.bf16.msra.mxu0 %v4710
        %4787 = vmatprep.subr.bf16.mxu0 %v4707
        %4788 = vmatpush1.bf16.msra.mxu0 %v4706
        %4789 = vmatprep.subr.bf16.mxu0 %v4703
        %4790 = vmatpush1.bf16.msra.mxu0 %v4702
        %4791 = vmatprep.subr.bf16.mxu0 %v4699
        %4792 = vmatpush1.bf16.msra.mxu0 %v4698
        %4793 = vmatprep.subr.bf16.mxu0 %v4695
        %4794 = vmatpush1.bf16.msra.mxu0 %v4694
        %4795 = vmatprep.subr.bf16.mxu0 %v4691
        %4796 = vmatpush1.bf16.msra.mxu0 %v4690
        %4797 = vmatprep.subr.bf16.mxu0 %v4687
        %4798 = vmatpush1.bf16.msra.mxu0 %v4686
        %4799 = vmatprep.subr.bf16.mxu0 %v4683
        %4800 = vmatpush1.bf16.msra.mxu0 %v4682
        %4801 = vmatprep.subr.bf16.mxu0 0
        %4802 = vmatpush2.bf16.msra.mxu0 0
        %4803 = vmatprep.subr.bf16.mxu0 0
        %4804 = vmatpush2.bf16.msra.mxu0 0
        %4805 = vmatprep.subr.bf16.mxu0 0
        %4806 = vmatpush2.bf16.msra.mxu0 0
        %4807 = vmatprep.subr.bf16.mxu0 0
        %4808 = vmatpush2.bf16.msra.mxu0 0
        %4809 = vmatprep.subr.bf16.mxu0 0
        %4810 = vmatpush2.bf16.msra.mxu0 0
        %4811 = vmatprep.subr.bf16.mxu0 0
        %4812 = vmatpush2.bf16.msra.mxu0 0
        %4813 = vmatprep.subr.bf16.mxu0 0
        %4814 = vmatpush2.bf16.msra.mxu0 0
        %4815 = vmatprep.subr.bf16.mxu0 0
        %4816 = vmatpush2.bf16.msra.mxu0 0
        %4817 = vmatprep.mubr.bf16.mxu0 0
        %4818 = vmatmul.mubr.bf16.gmra.mxu0 %v4529
        %v4819 = vpop.f32.mrf.mxu0
        %v4820 = vadd.f32 %v4575, %v4819
        %v4821 = vpop.f32.mrf.mxu0
        %v4822 = vadd.f32 %v4579, %v4821
        %v4823 = vpop.f32.mrf.mxu0
        %v4824 = vpop.f32.mrf.mxu0
        %4825 = vdwg.mxu0
        %v4826 = vmax.f32 %v4779, 0.0
        %v4827 = vmax.f32 %v4781, 0.0
        %v4828 = vmax.f32 %v4820, 0.0
        %v4829 = vmax.f32 %v4822, 0.0
        %v4830 = vpack.c.bf16 %v4826, %v4826
        %v4831 = vpack.c.bf16 %v4827, %v4827
        %v4832 = vpack.c.bf16 %v4828, %v4828
        %v4833 = vpack.c.bf16 %v4829, %v4829
        %v4834 = vld [vmem:[#allocation19] sm:$0xff]
        %v4835 = vld [vmem:[#allocation19 + $0x8] sm:$0xff]
        %v4836 = vld [vmem:[#allocation19 + $0x10] sm:$0xff]
        %v4837 = vld [vmem:[#allocation19 + $0x18] sm:$0xff]
        %v4838 = vld [vmem:[#allocation19 + $0x20] sm:$0xff]
        %v4839 = vld [vmem:[#allocation19 + $0x28] sm:$0xff]
        %v4840 = vld [vmem:[#allocation19 + $0x30] sm:$0xff]
        %v4841 = vld [vmem:[#allocation19 + $0x38] sm:$0xff]
        %v4842 = vld [vmem:[#allocation19 + $0x40] sm:$0xff]
        %v4843 = vld [vmem:[#allocation19 + $0x48] sm:$0xff]
        %v4844 = vld [vmem:[#allocation19 + $0x50] sm:$0xff]
        %v4845 = vld [vmem:[#allocation19 + $0x58] sm:$0xff]
        %v4846 = vld [vmem:[#allocation19 + $0x60] sm:$0xff]
        %v4847 = vld [vmem:[#allocation19 + $0x68] sm:$0xff]
        %v4848 = vld [vmem:[#allocation19 + $0x70] sm:$0xff]
        %v4849 = vld [vmem:[#allocation19 + $0x78] sm:$0xff]
        %v4850 = vld [vmem:[#allocation19 + $0x80] sm:$0xff]
        %v4851 = vld [vmem:[#allocation19 + $0x88] sm:$0xff]
        %v4852 = vld [vmem:[#allocation19 + $0x90] sm:$0xff]
        %v4853 = vld [vmem:[#allocation19 + $0x98] sm:$0xff]
        %v4854 = vld [vmem:[#allocation19 + $0xa0] sm:$0xff]
        %v4855 = vld [vmem:[#allocation19 + $0xa8] sm:$0xff]
        %v4856 = vld [vmem:[#allocation19 + $0xb0] sm:$0xff]
        %v4857 = vld [vmem:[#allocation19 + $0xb8] sm:$0xff]
        %v4858 = vld [vmem:[#allocation19 + $0xc0] sm:$0xff]
        %v4859 = vld [vmem:[#allocation19 + $0xc8] sm:$0xff]
        %v4860 = vld [vmem:[#allocation19 + $0xd0] sm:$0xff]
        %v4861 = vld [vmem:[#allocation19 + $0xd8] sm:$0xff]
        %v4862 = vld [vmem:[#allocation19 + $0xe0] sm:$0xff]
        %v4863 = vld [vmem:[#allocation19 + $0xe8] sm:$0xff]
        %v4864 = vld [vmem:[#allocation19 + $0xf0] sm:$0xff]
        %v4865 = vld [vmem:[#allocation19 + $0xf8] sm:$0xff]
        %v4866 = vld [vmem:[#allocation19 + $0x100] sm:$0xff]
        %v4867 = vld [vmem:[#allocation19 + $0x108] sm:$0xff]
        %v4868 = vld [vmem:[#allocation19 + $0x110] sm:$0xff]
        %v4869 = vld [vmem:[#allocation19 + $0x118] sm:$0xff]
        %v4870 = vld [vmem:[#allocation19 + $0x120] sm:$0xff]
        %v4871 = vld [vmem:[#allocation19 + $0x128] sm:$0xff]
        %v4872 = vld [vmem:[#allocation19 + $0x130] sm:$0xff]
        %v4873 = vld [vmem:[#allocation19 + $0x138] sm:$0xff]
        %v4874 = vld [vmem:[#allocation19 + $0x140] sm:$0xff]
        %v4875 = vld [vmem:[#allocation19 + $0x148] sm:$0xff]
        %v4876 = vld [vmem:[#allocation19 + $0x150] sm:$0xff]
        %v4877 = vld [vmem:[#allocation19 + $0x158] sm:$0xff]
        %v4878 = vld [vmem:[#allocation19 + $0x160] sm:$0xff]
        %v4879 = vld [vmem:[#allocation19 + $0x168] sm:$0xff]
        %v4880 = vld [vmem:[#allocation19 + $0x170] sm:$0xff]
        %v4881 = vld [vmem:[#allocation19 + $0x178] sm:$0xff]
        %v4882 = vld [vmem:[#allocation19 + $0x180] sm:$0xff]
        %v4883 = vld [vmem:[#allocation19 + $0x188] sm:$0xff]
        %v4884 = vld [vmem:[#allocation19 + $0x190] sm:$0xff]
        %v4885 = vld [vmem:[#allocation19 + $0x198] sm:$0xff]
        %v4886 = vld [vmem:[#allocation19 + $0x1a0] sm:$0xff]
        %v4887 = vld [vmem:[#allocation19 + $0x1a8] sm:$0xff]
        %v4888 = vld [vmem:[#allocation19 + $0x1b0] sm:$0xff]
        %v4889 = vld [vmem:[#allocation19 + $0x1b8] sm:$0xff]
        %v4890 = vld [vmem:[#allocation19 + $0x1c0] sm:$0xff]
        %v4891 = vld [vmem:[#allocation19 + $0x1c8] sm:$0xff]
        %v4892 = vld [vmem:[#allocation19 + $0x1d0] sm:$0xff]
        %v4893 = vld [vmem:[#allocation19 + $0x1d8] sm:$0xff]
        %v4894 = vld [vmem:[#allocation19 + $0x1e0] sm:$0xff]
        %v4895 = vld [vmem:[#allocation19 + $0x1e8] sm:$0xff]
        %v4896 = vld [vmem:[#allocation19 + $0x1f0] sm:$0xff]
        %v4897 = vld [vmem:[#allocation19 + $0x1f8] sm:$0xff]
        %v4898 = vld [vmem:[#allocation19 + $0x200] sm:$0xff]
        %v4899 = vld [vmem:[#allocation19 + $0x208] sm:$0xff]
        %v4900 = vld [vmem:[#allocation19 + $0x210] sm:$0xff]
        %v4901 = vld [vmem:[#allocation19 + $0x218] sm:$0xff]
        %v4902 = vld [vmem:[#allocation19 + $0x220] sm:$0xff]
        %v4903 = vld [vmem:[#allocation19 + $0x228] sm:$0xff]
        %v4904 = vld [vmem:[#allocation19 + $0x230] sm:$0xff]
        %v4905 = vld [vmem:[#allocation19 + $0x238] sm:$0xff]
        %v4906 = vld [vmem:[#allocation19 + $0x240] sm:$0xff]
        %v4907 = vld [vmem:[#allocation19 + $0x248] sm:$0xff]
        %v4908 = vld [vmem:[#allocation19 + $0x250] sm:$0xff]
        %v4909 = vld [vmem:[#allocation19 + $0x258] sm:$0xff]
        %v4910 = vld [vmem:[#allocation19 + $0x260] sm:$0xff]
        %v4911 = vld [vmem:[#allocation19 + $0x268] sm:$0xff]
        %v4912 = vld [vmem:[#allocation19 + $0x270] sm:$0xff]
        %v4913 = vld [vmem:[#allocation19 + $0x278] sm:$0xff]
        %v4914 = vld [vmem:[#allocation19 + $0x280] sm:$0xff]
        %v4915 = vld [vmem:[#allocation19 + $0x288] sm:$0xff]
        %v4916 = vld [vmem:[#allocation19 + $0x290] sm:$0xff]
        %v4917 = vld [vmem:[#allocation19 + $0x298] sm:$0xff]
        %v4918 = vld [vmem:[#allocation19 + $0x2a0] sm:$0xff]
        %v4919 = vld [vmem:[#allocation19 + $0x2a8] sm:$0xff]
        %v4920 = vld [vmem:[#allocation19 + $0x2b0] sm:$0xff]
        %v4921 = vld [vmem:[#allocation19 + $0x2b8] sm:$0xff]
        %v4922 = vld [vmem:[#allocation19 + $0x2c0] sm:$0xff]
        %v4923 = vld [vmem:[#allocation19 + $0x2c8] sm:$0xff]
        %v4924 = vld [vmem:[#allocation19 + $0x2d0] sm:$0xff]
        %v4925 = vld [vmem:[#allocation19 + $0x2d8] sm:$0xff]
        %v4926 = vld [vmem:[#allocation19 + $0x2e0] sm:$0xff]
        %v4927 = vld [vmem:[#allocation19 + $0x2e8] sm:$0xff]
        %v4928 = vld [vmem:[#allocation19 + $0x2f0] sm:$0xff]
        %v4929 = vld [vmem:[#allocation19 + $0x2f8] sm:$0xff]
        %v4930 = vld [vmem:[#allocation19 + $0x300] sm:$0xff]
        %v4931 = vld [vmem:[#allocation19 + $0x308] sm:$0xff]
        %v4932 = vld [vmem:[#allocation19 + $0x310] sm:$0xff]
        %v4933 = vld [vmem:[#allocation19 + $0x318] sm:$0xff]
        %v4934 = vld [vmem:[#allocation19 + $0x320] sm:$0xff]
        %v4935 = vld [vmem:[#allocation19 + $0x328] sm:$0xff]
        %v4936 = vld [vmem:[#allocation19 + $0x330] sm:$0xff]
        %v4937 = vld [vmem:[#allocation19 + $0x338] sm:$0xff]
        %v4938 = vld [vmem:[#allocation19 + $0x340] sm:$0xff]
        %v4939 = vld [vmem:[#allocation19 + $0x348] sm:$0xff]
        %v4940 = vld [vmem:[#allocation19 + $0x350] sm:$0xff]
        %v4941 = vld [vmem:[#allocation19 + $0x358] sm:$0xff]
        %v4942 = vld [vmem:[#allocation19 + $0x360] sm:$0xff]
        %v4943 = vld [vmem:[#allocation19 + $0x368] sm:$0xff]
        %v4944 = vld [vmem:[#allocation19 + $0x370] sm:$0xff]
        %v4945 = vld [vmem:[#allocation19 + $0x378] sm:$0xff]
        %v4946 = vld [vmem:[#allocation19 + $0x380] sm:$0xff]
        %v4947 = vld [vmem:[#allocation19 + $0x388] sm:$0xff]
        %v4948 = vld [vmem:[#allocation19 + $0x390] sm:$0xff]
        %v4949 = vld [vmem:[#allocation19 + $0x398] sm:$0xff]
        %v4950 = vld [vmem:[#allocation19 + $0x3a0] sm:$0xff]
        %v4951 = vld [vmem:[#allocation19 + $0x3a8] sm:$0xff]
        %v4952 = vld [vmem:[#allocation19 + $0x3b0] sm:$0xff]
        %v4953 = vld [vmem:[#allocation19 + $0x3b8] sm:$0xff]
        %v4954 = vld [vmem:[#allocation19 + $0x3c0] sm:$0xff]
        %v4955 = vld [vmem:[#allocation19 + $0x3c8] sm:$0xff]
        %v4956 = vld [vmem:[#allocation19 + $0x3d0] sm:$0xff]
        %v4957 = vld [vmem:[#allocation19 + $0x3d8] sm:$0xff]
        %v4958 = vld [vmem:[#allocation19 + $0x3e0] sm:$0xff]
        %v4959 = vld [vmem:[#allocation19 + $0x3e8] sm:$0xff]
        %v4960 = vld [vmem:[#allocation19 + $0x3f0] sm:$0xff]
        %v4961 = vld [vmem:[#allocation19 + $0x3f8] sm:$0xff]
        %v4962 = vld [vmem:[%s13] sm:$0xf]
        %v4964 = vlaneseq
        %v4965 = vshrl.u32 %v4964, 7
        %v4966 = vsub.s32 0, %v4965
        %v4967 = vrot.slane %v4962, %v4966
        %v4968 = vlaneseq
        %v4969 = vshrl.u32 %v4968, 7
        %v4970 = vsub.s32 1, %v4969
        %v4971 = vrot.slane %v4962, %v4970
        %v4972 = vlaneseq
        %v4973 = vshrl.u32 %v4972, 7
        %v4974 = vsub.s32 2, %v4973
        %v4975 = vrot.slane %v4962, %v4974
        %v4976 = vlaneseq
        %v4977 = vshrl.u32 %v4976, 7
        %v4978 = vsub.s32 3, %v4977
        %v4979 = vrot.slane %v4962, %v4978
        %v5112 = vunpack.c.l.b16 %v4834
        %v5113 = vunpack.c.h.b16 %v4834
        %v5114 = vunpack.c.l.b16 %v4835
        %v5115 = vunpack.c.h.b16 %v4835
        %v5116 = vunpack.c.l.b16 %v4836
        %v5117 = vunpack.c.h.b16 %v4836
        %v5118 = vunpack.c.l.b16 %v4837
        %v5119 = vunpack.c.h.b16 %v4837
        %v5120 = vunpack.c.l.b16 %v4838
        %v5121 = vunpack.c.h.b16 %v4838
        %v5122 = vunpack.c.l.b16 %v4839
        %v5123 = vunpack.c.h.b16 %v4839
        %v5124 = vunpack.c.l.b16 %v4840
        %v5125 = vunpack.c.h.b16 %v4840
        %v5126 = vunpack.c.l.b16 %v4841
        %v5127 = vunpack.c.h.b16 %v4841
        %v5128 = vunpack.c.l.b16 %v4842
        %v5129 = vunpack.c.h.b16 %v4842
        %v5130 = vunpack.c.l.b16 %v4843
        %v5131 = vunpack.c.h.b16 %v4843
        %v5132 = vunpack.c.l.b16 %v4844
        %v5133 = vunpack.c.h.b16 %v4844
        %v5134 = vunpack.c.l.b16 %v4845
        %v5135 = vunpack.c.h.b16 %v4845
        %v5136 = vunpack.c.l.b16 %v4846
        %v5137 = vunpack.c.h.b16 %v4846
        %v5138 = vunpack.c.l.b16 %v4847
        %v5139 = vunpack.c.h.b16 %v4847
        %v5140 = vunpack.c.l.b16 %v4848
        %v5141 = vunpack.c.h.b16 %v4848
        %v5142 = vunpack.c.l.b16 %v4849
        %v5143 = vunpack.c.h.b16 %v4849
        %v5144 = vunpack.c.l.b16 %v4850
        %v5145 = vunpack.c.h.b16 %v4850
        %v5146 = vunpack.c.l.b16 %v4851
        %v5147 = vunpack.c.h.b16 %v4851
        %v5148 = vunpack.c.l.b16 %v4852
        %v5149 = vunpack.c.h.b16 %v4852
        %v5150 = vunpack.c.l.b16 %v4853
        %v5151 = vunpack.c.h.b16 %v4853
        %v5152 = vunpack.c.l.b16 %v4854
        %v5153 = vunpack.c.h.b16 %v4854
        %v5154 = vunpack.c.l.b16 %v4855
        %v5155 = vunpack.c.h.b16 %v4855
        %v5156 = vunpack.c.l.b16 %v4856
        %v5157 = vunpack.c.h.b16 %v4856
        %v5158 = vunpack.c.l.b16 %v4857
        %v5159 = vunpack.c.h.b16 %v4857
        %v5160 = vunpack.c.l.b16 %v4858
        %v5161 = vunpack.c.h.b16 %v4858
        %v5162 = vunpack.c.l.b16 %v4859
        %v5163 = vunpack.c.h.b16 %v4859
        %v5164 = vunpack.c.l.b16 %v4860
        %v5165 = vunpack.c.h.b16 %v4860
        %v5166 = vunpack.c.l.b16 %v4861
        %v5167 = vunpack.c.h.b16 %v4861
        %v5168 = vunpack.c.l.b16 %v4862
        %v5169 = vunpack.c.h.b16 %v4862
        %v5170 = vunpack.c.l.b16 %v4863
        %v5171 = vunpack.c.h.b16 %v4863
        %v5172 = vunpack.c.l.b16 %v4864
        %v5173 = vunpack.c.h.b16 %v4864
        %v5174 = vunpack.c.l.b16 %v4865
        %v5175 = vunpack.c.h.b16 %v4865
        %v5176 = vunpack.c.l.b16 %v4866
        %v5177 = vunpack.c.h.b16 %v4866
        %v5178 = vunpack.c.l.b16 %v4867
        %v5179 = vunpack.c.h.b16 %v4867
        %v5180 = vunpack.c.l.b16 %v4868
        %v5181 = vunpack.c.h.b16 %v4868
        %v5182 = vunpack.c.l.b16 %v4869
        %v5183 = vunpack.c.h.b16 %v4869
        %v5184 = vunpack.c.l.b16 %v4870
        %v5185 = vunpack.c.h.b16 %v4870
        %v5186 = vunpack.c.l.b16 %v4871
        %v5187 = vunpack.c.h.b16 %v4871
        %v5188 = vunpack.c.l.b16 %v4872
        %v5189 = vunpack.c.h.b16 %v4872
        %v5190 = vunpack.c.l.b16 %v4873
        %v5191 = vunpack.c.h.b16 %v4873
        %v5192 = vunpack.c.l.b16 %v4874
        %v5193 = vunpack.c.h.b16 %v4874
        %v5194 = vunpack.c.l.b16 %v4875
        %v5195 = vunpack.c.h.b16 %v4875
        %v5196 = vunpack.c.l.b16 %v4876
        %v5197 = vunpack.c.h.b16 %v4876
        %v5198 = vunpack.c.l.b16 %v4877
        %v5199 = vunpack.c.h.b16 %v4877
        %v5200 = vunpack.c.l.b16 %v4878
        %v5201 = vunpack.c.h.b16 %v4878
        %v5202 = vunpack.c.l.b16 %v4879
        %v5203 = vunpack.c.h.b16 %v4879
        %v5204 = vunpack.c.l.b16 %v4880
        %v5205 = vunpack.c.h.b16 %v4880
        %v5206 = vunpack.c.l.b16 %v4881
        %v5207 = vunpack.c.h.b16 %v4881
        %v5208 = vunpack.c.l.b16 %v4882
        %v5209 = vunpack.c.h.b16 %v4882
        %v5210 = vunpack.c.l.b16 %v4883
        %v5211 = vunpack.c.h.b16 %v4883
        %v5212 = vunpack.c.l.b16 %v4884
        %v5213 = vunpack.c.h.b16 %v4884
        %v5214 = vunpack.c.l.b16 %v4885
        %v5215 = vunpack.c.h.b16 %v4885
        %v5216 = vunpack.c.l.b16 %v4886
        %v5217 = vunpack.c.h.b16 %v4886
        %v5218 = vunpack.c.l.b16 %v4887
        %v5219 = vunpack.c.h.b16 %v4887
        %v5220 = vunpack.c.l.b16 %v4888
        %v5221 = vunpack.c.h.b16 %v4888
        %v5222 = vunpack.c.l.b16 %v4889
        %v5223 = vunpack.c.h.b16 %v4889
        %v5224 = vunpack.c.l.b16 %v4890
        %v5225 = vunpack.c.h.b16 %v4890
        %v5226 = vunpack.c.l.b16 %v4891
        %v5227 = vunpack.c.h.b16 %v4891
        %v5228 = vunpack.c.l.b16 %v4892
        %v5229 = vunpack.c.h.b16 %v4892
        %v5230 = vunpack.c.l.b16 %v4893
        %v5231 = vunpack.c.h.b16 %v4893
        %v5232 = vunpack.c.l.b16 %v4894
        %v5233 = vunpack.c.h.b16 %v4894
        %v5234 = vunpack.c.l.b16 %v4895
        %v5235 = vunpack.c.h.b16 %v4895
        %v5236 = vunpack.c.l.b16 %v4896
        %v5237 = vunpack.c.h.b16 %v4896
        %v5238 = vunpack.c.l.b16 %v4897
        %v5239 = vunpack.c.h.b16 %v4897
        %v5240 = vunpack.c.l.b16 %v4898
        %v5241 = vunpack.c.h.b16 %v4898
        %v5242 = vunpack.c.l.b16 %v4899
        %v5243 = vunpack.c.h.b16 %v4899
        %v5244 = vunpack.c.l.b16 %v4900
        %v5245 = vunpack.c.h.b16 %v4900
        %v5246 = vunpack.c.l.b16 %v4901
        %v5247 = vunpack.c.h.b16 %v4901
        %v5248 = vunpack.c.l.b16 %v4902
        %v5249 = vunpack.c.h.b16 %v4902
        %v5250 = vunpack.c.l.b16 %v4903
        %v5251 = vunpack.c.h.b16 %v4903
        %v5252 = vunpack.c.l.b16 %v4904
        %v5253 = vunpack.c.h.b16 %v4904
        %v5254 = vunpack.c.l.b16 %v4905
        %v5255 = vunpack.c.h.b16 %v4905
        %v5256 = vunpack.c.l.b16 %v4906
        %v5257 = vunpack.c.h.b16 %v4906
        %v5258 = vunpack.c.l.b16 %v4907
        %v5259 = vunpack.c.h.b16 %v4907
        %v5260 = vunpack.c.l.b16 %v4908
        %v5261 = vunpack.c.h.b16 %v4908
        %v5262 = vunpack.c.l.b16 %v4909
        %v5263 = vunpack.c.h.b16 %v4909
        %v5264 = vunpack.c.l.b16 %v4910
        %v5265 = vunpack.c.h.b16 %v4910
        %v5266 = vunpack.c.l.b16 %v4911
        %v5267 = vunpack.c.h.b16 %v4911
        %v5268 = vunpack.c.l.b16 %v4912
        %v5269 = vunpack.c.h.b16 %v4912
        %v5270 = vunpack.c.l.b16 %v4913
        %v5271 = vunpack.c.h.b16 %v4913
        %v5272 = vunpack.c.l.b16 %v4914
        %v5273 = vunpack.c.h.b16 %v4914
        %v5274 = vunpack.c.l.b16 %v4915
        %v5275 = vunpack.c.h.b16 %v4915
        %v5276 = vunpack.c.l.b16 %v4916
        %v5277 = vunpack.c.h.b16 %v4916
        %v5278 = vunpack.c.l.b16 %v4917
        %v5279 = vunpack.c.h.b16 %v4917
        %v5280 = vunpack.c.l.b16 %v4918
        %v5281 = vunpack.c.h.b16 %v4918
        %v5282 = vunpack.c.l.b16 %v4919
        %v5283 = vunpack.c.h.b16 %v4919
        %v5284 = vunpack.c.l.b16 %v4920
        %v5285 = vunpack.c.h.b16 %v4920
        %v5286 = vunpack.c.l.b16 %v4921
        %v5287 = vunpack.c.h.b16 %v4921
        %v5288 = vunpack.c.l.b16 %v4922
        %v5289 = vunpack.c.h.b16 %v4922
        %v5290 = vunpack.c.l.b16 %v4923
        %v5291 = vunpack.c.h.b16 %v4923
        %v5292 = vunpack.c.l.b16 %v4924
        %v5293 = vunpack.c.h.b16 %v4924
        %v5294 = vunpack.c.l.b16 %v4925
        %v5295 = vunpack.c.h.b16 %v4925
        %v5296 = vunpack.c.l.b16 %v4926
        %v5297 = vunpack.c.h.b16 %v4926
        %v5298 = vunpack.c.l.b16 %v4927
        %v5299 = vunpack.c.h.b16 %v4927
        %v5300 = vunpack.c.l.b16 %v4928
        %v5301 = vunpack.c.h.b16 %v4928
        %v5302 = vunpack.c.l.b16 %v4929
        %v5303 = vunpack.c.h.b16 %v4929
        %v5304 = vunpack.c.l.b16 %v4930
        %v5305 = vunpack.c.h.b16 %v4930
        %v5306 = vunpack.c.l.b16 %v4931
        %v5307 = vunpack.c.h.b16 %v4931
        %v5308 = vunpack.c.l.b16 %v4932
        %v5309 = vunpack.c.h.b16 %v4932
        %v5310 = vunpack.c.l.b16 %v4933
        %v5311 = vunpack.c.h.b16 %v4933
        %v5312 = vunpack.c.l.b16 %v4934
        %v5313 = vunpack.c.h.b16 %v4934
        %v5314 = vunpack.c.l.b16 %v4935
        %v5315 = vunpack.c.h.b16 %v4935
        %v5316 = vunpack.c.l.b16 %v4936
        %v5317 = vunpack.c.h.b16 %v4936
        %v5318 = vunpack.c.l.b16 %v4937
        %v5319 = vunpack.c.h.b16 %v4937
        %v5320 = vunpack.c.l.b16 %v4938
        %v5321 = vunpack.c.h.b16 %v4938
        %v5322 = vunpack.c.l.b16 %v4939
        %v5323 = vunpack.c.h.b16 %v4939
        %v5324 = vunpack.c.l.b16 %v4940
        %v5325 = vunpack.c.h.b16 %v4940
        %v5326 = vunpack.c.l.b16 %v4941
        %v5327 = vunpack.c.h.b16 %v4941
        %v5328 = vunpack.c.l.b16 %v4942
        %v5329 = vunpack.c.h.b16 %v4942
        %v5330 = vunpack.c.l.b16 %v4943
        %v5331 = vunpack.c.h.b16 %v4943
        %v5332 = vunpack.c.l.b16 %v4944
        %v5333 = vunpack.c.h.b16 %v4944
        %v5334 = vunpack.c.l.b16 %v4945
        %v5335 = vunpack.c.h.b16 %v4945
        %v5336 = vunpack.c.l.b16 %v4946
        %v5337 = vunpack.c.h.b16 %v4946
        %v5338 = vunpack.c.l.b16 %v4947
        %v5339 = vunpack.c.h.b16 %v4947
        %v5340 = vunpack.c.l.b16 %v4948
        %v5341 = vunpack.c.h.b16 %v4948
        %v5342 = vunpack.c.l.b16 %v4949
        %v5343 = vunpack.c.h.b16 %v4949
        %v5344 = vunpack.c.l.b16 %v4950
        %v5345 = vunpack.c.h.b16 %v4950
        %v5346 = vunpack.c.l.b16 %v4951
        %v5347 = vunpack.c.h.b16 %v4951
        %v5348 = vunpack.c.l.b16 %v4952
        %v5349 = vunpack.c.h.b16 %v4952
        %v5350 = vunpack.c.l.b16 %v4953
        %v5351 = vunpack.c.h.b16 %v4953
        %v5352 = vunpack.c.l.b16 %v4954
        %v5353 = vunpack.c.h.b16 %v4954
        %v5354 = vunpack.c.l.b16 %v4955
        %v5355 = vunpack.c.h.b16 %v4955
        %v5356 = vunpack.c.l.b16 %v4956
        %v5357 = vunpack.c.h.b16 %v4956
        %v5358 = vunpack.c.l.b16 %v4957
        %v5359 = vunpack.c.h.b16 %v4957
        %v5360 = vunpack.c.l.b16 %v4958
        %v5361 = vunpack.c.h.b16 %v4958
        %v5362 = vunpack.c.l.b16 %v4959
        %v5363 = vunpack.c.h.b16 %v4959
        %v5364 = vunpack.c.l.b16 %v4960
        %v5365 = vunpack.c.h.b16 %v4960
        %v5366 = vunpack.c.l.b16 %v4961
        %v5367 = vunpack.c.h.b16 %v4961
        %v5368 = vpack.c.b16 %v5116, %v5112
        %v5369 = vpack.c.b16 %v5117, %v5113
        %v5370 = vpack.c.b16 %v5118, %v5114
        %v5371 = vpack.c.b16 %v5119, %v5115
        %v5372 = vpack.c.b16 %v5124, %v5120
        %v5373 = vpack.c.b16 %v5125, %v5121
        %v5374 = vpack.c.b16 %v5126, %v5122
        %v5375 = vpack.c.b16 %v5127, %v5123
        %v5376 = vpack.c.b16 %v5132, %v5128
        %v5377 = vpack.c.b16 %v5133, %v5129
        %v5378 = vpack.c.b16 %v5134, %v5130
        %v5379 = vpack.c.b16 %v5135, %v5131
        %v5380 = vpack.c.b16 %v5140, %v5136
        %v5381 = vpack.c.b16 %v5141, %v5137
        %v5382 = vpack.c.b16 %v5142, %v5138
        %v5383 = vpack.c.b16 %v5143, %v5139
        %v5384 = vpack.c.b16 %v5148, %v5144
        %v5385 = vpack.c.b16 %v5149, %v5145
        %v5386 = vpack.c.b16 %v5150, %v5146
        %v5387 = vpack.c.b16 %v5151, %v5147
        %v5388 = vpack.c.b16 %v5156, %v5152
        %v5389 = vpack.c.b16 %v5157, %v5153
        %v5390 = vpack.c.b16 %v5158, %v5154
        %v5391 = vpack.c.b16 %v5159, %v5155
        %v5392 = vpack.c.b16 %v5164, %v5160
        %v5393 = vpack.c.b16 %v5165, %v5161
        %v5394 = vpack.c.b16 %v5166, %v5162
        %v5395 = vpack.c.b16 %v5167, %v5163
        %v5396 = vpack.c.b16 %v5172, %v5168
        %v5397 = vpack.c.b16 %v5173, %v5169
        %v5398 = vpack.c.b16 %v5174, %v5170
        %v5399 = vpack.c.b16 %v5175, %v5171
        %v5400 = vpack.c.b16 %v5180, %v5176
        %v5401 = vpack.c.b16 %v5181, %v5177
        %v5402 = vpack.c.b16 %v5182, %v5178
        %v5403 = vpack.c.b16 %v5183, %v5179
        %v5404 = vpack.c.b16 %v5188, %v5184
        %v5405 = vpack.c.b16 %v5189, %v5185
        %v5406 = vpack.c.b16 %v5190, %v5186
        %v5407 = vpack.c.b16 %v5191, %v5187
        %v5408 = vpack.c.b16 %v5196, %v5192
        %v5409 = vpack.c.b16 %v5197, %v5193
        %v5410 = vpack.c.b16 %v5198, %v5194
        %v5411 = vpack.c.b16 %v5199, %v5195
        %v5412 = vpack.c.b16 %v5204, %v5200
        %v5413 = vpack.c.b16 %v5205, %v5201
        %v5414 = vpack.c.b16 %v5206, %v5202
        %v5415 = vpack.c.b16 %v5207, %v5203
        %v5416 = vpack.c.b16 %v5212, %v5208
        %v5417 = vpack.c.b16 %v5213, %v5209
        %v5418 = vpack.c.b16 %v5214, %v5210
        %v5419 = vpack.c.b16 %v5215, %v5211
        %v5420 = vpack.c.b16 %v5220, %v5216
        %v5421 = vpack.c.b16 %v5221, %v5217
        %v5422 = vpack.c.b16 %v5222, %v5218
        %v5423 = vpack.c.b16 %v5223, %v5219
        %v5424 = vpack.c.b16 %v5228, %v5224
        %v5425 = vpack.c.b16 %v5229, %v5225
        %v5426 = vpack.c.b16 %v5230, %v5226
        %v5427 = vpack.c.b16 %v5231, %v5227
        %v5428 = vpack.c.b16 %v5236, %v5232
        %v5429 = vpack.c.b16 %v5237, %v5233
        %v5430 = vpack.c.b16 %v5238, %v5234
        %v5431 = vpack.c.b16 %v5239, %v5235
        %v5432 = vpack.c.b16 %v5244, %v5240
        %v5433 = vpack.c.b16 %v5245, %v5241
        %v5434 = vpack.c.b16 %v5246, %v5242
        %v5435 = vpack.c.b16 %v5247, %v5243
        %v5436 = vpack.c.b16 %v5252, %v5248
        %v5437 = vpack.c.b16 %v5253, %v5249
        %v5438 = vpack.c.b16 %v5254, %v5250
        %v5439 = vpack.c.b16 %v5255, %v5251
        %v5440 = vpack.c.b16 %v5260, %v5256
        %v5441 = vpack.c.b16 %v5261, %v5257
        %v5442 = vpack.c.b16 %v5262, %v5258
        %v5443 = vpack.c.b16 %v5263, %v5259
        %v5444 = vpack.c.b16 %v5268, %v5264
        %v5445 = vpack.c.b16 %v5269, %v5265
        %v5446 = vpack.c.b16 %v5270, %v5266
        %v5447 = vpack.c.b16 %v5271, %v5267
        %v5448 = vpack.c.b16 %v5276, %v5272
        %v5449 = vpack.c.b16 %v5277, %v5273
        %v5450 = vpack.c.b16 %v5278, %v5274
        %v5451 = vpack.c.b16 %v5279, %v5275
        %v5452 = vpack.c.b16 %v5284, %v5280
        %v5453 = vpack.c.b16 %v5285, %v5281
        %v5454 = vpack.c.b16 %v5286, %v5282
        %v5455 = vpack.c.b16 %v5287, %v5283
        %v5456 = vpack.c.b16 %v5292, %v5288
        %v5457 = vpack.c.b16 %v5293, %v5289
        %v5458 = vpack.c.b16 %v5294, %v5290
        %v5459 = vpack.c.b16 %v5295, %v5291
        %v5460 = vpack.c.b16 %v5300, %v5296
        %v5461 = vpack.c.b16 %v5301, %v5297
        %v5462 = vpack.c.b16 %v5302, %v5298
        %v5463 = vpack.c.b16 %v5303, %v5299
        %v5464 = vpack.c.b16 %v5308, %v5304
        %v5465 = vpack.c.b16 %v5309, %v5305
        %v5466 = vpack.c.b16 %v5310, %v5306
        %v5467 = vpack.c.b16 %v5311, %v5307
        %v5468 = vpack.c.b16 %v5316, %v5312
        %v5469 = vpack.c.b16 %v5317, %v5313
        %v5470 = vpack.c.b16 %v5318, %v5314
        %v5471 = vpack.c.b16 %v5319, %v5315
        %v5472 = vpack.c.b16 %v5324, %v5320
        %v5473 = vpack.c.b16 %v5325, %v5321
        %v5474 = vpack.c.b16 %v5326, %v5322
        %v5475 = vpack.c.b16 %v5327, %v5323
        %v5476 = vpack.c.b16 %v5332, %v5328
        %v5477 = vpack.c.b16 %v5333, %v5329
        %v5478 = vpack.c.b16 %v5334, %v5330
        %v5479 = vpack.c.b16 %v5335, %v5331
        %v5480 = vpack.c.b16 %v5340, %v5336
        %v5481 = vpack.c.b16 %v5341, %v5337
        %v5482 = vpack.c.b16 %v5342, %v5338
        %v5483 = vpack.c.b16 %v5343, %v5339
        %v5484 = vpack.c.b16 %v5348, %v5344
        %v5485 = vpack.c.b16 %v5349, %v5345
        %v5486 = vpack.c.b16 %v5350, %v5346
        %v5487 = vpack.c.b16 %v5351, %v5347
        %v5488 = vpack.c.b16 %v5356, %v5352
        %v5489 = vpack.c.b16 %v5357, %v5353
        %v5490 = vpack.c.b16 %v5358, %v5354
        %v5491 = vpack.c.b16 %v5359, %v5355
        %v5492 = vpack.c.b16 %v5364, %v5360
        %v5493 = vpack.c.b16 %v5365, %v5361
        %v5494 = vpack.c.b16 %v5366, %v5362
        %v5495 = vpack.c.b16 %v5367, %v5363
        %5624 = vmatprep.subr.bf16.mxu0 %v5397
        %5625 = vmatpush1.bf16.msra.mxu0 %v5396
        %5626 = vmatprep.subr.bf16.mxu0 %v5393
        %5627 = vmatpush1.bf16.msra.mxu0 %v5392
        %5628 = vmatprep.subr.bf16.mxu0 %v5389
        %5629 = vmatpush1.bf16.msra.mxu0 %v5388
        %5630 = vmatprep.subr.bf16.mxu0 %v5385
        %5631 = vmatpush1.bf16.msra.mxu0 %v5384
        %5632 = vmatprep.subr.bf16.mxu0 %v5381
        %5633 = vmatpush1.bf16.msra.mxu0 %v5380
        %5634 = vmatprep.subr.bf16.mxu0 %v5377
        %5635 = vmatpush1.bf16.msra.mxu0 %v5376
        %5636 = vmatprep.subr.bf16.mxu0 %v5373
        %5637 = vmatpush1.bf16.msra.mxu0 %v5372
        %5638 = vmatprep.subr.bf16.mxu0 %v5369
        %5639 = vmatpush1.bf16.msra.mxu0 %v5368
        %5640 = vmatprep.subr.bf16.mxu0 %v5429
        %5641 = vmatpush2.bf16.msra.mxu0 %v5428
        %5642 = vmatprep.subr.bf16.mxu0 %v5425
        %5643 = vmatpush2.bf16.msra.mxu0 %v5424
        %5644 = vmatprep.subr.bf16.mxu0 %v5421
        %5645 = vmatpush2.bf16.msra.mxu0 %v5420
        %5646 = vmatprep.subr.bf16.mxu0 %v5417
        %5647 = vmatpush2.bf16.msra.mxu0 %v5416
        %5648 = vmatprep.subr.bf16.mxu0 %v5413
        %5649 = vmatpush2.bf16.msra.mxu0 %v5412
        %5650 = vmatprep.subr.bf16.mxu0 %v5409
        %5651 = vmatpush2.bf16.msra.mxu0 %v5408
        %5652 = vmatprep.subr.bf16.mxu0 %v5405
        %5653 = vmatpush2.bf16.msra.mxu0 %v5404
        %5654 = vmatprep.subr.bf16.mxu0 %v5401
        %5655 = vmatpush2.bf16.msra.mxu0 %v5400
        %5656 = vmatprep.mubr.bf16.mxu0 %v4831
        %5657 = vmatmul.mubr.bf16.gmra.mxu0 %v4830
        %v5658 = vpop.f32.mrf.mxu0
        %v5659 = vadd.f32 %v4967, %v5658
        %v5660 = vpop.f32.mrf.mxu0
        %v5661 = vadd.f32 %v4971, %v5660
        %v5662 = vpop.f32.mrf.mxu0
        %v5663 = vpop.f32.mrf.mxu0
        %5664 = vdwg.mxu0
        %5665 = vmatprep.subr.bf16.mxu0 %v5461
        %5666 = vmatpush1.bf16.msra.mxu0 %v5460
        %5667 = vmatprep.subr.bf16.mxu0 %v5457
        %5668 = vmatpush1.bf16.msra.mxu0 %v5456
        %5669 = vmatprep.subr.bf16.mxu0 %v5453
        %5670 = vmatpush1.bf16.msra.mxu0 %v5452
        %5671 = vmatprep.subr.bf16.mxu0 %v5449
        %5672 = vmatpush1.bf16.msra.mxu0 %v5448
        %5673 = vmatprep.subr.bf16.mxu0 %v5445
        %5674 = vmatpush1.bf16.msra.mxu0 %v5444
        %5675 = vmatprep.subr.bf16.mxu0 %v5441
        %5676 = vmatpush1.bf16.msra.mxu0 %v5440
        %5677 = vmatprep.subr.bf16.mxu0 %v5437
        %5678 = vmatpush1.bf16.msra.mxu0 %v5436
        %5679 = vmatprep.subr.bf16.mxu0 %v5433
        %5680 = vmatpush1.bf16.msra.mxu0 %v5432
        %5681 = vmatprep.subr.bf16.mxu0 %v5493
        %5682 = vmatpush2.bf16.msra.mxu0 %v5492
        %5683 = vmatprep.subr.bf16.mxu0 %v5489
        %5684 = vmatpush2.bf16.msra.mxu0 %v5488
        %5685 = vmatprep.subr.bf16.mxu0 %v5485
        %5686 = vmatpush2.bf16.msra.mxu0 %v5484
        %5687 = vmatprep.subr.bf16.mxu0 %v5481
        %5688 = vmatpush2.bf16.msra.mxu0 %v5480
        %5689 = vmatprep.subr.bf16.mxu0 %v5477
        %5690 = vmatpush2.bf16.msra.mxu0 %v5476
        %5691 = vmatprep.subr.bf16.mxu0 %v5473
        %5692 = vmatpush2.bf16.msra.mxu0 %v5472
        %5693 = vmatprep.subr.bf16.mxu0 %v5469
        %5694 = vmatpush2.bf16.msra.mxu0 %v5468
        %5695 = vmatprep.subr.bf16.mxu0 %v5465
        %5696 = vmatpush2.bf16.msra.mxu0 %v5464
        %5697 = vmatprep.mubr.bf16.mxu0 %v4833
        %5698 = vmatmul.mubr.bf16.gmra.mxu0 %v4832
        %v5699 = vpop.f32.mrf.mxu0
        %v5700 = vadd.f32 %v5659, %v5699
        %v5701 = vpop.f32.mrf.mxu0
        %v5702 = vadd.f32 %v5661, %v5701
        %v5703 = vpop.f32.mrf.mxu0
        %v5704 = vpop.f32.mrf.mxu0
        %5705 = vdwg.mxu0
        %5706 = vmatprep.subr.bf16.mxu0 %v5399
        %5707 = vmatpush1.bf16.msra.mxu0 %v5398
        %5708 = vmatprep.subr.bf16.mxu0 %v5395
        %5709 = vmatpush1.bf16.msra.mxu0 %v5394
        %5710 = vmatprep.subr.bf16.mxu0 %v5391
        %5711 = vmatpush1.bf16.msra.mxu0 %v5390
        %5712 = vmatprep.subr.bf16.mxu0 %v5387
        %5713 = vmatpush1.bf16.msra.mxu0 %v5386
        %5714 = vmatprep.subr.bf16.mxu0 %v5383
        %5715 = vmatpush1.bf16.msra.mxu0 %v5382
        %5716 = vmatprep.subr.bf16.mxu0 %v5379
        %5717 = vmatpush1.bf16.msra.mxu0 %v5378
        %5718 = vmatprep.subr.bf16.mxu0 %v5375
        %5719 = vmatpush1.bf16.msra.mxu0 %v5374
        %5720 = vmatprep.subr.bf16.mxu0 %v5371
        %5721 = vmatpush1.bf16.msra.mxu0 %v5370
        %5722 = vmatprep.subr.bf16.mxu0 %v5431
        %5723 = vmatpush2.bf16.msra.mxu0 %v5430
        %5724 = vmatprep.subr.bf16.mxu0 %v5427
        %5725 = vmatpush2.bf16.msra.mxu0 %v5426
        %5726 = vmatprep.subr.bf16.mxu0 %v5423
        %5727 = vmatpush2.bf16.msra.mxu0 %v5422
        %5728 = vmatprep.subr.bf16.mxu0 %v5419
        %5729 = vmatpush2.bf16.msra.mxu0 %v5418
        %5730 = vmatprep.subr.bf16.mxu0 %v5415
        %5731 = vmatpush2.bf16.msra.mxu0 %v5414
        %5732 = vmatprep.subr.bf16.mxu0 %v5411
        %5733 = vmatpush2.bf16.msra.mxu0 %v5410
        %5734 = vmatprep.subr.bf16.mxu0 %v5407
        %5735 = vmatpush2.bf16.msra.mxu0 %v5406
        %5736 = vmatprep.subr.bf16.mxu0 %v5403
        %5737 = vmatpush2.bf16.msra.mxu0 %v5402
        %5738 = vmatprep.mubr.bf16.mxu0 %v4831
        %5739 = vmatmul.mubr.bf16.gmra.mxu0 %v4830
        %v5740 = vpop.f32.mrf.mxu0
        %v5741 = vadd.f32 %v4975, %v5740
        %v5742 = vpop.f32.mrf.mxu0
        %v5743 = vadd.f32 %v4979, %v5742
        %v5744 = vpop.f32.mrf.mxu0
        %v5745 = vpop.f32.mrf.mxu0
        %5746 = vdwg.mxu0
        %5747 = vmatprep.subr.bf16.mxu0 %v5463
        %5748 = vmatpush1.bf16.msra.mxu0 %v5462
        %5749 = vmatprep.subr.bf16.mxu0 %v5459
        %5750 = vmatpush1.bf16.msra.mxu0 %v5458
        %5751 = vmatprep.subr.bf16.mxu0 %v5455
        %5752 = vmatpush1.bf16.msra.mxu0 %v5454
        %5753 = vmatprep.subr.bf16.mxu0 %v5451
        %5754 = vmatpush1.bf16.msra.mxu0 %v5450
        %5755 = vmatprep.subr.bf16.mxu0 %v5447
        %5756 = vmatpush1.bf16.msra.mxu0 %v5446
        %5757 = vmatprep.subr.bf16.mxu0 %v5443
        %5758 = vmatpush1.bf16.msra.mxu0 %v5442
        %5759 = vmatprep.subr.bf16.mxu0 %v5439
        %5760 = vmatpush1.bf16.msra.mxu0 %v5438
        %5761 = vmatprep.subr.bf16.mxu0 %v5435
        %5762 = vmatpush1.bf16.msra.mxu0 %v5434
        %5763 = vmatprep.subr.bf16.mxu0 %v5495
        %5764 = vmatpush2.bf16.msra.mxu0 %v5494
        %5765 = vmatprep.subr.bf16.mxu0 %v5491
        %5766 = vmatpush2.bf16.msra.mxu0 %v5490
        %5767 = vmatprep.subr.bf16.mxu0 %v5487
        %5768 = vmatpush2.bf16.msra.mxu0 %v5486
        %5769 = vmatprep.subr.bf16.mxu0 %v5483
        %5770 = vmatpush2.bf16.msra.mxu0 %v5482
        %5771 = vmatprep.subr.bf16.mxu0 %v5479
        %5772 = vmatpush2.bf16.msra.mxu0 %v5478
        %5773 = vmatprep.subr.bf16.mxu0 %v5475
        %5774 = vmatpush2.bf16.msra.mxu0 %v5474
        %5775 = vmatprep.subr.bf16.mxu0 %v5471
        %5776 = vmatpush2.bf16.msra.mxu0 %v5470
        %5777 = vmatprep.subr.bf16.mxu0 %v5467
        %5778 = vmatpush2.bf16.msra.mxu0 %v5466
        %5779 = vmatprep.mubr.bf16.mxu0 %v4833
        %5780 = vmatmul.mubr.bf16.gmra.mxu0 %v4832
        %v5781 = vpop.f32.mrf.mxu0
        %v5782 = vadd.f32 %v5741, %v5781
        %v5783 = vpop.f32.mrf.mxu0
        %v5784 = vadd.f32 %v5743, %v5783
        %v5785 = vpop.f32.mrf.mxu0
        %v5786 = vpop.f32.mrf.mxu0
        %5787 = vdwg.mxu0
        %v5788 = vmax.f32 %v5700, 0.0
        %v5789 = vmax.f32 %v5702, 0.0
        %v5790 = vmax.f32 %v5782, 0.0
        %v5791 = vmax.f32 %v5784, 0.0
        %v5792 = vpack.c.bf16 %v5788, %v5788
        %v5793 = vpack.c.bf16 %v5789, %v5789
        %v5794 = vpack.c.bf16 %v5790, %v5790
        %v5795 = vpack.c.bf16 %v5791, %v5791
        %v5796 = vld [vmem:[#allocation20] sm:$0xff]
        %v5797 = vld [vmem:[#allocation20 + $0x8] sm:$0xff]
        %v5798 = vld [vmem:[#allocation20 + $0x10] sm:$0xff]
        %v5799 = vld [vmem:[#allocation20 + $0x18] sm:$0xf]
        %v5800 = vld [vmem:[#allocation20 + $0x1c] sm:$0xff]
        %v5801 = vld [vmem:[#allocation20 + $0x24] sm:$0xff]
        %v5802 = vld [vmem:[#allocation20 + $0x2c] sm:$0xff]
        %v5803 = vld [vmem:[#allocation20 + $0x34] sm:$0xf]
        %v5804 = vld [vmem:[#allocation20 + $0x38] sm:$0xff]
        %v5805 = vld [vmem:[#allocation20 + $0x40] sm:$0xff]
        %v5806 = vld [vmem:[#allocation20 + $0x48] sm:$0xff]
        %v5807 = vld [vmem:[#allocation20 + $0x50] sm:$0xf]
        %v5808 = vld [vmem:[#allocation20 + $0x54] sm:$0xff]
        %v5809 = vld [vmem:[#allocation20 + $0x5c] sm:$0xff]
        %v5810 = vld [vmem:[#allocation20 + $0x64] sm:$0xff]
        %v5811 = vld [vmem:[#allocation20 + $0x6c] sm:$0xf]
        %v5812 = vld [vmem:[#allocation20 + $0x70] sm:$0xff]
        %v5813 = vld [vmem:[#allocation20 + $0x78] sm:$0xff]
        %v5814 = vld [vmem:[#allocation20 + $0x80] sm:$0xff]
        %v5815 = vld [vmem:[#allocation20 + $0x88] sm:$0xf]
        %v5816 = vld [vmem:[#allocation20 + $0x8c] sm:$0xff]
        %v5817 = vld [vmem:[#allocation20 + $0x94] sm:$0xff]
        %v5818 = vld [vmem:[#allocation20 + $0x9c] sm:$0xff]
        %v5819 = vld [vmem:[#allocation20 + $0xa4] sm:$0xf]
        %v5820 = vld [vmem:[#allocation20 + $0xa8] sm:$0xff]
        %v5821 = vld [vmem:[#allocation20 + $0xb0] sm:$0xff]
        %v5822 = vld [vmem:[#allocation20 + $0xb8] sm:$0xff]
        %v5823 = vld [vmem:[#allocation20 + $0xc0] sm:$0xf]
        %v5824 = vld [vmem:[#allocation20 + $0xc4] sm:$0xff]
        %v5825 = vld [vmem:[#allocation20 + $0xcc] sm:$0xff]
        %v5826 = vld [vmem:[#allocation20 + $0xd4] sm:$0xff]
        %v5827 = vld [vmem:[#allocation20 + $0xdc] sm:$0xf]
        %v5828 = vld [vmem:[#allocation20 + $0xe0] sm:$0xff]
        %v5829 = vld [vmem:[#allocation20 + $0xe8] sm:$0xff]
        %v5830 = vld [vmem:[#allocation20 + $0xf0] sm:$0xff]
        %v5831 = vld [vmem:[#allocation20 + $0xf8] sm:$0xf]
        %v5832 = vld [vmem:[#allocation20 + $0xfc] sm:$0xff]
        %v5833 = vld [vmem:[#allocation20 + $0x104] sm:$0xff]
        %v5834 = vld [vmem:[#allocation20 + $0x10c] sm:$0xff]
        %v5835 = vld [vmem:[#allocation20 + $0x114] sm:$0xf]
        %v5836 = vld [vmem:[#allocation20 + $0x118] sm:$0xff]
        %v5837 = vld [vmem:[#allocation20 + $0x120] sm:$0xff]
        %v5838 = vld [vmem:[#allocation20 + $0x128] sm:$0xff]
        %v5839 = vld [vmem:[#allocation20 + $0x130] sm:$0xf]
        %v5840 = vld [vmem:[#allocation20 + $0x134] sm:$0xff]
        %v5841 = vld [vmem:[#allocation20 + $0x13c] sm:$0xff]
        %v5842 = vld [vmem:[#allocation20 + $0x144] sm:$0xff]
        %v5843 = vld [vmem:[#allocation20 + $0x14c] sm:$0xf]
        %v5844 = vld [vmem:[#allocation20 + $0x150] sm:$0xff]
        %v5845 = vld [vmem:[#allocation20 + $0x158] sm:$0xff]
        %v5846 = vld [vmem:[#allocation20 + $0x160] sm:$0xff]
        %v5847 = vld [vmem:[#allocation20 + $0x168] sm:$0xf]
        %v5848 = vld [vmem:[#allocation20 + $0x16c] sm:$0xff]
        %v5849 = vld [vmem:[#allocation20 + $0x174] sm:$0xff]
        %v5850 = vld [vmem:[#allocation20 + $0x17c] sm:$0xff]
        %v5851 = vld [vmem:[#allocation20 + $0x184] sm:$0xf]
        %v5852 = vld [vmem:[#allocation20 + $0x188] sm:$0xff]
        %v5853 = vld [vmem:[#allocation20 + $0x190] sm:$0xff]
        %v5854 = vld [vmem:[#allocation20 + $0x198] sm:$0xff]
        %v5855 = vld [vmem:[#allocation20 + $0x1a0] sm:$0xf]
        %v5856 = vld [vmem:[#allocation20 + $0x1a4] sm:$0xff]
        %v5857 = vld [vmem:[#allocation20 + $0x1ac] sm:$0xff]
        %v5858 = vld [vmem:[#allocation20 + $0x1b4] sm:$0xff]
        %v5859 = vld [vmem:[#allocation20 + $0x1bc] sm:$0xf]
        %v5860 = vld [vmem:[#allocation20 + $0x1c0] sm:$0xff]
        %v5861 = vld [vmem:[#allocation20 + $0x1c8] sm:$0xff]
        %v5862 = vld [vmem:[#allocation20 + $0x1d0] sm:$0xff]
        %v5863 = vld [vmem:[#allocation20 + $0x1d8] sm:$0xf]
        %v5864 = vld [vmem:[#allocation20 + $0x1dc] sm:$0xff]
        %v5865 = vld [vmem:[#allocation20 + $0x1e4] sm:$0xff]
        %v5866 = vld [vmem:[#allocation20 + $0x1ec] sm:$0xff]
        %v5867 = vld [vmem:[#allocation20 + $0x1f4] sm:$0xf]
        %v5868 = vld [vmem:[#allocation20 + $0x1f8] sm:$0xff]
        %v5869 = vld [vmem:[#allocation20 + $0x200] sm:$0xff]
        %v5870 = vld [vmem:[#allocation20 + $0x208] sm:$0xff]
        %v5871 = vld [vmem:[#allocation20 + $0x210] sm:$0xf]
        %v5872 = vld [vmem:[#allocation20 + $0x214] sm:$0xff]
        %v5873 = vld [vmem:[#allocation20 + $0x21c] sm:$0xff]
        %v5874 = vld [vmem:[#allocation20 + $0x224] sm:$0xff]
        %v5875 = vld [vmem:[#allocation20 + $0x22c] sm:$0xf]
        %v5876 = vld [vmem:[#allocation20 + $0x230] sm:$0xff]
        %v5877 = vld [vmem:[#allocation20 + $0x238] sm:$0xff]
        %v5878 = vld [vmem:[#allocation20 + $0x240] sm:$0xff]
        %v5879 = vld [vmem:[#allocation20 + $0x248] sm:$0xf]
        %v5880 = vld [vmem:[#allocation20 + $0x24c] sm:$0xff]
        %v5881 = vld [vmem:[#allocation20 + $0x254] sm:$0xff]
        %v5882 = vld [vmem:[#allocation20 + $0x25c] sm:$0xff]
        %v5883 = vld [vmem:[#allocation20 + $0x264] sm:$0xf]
        %v5884 = vld [vmem:[#allocation20 + $0x268] sm:$0xff]
        %v5885 = vld [vmem:[#allocation20 + $0x270] sm:$0xff]
        %v5886 = vld [vmem:[#allocation20 + $0x278] sm:$0xff]
        %v5887 = vld [vmem:[#allocation20 + $0x280] sm:$0xf]
        %v5888 = vld [vmem:[#allocation20 + $0x284] sm:$0xff]
        %v5889 = vld [vmem:[#allocation20 + $0x28c] sm:$0xff]
        %v5890 = vld [vmem:[#allocation20 + $0x294] sm:$0xff]
        %v5891 = vld [vmem:[#allocation20 + $0x29c] sm:$0xf]
        %v5892 = vld [vmem:[#allocation20 + $0x2a0] sm:$0xff]
        %v5893 = vld [vmem:[#allocation20 + $0x2a8] sm:$0xff]
        %v5894 = vld [vmem:[#allocation20 + $0x2b0] sm:$0xff]
        %v5895 = vld [vmem:[#allocation20 + $0x2b8] sm:$0xf]
        %v5896 = vld [vmem:[#allocation20 + $0x2bc] sm:$0xff]
        %v5897 = vld [vmem:[#allocation20 + $0x2c4] sm:$0xff]
        %v5898 = vld [vmem:[#allocation20 + $0x2cc] sm:$0xff]
        %v5899 = vld [vmem:[#allocation20 + $0x2d4] sm:$0xf]
        %v5900 = vld [vmem:[#allocation20 + $0x2d8] sm:$0xff]
        %v5901 = vld [vmem:[#allocation20 + $0x2e0] sm:$0xff]
        %v5902 = vld [vmem:[#allocation20 + $0x2e8] sm:$0xff]
        %v5903 = vld [vmem:[#allocation20 + $0x2f0] sm:$0xf]
        %v5904 = vld [vmem:[#allocation20 + $0x2f4] sm:$0xff]
        %v5905 = vld [vmem:[#allocation20 + $0x2fc] sm:$0xff]
        %v5906 = vld [vmem:[#allocation20 + $0x304] sm:$0xff]
        %v5907 = vld [vmem:[#allocation20 + $0x30c] sm:$0xf]
        %v5908 = vld [vmem:[#allocation20 + $0x310] sm:$0xff]
        %v5909 = vld [vmem:[#allocation20 + $0x318] sm:$0xff]
        %v5910 = vld [vmem:[#allocation20 + $0x320] sm:$0xff]
        %v5911 = vld [vmem:[#allocation20 + $0x328] sm:$0xf]
        %v5912 = vld [vmem:[#allocation20 + $0x32c] sm:$0xff]
        %v5913 = vld [vmem:[#allocation20 + $0x334] sm:$0xff]
        %v5914 = vld [vmem:[#allocation20 + $0x33c] sm:$0xff]
        %v5915 = vld [vmem:[#allocation20 + $0x344] sm:$0xf]
        %v5916 = vld [vmem:[#allocation20 + $0x348] sm:$0xff]
        %v5917 = vld [vmem:[#allocation20 + $0x350] sm:$0xff]
        %v5918 = vld [vmem:[#allocation20 + $0x358] sm:$0xff]
        %v5919 = vld [vmem:[#allocation20 + $0x360] sm:$0xf]
        %v5920 = vld [vmem:[#allocation20 + $0x364] sm:$0xff]
        %v5921 = vld [vmem:[#allocation20 + $0x36c] sm:$0xff]
        %v5922 = vld [vmem:[#allocation20 + $0x374] sm:$0xff]
        %v5923 = vld [vmem:[#allocation20 + $0x37c] sm:$0xf]
        %v5924 = vld [vmem:[#allocation20 + $0x380] sm:$0xff]
        %v5925 = vld [vmem:[#allocation20 + $0x388] sm:$0xff]
        %v5926 = vld [vmem:[#allocation20 + $0x390] sm:$0xff]
        %v5927 = vld [vmem:[#allocation20 + $0x398] sm:$0xf]
        %v5928 = vld [vmem:[#allocation20 + $0x39c] sm:$0xff]
        %v5929 = vld [vmem:[#allocation20 + $0x3a4] sm:$0xff]
        %v5930 = vld [vmem:[#allocation20 + $0x3ac] sm:$0xff]
        %v5931 = vld [vmem:[#allocation20 + $0x3b4] sm:$0xf]
        %v5932 = vld [vmem:[#allocation20 + $0x3b8] sm:$0xff]
        %v5933 = vld [vmem:[#allocation20 + $0x3c0] sm:$0xff]
        %v5934 = vld [vmem:[#allocation20 + $0x3c8] sm:$0xff]
        %v5935 = vld [vmem:[#allocation20 + $0x3d0] sm:$0xf]
        %v5936 = vld [vmem:[#allocation20 + $0x3d4] sm:$0xff]
        %v5937 = vld [vmem:[#allocation20 + $0x3dc] sm:$0xff]
        %v5938 = vld [vmem:[#allocation20 + $0x3e4] sm:$0xff]
        %v5939 = vld [vmem:[#allocation20 + $0x3ec] sm:$0xf]
        %v5940 = vld [vmem:[#allocation20 + $0x3f0] sm:$0xff]
        %v5941 = vld [vmem:[#allocation20 + $0x3f8] sm:$0xff]
        %v5942 = vld [vmem:[#allocation20 + $0x400] sm:$0xff]
        %v5943 = vld [vmem:[#allocation20 + $0x408] sm:$0xf]
        %v5944 = vld [vmem:[#allocation20 + $0x40c] sm:$0xff]
        %v5945 = vld [vmem:[#allocation20 + $0x414] sm:$0xff]
        %v5946 = vld [vmem:[#allocation20 + $0x41c] sm:$0xff]
        %v5947 = vld [vmem:[#allocation20 + $0x424] sm:$0xf]
        %v5948 = vld [vmem:[#allocation20 + $0x428] sm:$0xff]
        %v5949 = vld [vmem:[#allocation20 + $0x430] sm:$0xff]
        %v5950 = vld [vmem:[#allocation20 + $0x438] sm:$0xff]
        %v5951 = vld [vmem:[#allocation20 + $0x440] sm:$0xf]
        %v5952 = vld [vmem:[#allocation20 + $0x444] sm:$0xff]
        %v5953 = vld [vmem:[#allocation20 + $0x44c] sm:$0xff]
        %v5954 = vld [vmem:[#allocation20 + $0x454] sm:$0xff]
        %v5955 = vld [vmem:[#allocation20 + $0x45c] sm:$0xf]
        %v5956 = vld [vmem:[#allocation20 + $0x460] sm:$0xff]
        %v5957 = vld [vmem:[#allocation20 + $0x468] sm:$0xff]
        %v5958 = vld [vmem:[#allocation20 + $0x470] sm:$0xff]
        %v5959 = vld [vmem:[#allocation20 + $0x478] sm:$0xf]
        %v5960 = vld [vmem:[#allocation20 + $0x47c] sm:$0xff]
        %v5961 = vld [vmem:[#allocation20 + $0x484] sm:$0xff]
        %v5962 = vld [vmem:[#allocation20 + $0x48c] sm:$0xff]
        %v5963 = vld [vmem:[#allocation20 + $0x494] sm:$0xf]
        %v5964 = vld [vmem:[#allocation20 + $0x498] sm:$0xff]
        %v5965 = vld [vmem:[#allocation20 + $0x4a0] sm:$0xff]
        %v5966 = vld [vmem:[#allocation20 + $0x4a8] sm:$0xff]
        %v5967 = vld [vmem:[#allocation20 + $0x4b0] sm:$0xf]
        %v5968 = vld [vmem:[#allocation20 + $0x4b4] sm:$0xff]
        %v5969 = vld [vmem:[#allocation20 + $0x4bc] sm:$0xff]
        %v5970 = vld [vmem:[#allocation20 + $0x4c4] sm:$0xff]
        %v5971 = vld [vmem:[#allocation20 + $0x4cc] sm:$0xf]
        %v5972 = vld [vmem:[#allocation20 + $0x4d0] sm:$0xff]
        %v5973 = vld [vmem:[#allocation20 + $0x4d8] sm:$0xff]
        %v5974 = vld [vmem:[#allocation20 + $0x4e0] sm:$0xff]
        %v5975 = vld [vmem:[#allocation20 + $0x4e8] sm:$0xf]
        %v5976 = vld [vmem:[#allocation20 + $0x4ec] sm:$0xff]
        %v5977 = vld [vmem:[#allocation20 + $0x4f4] sm:$0xff]
        %v5978 = vld [vmem:[#allocation20 + $0x4fc] sm:$0xff]
        %v5979 = vld [vmem:[#allocation20 + $0x504] sm:$0xf]
        %v5980 = vld [vmem:[#allocation20 + $0x508] sm:$0xff]
        %v5981 = vld [vmem:[#allocation20 + $0x510] sm:$0xff]
        %v5982 = vld [vmem:[#allocation20 + $0x518] sm:$0xff]
        %v5983 = vld [vmem:[#allocation20 + $0x520] sm:$0xf]
        %v5984 = vld [vmem:[#allocation20 + $0x524] sm:$0xff]
        %v5985 = vld [vmem:[#allocation20 + $0x52c] sm:$0xff]
        %v5986 = vld [vmem:[#allocation20 + $0x534] sm:$0xff]
        %v5987 = vld [vmem:[#allocation20 + $0x53c] sm:$0xf]
        %v5988 = vld [vmem:[#allocation20 + $0x540] sm:$0xff]
        %v5989 = vld [vmem:[#allocation20 + $0x548] sm:$0xff]
        %v5990 = vld [vmem:[#allocation20 + $0x550] sm:$0xff]
        %v5991 = vld [vmem:[#allocation20 + $0x558] sm:$0xf]
        %v5992 = vld [vmem:[#allocation20 + $0x55c] sm:$0xff]
        %v5993 = vld [vmem:[#allocation20 + $0x564] sm:$0xff]
        %v5994 = vld [vmem:[#allocation20 + $0x56c] sm:$0xff]
        %v5995 = vld [vmem:[#allocation20 + $0x574] sm:$0xf]
        %v5996 = vld [vmem:[#allocation20 + $0x578] sm:$0xff]
        %v5997 = vld [vmem:[#allocation20 + $0x580] sm:$0xff]
        %v5998 = vld [vmem:[#allocation20 + $0x588] sm:$0xff]
        %v5999 = vld [vmem:[#allocation20 + $0x590] sm:$0xf]
        %v6000 = vld [vmem:[#allocation20 + $0x594] sm:$0xff]
        %v6001 = vld [vmem:[#allocation20 + $0x59c] sm:$0xff]
        %v6002 = vld [vmem:[#allocation20 + $0x5a4] sm:$0xff]
        %v6003 = vld [vmem:[#allocation20 + $0x5ac] sm:$0xf]
        %v6004 = vld [vmem:[#allocation20 + $0x5b0] sm:$0xff]
        %v6005 = vld [vmem:[#allocation20 + $0x5b8] sm:$0xff]
        %v6006 = vld [vmem:[#allocation20 + $0x5c0] sm:$0xff]
        %v6007 = vld [vmem:[#allocation20 + $0x5c8] sm:$0xf]
        %v6008 = vld [vmem:[#allocation20 + $0x5cc] sm:$0xff]
        %v6009 = vld [vmem:[#allocation20 + $0x5d4] sm:$0xff]
        %v6010 = vld [vmem:[#allocation20 + $0x5dc] sm:$0xff]
        %v6011 = vld [vmem:[#allocation20 + $0x5e4] sm:$0xf]
        %v6012 = vld [vmem:[#allocation20 + $0x5e8] sm:$0xff]
        %v6013 = vld [vmem:[#allocation20 + $0x5f0] sm:$0xff]
        %v6014 = vld [vmem:[#allocation20 + $0x5f8] sm:$0xff]
        %v6015 = vld [vmem:[#allocation20 + $0x600] sm:$0xf]
        %v6016 = vld [vmem:[#allocation20 + $0x604] sm:$0xff]
        %v6017 = vld [vmem:[#allocation20 + $0x60c] sm:$0xff]
        %v6018 = vld [vmem:[#allocation20 + $0x614] sm:$0xff]
        %v6019 = vld [vmem:[#allocation20 + $0x61c] sm:$0xf]
        %v6020 = vld [vmem:[#allocation20 + $0x620] sm:$0xff]
        %v6021 = vld [vmem:[#allocation20 + $0x628] sm:$0xff]
        %v6022 = vld [vmem:[#allocation20 + $0x630] sm:$0xff]
        %v6023 = vld [vmem:[#allocation20 + $0x638] sm:$0xf]
        %v6024 = vld [vmem:[#allocation20 + $0x63c] sm:$0xff]
        %v6025 = vld [vmem:[#allocation20 + $0x644] sm:$0xff]
        %v6026 = vld [vmem:[#allocation20 + $0x64c] sm:$0xff]
        %v6027 = vld [vmem:[#allocation20 + $0x654] sm:$0xf]
        %v6028 = vld [vmem:[#allocation20 + $0x658] sm:$0xff]
        %v6029 = vld [vmem:[#allocation20 + $0x660] sm:$0xff]
        %v6030 = vld [vmem:[#allocation20 + $0x668] sm:$0xff]
        %v6031 = vld [vmem:[#allocation20 + $0x670] sm:$0xf]
        %v6032 = vld [vmem:[#allocation20 + $0x674] sm:$0xff]
        %v6033 = vld [vmem:[#allocation20 + $0x67c] sm:$0xff]
        %v6034 = vld [vmem:[#allocation20 + $0x684] sm:$0xff]
        %v6035 = vld [vmem:[#allocation20 + $0x68c] sm:$0xf]
        %v6036 = vld [vmem:[#allocation20 + $0x690] sm:$0xff]
        %v6037 = vld [vmem:[#allocation20 + $0x698] sm:$0xff]
        %v6038 = vld [vmem:[#allocation20 + $0x6a0] sm:$0xff]
        %v6039 = vld [vmem:[#allocation20 + $0x6a8] sm:$0xf]
        %v6040 = vld [vmem:[#allocation20 + $0x6ac] sm:$0xff]
        %v6041 = vld [vmem:[#allocation20 + $0x6b4] sm:$0xff]
        %v6042 = vld [vmem:[#allocation20 + $0x6bc] sm:$0xff]
        %v6043 = vld [vmem:[#allocation20 + $0x6c4] sm:$0xf]
        %v6044 = vld [vmem:[#allocation20 + $0x6c8] sm:$0xff]
        %v6045 = vld [vmem:[#allocation20 + $0x6d0] sm:$0xff]
        %v6046 = vld [vmem:[#allocation20 + $0x6d8] sm:$0xff]
        %v6047 = vld [vmem:[#allocation20 + $0x6e0] sm:$0xf]
        %v6048 = vld [vmem:[#allocation20 + $0x6e4] sm:$0xff]
        %v6049 = vld [vmem:[#allocation20 + $0x6ec] sm:$0xff]
        %v6050 = vld [vmem:[#allocation20 + $0x6f4] sm:$0xff]
        %v6051 = vld [vmem:[#allocation20 + $0x6fc] sm:$0xf]
        %v6052 = vld [vmem:[%s15] sm:$0xff]
        %v6054 = vlaneseq
        %v6055 = vshrl.u32 %v6054, 7
        %v6056 = vsub.s32 0, %v6055
        %v6057 = vrot.slane %v6052, %v6056
        %v6058 = vlaneseq
        %v6059 = vshrl.u32 %v6058, 7
        %v6060 = vsub.s32 1, %v6059
        %v6061 = vrot.slane %v6052, %v6060
        %v6062 = vlaneseq
        %v6063 = vshrl.u32 %v6062, 7
        %v6064 = vsub.s32 2, %v6063
        %v6065 = vrot.slane %v6052, %v6064
        %v6066 = vlaneseq
        %v6067 = vshrl.u32 %v6066, 7
        %v6068 = vsub.s32 3, %v6067
        %v6069 = vrot.slane %v6052, %v6068
        %v6070 = vlaneseq
        %v6071 = vshrl.u32 %v6070, 7
        %v6072 = vsub.s32 4, %v6071
        %v6073 = vrot.slane %v6052, %v6072
        %v6074 = vlaneseq
        %v6075 = vshrl.u32 %v6074, 7
        %v6076 = vsub.s32 5, %v6075
        %v6077 = vrot.slane %v6052, %v6076
        %v6078 = vlaneseq
        %v6079 = vshrl.u32 %v6078, 7
        %v6080 = vsub.s32 6, %v6079
        %v6081 = vrot.slane %v6052, %v6080
        %v6345 = vunpack.c.l.b16 %v5796
        %v6346 = vunpack.c.h.b16 %v5796
        %v6347 = vunpack.c.l.b16 %v5797
        %v6348 = vunpack.c.h.b16 %v5797
        %v6349 = vunpack.c.l.b16 %v5798
        %v6350 = vunpack.c.h.b16 %v5798
        %v6351 = vunpack.c.l.b16 %v5799
        %v6352 = vunpack.c.l.b16 %v5800
        %v6353 = vunpack.c.h.b16 %v5800
        %v6354 = vunpack.c.l.b16 %v5801
        %v6355 = vunpack.c.h.b16 %v5801
        %v6356 = vunpack.c.l.b16 %v5802
        %v6357 = vunpack.c.h.b16 %v5802
        %v6358 = vunpack.c.l.b16 %v5803
        %v6359 = vunpack.c.l.b16 %v5804
        %v6360 = vunpack.c.h.b16 %v5804
        %v6361 = vunpack.c.l.b16 %v5805
        %v6362 = vunpack.c.h.b16 %v5805
        %v6363 = vunpack.c.l.b16 %v5806
        %v6364 = vunpack.c.h.b16 %v5806
        %v6365 = vunpack.c.l.b16 %v5807
        %v6366 = vunpack.c.l.b16 %v5808
        %v6367 = vunpack.c.h.b16 %v5808
        %v6368 = vunpack.c.l.b16 %v5809
        %v6369 = vunpack.c.h.b16 %v5809
        %v6370 = vunpack.c.l.b16 %v5810
        %v6371 = vunpack.c.h.b16 %v5810
        %v6372 = vunpack.c.l.b16 %v5811
        %v6373 = vunpack.c.l.b16 %v5812
        %v6374 = vunpack.c.h.b16 %v5812
        %v6375 = vunpack.c.l.b16 %v5813
        %v6376 = vunpack.c.h.b16 %v5813
        %v6377 = vunpack.c.l.b16 %v5814
        %v6378 = vunpack.c.h.b16 %v5814
        %v6379 = vunpack.c.l.b16 %v5815
        %v6380 = vunpack.c.l.b16 %v5816
        %v6381 = vunpack.c.h.b16 %v5816
        %v6382 = vunpack.c.l.b16 %v5817
        %v6383 = vunpack.c.h.b16 %v5817
        %v6384 = vunpack.c.l.b16 %v5818
        %v6385 = vunpack.c.h.b16 %v5818
        %v6386 = vunpack.c.l.b16 %v5819
        %v6387 = vunpack.c.l.b16 %v5820
        %v6388 = vunpack.c.h.b16 %v5820
        %v6389 = vunpack.c.l.b16 %v5821
        %v6390 = vunpack.c.h.b16 %v5821
        %v6391 = vunpack.c.l.b16 %v5822
        %v6392 = vunpack.c.h.b16 %v5822
        %v6393 = vunpack.c.l.b16 %v5823
        %v6394 = vunpack.c.l.b16 %v5824
        %v6395 = vunpack.c.h.b16 %v5824
        %v6396 = vunpack.c.l.b16 %v5825
        %v6397 = vunpack.c.h.b16 %v5825
        %v6398 = vunpack.c.l.b16 %v5826
        %v6399 = vunpack.c.h.b16 %v5826
        %v6400 = vunpack.c.l.b16 %v5827
        %v6401 = vunpack.c.l.b16 %v5828
        %v6402 = vunpack.c.h.b16 %v5828
        %v6403 = vunpack.c.l.b16 %v5829
        %v6404 = vunpack.c.h.b16 %v5829
        %v6405 = vunpack.c.l.b16 %v5830
        %v6406 = vunpack.c.h.b16 %v5830
        %v6407 = vunpack.c.l.b16 %v5831
        %v6408 = vunpack.c.l.b16 %v5832
        %v6409 = vunpack.c.h.b16 %v5832
        %v6410 = vunpack.c.l.b16 %v5833
        %v6411 = vunpack.c.h.b16 %v5833
        %v6412 = vunpack.c.l.b16 %v5834
        %v6413 = vunpack.c.h.b16 %v5834
        %v6414 = vunpack.c.l.b16 %v5835
        %v6415 = vunpack.c.l.b16 %v5836
        %v6416 = vunpack.c.h.b16 %v5836
        %v6417 = vunpack.c.l.b16 %v5837
        %v6418 = vunpack.c.h.b16 %v5837
        %v6419 = vunpack.c.l.b16 %v5838
        %v6420 = vunpack.c.h.b16 %v5838
        %v6421 = vunpack.c.l.b16 %v5839
        %v6422 = vunpack.c.l.b16 %v5840
        %v6423 = vunpack.c.h.b16 %v5840
        %v6424 = vunpack.c.l.b16 %v5841
        %v6425 = vunpack.c.h.b16 %v5841
        %v6426 = vunpack.c.l.b16 %v5842
        %v6427 = vunpack.c.h.b16 %v5842
        %v6428 = vunpack.c.l.b16 %v5843
        %v6429 = vunpack.c.l.b16 %v5844
        %v6430 = vunpack.c.h.b16 %v5844
        %v6431 = vunpack.c.l.b16 %v5845
        %v6432 = vunpack.c.h.b16 %v5845
        %v6433 = vunpack.c.l.b16 %v5846
        %v6434 = vunpack.c.h.b16 %v5846
        %v6435 = vunpack.c.l.b16 %v5847
        %v6436 = vunpack.c.l.b16 %v5848
        %v6437 = vunpack.c.h.b16 %v5848
        %v6438 = vunpack.c.l.b16 %v5849
        %v6439 = vunpack.c.h.b16 %v5849
        %v6440 = vunpack.c.l.b16 %v5850
        %v6441 = vunpack.c.h.b16 %v5850
        %v6442 = vunpack.c.l.b16 %v5851
        %v6443 = vunpack.c.l.b16 %v5852
        %v6444 = vunpack.c.h.b16 %v5852
        %v6445 = vunpack.c.l.b16 %v5853
        %v6446 = vunpack.c.h.b16 %v5853
        %v6447 = vunpack.c.l.b16 %v5854
        %v6448 = vunpack.c.h.b16 %v5854
        %v6449 = vunpack.c.l.b16 %v5855
        %v6450 = vunpack.c.l.b16 %v5856
        %v6451 = vunpack.c.h.b16 %v5856
        %v6452 = vunpack.c.l.b16 %v5857
        %v6453 = vunpack.c.h.b16 %v5857
        %v6454 = vunpack.c.l.b16 %v5858
        %v6455 = vunpack.c.h.b16 %v5858
        %v6456 = vunpack.c.l.b16 %v5859
        %v6457 = vunpack.c.l.b16 %v5860
        %v6458 = vunpack.c.h.b16 %v5860
        %v6459 = vunpack.c.l.b16 %v5861
        %v6460 = vunpack.c.h.b16 %v5861
        %v6461 = vunpack.c.l.b16 %v5862
        %v6462 = vunpack.c.h.b16 %v5862
        %v6463 = vunpack.c.l.b16 %v5863
        %v6464 = vunpack.c.l.b16 %v5864
        %v6465 = vunpack.c.h.b16 %v5864
        %v6466 = vunpack.c.l.b16 %v5865
        %v6467 = vunpack.c.h.b16 %v5865
        %v6468 = vunpack.c.l.b16 %v5866
        %v6469 = vunpack.c.h.b16 %v5866
        %v6470 = vunpack.c.l.b16 %v5867
        %v6471 = vunpack.c.l.b16 %v5868
        %v6472 = vunpack.c.h.b16 %v5868
        %v6473 = vunpack.c.l.b16 %v5869
        %v6474 = vunpack.c.h.b16 %v5869
        %v6475 = vunpack.c.l.b16 %v5870
        %v6476 = vunpack.c.h.b16 %v5870
        %v6477 = vunpack.c.l.b16 %v5871
        %v6478 = vunpack.c.l.b16 %v5872
        %v6479 = vunpack.c.h.b16 %v5872
        %v6480 = vunpack.c.l.b16 %v5873
        %v6481 = vunpack.c.h.b16 %v5873
        %v6482 = vunpack.c.l.b16 %v5874
        %v6483 = vunpack.c.h.b16 %v5874
        %v6484 = vunpack.c.l.b16 %v5875
        %v6485 = vunpack.c.l.b16 %v5876
        %v6486 = vunpack.c.h.b16 %v5876
        %v6487 = vunpack.c.l.b16 %v5877
        %v6488 = vunpack.c.h.b16 %v5877
        %v6489 = vunpack.c.l.b16 %v5878
        %v6490 = vunpack.c.h.b16 %v5878
        %v6491 = vunpack.c.l.b16 %v5879
        %v6492 = vunpack.c.l.b16 %v5880
        %v6493 = vunpack.c.h.b16 %v5880
        %v6494 = vunpack.c.l.b16 %v5881
        %v6495 = vunpack.c.h.b16 %v5881
        %v6496 = vunpack.c.l.b16 %v5882
        %v6497 = vunpack.c.h.b16 %v5882
        %v6498 = vunpack.c.l.b16 %v5883
        %v6499 = vunpack.c.l.b16 %v5884
        %v6500 = vunpack.c.h.b16 %v5884
        %v6501 = vunpack.c.l.b16 %v5885
        %v6502 = vunpack.c.h.b16 %v5885
        %v6503 = vunpack.c.l.b16 %v5886
        %v6504 = vunpack.c.h.b16 %v5886
        %v6505 = vunpack.c.l.b16 %v5887
        %v6506 = vunpack.c.l.b16 %v5888
        %v6507 = vunpack.c.h.b16 %v5888
        %v6508 = vunpack.c.l.b16 %v5889
        %v6509 = vunpack.c.h.b16 %v5889
        %v6510 = vunpack.c.l.b16 %v5890
        %v6511 = vunpack.c.h.b16 %v5890
        %v6512 = vunpack.c.l.b16 %v5891
        %v6513 = vunpack.c.l.b16 %v5892
        %v6514 = vunpack.c.h.b16 %v5892
        %v6515 = vunpack.c.l.b16 %v5893
        %v6516 = vunpack.c.h.b16 %v5893
        %v6517 = vunpack.c.l.b16 %v5894
        %v6518 = vunpack.c.h.b16 %v5894
        %v6519 = vunpack.c.l.b16 %v5895
        %v6520 = vunpack.c.l.b16 %v5896
        %v6521 = vunpack.c.h.b16 %v5896
        %v6522 = vunpack.c.l.b16 %v5897
        %v6523 = vunpack.c.h.b16 %v5897
        %v6524 = vunpack.c.l.b16 %v5898
        %v6525 = vunpack.c.h.b16 %v5898
        %v6526 = vunpack.c.l.b16 %v5899
        %v6527 = vunpack.c.l.b16 %v5900
        %v6528 = vunpack.c.h.b16 %v5900
        %v6529 = vunpack.c.l.b16 %v5901
        %v6530 = vunpack.c.h.b16 %v5901
        %v6531 = vunpack.c.l.b16 %v5902
        %v6532 = vunpack.c.h.b16 %v5902
        %v6533 = vunpack.c.l.b16 %v5903
        %v6534 = vunpack.c.l.b16 %v5904
        %v6535 = vunpack.c.h.b16 %v5904
        %v6536 = vunpack.c.l.b16 %v5905
        %v6537 = vunpack.c.h.b16 %v5905
        %v6538 = vunpack.c.l.b16 %v5906
        %v6539 = vunpack.c.h.b16 %v5906
        %v6540 = vunpack.c.l.b16 %v5907
        %v6541 = vunpack.c.l.b16 %v5908
        %v6542 = vunpack.c.h.b16 %v5908
        %v6543 = vunpack.c.l.b16 %v5909
        %v6544 = vunpack.c.h.b16 %v5909
        %v6545 = vunpack.c.l.b16 %v5910
        %v6546 = vunpack.c.h.b16 %v5910
        %v6547 = vunpack.c.l.b16 %v5911
        %v6548 = vunpack.c.l.b16 %v5912
        %v6549 = vunpack.c.h.b16 %v5912
        %v6550 = vunpack.c.l.b16 %v5913
        %v6551 = vunpack.c.h.b16 %v5913
        %v6552 = vunpack.c.l.b16 %v5914
        %v6553 = vunpack.c.h.b16 %v5914
        %v6554 = vunpack.c.l.b16 %v5915
        %v6555 = vunpack.c.l.b16 %v5916
        %v6556 = vunpack.c.h.b16 %v5916
        %v6557 = vunpack.c.l.b16 %v5917
        %v6558 = vunpack.c.h.b16 %v5917
        %v6559 = vunpack.c.l.b16 %v5918
        %v6560 = vunpack.c.h.b16 %v5918
        %v6561 = vunpack.c.l.b16 %v5919
        %v6562 = vunpack.c.l.b16 %v5920
        %v6563 = vunpack.c.h.b16 %v5920
        %v6564 = vunpack.c.l.b16 %v5921
        %v6565 = vunpack.c.h.b16 %v5921
        %v6566 = vunpack.c.l.b16 %v5922
        %v6567 = vunpack.c.h.b16 %v5922
        %v6568 = vunpack.c.l.b16 %v5923
        %v6569 = vunpack.c.l.b16 %v5924
        %v6570 = vunpack.c.h.b16 %v5924
        %v6571 = vunpack.c.l.b16 %v5925
        %v6572 = vunpack.c.h.b16 %v5925
        %v6573 = vunpack.c.l.b16 %v5926
        %v6574 = vunpack.c.h.b16 %v5926
        %v6575 = vunpack.c.l.b16 %v5927
        %v6576 = vunpack.c.l.b16 %v5928
        %v6577 = vunpack.c.h.b16 %v5928
        %v6578 = vunpack.c.l.b16 %v5929
        %v6579 = vunpack.c.h.b16 %v5929
        %v6580 = vunpack.c.l.b16 %v5930
        %v6581 = vunpack.c.h.b16 %v5930
        %v6582 = vunpack.c.l.b16 %v5931
        %v6583 = vunpack.c.l.b16 %v5932
        %v6584 = vunpack.c.h.b16 %v5932
        %v6585 = vunpack.c.l.b16 %v5933
        %v6586 = vunpack.c.h.b16 %v5933
        %v6587 = vunpack.c.l.b16 %v5934
        %v6588 = vunpack.c.h.b16 %v5934
        %v6589 = vunpack.c.l.b16 %v5935
        %v6590 = vunpack.c.l.b16 %v5936
        %v6591 = vunpack.c.h.b16 %v5936
        %v6592 = vunpack.c.l.b16 %v5937
        %v6593 = vunpack.c.h.b16 %v5937
        %v6594 = vunpack.c.l.b16 %v5938
        %v6595 = vunpack.c.h.b16 %v5938
        %v6596 = vunpack.c.l.b16 %v5939
        %v6597 = vunpack.c.l.b16 %v5940
        %v6598 = vunpack.c.h.b16 %v5940
        %v6599 = vunpack.c.l.b16 %v5941
        %v6600 = vunpack.c.h.b16 %v5941
        %v6601 = vunpack.c.l.b16 %v5942
        %v6602 = vunpack.c.h.b16 %v5942
        %v6603 = vunpack.c.l.b16 %v5943
        %v6604 = vunpack.c.l.b16 %v5944
        %v6605 = vunpack.c.h.b16 %v5944
        %v6606 = vunpack.c.l.b16 %v5945
        %v6607 = vunpack.c.h.b16 %v5945
        %v6608 = vunpack.c.l.b16 %v5946
        %v6609 = vunpack.c.h.b16 %v5946
        %v6610 = vunpack.c.l.b16 %v5947
        %v6611 = vunpack.c.l.b16 %v5948
        %v6612 = vunpack.c.h.b16 %v5948
        %v6613 = vunpack.c.l.b16 %v5949
        %v6614 = vunpack.c.h.b16 %v5949
        %v6615 = vunpack.c.l.b16 %v5950
        %v6616 = vunpack.c.h.b16 %v5950
        %v6617 = vunpack.c.l.b16 %v5951
        %v6618 = vunpack.c.l.b16 %v5952
        %v6619 = vunpack.c.h.b16 %v5952
        %v6620 = vunpack.c.l.b16 %v5953
        %v6621 = vunpack.c.h.b16 %v5953
        %v6622 = vunpack.c.l.b16 %v5954
        %v6623 = vunpack.c.h.b16 %v5954
        %v6624 = vunpack.c.l.b16 %v5955
        %v6625 = vunpack.c.l.b16 %v5956
        %v6626 = vunpack.c.h.b16 %v5956
        %v6627 = vunpack.c.l.b16 %v5957
        %v6628 = vunpack.c.h.b16 %v5957
        %v6629 = vunpack.c.l.b16 %v5958
        %v6630 = vunpack.c.h.b16 %v5958
        %v6631 = vunpack.c.l.b16 %v5959
        %v6632 = vunpack.c.l.b16 %v5960
        %v6633 = vunpack.c.h.b16 %v5960
        %v6634 = vunpack.c.l.b16 %v5961
        %v6635 = vunpack.c.h.b16 %v5961
        %v6636 = vunpack.c.l.b16 %v5962
        %v6637 = vunpack.c.h.b16 %v5962
        %v6638 = vunpack.c.l.b16 %v5963
        %v6639 = vunpack.c.l.b16 %v5964
        %v6640 = vunpack.c.h.b16 %v5964
        %v6641 = vunpack.c.l.b16 %v5965
        %v6642 = vunpack.c.h.b16 %v5965
        %v6643 = vunpack.c.l.b16 %v5966
        %v6644 = vunpack.c.h.b16 %v5966
        %v6645 = vunpack.c.l.b16 %v5967
        %v6646 = vunpack.c.l.b16 %v5968
        %v6647 = vunpack.c.h.b16 %v5968
        %v6648 = vunpack.c.l.b16 %v5969
        %v6649 = vunpack.c.h.b16 %v5969
        %v6650 = vunpack.c.l.b16 %v5970
        %v6651 = vunpack.c.h.b16 %v5970
        %v6652 = vunpack.c.l.b16 %v5971
        %v6653 = vunpack.c.l.b16 %v5972
        %v6654 = vunpack.c.h.b16 %v5972
        %v6655 = vunpack.c.l.b16 %v5973
        %v6656 = vunpack.c.h.b16 %v5973
        %v6657 = vunpack.c.l.b16 %v5974
        %v6658 = vunpack.c.h.b16 %v5974
        %v6659 = vunpack.c.l.b16 %v5975
        %v6660 = vunpack.c.l.b16 %v5976
        %v6661 = vunpack.c.h.b16 %v5976
        %v6662 = vunpack.c.l.b16 %v5977
        %v6663 = vunpack.c.h.b16 %v5977
        %v6664 = vunpack.c.l.b16 %v5978
        %v6665 = vunpack.c.h.b16 %v5978
        %v6666 = vunpack.c.l.b16 %v5979
        %v6667 = vunpack.c.l.b16 %v5980
        %v6668 = vunpack.c.h.b16 %v5980
        %v6669 = vunpack.c.l.b16 %v5981
        %v6670 = vunpack.c.h.b16 %v5981
        %v6671 = vunpack.c.l.b16 %v5982
        %v6672 = vunpack.c.h.b16 %v5982
        %v6673 = vunpack.c.l.b16 %v5983
        %v6674 = vunpack.c.l.b16 %v5984
        %v6675 = vunpack.c.h.b16 %v5984
        %v6676 = vunpack.c.l.b16 %v5985
        %v6677 = vunpack.c.h.b16 %v5985
        %v6678 = vunpack.c.l.b16 %v5986
        %v6679 = vunpack.c.h.b16 %v5986
        %v6680 = vunpack.c.l.b16 %v5987
        %v6681 = vunpack.c.l.b16 %v5988
        %v6682 = vunpack.c.h.b16 %v5988
        %v6683 = vunpack.c.l.b16 %v5989
        %v6684 = vunpack.c.h.b16 %v5989
        %v6685 = vunpack.c.l.b16 %v5990
        %v6686 = vunpack.c.h.b16 %v5990
        %v6687 = vunpack.c.l.b16 %v5991
        %v6688 = vunpack.c.l.b16 %v5992
        %v6689 = vunpack.c.h.b16 %v5992
        %v6690 = vunpack.c.l.b16 %v5993
        %v6691 = vunpack.c.h.b16 %v5993
        %v6692 = vunpack.c.l.b16 %v5994
        %v6693 = vunpack.c.h.b16 %v5994
        %v6694 = vunpack.c.l.b16 %v5995
        %v6695 = vunpack.c.l.b16 %v5996
        %v6696 = vunpack.c.h.b16 %v5996
        %v6697 = vunpack.c.l.b16 %v5997
        %v6698 = vunpack.c.h.b16 %v5997
        %v6699 = vunpack.c.l.b16 %v5998
        %v6700 = vunpack.c.h.b16 %v5998
        %v6701 = vunpack.c.l.b16 %v5999
        %v6702 = vunpack.c.l.b16 %v6000
        %v6703 = vunpack.c.h.b16 %v6000
        %v6704 = vunpack.c.l.b16 %v6001
        %v6705 = vunpack.c.h.b16 %v6001
        %v6706 = vunpack.c.l.b16 %v6002
        %v6707 = vunpack.c.h.b16 %v6002
        %v6708 = vunpack.c.l.b16 %v6003
        %v6709 = vunpack.c.l.b16 %v6004
        %v6710 = vunpack.c.h.b16 %v6004
        %v6711 = vunpack.c.l.b16 %v6005
        %v6712 = vunpack.c.h.b16 %v6005
        %v6713 = vunpack.c.l.b16 %v6006
        %v6714 = vunpack.c.h.b16 %v6006
        %v6715 = vunpack.c.l.b16 %v6007
        %v6716 = vunpack.c.l.b16 %v6008
        %v6717 = vunpack.c.h.b16 %v6008
        %v6718 = vunpack.c.l.b16 %v6009
        %v6719 = vunpack.c.h.b16 %v6009
        %v6720 = vunpack.c.l.b16 %v6010
        %v6721 = vunpack.c.h.b16 %v6010
        %v6722 = vunpack.c.l.b16 %v6011
        %v6723 = vunpack.c.l.b16 %v6012
        %v6724 = vunpack.c.h.b16 %v6012
        %v6725 = vunpack.c.l.b16 %v6013
        %v6726 = vunpack.c.h.b16 %v6013
        %v6727 = vunpack.c.l.b16 %v6014
        %v6728 = vunpack.c.h.b16 %v6014
        %v6729 = vunpack.c.l.b16 %v6015
        %v6730 = vunpack.c.l.b16 %v6016
        %v6731 = vunpack.c.h.b16 %v6016
        %v6732 = vunpack.c.l.b16 %v6017
        %v6733 = vunpack.c.h.b16 %v6017
        %v6734 = vunpack.c.l.b16 %v6018
        %v6735 = vunpack.c.h.b16 %v6018
        %v6736 = vunpack.c.l.b16 %v6019
        %v6737 = vunpack.c.l.b16 %v6020
        %v6738 = vunpack.c.h.b16 %v6020
        %v6739 = vunpack.c.l.b16 %v6021
        %v6740 = vunpack.c.h.b16 %v6021
        %v6741 = vunpack.c.l.b16 %v6022
        %v6742 = vunpack.c.h.b16 %v6022
        %v6743 = vunpack.c.l.b16 %v6023
        %v6744 = vunpack.c.l.b16 %v6024
        %v6745 = vunpack.c.h.b16 %v6024
        %v6746 = vunpack.c.l.b16 %v6025
        %v6747 = vunpack.c.h.b16 %v6025
        %v6748 = vunpack.c.l.b16 %v6026
        %v6749 = vunpack.c.h.b16 %v6026
        %v6750 = vunpack.c.l.b16 %v6027
        %v6751 = vunpack.c.l.b16 %v6028
        %v6752 = vunpack.c.h.b16 %v6028
        %v6753 = vunpack.c.l.b16 %v6029
        %v6754 = vunpack.c.h.b16 %v6029
        %v6755 = vunpack.c.l.b16 %v6030
        %v6756 = vunpack.c.h.b16 %v6030
        %v6757 = vunpack.c.l.b16 %v6031
        %v6758 = vunpack.c.l.b16 %v6032
        %v6759 = vunpack.c.h.b16 %v6032
        %v6760 = vunpack.c.l.b16 %v6033
        %v6761 = vunpack.c.h.b16 %v6033
        %v6762 = vunpack.c.l.b16 %v6034
        %v6763 = vunpack.c.h.b16 %v6034
        %v6764 = vunpack.c.l.b16 %v6035
        %v6765 = vunpack.c.l.b16 %v6036
        %v6766 = vunpack.c.h.b16 %v6036
        %v6767 = vunpack.c.l.b16 %v6037
        %v6768 = vunpack.c.h.b16 %v6037
        %v6769 = vunpack.c.l.b16 %v6038
        %v6770 = vunpack.c.h.b16 %v6038
        %v6771 = vunpack.c.l.b16 %v6039
        %v6772 = vunpack.c.l.b16 %v6040
        %v6773 = vunpack.c.h.b16 %v6040
        %v6774 = vunpack.c.l.b16 %v6041
        %v6775 = vunpack.c.h.b16 %v6041
        %v6776 = vunpack.c.l.b16 %v6042
        %v6777 = vunpack.c.h.b16 %v6042
        %v6778 = vunpack.c.l.b16 %v6043
        %v6779 = vunpack.c.l.b16 %v6044
        %v6780 = vunpack.c.h.b16 %v6044
        %v6781 = vunpack.c.l.b16 %v6045
        %v6782 = vunpack.c.h.b16 %v6045
        %v6783 = vunpack.c.l.b16 %v6046
        %v6784 = vunpack.c.h.b16 %v6046
        %v6785 = vunpack.c.l.b16 %v6047
        %v6786 = vunpack.c.l.b16 %v6048
        %v6787 = vunpack.c.h.b16 %v6048
        %v6788 = vunpack.c.l.b16 %v6049
        %v6789 = vunpack.c.h.b16 %v6049
        %v6790 = vunpack.c.l.b16 %v6050
        %v6791 = vunpack.c.h.b16 %v6050
        %v6792 = vunpack.c.l.b16 %v6051
        %v6793 = vpack.c.b16 %v6352, %v6345
        %v6794 = vpack.c.b16 %v6353, %v6346
        %v6795 = vpack.c.b16 %v6354, %v6347
        %v6796 = vpack.c.b16 %v6355, %v6348
        %v6797 = vpack.c.b16 %v6356, %v6349
        %v6798 = vpack.c.b16 %v6357, %v6350
        %v6799 = vpack.c.b16 %v6358, %v6351
        %v6800 = vpack.c.b16 %v6366, %v6359
        %v6801 = vpack.c.b16 %v6367, %v6360
        %v6802 = vpack.c.b16 %v6368, %v6361
        %v6803 = vpack.c.b16 %v6369, %v6362
        %v6804 = vpack.c.b16 %v6370, %v6363
        %v6805 = vpack.c.b16 %v6371, %v6364
        %v6806 = vpack.c.b16 %v6372, %v6365
        %v6807 = vpack.c.b16 %v6380, %v6373
        %v6808 = vpack.c.b16 %v6381, %v6374
        %v6809 = vpack.c.b16 %v6382, %v6375
        %v6810 = vpack.c.b16 %v6383, %v6376
        %v6811 = vpack.c.b16 %v6384, %v6377
        %v6812 = vpack.c.b16 %v6385, %v6378
        %v6813 = vpack.c.b16 %v6386, %v6379
        %v6814 = vpack.c.b16 %v6394, %v6387
        %v6815 = vpack.c.b16 %v6395, %v6388
        %v6816 = vpack.c.b16 %v6396, %v6389
        %v6817 = vpack.c.b16 %v6397, %v6390
        %v6818 = vpack.c.b16 %v6398, %v6391
        %v6819 = vpack.c.b16 %v6399, %v6392
        %v6820 = vpack.c.b16 %v6400, %v6393
        %v6821 = vpack.c.b16 %v6408, %v6401
        %v6822 = vpack.c.b16 %v6409, %v6402
        %v6823 = vpack.c.b16 %v6410, %v6403
        %v6824 = vpack.c.b16 %v6411, %v6404
        %v6825 = vpack.c.b16 %v6412, %v6405
        %v6826 = vpack.c.b16 %v6413, %v6406
        %v6827 = vpack.c.b16 %v6414, %v6407
        %v6828 = vpack.c.b16 %v6422, %v6415
        %v6829 = vpack.c.b16 %v6423, %v6416
        %v6830 = vpack.c.b16 %v6424, %v6417
        %v6831 = vpack.c.b16 %v6425, %v6418
        %v6832 = vpack.c.b16 %v6426, %v6419
        %v6833 = vpack.c.b16 %v6427, %v6420
        %v6834 = vpack.c.b16 %v6428, %v6421
        %v6835 = vpack.c.b16 %v6436, %v6429
        %v6836 = vpack.c.b16 %v6437, %v6430
        %v6837 = vpack.c.b16 %v6438, %v6431
        %v6838 = vpack.c.b16 %v6439, %v6432
        %v6839 = vpack.c.b16 %v6440, %v6433
        %v6840 = vpack.c.b16 %v6441, %v6434
        %v6841 = vpack.c.b16 %v6442, %v6435
        %v6842 = vpack.c.b16 %v6450, %v6443
        %v6843 = vpack.c.b16 %v6451, %v6444
        %v6844 = vpack.c.b16 %v6452, %v6445
        %v6845 = vpack.c.b16 %v6453, %v6446
        %v6846 = vpack.c.b16 %v6454, %v6447
        %v6847 = vpack.c.b16 %v6455, %v6448
        %v6848 = vpack.c.b16 %v6456, %v6449
        %v6849 = vpack.c.b16 %v6464, %v6457
        %v6850 = vpack.c.b16 %v6465, %v6458
        %v6851 = vpack.c.b16 %v6466, %v6459
        %v6852 = vpack.c.b16 %v6467, %v6460
        %v6853 = vpack.c.b16 %v6468, %v6461
        %v6854 = vpack.c.b16 %v6469, %v6462
        %v6855 = vpack.c.b16 %v6470, %v6463
        %v6856 = vpack.c.b16 %v6478, %v6471
        %v6857 = vpack.c.b16 %v6479, %v6472
        %v6858 = vpack.c.b16 %v6480, %v6473
        %v6859 = vpack.c.b16 %v6481, %v6474
        %v6860 = vpack.c.b16 %v6482, %v6475
        %v6861 = vpack.c.b16 %v6483, %v6476
        %v6862 = vpack.c.b16 %v6484, %v6477
        %v6863 = vpack.c.b16 %v6492, %v6485
        %v6864 = vpack.c.b16 %v6493, %v6486
        %v6865 = vpack.c.b16 %v6494, %v6487
        %v6866 = vpack.c.b16 %v6495, %v6488
        %v6867 = vpack.c.b16 %v6496, %v6489
        %v6868 = vpack.c.b16 %v6497, %v6490
        %v6869 = vpack.c.b16 %v6498, %v6491
        %v6870 = vpack.c.b16 %v6506, %v6499
        %v6871 = vpack.c.b16 %v6507, %v6500
        %v6872 = vpack.c.b16 %v6508, %v6501
        %v6873 = vpack.c.b16 %v6509, %v6502
        %v6874 = vpack.c.b16 %v6510, %v6503
        %v6875 = vpack.c.b16 %v6511, %v6504
        %v6876 = vpack.c.b16 %v6512, %v6505
        %v6877 = vpack.c.b16 %v6520, %v6513
        %v6878 = vpack.c.b16 %v6521, %v6514
        %v6879 = vpack.c.b16 %v6522, %v6515
        %v6880 = vpack.c.b16 %v6523, %v6516
        %v6881 = vpack.c.b16 %v6524, %v6517
        %v6882 = vpack.c.b16 %v6525, %v6518
        %v6883 = vpack.c.b16 %v6526, %v6519
        %v6884 = vpack.c.b16 %v6534, %v6527
        %v6885 = vpack.c.b16 %v6535, %v6528
        %v6886 = vpack.c.b16 %v6536, %v6529
        %v6887 = vpack.c.b16 %v6537, %v6530
        %v6888 = vpack.c.b16 %v6538, %v6531
        %v6889 = vpack.c.b16 %v6539, %v6532
        %v6890 = vpack.c.b16 %v6540, %v6533
        %v6891 = vpack.c.b16 %v6548, %v6541
        %v6892 = vpack.c.b16 %v6549, %v6542
        %v6893 = vpack.c.b16 %v6550, %v6543
        %v6894 = vpack.c.b16 %v6551, %v6544
        %v6895 = vpack.c.b16 %v6552, %v6545
        %v6896 = vpack.c.b16 %v6553, %v6546
        %v6897 = vpack.c.b16 %v6554, %v6547
        %v6898 = vpack.c.b16 %v6562, %v6555
        %v6899 = vpack.c.b16 %v6563, %v6556
        %v6900 = vpack.c.b16 %v6564, %v6557
        %v6901 = vpack.c.b16 %v6565, %v6558
        %v6902 = vpack.c.b16 %v6566, %v6559
        %v6903 = vpack.c.b16 %v6567, %v6560
        %v6904 = vpack.c.b16 %v6568, %v6561
        %v6905 = vpack.c.b16 %v6576, %v6569
        %v6906 = vpack.c.b16 %v6577, %v6570
        %v6907 = vpack.c.b16 %v6578, %v6571
        %v6908 = vpack.c.b16 %v6579, %v6572
        %v6909 = vpack.c.b16 %v6580, %v6573
        %v6910 = vpack.c.b16 %v6581, %v6574
        %v6911 = vpack.c.b16 %v6582, %v6575
        %v6912 = vpack.c.b16 %v6590, %v6583
        %v6913 = vpack.c.b16 %v6591, %v6584
        %v6914 = vpack.c.b16 %v6592, %v6585
        %v6915 = vpack.c.b16 %v6593, %v6586
        %v6916 = vpack.c.b16 %v6594, %v6587
        %v6917 = vpack.c.b16 %v6595, %v6588
        %v6918 = vpack.c.b16 %v6596, %v6589
        %v6919 = vpack.c.b16 %v6604, %v6597
        %v6920 = vpack.c.b16 %v6605, %v6598
        %v6921 = vpack.c.b16 %v6606, %v6599
        %v6922 = vpack.c.b16 %v6607, %v6600
        %v6923 = vpack.c.b16 %v6608, %v6601
        %v6924 = vpack.c.b16 %v6609, %v6602
        %v6925 = vpack.c.b16 %v6610, %v6603
        %v6926 = vpack.c.b16 %v6618, %v6611
        %v6927 = vpack.c.b16 %v6619, %v6612
        %v6928 = vpack.c.b16 %v6620, %v6613
        %v6929 = vpack.c.b16 %v6621, %v6614
        %v6930 = vpack.c.b16 %v6622, %v6615
        %v6931 = vpack.c.b16 %v6623, %v6616
        %v6932 = vpack.c.b16 %v6624, %v6617
        %v6933 = vpack.c.b16 %v6632, %v6625
        %v6934 = vpack.c.b16 %v6633, %v6626
        %v6935 = vpack.c.b16 %v6634, %v6627
        %v6936 = vpack.c.b16 %v6635, %v6628
        %v6937 = vpack.c.b16 %v6636, %v6629
        %v6938 = vpack.c.b16 %v6637, %v6630
        %v6939 = vpack.c.b16 %v6638, %v6631
        %v6940 = vpack.c.b16 %v6646, %v6639
        %v6941 = vpack.c.b16 %v6647, %v6640
        %v6942 = vpack.c.b16 %v6648, %v6641
        %v6943 = vpack.c.b16 %v6649, %v6642
        %v6944 = vpack.c.b16 %v6650, %v6643
        %v6945 = vpack.c.b16 %v6651, %v6644
        %v6946 = vpack.c.b16 %v6652, %v6645
        %v6947 = vpack.c.b16 %v6660, %v6653
        %v6948 = vpack.c.b16 %v6661, %v6654
        %v6949 = vpack.c.b16 %v6662, %v6655
        %v6950 = vpack.c.b16 %v6663, %v6656
        %v6951 = vpack.c.b16 %v6664, %v6657
        %v6952 = vpack.c.b16 %v6665, %v6658
        %v6953 = vpack.c.b16 %v6666, %v6659
        %v6954 = vpack.c.b16 %v6674, %v6667
        %v6955 = vpack.c.b16 %v6675, %v6668
        %v6956 = vpack.c.b16 %v6676, %v6669
        %v6957 = vpack.c.b16 %v6677, %v6670
        %v6958 = vpack.c.b16 %v6678, %v6671
        %v6959 = vpack.c.b16 %v6679, %v6672
        %v6960 = vpack.c.b16 %v6680, %v6673
        %v6961 = vpack.c.b16 %v6688, %v6681
        %v6962 = vpack.c.b16 %v6689, %v6682
        %v6963 = vpack.c.b16 %v6690, %v6683
        %v6964 = vpack.c.b16 %v6691, %v6684
        %v6965 = vpack.c.b16 %v6692, %v6685
        %v6966 = vpack.c.b16 %v6693, %v6686
        %v6967 = vpack.c.b16 %v6694, %v6687
        %v6968 = vpack.c.b16 %v6702, %v6695
        %v6969 = vpack.c.b16 %v6703, %v6696
        %v6970 = vpack.c.b16 %v6704, %v6697
        %v6971 = vpack.c.b16 %v6705, %v6698
        %v6972 = vpack.c.b16 %v6706, %v6699
        %v6973 = vpack.c.b16 %v6707, %v6700
        %v6974 = vpack.c.b16 %v6708, %v6701
        %v6975 = vpack.c.b16 %v6716, %v6709
        %v6976 = vpack.c.b16 %v6717, %v6710
        %v6977 = vpack.c.b16 %v6718, %v6711
        %v6978 = vpack.c.b16 %v6719, %v6712
        %v6979 = vpack.c.b16 %v6720, %v6713
        %v6980 = vpack.c.b16 %v6721, %v6714
        %v6981 = vpack.c.b16 %v6722, %v6715
        %v6982 = vpack.c.b16 %v6730, %v6723
        %v6983 = vpack.c.b16 %v6731, %v6724
        %v6984 = vpack.c.b16 %v6732, %v6725
        %v6985 = vpack.c.b16 %v6733, %v6726
        %v6986 = vpack.c.b16 %v6734, %v6727
        %v6987 = vpack.c.b16 %v6735, %v6728
        %v6988 = vpack.c.b16 %v6736, %v6729
        %v6989 = vpack.c.b16 %v6744, %v6737
        %v6990 = vpack.c.b16 %v6745, %v6738
        %v6991 = vpack.c.b16 %v6746, %v6739
        %v6992 = vpack.c.b16 %v6747, %v6740
        %v6993 = vpack.c.b16 %v6748, %v6741
        %v6994 = vpack.c.b16 %v6749, %v6742
        %v6995 = vpack.c.b16 %v6750, %v6743
        %v6996 = vpack.c.b16 %v6758, %v6751
        %v6997 = vpack.c.b16 %v6759, %v6752
        %v6998 = vpack.c.b16 %v6760, %v6753
        %v6999 = vpack.c.b16 %v6761, %v6754
        %v7000 = vpack.c.b16 %v6762, %v6755
        %v7001 = vpack.c.b16 %v6763, %v6756
        %v7002 = vpack.c.b16 %v6764, %v6757
        %v7003 = vpack.c.b16 %v6772, %v6765
        %v7004 = vpack.c.b16 %v6773, %v6766
        %v7005 = vpack.c.b16 %v6774, %v6767
        %v7006 = vpack.c.b16 %v6775, %v6768
        %v7007 = vpack.c.b16 %v6776, %v6769
        %v7008 = vpack.c.b16 %v6777, %v6770
        %v7009 = vpack.c.b16 %v6778, %v6771
        %v7010 = vpack.c.b16 %v6786, %v6779
        %v7011 = vpack.c.b16 %v6787, %v6780
        %v7012 = vpack.c.b16 %v6788, %v6781
        %v7013 = vpack.c.b16 %v6789, %v6782
        %v7014 = vpack.c.b16 %v6790, %v6783
        %v7015 = vpack.c.b16 %v6791, %v6784
        %v7016 = vpack.c.b16 %v6792, %v6785
        %7241 = vmatprep.subr.bf16.mxu0 %v6843
        %7242 = vmatpush1.bf16.msra.mxu0 %v6842
        %7243 = vmatprep.subr.bf16.mxu0 %v6836
        %7244 = vmatpush1.bf16.msra.mxu0 %v6835
        %7245 = vmatprep.subr.bf16.mxu0 %v6829
        %7246 = vmatpush1.bf16.msra.mxu0 %v6828
        %7247 = vmatprep.subr.bf16.mxu0 %v6822
        %7248 = vmatpush1.bf16.msra.mxu0 %v6821
        %7249 = vmatprep.subr.bf16.mxu0 %v6815
        %7250 = vmatpush1.bf16.msra.mxu0 %v6814
        %7251 = vmatprep.subr.bf16.mxu0 %v6808
        %7252 = vmatpush1.bf16.msra.mxu0 %v6807
        %7253 = vmatprep.subr.bf16.mxu0 %v6801
        %7254 = vmatpush1.bf16.msra.mxu0 %v6800
        %7255 = vmatprep.subr.bf16.mxu0 %v6794
        %7256 = vmatpush1.bf16.msra.mxu0 %v6793
        %7257 = vmatprep.subr.bf16.mxu0 %v6899
        %7258 = vmatpush2.bf16.msra.mxu0 %v6898
        %7259 = vmatprep.subr.bf16.mxu0 %v6892
        %7260 = vmatpush2.bf16.msra.mxu0 %v6891
        %7261 = vmatprep.subr.bf16.mxu0 %v6885
        %7262 = vmatpush2.bf16.msra.mxu0 %v6884
        %7263 = vmatprep.subr.bf16.mxu0 %v6878
        %7264 = vmatpush2.bf16.msra.mxu0 %v6877
        %7265 = vmatprep.subr.bf16.mxu0 %v6871
        %7266 = vmatpush2.bf16.msra.mxu0 %v6870
        %7267 = vmatprep.subr.bf16.mxu0 %v6864
        %7268 = vmatpush2.bf16.msra.mxu0 %v6863
        %7269 = vmatprep.subr.bf16.mxu0 %v6857
        %7270 = vmatpush2.bf16.msra.mxu0 %v6856
        %7271 = vmatprep.subr.bf16.mxu0 %v6850
        %7272 = vmatpush2.bf16.msra.mxu0 %v6849
        %7273 = vmatprep.mubr.bf16.mxu0 %v5793
        %7274 = vmatmul.mubr.bf16.gmra.mxu0 %v5792
        %v7275 = vpop.f32.mrf.mxu0
        %v7276 = vadd.f32 %v6057, %v7275
        %v7277 = vpop.f32.mrf.mxu0
        %v7278 = vadd.f32 %v6061, %v7277
        %v7279 = vpop.f32.mrf.mxu0
        %v7280 = vpop.f32.mrf.mxu0
        %7281 = vdwg.mxu0
        %7282 = vmatprep.subr.bf16.mxu0 %v6955
        %7283 = vmatpush1.bf16.msra.mxu0 %v6954
        %7284 = vmatprep.subr.bf16.mxu0 %v6948
        %7285 = vmatpush1.bf16.msra.mxu0 %v6947
        %7286 = vmatprep.subr.bf16.mxu0 %v6941
        %7287 = vmatpush1.bf16.msra.mxu0 %v6940
        %7288 = vmatprep.subr.bf16.mxu0 %v6934
        %7289 = vmatpush1.bf16.msra.mxu0 %v6933
        %7290 = vmatprep.subr.bf16.mxu0 %v6927
        %7291 = vmatpush1.bf16.msra.mxu0 %v6926
        %7292 = vmatprep.subr.bf16.mxu0 %v6920
        %7293 = vmatpush1.bf16.msra.mxu0 %v6919
        %7294 = vmatprep.subr.bf16.mxu0 %v6913
        %7295 = vmatpush1.bf16.msra.mxu0 %v6912
        %7296 = vmatprep.subr.bf16.mxu0 %v6906
        %7297 = vmatpush1.bf16.msra.mxu0 %v6905
        %7298 = vmatprep.subr.bf16.mxu0 %v7011
        %7299 = vmatpush2.bf16.msra.mxu0 %v7010
        %7300 = vmatprep.subr.bf16.mxu0 %v7004
        %7301 = vmatpush2.bf16.msra.mxu0 %v7003
        %7302 = vmatprep.subr.bf16.mxu0 %v6997
        %7303 = vmatpush2.bf16.msra.mxu0 %v6996
        %7304 = vmatprep.subr.bf16.mxu0 %v6990
        %7305 = vmatpush2.bf16.msra.mxu0 %v6989
        %7306 = vmatprep.subr.bf16.mxu0 %v6983
        %7307 = vmatpush2.bf16.msra.mxu0 %v6982
        %7308 = vmatprep.subr.bf16.mxu0 %v6976
        %7309 = vmatpush2.bf16.msra.mxu0 %v6975
        %7310 = vmatprep.subr.bf16.mxu0 %v6969
        %7311 = vmatpush2.bf16.msra.mxu0 %v6968
        %7312 = vmatprep.subr.bf16.mxu0 %v6962
        %7313 = vmatpush2.bf16.msra.mxu0 %v6961
        %7314 = vmatprep.mubr.bf16.mxu0 %v5795
        %7315 = vmatmul.mubr.bf16.gmra.mxu0 %v5794
        %v7316 = vpop.f32.mrf.mxu0
        %v7317 = vadd.f32 %v7276, %v7316
        %v7318 = vpop.f32.mrf.mxu0
        %v7319 = vadd.f32 %v7278, %v7318
        %v7320 = vpop.f32.mrf.mxu0
        %v7321 = vpop.f32.mrf.mxu0
        %7322 = vdwg.mxu0
        %7323 = vmatprep.subr.bf16.mxu0 %v6845
        %7324 = vmatpush1.bf16.msra.mxu0 %v6844
        %7325 = vmatprep.subr.bf16.mxu0 %v6838
        %7326 = vmatpush1.bf16.msra.mxu0 %v6837
        %7327 = vmatprep.subr.bf16.mxu0 %v6831
        %7328 = vmatpush1.bf16.msra.mxu0 %v6830
        %7329 = vmatprep.subr.bf16.mxu0 %v6824
        %7330 = vmatpush1.bf16.msra.mxu0 %v6823
        %7331 = vmatprep.subr.bf16.mxu0 %v6817
        %7332 = vmatpush1.bf16.msra.mxu0 %v6816
        %7333 = vmatprep.subr.bf16.mxu0 %v6810
        %7334 = vmatpush1.bf16.msra.mxu0 %v6809
        %7335 = vmatprep.subr.bf16.mxu0 %v6803
        %7336 = vmatpush1.bf16.msra.mxu0 %v6802
        %7337 = vmatprep.subr.bf16.mxu0 %v6796
        %7338 = vmatpush1.bf16.msra.mxu0 %v6795
        %7339 = vmatprep.subr.bf16.mxu0 %v6901
        %7340 = vmatpush2.bf16.msra.mxu0 %v6900
        %7341 = vmatprep.subr.bf16.mxu0 %v6894
        %7342 = vmatpush2.bf16.msra.mxu0 %v6893
        %7343 = vmatprep.subr.bf16.mxu0 %v6887
        %7344 = vmatpush2.bf16.msra.mxu0 %v6886
        %7345 = vmatprep.subr.bf16.mxu0 %v6880
        %7346 = vmatpush2.bf16.msra.mxu0 %v6879
        %7347 = vmatprep.subr.bf16.mxu0 %v6873
        %7348 = vmatpush2.bf16.msra.mxu0 %v6872
        %7349 = vmatprep.subr.bf16.mxu0 %v6866
        %7350 = vmatpush2.bf16.msra.mxu0 %v6865
        %7351 = vmatprep.subr.bf16.mxu0 %v6859
        %7352 = vmatpush2.bf16.msra.mxu0 %v6858
        %7353 = vmatprep.subr.bf16.mxu0 %v6852
        %7354 = vmatpush2.bf16.msra.mxu0 %v6851
        %7355 = vmatprep.mubr.bf16.mxu0 %v5793
        %7356 = vmatmul.mubr.bf16.gmra.mxu0 %v5792
        %v7357 = vpop.f32.mrf.mxu0
        %v7358 = vadd.f32 %v6065, %v7357
        %v7359 = vpop.f32.mrf.mxu0
        %v7360 = vadd.f32 %v6069, %v7359
        %v7361 = vpop.f32.mrf.mxu0
        %v7362 = vpop.f32.mrf.mxu0
        %7363 = vdwg.mxu0
        %7364 = vmatprep.subr.bf16.mxu0 %v6957
        %7365 = vmatpush1.bf16.msra.mxu0 %v6956
        %7366 = vmatprep.subr.bf16.mxu0 %v6950
        %7367 = vmatpush1.bf16.msra.mxu0 %v6949
        %7368 = vmatprep.subr.bf16.mxu0 %v6943
        %7369 = vmatpush1.bf16.msra.mxu0 %v6942
        %7370 = vmatprep.subr.bf16.mxu0 %v6936
        %7371 = vmatpush1.bf16.msra.mxu0 %v6935
        %7372 = vmatprep.subr.bf16.mxu0 %v6929
        %7373 = vmatpush1.bf16.msra.mxu0 %v6928
        %7374 = vmatprep.subr.bf16.mxu0 %v6922
        %7375 = vmatpush1.bf16.msra.mxu0 %v6921
        %7376 = vmatprep.subr.bf16.mxu0 %v6915
        %7377 = vmatpush1.bf16.msra.mxu0 %v6914
        %7378 = vmatprep.subr.bf16.mxu0 %v6908
        %7379 = vmatpush1.bf16.msra.mxu0 %v6907
        %7380 = vmatprep.subr.bf16.mxu0 %v7013
        %7381 = vmatpush2.bf16.msra.mxu0 %v7012
        %7382 = vmatprep.subr.bf16.mxu0 %v7006
        %7383 = vmatpush2.bf16.msra.mxu0 %v7005
        %7384 = vmatprep.subr.bf16.mxu0 %v6999
        %7385 = vmatpush2.bf16.msra.mxu0 %v6998
        %7386 = vmatprep.subr.bf16.mxu0 %v6992
        %7387 = vmatpush2.bf16.msra.mxu0 %v6991
        %7388 = vmatprep.subr.bf16.mxu0 %v6985
        %7389 = vmatpush2.bf16.msra.mxu0 %v6984
        %7390 = vmatprep.subr.bf16.mxu0 %v6978
        %7391 = vmatpush2.bf16.msra.mxu0 %v6977
        %7392 = vmatprep.subr.bf16.mxu0 %v6971
        %7393 = vmatpush2.bf16.msra.mxu0 %v6970
        %7394 = vmatprep.subr.bf16.mxu0 %v6964
        %7395 = vmatpush2.bf16.msra.mxu0 %v6963
        %7396 = vmatprep.mubr.bf16.mxu0 %v5795
        %7397 = vmatmul.mubr.bf16.gmra.mxu0 %v5794
        %v7398 = vpop.f32.mrf.mxu0
        %v7399 = vadd.f32 %v7358, %v7398
        %v7400 = vpop.f32.mrf.mxu0
        %v7401 = vadd.f32 %v7360, %v7400
        %v7402 = vpop.f32.mrf.mxu0
        %v7403 = vpop.f32.mrf.mxu0
        %7404 = vdwg.mxu0
        %7405 = vmatprep.subr.bf16.mxu0 %v6847
        %7406 = vmatpush1.bf16.msra.mxu0 %v6846
        %7407 = vmatprep.subr.bf16.mxu0 %v6840
        %7408 = vmatpush1.bf16.msra.mxu0 %v6839
        %7409 = vmatprep.subr.bf16.mxu0 %v6833
        %7410 = vmatpush1.bf16.msra.mxu0 %v6832
        %7411 = vmatprep.subr.bf16.mxu0 %v6826
        %7412 = vmatpush1.bf16.msra.mxu0 %v6825
        %7413 = vmatprep.subr.bf16.mxu0 %v6819
        %7414 = vmatpush1.bf16.msra.mxu0 %v6818
        %7415 = vmatprep.subr.bf16.mxu0 %v6812
        %7416 = vmatpush1.bf16.msra.mxu0 %v6811
        %7417 = vmatprep.subr.bf16.mxu0 %v6805
        %7418 = vmatpush1.bf16.msra.mxu0 %v6804
        %7419 = vmatprep.subr.bf16.mxu0 %v6798
        %7420 = vmatpush1.bf16.msra.mxu0 %v6797
        %7421 = vmatprep.subr.bf16.mxu0 %v6903
        %7422 = vmatpush2.bf16.msra.mxu0 %v6902
        %7423 = vmatprep.subr.bf16.mxu0 %v6896
        %7424 = vmatpush2.bf16.msra.mxu0 %v6895
        %7425 = vmatprep.subr.bf16.mxu0 %v6889
        %7426 = vmatpush2.bf16.msra.mxu0 %v6888
        %7427 = vmatprep.subr.bf16.mxu0 %v6882
        %7428 = vmatpush2.bf16.msra.mxu0 %v6881
        %7429 = vmatprep.subr.bf16.mxu0 %v6875
        %7430 = vmatpush2.bf16.msra.mxu0 %v6874
        %7431 = vmatprep.subr.bf16.mxu0 %v6868
        %7432 = vmatpush2.bf16.msra.mxu0 %v6867
        %7433 = vmatprep.subr.bf16.mxu0 %v6861
        %7434 = vmatpush2.bf16.msra.mxu0 %v6860
        %7435 = vmatprep.subr.bf16.mxu0 %v6854
        %7436 = vmatpush2.bf16.msra.mxu0 %v6853
        %7437 = vmatprep.mubr.bf16.mxu0 %v5793
        %7438 = vmatmul.mubr.bf16.gmra.mxu0 %v5792
        %v7439 = vpop.f32.mrf.mxu0
        %v7440 = vadd.f32 %v6073, %v7439
        %v7441 = vpop.f32.mrf.mxu0
        %v7442 = vadd.f32 %v6077, %v7441
        %v7443 = vpop.f32.mrf.mxu0
        %v7444 = vpop.f32.mrf.mxu0
        %7445 = vdwg.mxu0
        %7446 = vmatprep.subr.bf16.mxu0 %v6959
        %7447 = vmatpush1.bf16.msra.mxu0 %v6958
        %7448 = vmatprep.subr.bf16.mxu0 %v6952
        %7449 = vmatpush1.bf16.msra.mxu0 %v6951
        %7450 = vmatprep.subr.bf16.mxu0 %v6945
        %7451 = vmatpush1.bf16.msra.mxu0 %v6944
        %7452 = vmatprep.subr.bf16.mxu0 %v6938
        %7453 = vmatpush1.bf16.msra.mxu0 %v6937
        %7454 = vmatprep.subr.bf16.mxu0 %v6931
        %7455 = vmatpush1.bf16.msra.mxu0 %v6930
        %7456 = vmatprep.subr.bf16.mxu0 %v6924
        %7457 = vmatpush1.bf16.msra.mxu0 %v6923
        %7458 = vmatprep.subr.bf16.mxu0 %v6917
        %7459 = vmatpush1.bf16.msra.mxu0 %v6916
        %7460 = vmatprep.subr.bf16.mxu0 %v6910
        %7461 = vmatpush1.bf16.msra.mxu0 %v6909
        %7462 = vmatprep.subr.bf16.mxu0 %v7015
        %7463 = vmatpush2.bf16.msra.mxu0 %v7014
        %7464 = vmatprep.subr.bf16.mxu0 %v7008
        %7465 = vmatpush2.bf16.msra.mxu0 %v7007
        %7466 = vmatprep.subr.bf16.mxu0 %v7001
        %7467 = vmatpush2.bf16.msra.mxu0 %v7000
        %7468 = vmatprep.subr.bf16.mxu0 %v6994
        %7469 = vmatpush2.bf16.msra.mxu0 %v6993
        %7470 = vmatprep.subr.bf16.mxu0 %v6987
        %7471 = vmatpush2.bf16.msra.mxu0 %v6986
        %7472 = vmatprep.subr.bf16.mxu0 %v6980
        %7473 = vmatpush2.bf16.msra.mxu0 %v6979
        %7474 = vmatprep.subr.bf16.mxu0 %v6973
        %7475 = vmatpush2.bf16.msra.mxu0 %v6972
        %7476 = vmatprep.subr.bf16.mxu0 %v6966
        %7477 = vmatpush2.bf16.msra.mxu0 %v6965
        %7478 = vmatprep.mubr.bf16.mxu0 %v5795
        %7479 = vmatmul.mubr.bf16.gmra.mxu0 %v5794
        %v7480 = vpop.f32.mrf.mxu0
        %v7481 = vadd.f32 %v7440, %v7480
        %v7482 = vpop.f32.mrf.mxu0
        %v7483 = vadd.f32 %v7442, %v7482
        %v7484 = vpop.f32.mrf.mxu0
        %v7485 = vpop.f32.mrf.mxu0
        %7486 = vdwg.mxu0
        %7487 = vmatprep.subr.bf16.mxu0 0
        %7488 = vmatpush1.bf16.msra.mxu0 %v6848
        %7489 = vmatprep.subr.bf16.mxu0 0
        %7490 = vmatpush1.bf16.msra.mxu0 %v6841
        %7491 = vmatprep.subr.bf16.mxu0 0
        %7492 = vmatpush1.bf16.msra.mxu0 %v6834
        %7493 = vmatprep.subr.bf16.mxu0 0
        %7494 = vmatpush1.bf16.msra.mxu0 %v6827
        %7495 = vmatprep.subr.bf16.mxu0 0
        %7496 = vmatpush1.bf16.msra.mxu0 %v6820
        %7497 = vmatprep.subr.bf16.mxu0 0
        %7498 = vmatpush1.bf16.msra.mxu0 %v6813
        %7499 = vmatprep.subr.bf16.mxu0 0
        %7500 = vmatpush1.bf16.msra.mxu0 %v6806
        %7501 = vmatprep.subr.bf16.mxu0 0
        %7502 = vmatpush1.bf16.msra.mxu0 %v6799
        %7503 = vmatprep.subr.bf16.mxu0 0
        %7504 = vmatpush2.bf16.msra.mxu0 %v6904
        %7505 = vmatprep.subr.bf16.mxu0 0
        %7506 = vmatpush2.bf16.msra.mxu0 %v6897
        %7507 = vmatprep.subr.bf16.mxu0 0
        %7508 = vmatpush2.bf16.msra.mxu0 %v6890
        %7509 = vmatprep.subr.bf16.mxu0 0
        %7510 = vmatpush2.bf16.msra.mxu0 %v6883
        %7511 = vmatprep.subr.bf16.mxu0 0
        %7512 = vmatpush2.bf16.msra.mxu0 %v6876
        %7513 = vmatprep.subr.bf16.mxu0 0
        %7514 = vmatpush2.bf16.msra.mxu0 %v6869
        %7515 = vmatprep.subr.bf16.mxu0 0
        %7516 = vmatpush2.bf16.msra.mxu0 %v6862
        %7517 = vmatprep.subr.bf16.mxu0 0
        %7518 = vmatpush2.bf16.msra.mxu0 %v6855
        %7519 = vmatprep.mubr.bf16.mxu0 %v5793
        %7520 = vmatmul.mubr.bf16.gmra.mxu0 %v5792
        %v7521 = vpop.f32.mrf.mxu0
        %v7522 = vadd.f32 %v6081, %v7521
        %v7523 = vpop.f32.mrf.mxu0
        %v7524 = vpop.f32.mrf.mxu0
        %v7525 = vpop.f32.mrf.mxu0
        %7526 = vdwg.mxu0
        %7527 = vmatprep.subr.bf16.mxu0 0
        %7528 = vmatpush1.bf16.msra.mxu0 %v6960
        %7529 = vmatprep.subr.bf16.mxu0 0
        %7530 = vmatpush1.bf16.msra.mxu0 %v6953
        %7531 = vmatprep.subr.bf16.mxu0 0
        %7532 = vmatpush1.bf16.msra.mxu0 %v6946
        %7533 = vmatprep.subr.bf16.mxu0 0
        %7534 = vmatpush1.bf16.msra.mxu0 %v6939
        %7535 = vmatprep.subr.bf16.mxu0 0
        %7536 = vmatpush1.bf16.msra.mxu0 %v6932
        %7537 = vmatprep.subr.bf16.mxu0 0
        %7538 = vmatpush1.bf16.msra.mxu0 %v6925
        %7539 = vmatprep.subr.bf16.mxu0 0
        %7540 = vmatpush1.bf16.msra.mxu0 %v6918
        %7541 = vmatprep.subr.bf16.mxu0 0
        %7542 = vmatpush1.bf16.msra.mxu0 %v6911
        %7543 = vmatprep.subr.bf16.mxu0 0
        %7544 = vmatpush2.bf16.msra.mxu0 %v7016
        %7545 = vmatprep.subr.bf16.mxu0 0
        %7546 = vmatpush2.bf16.msra.mxu0 %v7009
        %7547 = vmatprep.subr.bf16.mxu0 0
        %7548 = vmatpush2.bf16.msra.mxu0 %v7002
        %7549 = vmatprep.subr.bf16.mxu0 0
        %7550 = vmatpush2.bf16.msra.mxu0 %v6995
        %7551 = vmatprep.subr.bf16.mxu0 0
        %7552 = vmatpush2.bf16.msra.mxu0 %v6988
        %7553 = vmatprep.subr.bf16.mxu0 0
        %7554 = vmatpush2.bf16.msra.mxu0 %v6981
        %7555 = vmatprep.subr.bf16.mxu0 0
        %7556 = vmatpush2.bf16.msra.mxu0 %v6974
        %7557 = vmatprep.subr.bf16.mxu0 0
        %7558 = vmatpush2.bf16.msra.mxu0 %v6967
        %7559 = vmatprep.mubr.bf16.mxu0 %v5795
        %7560 = vmatmul.mubr.bf16.gmra.mxu0 %v5794
        %v7561 = vpop.f32.mrf.mxu0
        %v7562 = vadd.f32 %v7522, %v7561
        %v7563 = vpop.f32.mrf.mxu0
        %v7564 = vpop.f32.mrf.mxu0
        %v7565 = vpop.f32.mrf.mxu0
        %7566 = vdwg.mxu0
        %v7567 = vmul.f32 %v7317, 0.5
        %v7568 = vmul.f32 %v7319, 0.5
        %v7569 = vmul.f32 %v7399, 0.5
        %v7570 = vmul.f32 %v7401, 0.5
        %v7571 = vmul.f32 %v7481, 0.5
        %v7572 = vmul.f32 %v7483, 0.5
        %v7573 = vmul.f32 %v7562, 0.5
        %v7574 = vtanh.pop %v7567
        %v7575 = vtanh.pop %v7568
        %v7576 = vtanh.pop %v7569
        %v7577 = vtanh.pop %v7570
        %v7578 = vtanh.pop %v7571
        %v7579 = vtanh.pop %v7572
        %v7580 = vtanh.pop %v7573
        %v7581 = vmul.f32 %v7574, 0.5
        %v7582 = vmul.f32 %v7575, 0.5
        %v7583 = vmul.f32 %v7576, 0.5
        %v7584 = vmul.f32 %v7577, 0.5
        %v7585 = vmul.f32 %v7578, 0.5
        %v7586 = vmul.f32 %v7579, 0.5
        %v7587 = vmul.f32 %v7580, 0.5
        %v7588 = vadd.f32 %v7581, 0.5
        %v7589 = vadd.f32 %v7582, 0.5
        %v7590 = vadd.f32 %v7583, 0.5
        %v7591 = vadd.f32 %v7584, 0.5
        %v7592 = vadd.f32 %v7585, 0.5
        %v7593 = vadd.f32 %v7586, 0.5
        %v7594 = vadd.f32 %v7587, 0.5
        %v7595 = vpack.c.bf16 %v7588, %v7588
        %v7596 = vpack.c.bf16 %v7589, %v7589
        %v7597 = vpack.c.bf16 %v7590, %v7590
        %v7598 = vpack.c.bf16 %v7591, %v7591
        %v7599 = vpack.c.bf16 %v7592, %v7592
        %v7600 = vpack.c.bf16 %v7593, %v7593
        %v7601 = vpack.c.bf16 %v7594, %v7594
        %v7609 = vunpack.c.l.b16 %v7595
        %v7610 = vunpack.c.l.b16 %v7596
        %v7611 = vunpack.c.l.b16 %v7597
        %v7612 = vunpack.c.l.b16 %v7598
        %v7613 = vunpack.c.l.b16 %v7599
        %v7614 = vunpack.c.l.b16 %v7600
        %v7615 = vunpack.c.l.b16 %v7601
        %v7616 = vpack.c.b16 %v7610, %v7609
        %v7617 = vpack.c.b16 %v7612, %v7611
        %v7618 = vpack.c.b16 %v7614, %v7613
        %v7619 = vpack.c.b16 %v7615, %v7615
        %7624 = vst [vmem:[%s744] sm:$0xff] %v7616
        %7625 = vst [vmem:[%s744 + $0x8] sm:$0xff] %v7617
        %7626 = vst [vmem:[%s744 + $0x10] sm:$0xff] %v7618
        %7627 = vst [vmem:[%s744 + $0x18] sm:$0xf] %v7619
        %s7628 = sand.u32 %s400, 1
        %s7629 = scalar_lea.sflag [#allocation4], %s7628
        %s7630 = sand.u32 %s400, 1
        %s7631 = smul.addr %s7630, 28
        %s7632 = scalar_lea.vmem [#allocation22], %s7631
        %s7633 = sand.u32 %s426, 1
        %s7634 = scalar_lea.sflag [#allocation24], %s7633
        %s7635 = sand.u32 %s426, 1
        %s7636 = smul.addr %s7635, 16
        %s7637 = scalar_lea.vmem [#allocation23], %s7636
        // Predicated region
        $region133: #{tpu_custom_call.1} parent=83 // pred_check
          %p7638 = pneg %p410
        $region134: #{tpu_custom_call.1} parent=83 // pred_check_branch
          %7640 = sbr.rel (%p7638) target = $region136
        $region135: #{tpu_custom_call.1} parent=83 // pred_region
          %s7642 = ssub.s32 448, 448
          %7643 = vsyncadd %s7629, %s7642
          %s7644 = smul.addr %s46, 7
          %s7645 = smul.addr %s7644, 64
          %s7646 = scalar_lea.hbm %s16, %s7645
          %s7648 = sshll.u32 %s7632, 4
          %s7649 = int_to_ptr.vmem [resolvable:$true] %s7648
          %7651 = dma.vmem_to_hbm [thread:$0]  %s7649, 448, %s7646, %s7629
        $region136: #{tpu_custom_call.1} parent=83 // pred_fallthru
          _
        // Predicated region
        $region137: #{tpu_custom_call.1} parent=83 // pred_check
          %p7652 = pneg %p436
        $region138: #{tpu_custom_call.1} parent=83 // pred_check_branch
          %7654 = sbr.rel (%p7652) target = $region140
        $region139: #{tpu_custom_call.1} parent=83 // pred_region
          %s7656 = ssub.s32 256, 256
          %7657 = vsyncadd %s7634, %s7656
          %s7658 = smul.addr %s46, 2
          %s7659 = smul.addr %s7658, 128
          %s7660 = scalar_lea.hbm %s17, %s7659
          %s7662 = sshll.u32 %s7637, 4
          %s7663 = int_to_ptr.vmem [resolvable:$true] %s7662
          %7665 = dma.vmem_to_hbm [thread:$0]  %s7663, 256, %s7660, %s7634
        $region140: #{tpu_custom_call.1} parent=83 // pred_fallthru
          _
      $region84: #{tpu_custom_call.1} parent=5 // pred_fallthru
        _
      %p7666 = scmp.le.s32.totalorder 2, %s41
      // Predicated region
      $region141: #{tpu_custom_call.1} parent=5 // pred_check
        %p7667 = pneg %p7666
      $region142: #{tpu_custom_call.1} parent=5 // pred_check_branch
        %7669 = sbr.rel (%p7667) target = $region144
      $region143: #{tpu_custom_call.1} parent=5 // pred_region
        %s7670 = ssub.s32 %s41, 2
        // Predicated region
        $region145: #{tpu_custom_call.1} parent=143 // pred_check
          %p7671 = pneg %p416
        $region146: #{tpu_custom_call.1} parent=143 // pred_check_branch
          %7673 = sbr.rel (%p7671) target = $region148
        $region147: #{tpu_custom_call.1} parent=143 // pred_region
          %s7674 = sand.u32 %s401, 1
          %s7675 = scalar_lea.sflag [#allocation4], %s7674
          %s7676 = sand.u32 %s401, 1
          %s7677 = smul.addr %s7676, 28
          %s7678 = scalar_lea.vmem [#allocation22], %s7677
          %7679 = dma.done %s7675, 448
        $region148: #{tpu_custom_call.1} parent=143 // pred_fallthru
          _
        // Predicated region
        $region149: #{tpu_custom_call.1} parent=143 // pred_check
          %p7680 = pneg %p442
        $region150: #{tpu_custom_call.1} parent=143 // pred_check_branch
          %7682 = sbr.rel (%p7680) target = $region152
        $region151: #{tpu_custom_call.1} parent=143 // pred_region
          %s7683 = sand.u32 %s427, 1
          %s7684 = scalar_lea.sflag [#allocation24], %s7683
          %s7685 = sand.u32 %s427, 1
          %s7686 = smul.addr %s7685, 16
          %s7687 = scalar_lea.vmem [#allocation23], %s7686
          %7688 = dma.done %s7684, 256
        $region152: #{tpu_custom_call.1} parent=143 // pred_fallthru
          _
      $region144: #{tpu_custom_call.1} parent=5 // pred_fallthru
        _
    $region6: #{tpu_custom_call.1} parent=1 // loop_footer
      %s45 = sadd.s32 1, %s41
    $region7: #{tpu_custom_call.1} parent=1 // loop_footer_branch
      %40 = sbr.rel target = $region3
    $region8: #{tpu_custom_call.1} parent=1 // loop_exit
      _
    %7689 = vsyncpa [#allocation3], 1
    %s7690 = scalar_lea.sflag [#allocation3], 1
    %7691 = vsyncpa %s7690, 1
    %7692 = vsyncpa [#allocation6], 1
    %s7693 = scalar_lea.sflag [#allocation6], 1
    %7694 = vsyncpa %s7693, 1
    %7695 = vsyncpa [#allocation9], 1
    %7696 = vsyncpa [#allocation12], 1
    %7697 = vsyncpa [#allocation15], 1
    %7698 = vsyncpa [#allocation18], 1
    %7699 = vsyncpa [#allocation21], 1
    %7700 = vsyncpa [#allocation4], 1
    %s7701 = scalar_lea.sflag [#allocation4], 1
    %7702 = vsyncpa %s7701, 1
    %7703 = vsyncpa [#allocation24], 1
    %s7704 = scalar_lea.sflag [#allocation24], 1
    %7705 = vsyncpa %s7704, 1

</llo_original>
